<compile_context>
chip_gen: v5e
topology: v5e:2x2
jax: 0.10.0
libtpu: 0.0.40
codegen_flags: <defaults>
</compile_context>

<pallas_src>
import functools

import jax
import jax.numpy as jnp
from jax import lax
from jax.experimental import pallas as pl
from jax.experimental.pallas import tpu as pltpu


def _clip_embed_kernel(tok_ref, emb_hbm, pos_ref, out_ref, gbuf, sems, *, tt, t_pad):
    # tok_ref : SMEM (B*T_pad,) int32      -- scalar-prefetched token ids
    # emb_hbm : HBM  (V, D)                -- raw ref (memory_space=pl.ANY)
    # pos_ref : VMEM (T_pad, D)            -- resident position table
    # out_ref : VMEM (1, tt, D)            -- current output tile
    # gbuf    : VMEM (2, tt, D)            -- double-buffered gather scratch
    # sems    : DMA semaphores, shape (2,) -- one per buffer slot
    b = pl.program_id(0)
    t = pl.program_id(1)
    nt = pl.num_programs(1)

    def issue_tile(t_idx, slot):
        base = b * t_pad + t_idx * tt
        for r in range(tt):
            tok_id = tok_ref[base + r]
            pltpu.make_async_copy(
                emb_hbm.at[pl.ds(tok_id, 1), :],
                gbuf.at[slot, pl.ds(r, 1), :],
                sems.at[slot],
            ).start()

    slot = lax.rem(t, 2)

    # Prime the pipeline at the start of each batch row.
    @pl.when(t == 0)
    def _():
        issue_tile(0, 0)

    # Prefetch the next token tile of this row while processing the current one.
    @pl.when(t + 1 < nt)
    def _():
        issue_tile(t + 1, 1 - slot)

    # Wait for all row DMAs of the current tile.
    for r in range(tt):
        pltpu.make_async_copy(
            emb_hbm.at[pl.ds(0, 1), :],
            gbuf.at[slot, pl.ds(r, 1), :],
            sems.at[slot],
        ).wait()

    start = pl.multiple_of(t * tt, tt)
    out_ref[0] = (gbuf[slot] + pos_ref[pl.ds(start, tt), :]).astype(out_ref.dtype)


def clip_embedding(tokens: jax.Array, emb_table: jax.Array, pos_emb: jax.Array) -> jax.Array:
    """tokens: (B, T) int; emb_table: (V, D); pos_emb: (T, D) -> (B, T, D)."""
    B, T = tokens.shape
    V, D = emb_table.shape
    assert pos_emb.shape == (T, D)

    # Token-tile size: multiple of 8 (sublane-dense stores), 64 when T allows.
    TT = 64 if T >= 64 else pl.cdiv(T, 8) * 8
    T_pad = pl.cdiv(T, TT) * TT
    NT = T_pad // TT

    # Clamp ids (the gather has no runtime bounds check) and pad the token axis
    # to a whole number of tiles; flatten to 1-D so the SMEM prefetch table does
    # not pad each row to 128 columns.
    tok = jnp.clip(tokens.astype(jnp.int32), 0, V - 1)
    pos = pos_emb
    if T_pad != T:
        tok = jnp.pad(tok, ((0, 0), (0, T_pad - T)))
        pos = jnp.pad(pos_emb, ((0, T_pad - T), (0, 0)))
    tok_flat = tok.reshape(B * T_pad)

    kernel = functools.partial(_clip_embed_kernel, tt=TT, t_pad=T_pad)

    grid_spec = pltpu.PrefetchScalarGridSpec(
        num_scalar_prefetch=1,                     # token ids -> SMEM
        grid=(B, NT),
        in_specs=[
            pl.BlockSpec(memory_space=pl.ANY),                   # emb table stays in HBM
            pl.BlockSpec((T_pad, D), lambda b, t, tok: (0, 0)),  # pos resident in VMEM
        ],
        out_specs=pl.BlockSpec((1, TT, D), lambda b, t, tok: (b, t, 0)),
        scratch_shapes=[
            pltpu.VMEM((2, TT, D), emb_table.dtype),             # double-buffered gather
            pltpu.SemaphoreType.DMA((2,)),                       # one sem per slot
        ],
    )

    out = pl.pallas_call(
        kernel,
        out_shape=jax.ShapeDtypeStruct((B, T_pad, D), emb_table.dtype),
        grid_spec=grid_spec,
        compiler_params=pltpu.CompilerParams(
            dimension_semantics=("parallel", "arbitrary"),
        ),
    )(tok_flat, emb_table, pos)

    return out[:, :T, :]


if __name__ == "__main__":
    # Module hyperparameters (small, CLIP-flavoured: 77-token context).
    vocab_size = 128
    embed_size = 128
    n_tokens = 77
    batch = 2

    key = jax.random.PRNGKey(0)
    k_tok, k_emb, k_pos = jax.random.split(key, 3)

    tokens = jax.random.randint(k_tok, (batch, n_tokens), 0, vocab_size, dtype=jnp.int32)
    # nn.Embedding default init ~ N(0, 1)
    emb_table = jax.random.normal(k_emb, (vocab_size, embed_size), dtype=jnp.float32)
    # Module inits position_embedding to zeros; use random values so the add
    # path is actually exercised (deterministic, in-script).
    pos_emb = 0.02 * jax.random.normal(k_pos, (n_tokens, embed_size), dtype=jnp.float32)

    out = jax.block_until_ready(clip_embedding(tokens, emb_table, pos_emb))

    # Pure-JAX reference: x = embedding(tokens); x += position_embedding
    ref = emb_table[tokens] + pos_emb[None, :, :]
    assert out.shape == (batch, n_tokens, embed_size)
    assert jnp.allclose(out, ref, atol=1e-6, rtol=1e-6)

    print("KERNEL_OK")
</pallas_src>

<mosaic_0001>
module attributes {stable_mosaic.version = 11 : i64} {
  func.func @_clip_embed_kernel(%arg0: i32, %arg1: i32, %arg2: memref<256xi32, #tpu.memory_space<smem>>, %arg3: memref<128x128xf32, #tpu.memory_space<any>>, %arg4: memref<128x128xf32, #tpu.memory_space<vmem>>, %arg5: memref<1x64x128xf32, #tpu.memory_space<vmem>>, %arg6: memref<2x64x128xf32, #tpu.memory_space<vmem>>, %arg7: memref<2x!tpu.dma_semaphore, #tpu.memory_space<semaphore_mem>>) attributes {dimension_semantics = [#tpu.dimension_semantics<parallel>, #tpu.dimension_semantics<arbitrary>], iteration_bounds = array<i64: 2, 2>, scalar_prefetch = 1 : i64, scratch_operands = 2 : i64, tpu.core_type = #tpu.core_type<tc>, window_params = [{}, {pipeline_mode = #tpu.pipeline_mode<synchronous>, transform_indices = @transform_1, window_bounds = array<i64: 128, 128>}, {transform_indices = @transform_2, window_bounds = array<i64: 1, 64, 128>}]} {
    %c2_i32 = arith.constant 2 : i32
    %0 = arith.remsi %arg1, %c2_i32 : i32
    %c0_i32 = arith.constant 0 : i32
    %1 = arith.cmpi eq, %arg1, %c0_i32 : i32
    %2 = arith.extui %1 : i1 to i32
    %c0_i32_0 = arith.constant 0 : i32
    %3 = arith.cmpi ne, %2, %c0_i32_0 : i32
    scf.if %3 {
      %c128_i32 = arith.constant 128 : i32
      %339 = arith.muli %arg0, %c128_i32 : i32
      %c0_i32_203 = arith.constant 0 : i32
      %340 = arith.addi %339, %c0_i32_203 : i32
      %c0_i32_204 = arith.constant 0 : i32
      %341 = arith.addi %340, %c0_i32_204 : i32
      %342 = arith.index_cast %341 : i32 to index
      %343 = memref.load %arg2[%342] : memref<256xi32, #tpu.memory_space<smem>>
      %c0_i32_205 = arith.constant 0 : i32
      %c0_i32_206 = arith.constant 0 : i32
      %c0_i32_207 = arith.constant 0 : i32
      %344 = tpu.memref_slice %arg3[%343, %c0_i32_207] : memref<128x128xf32, #tpu.memory_space<any>> -> memref<1x128xf32, #tpu.memory_space<any>>
      %c0_i32_208 = arith.constant 0 : i32
      %c0_i32_209 = arith.constant 0 : i32
      %345 = tpu.memref_slice %arg6[%c0_i32_205, %c0_i32_208, %c0_i32_209] : memref<2x64x128xf32, #tpu.memory_space<vmem>> -> memref<1x1x128xf32, #tpu.memory_space<vmem>>
      %346 = tpu.memref_squeeze %345 : memref<1x1x128xf32, #tpu.memory_space<vmem>> -> memref<1x128xf32, #tpu.memory_space<vmem>>
      %347 = tpu.memref_slice %arg7[%c0_i32_206] : memref<2x!tpu.dma_semaphore, #tpu.memory_space<semaphore_mem>> -> memref<1x!tpu.dma_semaphore, #tpu.memory_space<semaphore_mem>>
      %348 = tpu.memref_squeeze %347 : memref<1x!tpu.dma_semaphore, #tpu.memory_space<semaphore_mem>> -> memref<!tpu.dma_semaphore, #tpu.memory_space<semaphore_mem>>
      tpu.enqueue_dma source(%344 : memref<1x128xf32, #tpu.memory_space<any>>) target(%346 : memref<1x128xf32, #tpu.memory_space<vmem>>) target_semaphore(%348 : memref<!tpu.dma_semaphore, #tpu.memory_space<semaphore_mem>>)
      %c1_i32_210 = arith.constant 1 : i32
      %349 = arith.addi %340, %c1_i32_210 : i32
      %350 = arith.index_cast %349 : i32 to index
      %351 = memref.load %arg2[%350] : memref<256xi32, #tpu.memory_space<smem>>
      %c0_i32_211 = arith.constant 0 : i32
      %c0_i32_212 = arith.constant 0 : i32
      %c0_i32_213 = arith.constant 0 : i32
      %352 = tpu.memref_slice %arg3[%351, %c0_i32_213] : memref<128x128xf32, #tpu.memory_space<any>> -> memref<1x128xf32, #tpu.memory_space<any>>
      %c1_i32_214 = arith.constant 1 : i32
      %c0_i32_215 = arith.constant 0 : i32
      %353 = tpu.memref_slice %arg6[%c0_i32_211, %c1_i32_214, %c0_i32_215] : memref<2x64x128xf32, #tpu.memory_space<vmem>> -> memref<1x1x128xf32, #tpu.memory_space<vmem>>
      %354 = tpu.memref_squeeze %353 : memref<1x1x128xf32, #tpu.memory_space<vmem>> -> memref<1x128xf32, #tpu.memory_space<vmem>>
      %355 = tpu.memref_slice %arg7[%c0_i32_212] : memref<2x!tpu.dma_semaphore, #tpu.memory_space<semaphore_mem>> -> memref<1x!tpu.dma_semaphore, #tpu.memory_space<semaphore_mem>>
      %356 = tpu.memref_squeeze %355 : memref<1x!tpu.dma_semaphore, #tpu.memory_space<semaphore_mem>> -> memref<!tpu.dma_semaphore, #tpu.memory_space<semaphore_mem>>
      tpu.enqueue_dma source(%352 : memref<1x128xf32, #tpu.memory_space<any>>) target(%354 : memref<1x128xf32, #tpu.memory_space<vmem>>) target_semaphore(%356 : memref<!tpu.dma_semaphore, #tpu.memory_space<semaphore_mem>>)
      %c2_i32_216 = arith.constant 2 : i32
      %357 = arith.addi %340, %c2_i32_216 : i32
      %358 = arith.index_cast %357 : i32 to index
      %359 = memref.load %arg2[%358] : memref<256xi32, #tpu.memory_space<smem>>
      %c0_i32_217 = arith.constant 0 : i32
      %c0_i32_218 = arith.constant 0 : i32
      %c0_i32_219 = arith.constant 0 : i32
      %360 = tpu.memref_slice %arg3[%359, %c0_i32_219] : memref<128x128xf32, #tpu.memory_space<any>> -> memref<1x128xf32, #tpu.memory_space<any>>
      %c2_i32_220 = arith.constant 2 : i32
      %c0_i32_221 = arith.constant 0 : i32
      %361 = tpu.memref_slice %arg6[%c0_i32_217, %c2_i32_220, %c0_i32_221] : memref<2x64x128xf32, #tpu.memory_space<vmem>> -> memref<1x1x128xf32, #tpu.memory_space<vmem>>
      %362 = tpu.memref_squeeze %361 : memref<1x1x128xf32, #tpu.memory_space<vmem>> -> memref<1x128xf32, #tpu.memory_space<vmem>>
      %363 = tpu.memref_slice %arg7[%c0_i32_218] : memref<2x!tpu.dma_semaphore, #tpu.memory_space<semaphore_mem>> -> memref<1x!tpu.dma_semaphore, #tpu.memory_space<semaphore_mem>>
      %364 = tpu.memref_squeeze %363 : memref<1x!tpu.dma_semaphore, #tpu.memory_space<semaphore_mem>> -> memref<!tpu.dma_semaphore, #tpu.memory_space<semaphore_mem>>
      tpu.enqueue_dma source(%360 : memref<1x128xf32, #tpu.memory_space<any>>) target(%362 : memref<1x128xf32, #tpu.memory_space<vmem>>) target_semaphore(%364 : memref<!tpu.dma_semaphore, #tpu.memory_space<semaphore_mem>>)
      %c3_i32_222 = arith.constant 3 : i32
      %365 = arith.addi %340, %c3_i32_222 : i32
      %366 = arith.index_cast %365 : i32 to index
      %367 = memref.load %arg2[%366] : memref<256xi32, #tpu.memory_space<smem>>
      %c0_i32_223 = arith.constant 0 : i32
      %c0_i32_224 = arith.constant 0 : i32
      %c0_i32_225 = arith.constant 0 : i32
      %368 = tpu.memref_slice %arg3[%367, %c0_i32_225] : memref<128x128xf32, #tpu.memory_space<any>> -> memref<1x128xf32, #tpu.memory_space<any>>
      %c3_i32_226 = arith.constant 3 : i32
      %c0_i32_227 = arith.constant 0 : i32
      %369 = tpu.memref_slice %arg6[%c0_i32_223, %c3_i32_226, %c0_i32_227] : memref<2x64x128xf32, #tpu.memory_space<vmem>> -> memref<1x1x128xf32, #tpu.memory_space<vmem>>
      %370 = tpu.memref_squeeze %369 : memref<1x1x128xf32, #tpu.memory_space<vmem>> -> memref<1x128xf32, #tpu.memory_space<vmem>>
      %371 = tpu.memref_slice %arg7[%c0_i32_224] : memref<2x!tpu.dma_semaphore, #tpu.memory_space<semaphore_mem>> -> memref<1x!tpu.dma_semaphore, #tpu.memory_space<semaphore_mem>>
      %372 = tpu.memref_squeeze %371 : memref<1x!tpu.dma_semaphore, #tpu.memory_space<semaphore_mem>> -> memref<!tpu.dma_semaphore, #tpu.memory_space<semaphore_mem>>
      tpu.enqueue_dma source(%368 : memref<1x128xf32, #tpu.memory_space<any>>) target(%370 : memref<1x128xf32, #tpu.memory_space<vmem>>) target_semaphore(%372 : memref<!tpu.dma_semaphore, #tpu.memory_space<semaphore_mem>>)
      %c4_i32_228 = arith.constant 4 : i32
      %373 = arith.addi %340, %c4_i32_228 : i32
      %374 = arith.index_cast %373 : i32 to index
      %375 = memref.load %arg2[%374] : memref<256xi32, #tpu.memory_space<smem>>
      %c0_i32_229 = arith.constant 0 : i32
      %c0_i32_230 = arith.constant 0 : i32
      %c0_i32_231 = arith.constant 0 : i32
      %376 = tpu.memref_slice %arg3[%375, %c0_i32_231] : memref<128x128xf32, #tpu.memory_space<any>> -> memref<1x128xf32, #tpu.memory_space<any>>
      %c4_i32_232 = arith.constant 4 : i32
      %c0_i32_233 = arith.constant 0 : i32
      %377 = tpu.memref_slice %arg6[%c0_i32_229, %c4_i32_232, %c0_i32_233] : memref<2x64x128xf32, #tpu.memory_space<vmem>> -> memref<1x1x128xf32, #tpu.memory_space<vmem>>
      %378 = tpu.memref_squeeze %377 : memref<1x1x128xf32, #tpu.memory_space<vmem>> -> memref<1x128xf32, #tpu.memory_space<vmem>>
      %379 = tpu.memref_slice %arg7[%c0_i32_230] : memref<2x!tpu.dma_semaphore, #tpu.memory_space<semaphore_mem>> -> memref<1x!tpu.dma_semaphore, #tpu.memory_space<semaphore_mem>>
      %380 = tpu.memref_squeeze %379 : memref<1x!tpu.dma_semaphore, #tpu.memory_space<semaphore_mem>> -> memref<!tpu.dma_semaphore, #tpu.memory_space<semaphore_mem>>
      tpu.enqueue_dma source(%376 : memref<1x128xf32, #tpu.memory_space<any>>) target(%378 : memref<1x128xf32, #tpu.memory_space<vmem>>) target_semaphore(%380 : memref<!tpu.dma_semaphore, #tpu.memory_space<semaphore_mem>>)
      %c5_i32_234 = arith.constant 5 : i32
      %381 = arith.addi %340, %c5_i32_234 : i32
      %382 = arith.index_cast %381 : i32 to index
      %383 = memref.load %arg2[%382] : memref<256xi32, #tpu.memory_space<smem>>
      %c0_i32_235 = arith.constant 0 : i32
      %c0_i32_236 = arith.constant 0 : i32
      %c0_i32_237 = arith.constant 0 : i32
      %384 = tpu.memref_slice %arg3[%383, %c0_i32_237] : memref<128x128xf32, #tpu.memory_space<any>> -> memref<1x128xf32, #tpu.memory_space<any>>
      %c5_i32_238 = arith.constant 5 : i32
      %c0_i32_239 = arith.constant 0 : i32
      %385 = tpu.memref_slice %arg6[%c0_i32_235, %c5_i32_238, %c0_i32_239] : memref<2x64x128xf32, #tpu.memory_space<vmem>> -> memref<1x1x128xf32, #tpu.memory_space<vmem>>
      %386 = tpu.memref_squeeze %385 : memref<1x1x128xf32, #tpu.memory_space<vmem>> -> memref<1x128xf32, #tpu.memory_space<vmem>>
      %387 = tpu.memref_slice %arg7[%c0_i32_236] : memref<2x!tpu.dma_semaphore, #tpu.memory_space<semaphore_mem>> -> memref<1x!tpu.dma_semaphore, #tpu.memory_space<semaphore_mem>>
      %388 = tpu.memref_squeeze %387 : memref<1x!tpu.dma_semaphore, #tpu.memory_space<semaphore_mem>> -> memref<!tpu.dma_semaphore, #tpu.memory_space<semaphore_mem>>
      tpu.enqueue_dma source(%384 : memref<1x128xf32, #tpu.memory_space<any>>) target(%386 : memref<1x128xf32, #tpu.memory_space<vmem>>) target_semaphore(%388 : memref<!tpu.dma_semaphore, #tpu.memory_space<semaphore_mem>>)
      %c6_i32_240 = arith.constant 6 : i32
      %389 = arith.addi %340, %c6_i32_240 : i32
      %390 = arith.index_cast %389 : i32 to index
      %391 = memref.load %arg2[%390] : memref<256xi32, #tpu.memory_space<smem>>
      %c0_i32_241 = arith.constant 0 : i32
      %c0_i32_242 = arith.constant 0 : i32
      %c0_i32_243 = arith.constant 0 : i32
      %392 = tpu.memref_slice %arg3[%391, %c0_i32_243] : memref<128x128xf32, #tpu.memory_space<any>> -> memref<1x128xf32, #tpu.memory_space<any>>
      %c6_i32_244 = arith.constant 6 : i32
      %c0_i32_245 = arith.constant 0 : i32
      %393 = tpu.memref_slice %arg6[%c0_i32_241, %c6_i32_244, %c0_i32_245] : memref<2x64x128xf32, #tpu.memory_space<vmem>> -> memref<1x1x128xf32, #tpu.memory_space<vmem>>
      %394 = tpu.memref_squeeze %393 : memref<1x1x128xf32, #tpu.memory_space<vmem>> -> memref<1x128xf32, #tpu.memory_space<vmem>>
      %395 = tpu.memref_slice %arg7[%c0_i32_242] : memref<2x!tpu.dma_semaphore, #tpu.memory_space<semaphore_mem>> -> memref<1x!tpu.dma_semaphore, #tpu.memory_space<semaphore_mem>>
      %396 = tpu.memref_squeeze %395 : memref<1x!tpu.dma_semaphore, #tpu.memory_space<semaphore_mem>> -> memref<!tpu.dma_semaphore, #tpu.memory_space<semaphore_mem>>
      tpu.enqueue_dma source(%392 : memref<1x128xf32, #tpu.memory_space<any>>) target(%394 : memref<1x128xf32, #tpu.memory_space<vmem>>) target_semaphore(%396 : memref<!tpu.dma_semaphore, #tpu.memory_space<semaphore_mem>>)
      %c7_i32_246 = arith.constant 7 : i32
      %397 = arith.addi %340, %c7_i32_246 : i32
      %398 = arith.index_cast %397 : i32 to index
      %399 = memref.load %arg2[%398] : memref<256xi32, #tpu.memory_space<smem>>
      %c0_i32_247 = arith.constant 0 : i32
      %c0_i32_248 = arith.constant 0 : i32
      %c0_i32_249 = arith.constant 0 : i32
      %400 = tpu.memref_slice %arg3[%399, %c0_i32_249] : memref<128x128xf32, #tpu.memory_space<any>> -> memref<1x128xf32, #tpu.memory_space<any>>
      %c7_i32_250 = arith.constant 7 : i32
      %c0_i32_251 = arith.constant 0 : i32
      %401 = tpu.memref_slice %arg6[%c0_i32_247, %c7_i32_250, %c0_i32_251] : memref<2x64x128xf32, #tpu.memory_space<vmem>> -> memref<1x1x128xf32, #tpu.memory_space<vmem>>
      %402 = tpu.memref_squeeze %401 : memref<1x1x128xf32, #tpu.memory_space<vmem>> -> memref<1x128xf32, #tpu.memory_space<vmem>>
      %403 = tpu.memref_slice %arg7[%c0_i32_248] : memref<2x!tpu.dma_semaphore, #tpu.memory_space<semaphore_mem>> -> memref<1x!tpu.dma_semaphore, #tpu.memory_space<semaphore_mem>>
      %404 = tpu.memref_squeeze %403 : memref<1x!tpu.dma_semaphore, #tpu.memory_space<semaphore_mem>> -> memref<!tpu.dma_semaphore, #tpu.memory_space<semaphore_mem>>
      tpu.enqueue_dma source(%400 : memref<1x128xf32, #tpu.memory_space<any>>) target(%402 : memref<1x128xf32, #tpu.memory_space<vmem>>) target_semaphore(%404 : memref<!tpu.dma_semaphore, #tpu.memory_space<semaphore_mem>>)
      %c8_i32_252 = arith.constant 8 : i32
      %405 = arith.addi %340, %c8_i32_252 : i32
      %406 = arith.index_cast %405 : i32 to index
      %407 = memref.load %arg2[%406] : memref<256xi32, #tpu.memory_space<smem>>
      %c0_i32_253 = arith.constant 0 : i32
      %c0_i32_254 = arith.constant 0 : i32
      %c0_i32_255 = arith.constant 0 : i32
      %408 = tpu.memref_slice %arg3[%407, %c0_i32_255] : memref<128x128xf32, #tpu.memory_space<any>> -> memref<1x128xf32, #tpu.memory_space<any>>
      %c8_i32_256 = arith.constant 8 : i32
      %c0_i32_257 = arith.constant 0 : i32
      %409 = tpu.memref_slice %arg6[%c0_i32_253, %c8_i32_256, %c0_i32_257] : memref<2x64x128xf32, #tpu.memory_space<vmem>> -> memref<1x1x128xf32, #tpu.memory_space<vmem>>
      %410 = tpu.memref_squeeze %409 : memref<1x1x128xf32, #tpu.memory_space<vmem>> -> memref<1x128xf32, #tpu.memory_space<vmem>>
      %411 = tpu.memref_slice %arg7[%c0_i32_254] : memref<2x!tpu.dma_semaphore, #tpu.memory_space<semaphore_mem>> -> memref<1x!tpu.dma_semaphore, #tpu.memory_space<semaphore_mem>>
      %412 = tpu.memref_squeeze %411 : memref<1x!tpu.dma_semaphore, #tpu.memory_space<semaphore_mem>> -> memref<!tpu.dma_semaphore, #tpu.memory_space<semaphore_mem>>
      tpu.enqueue_dma source(%408 : memref<1x128xf32, #tpu.memory_space<any>>) target(%410 : memref<1x128xf32, #tpu.memory_space<vmem>>) target_semaphore(%412 : memref<!tpu.dma_semaphore, #tpu.memory_space<semaphore_mem>>)
      %c9_i32_258 = arith.constant 9 : i32
      %413 = arith.addi %340, %c9_i32_258 : i32
      %414 = arith.index_cast %413 : i32 to index
      %415 = memref.load %arg2[%414] : memref<256xi32, #tpu.memory_space<smem>>
      %c0_i32_259 = arith.constant 0 : i32
      %c0_i32_260 = arith.constant 0 : i32
      %c0_i32_261 = arith.constant 0 : i32
      %416 = tpu.memref_slice %arg3[%415, %c0_i32_261] : memref<128x128xf32, #tpu.memory_space<any>> -> memref<1x128xf32, #tpu.memory_space<any>>
      %c9_i32_262 = arith.constant 9 : i32
      %c0_i32_263 = arith.constant 0 : i32
      %417 = tpu.memref_slice %arg6[%c0_i32_259, %c9_i32_262, %c0_i32_263] : memref<2x64x128xf32, #tpu.memory_space<vmem>> -> memref<1x1x128xf32, #tpu.memory_space<vmem>>
      %418 = tpu.memref_squeeze %417 : memref<1x1x128xf32, #tpu.memory_space<vmem>> -> memref<1x128xf32, #tpu.memory_space<vmem>>
      %419 = tpu.memref_slice %arg7[%c0_i32_260] : memref<2x!tpu.dma_semaphore, #tpu.memory_space<semaphore_mem>> -> memref<1x!tpu.dma_semaphore, #tpu.memory_space<semaphore_mem>>
      %420 = tpu.memref_squeeze %419 : memref<1x!tpu.dma_semaphore, #tpu.memory_space<semaphore_mem>> -> memref<!tpu.dma_semaphore, #tpu.memory_space<semaphore_mem>>
      tpu.enqueue_dma source(%416 : memref<1x128xf32, #tpu.memory_space<any>>) target(%418 : memref<1x128xf32, #tpu.memory_space<vmem>>) target_semaphore(%420 : memref<!tpu.dma_semaphore, #tpu.memory_space<semaphore_mem>>)
      %c10_i32_264 = arith.constant 10 : i32
      %421 = arith.addi %340, %c10_i32_264 : i32
      %422 = arith.index_cast %421 : i32 to index
      %423 = memref.load %arg2[%422] : memref<256xi32, #tpu.memory_space<smem>>
      %c0_i32_265 = arith.constant 0 : i32
      %c0_i32_266 = arith.constant 0 : i32
      %c0_i32_267 = arith.constant 0 : i32
      %424 = tpu.memref_slice %arg3[%423, %c0_i32_267] : memref<128x128xf32, #tpu.memory_space<any>> -> memref<1x128xf32, #tpu.memory_space<any>>
      %c10_i32_268 = arith.constant 10 : i32
      %c0_i32_269 = arith.constant 0 : i32
      %425 = tpu.memref_slice %arg6[%c0_i32_265, %c10_i32_268, %c0_i32_269] : memref<2x64x128xf32, #tpu.memory_space<vmem>> -> memref<1x1x128xf32, #tpu.memory_space<vmem>>
      %426 = tpu.memref_squeeze %425 : memref<1x1x128xf32, #tpu.memory_space<vmem>> -> memref<1x128xf32, #tpu.memory_space<vmem>>
      %427 = tpu.memref_slice %arg7[%c0_i32_266] : memref<2x!tpu.dma_semaphore, #tpu.memory_space<semaphore_mem>> -> memref<1x!tpu.dma_semaphore, #tpu.memory_space<semaphore_mem>>
      %428 = tpu.memref_squeeze %427 : memref<1x!tpu.dma_semaphore, #tpu.memory_space<semaphore_mem>> -> memref<!tpu.dma_semaphore, #tpu.memory_space<semaphore_mem>>
      tpu.enqueue_dma source(%424 : memref<1x128xf32, #tpu.memory_space<any>>) target(%426 : memref<1x128xf32, #tpu.memory_space<vmem>>) target_semaphore(%428 : memref<!tpu.dma_semaphore, #tpu.memory_space<semaphore_mem>>)
      %c11_i32_270 = arith.constant 11 : i32
      %429 = arith.addi %340, %c11_i32_270 : i32
      %430 = arith.index_cast %429 : i32 to index
      %431 = memref.load %arg2[%430] : memref<256xi32, #tpu.memory_space<smem>>
      %c0_i32_271 = arith.constant 0 : i32
      %c0_i32_272 = arith.constant 0 : i32
      %c0_i32_273 = arith.constant 0 : i32
      %432 = tpu.memref_slice %arg3[%431, %c0_i32_273] : memref<128x128xf32, #tpu.memory_space<any>> -> memref<1x128xf32, #tpu.memory_space<any>>
      %c11_i32_274 = arith.constant 11 : i32
      %c0_i32_275 = arith.constant 0 : i32
      %433 = tpu.memref_slice %arg6[%c0_i32_271, %c11_i32_274, %c0_i32_275] : memref<2x64x128xf32, #tpu.memory_space<vmem>> -> memref<1x1x128xf32, #tpu.memory_space<vmem>>
      %434 = tpu.memref_squeeze %433 : memref<1x1x128xf32, #tpu.memory_space<vmem>> -> memref<1x128xf32, #tpu.memory_space<vmem>>
      %435 = tpu.memref_slice %arg7[%c0_i32_272] : memref<2x!tpu.dma_semaphore, #tpu.memory_space<semaphore_mem>> -> memref<1x!tpu.dma_semaphore, #tpu.memory_space<semaphore_mem>>
      %436 = tpu.memref_squeeze %435 : memref<1x!tpu.dma_semaphore, #tpu.memory_space<semaphore_mem>> -> memref<!tpu.dma_semaphore, #tpu.memory_space<semaphore_mem>>
      tpu.enqueue_dma source(%432 : memref<1x128xf32, #tpu.memory_space<any>>) target(%434 : memref<1x128xf32, #tpu.memory_space<vmem>>) target_semaphore(%436 : memref<!tpu.dma_semaphore, #tpu.memory_space<semaphore_mem>>)
      %c12_i32_276 = arith.constant 12 : i32
      %437 = arith.addi %340, %c12_i32_276 : i32
      %438 = arith.index_cast %437 : i32 to index
      %439 = memref.load %arg2[%438] : memref<256xi32, #tpu.memory_space<smem>>
      %c0_i32_277 = arith.constant 0 : i32
      %c0_i32_278 = arith.constant 0 : i32
      %c0_i32_279 = arith.constant 0 : i32
      %440 = tpu.memref_slice %arg3[%439, %c0_i32_279] : memref<128x128xf32, #tpu.memory_space<any>> -> memref<1x128xf32, #tpu.memory_space<any>>
      %c12_i32_280 = arith.constant 12 : i32
      %c0_i32_281 = arith.constant 0 : i32
      %441 = tpu.memref_slice %arg6[%c0_i32_277, %c12_i32_280, %c0_i32_281] : memref<2x64x128xf32, #tpu.memory_space<vmem>> -> memref<1x1x128xf32, #tpu.memory_space<vmem>>
      %442 = tpu.memref_squeeze %441 : memref<1x1x128xf32, #tpu.memory_space<vmem>> -> memref<1x128xf32, #tpu.memory_space<vmem>>
      %443 = tpu.memref_slice %arg7[%c0_i32_278] : memref<2x!tpu.dma_semaphore, #tpu.memory_space<semaphore_mem>> -> memref<1x!tpu.dma_semaphore, #tpu.memory_space<semaphore_mem>>
      %444 = tpu.memref_squeeze %443 : memref<1x!tpu.dma_semaphore, #tpu.memory_space<semaphore_mem>> -> memref<!tpu.dma_semaphore, #tpu.memory_space<semaphore_mem>>
      tpu.enqueue_dma source(%440 : memref<1x128xf32, #tpu.memory_space<any>>) target(%442 : memref<1x128xf32, #tpu.memory_space<vmem>>) target_semaphore(%444 : memref<!tpu.dma_semaphore, #tpu.memory_space<semaphore_mem>>)
      %c13_i32_282 = arith.constant 13 : i32
      %445 = arith.addi %340, %c13_i32_282 : i32
      %446 = arith.index_cast %445 : i32 to index
      %447 = memref.load %arg2[%446] : memref<256xi32, #tpu.memory_space<smem>>
      %c0_i32_283 = arith.constant 0 : i32
      %c0_i32_284 = arith.constant 0 : i32
      %c0_i32_285 = arith.constant 0 : i32
      %448 = tpu.memref_slice %arg3[%447, %c0_i32_285] : memref<128x128xf32, #tpu.memory_space<any>> -> memref<1x128xf32, #tpu.memory_space<any>>
      %c13_i32_286 = arith.constant 13 : i32
      %c0_i32_287 = arith.constant 0 : i32
      %449 = tpu.memref_slice %arg6[%c0_i32_283, %c13_i32_286, %c0_i32_287] : memref<2x64x128xf32, #tpu.memory_space<vmem>> -> memref<1x1x128xf32, #tpu.memory_space<vmem>>
      %450 = tpu.memref_squeeze %449 : memref<1x1x128xf32, #tpu.memory_space<vmem>> -> memref<1x128xf32, #tpu.memory_space<vmem>>
      %451 = tpu.memref_slice %arg7[%c0_i32_284] : memref<2x!tpu.dma_semaphore, #tpu.memory_space<semaphore_mem>> -> memref<1x!tpu.dma_semaphore, #tpu.memory_space<semaphore_mem>>
      %452 = tpu.memref_squeeze %451 : memref<1x!tpu.dma_semaphore, #tpu.memory_space<semaphore_mem>> -> memref<!tpu.dma_semaphore, #tpu.memory_space<semaphore_mem>>
      tpu.enqueue_dma source(%448 : memref<1x128xf32, #tpu.memory_space<any>>) target(%450 : memref<1x128xf32, #tpu.memory_space<vmem>>) target_semaphore(%452 : memref<!tpu.dma_semaphore, #tpu.memory_space<semaphore_mem>>)
      %c14_i32_288 = arith.constant 14 : i32
      %453 = arith.addi %340, %c14_i32_288 : i32
      %454 = arith.index_cast %453 : i32 to index
      %455 = memref.load %arg2[%454] : memref<256xi32, #tpu.memory_space<smem>>
      %c0_i32_289 = arith.constant 0 : i32
      %c0_i32_290 = arith.constant 0 : i32
      %c0_i32_291 = arith.constant 0 : i32
      %456 = tpu.memref_slice %arg3[%455, %c0_i32_291] : memref<128x128xf32, #tpu.memory_space<any>> -> memref<1x128xf32, #tpu.memory_space<any>>
      %c14_i32_292 = arith.constant 14 : i32
      %c0_i32_293 = arith.constant 0 : i32
      %457 = tpu.memref_slice %arg6[%c0_i32_289, %c14_i32_292, %c0_i32_293] : memref<2x64x128xf32, #tpu.memory_space<vmem>> -> memref<1x1x128xf32, #tpu.memory_space<vmem>>
      %458 = tpu.memref_squeeze %457 : memref<1x1x128xf32, #tpu.memory_space<vmem>> -> memref<1x128xf32, #tpu.memory_space<vmem>>
      %459 = tpu.memref_slice %arg7[%c0_i32_290] : memref<2x!tpu.dma_semaphore, #tpu.memory_space<semaphore_mem>> -> memref<1x!tpu.dma_semaphore, #tpu.memory_space<semaphore_mem>>
      %460 = tpu.memref_squeeze %459 : memref<1x!tpu.dma_semaphore, #tpu.memory_space<semaphore_mem>> -> memref<!tpu.dma_semaphore, #tpu.memory_space<semaphore_mem>>
      tpu.enqueue_dma source(%456 : memref<1x128xf32, #tpu.memory_space<any>>) target(%458 : memref<1x128xf32, #tpu.memory_space<vmem>>) target_semaphore(%460 : memref<!tpu.dma_semaphore, #tpu.memory_space<semaphore_mem>>)
      %c15_i32_294 = arith.constant 15 : i32
      %461 = arith.addi %340, %c15_i32_294 : i32
      %462 = arith.index_cast %461 : i32 to index
      %463 = memref.load %arg2[%462] : memref<256xi32, #tpu.memory_space<smem>>
      %c0_i32_295 = arith.constant 0 : i32
      %c0_i32_296 = arith.constant 0 : i32
      %c0_i32_297 = arith.constant 0 : i32
      %464 = tpu.memref_slice %arg3[%463, %c0_i32_297] : memref<128x128xf32, #tpu.memory_space<any>> -> memref<1x128xf32, #tpu.memory_space<any>>
      %c15_i32_298 = arith.constant 15 : i32
      %c0_i32_299 = arith.constant 0 : i32
      %465 = tpu.memref_slice %arg6[%c0_i32_295, %c15_i32_298, %c0_i32_299] : memref<2x64x128xf32, #tpu.memory_space<vmem>> -> memref<1x1x128xf32, #tpu.memory_space<vmem>>
      %466 = tpu.memref_squeeze %465 : memref<1x1x128xf32, #tpu.memory_space<vmem>> -> memref<1x128xf32, #tpu.memory_space<vmem>>
      %467 = tpu.memref_slice %arg7[%c0_i32_296] : memref<2x!tpu.dma_semaphore, #tpu.memory_space<semaphore_mem>> -> memref<1x!tpu.dma_semaphore, #tpu.memory_space<semaphore_mem>>
      %468 = tpu.memref_squeeze %467 : memref<1x!tpu.dma_semaphore, #tpu.memory_space<semaphore_mem>> -> memref<!tpu.dma_semaphore, #tpu.memory_space<semaphore_mem>>
      tpu.enqueue_dma source(%464 : memref<1x128xf32, #tpu.memory_space<any>>) target(%466 : memref<1x128xf32, #tpu.memory_space<vmem>>) target_semaphore(%468 : memref<!tpu.dma_semaphore, #tpu.memory_space<semaphore_mem>>)
      %c16_i32_300 = arith.constant 16 : i32
      %469 = arith.addi %340, %c16_i32_300 : i32
      %470 = arith.index_cast %469 : i32 to index
      %471 = memref.load %arg2[%470] : memref<256xi32, #tpu.memory_space<smem>>
      %c0_i32_301 = arith.constant 0 : i32
      %c0_i32_302 = arith.constant 0 : i32
      %c0_i32_303 = arith.constant 0 : i32
      %472 = tpu.memref_slice %arg3[%471, %c0_i32_303] : memref<128x128xf32, #tpu.memory_space<any>> -> memref<1x128xf32, #tpu.memory_space<any>>
      %c16_i32_304 = arith.constant 16 : i32
      %c0_i32_305 = arith.constant 0 : i32
      %473 = tpu.memref_slice %arg6[%c0_i32_301, %c16_i32_304, %c0_i32_305] : memref<2x64x128xf32, #tpu.memory_space<vmem>> -> memref<1x1x128xf32, #tpu.memory_space<vmem>>
      %474 = tpu.memref_squeeze %473 : memref<1x1x128xf32, #tpu.memory_space<vmem>> -> memref<1x128xf32, #tpu.memory_space<vmem>>
      %475 = tpu.memref_slice %arg7[%c0_i32_302] : memref<2x!tpu.dma_semaphore, #tpu.memory_space<semaphore_mem>> -> memref<1x!tpu.dma_semaphore, #tpu.memory_space<semaphore_mem>>
      %476 = tpu.memref_squeeze %475 : memref<1x!tpu.dma_semaphore, #tpu.memory_space<semaphore_mem>> -> memref<!tpu.dma_semaphore, #tpu.memory_space<semaphore_mem>>
      tpu.enqueue_dma source(%472 : memref<1x128xf32, #tpu.memory_space<any>>) target(%474 : memref<1x128xf32, #tpu.memory_space<vmem>>) target_semaphore(%476 : memref<!tpu.dma_semaphore, #tpu.memory_space<semaphore_mem>>)
      %c17_i32_306 = arith.constant 17 : i32
      %477 = arith.addi %340, %c17_i32_306 : i32
      %478 = arith.index_cast %477 : i32 to index
      %479 = memref.load %arg2[%478] : memref<256xi32, #tpu.memory_space<smem>>
      %c0_i32_307 = arith.constant 0 : i32
      %c0_i32_308 = arith.constant 0 : i32
      %c0_i32_309 = arith.constant 0 : i32
      %480 = tpu.memref_slice %arg3[%479, %c0_i32_309] : memref<128x128xf32, #tpu.memory_space<any>> -> memref<1x128xf32, #tpu.memory_space<any>>
      %c17_i32_310 = arith.constant 17 : i32
      %c0_i32_311 = arith.constant 0 : i32
      %481 = tpu.memref_slice %arg6[%c0_i32_307, %c17_i32_310, %c0_i32_311] : memref<2x64x128xf32, #tpu.memory_space<vmem>> -> memref<1x1x128xf32, #tpu.memory_space<vmem>>
      %482 = tpu.memref_squeeze %481 : memref<1x1x128xf32, #tpu.memory_space<vmem>> -> memref<1x128xf32, #tpu.memory_space<vmem>>
      %483 = tpu.memref_slice %arg7[%c0_i32_308] : memref<2x!tpu.dma_semaphore, #tpu.memory_space<semaphore_mem>> -> memref<1x!tpu.dma_semaphore, #tpu.memory_space<semaphore_mem>>
      %484 = tpu.memref_squeeze %483 : memref<1x!tpu.dma_semaphore, #tpu.memory_space<semaphore_mem>> -> memref<!tpu.dma_semaphore, #tpu.memory_space<semaphore_mem>>
      tpu.enqueue_dma source(%480 : memref<1x128xf32, #tpu.memory_space<any>>) target(%482 : memref<1x128xf32, #tpu.memory_space<vmem>>) target_semaphore(%484 : memref<!tpu.dma_semaphore, #tpu.memory_space<semaphore_mem>>)
      %c18_i32_312 = arith.constant 18 : i32
      %485 = arith.addi %340, %c18_i32_312 : i32
      %486 = arith.index_cast %485 : i32 to index
      %487 = memref.load %arg2[%486] : memref<256xi32, #tpu.memory_space<smem>>
      %c0_i32_313 = arith.constant 0 : i32
      %c0_i32_314 = arith.constant 0 : i32
      %c0_i32_315 = arith.constant 0 : i32
      %488 = tpu.memref_slice %arg3[%487, %c0_i32_315] : memref<128x128xf32, #tpu.memory_space<any>> -> memref<1x128xf32, #tpu.memory_space<any>>
      %c18_i32_316 = arith.constant 18 : i32
      %c0_i32_317 = arith.constant 0 : i32
      %489 = tpu.memref_slice %arg6[%c0_i32_313, %c18_i32_316, %c0_i32_317] : memref<2x64x128xf32, #tpu.memory_space<vmem>> -> memref<1x1x128xf32, #tpu.memory_space<vmem>>
      %490 = tpu.memref_squeeze %489 : memref<1x1x128xf32, #tpu.memory_space<vmem>> -> memref<1x128xf32, #tpu.memory_space<vmem>>
      %491 = tpu.memref_slice %arg7[%c0_i32_314] : memref<2x!tpu.dma_semaphore, #tpu.memory_space<semaphore_mem>> -> memref<1x!tpu.dma_semaphore, #tpu.memory_space<semaphore_mem>>
      %492 = tpu.memref_squeeze %491 : memref<1x!tpu.dma_semaphore, #tpu.memory_space<semaphore_mem>> -> memref<!tpu.dma_semaphore, #tpu.memory_space<semaphore_mem>>
      tpu.enqueue_dma source(%488 : memref<1x128xf32, #tpu.memory_space<any>>) target(%490 : memref<1x128xf32, #tpu.memory_space<vmem>>) target_semaphore(%492 : memref<!tpu.dma_semaphore, #tpu.memory_space<semaphore_mem>>)
      %c19_i32_318 = arith.constant 19 : i32
      %493 = arith.addi %340, %c19_i32_318 : i32
      %494 = arith.index_cast %493 : i32 to index
      %495 = memref.load %arg2[%494] : memref<256xi32, #tpu.memory_space<smem>>
      %c0_i32_319 = arith.constant 0 : i32
      %c0_i32_320 = arith.constant 0 : i32
      %c0_i32_321 = arith.constant 0 : i32
      %496 = tpu.memref_slice %arg3[%495, %c0_i32_321] : memref<128x128xf32, #tpu.memory_space<any>> -> memref<1x128xf32, #tpu.memory_space<any>>
      %c19_i32_322 = arith.constant 19 : i32
      %c0_i32_323 = arith.constant 0 : i32
      %497 = tpu.memref_slice %arg6[%c0_i32_319, %c19_i32_322, %c0_i32_323] : memref<2x64x128xf32, #tpu.memory_space<vmem>> -> memref<1x1x128xf32, #tpu.memory_space<vmem>>
      %498 = tpu.memref_squeeze %497 : memref<1x1x128xf32, #tpu.memory_space<vmem>> -> memref<1x128xf32, #tpu.memory_space<vmem>>
      %499 = tpu.memref_slice %arg7[%c0_i32_320] : memref<2x!tpu.dma_semaphore, #tpu.memory_space<semaphore_mem>> -> memref<1x!tpu.dma_semaphore, #tpu.memory_space<semaphore_mem>>
      %500 = tpu.memref_squeeze %499 : memref<1x!tpu.dma_semaphore, #tpu.memory_space<semaphore_mem>> -> memref<!tpu.dma_semaphore, #tpu.memory_space<semaphore_mem>>
      tpu.enqueue_dma source(%496 : memref<1x128xf32, #tpu.memory_space<any>>) target(%498 : memref<1x128xf32, #tpu.memory_space<vmem>>) target_semaphore(%500 : memref<!tpu.dma_semaphore, #tpu.memory_space<semaphore_mem>>)
      %c20_i32_324 = arith.constant 20 : i32
      %501 = arith.addi %340, %c20_i32_324 : i32
      %502 = arith.index_cast %501 : i32 to index
      %503 = memref.load %arg2[%502] : memref<256xi32, #tpu.memory_space<smem>>
      %c0_i32_325 = arith.constant 0 : i32
      %c0_i32_326 = arith.constant 0 : i32
      %c0_i32_327 = arith.constant 0 : i32
      %504 = tpu.memref_slice %arg3[%503, %c0_i32_327] : memref<128x128xf32, #tpu.memory_space<any>> -> memref<1x128xf32, #tpu.memory_space<any>>
      %c20_i32_328 = arith.constant 20 : i32
      %c0_i32_329 = arith.constant 0 : i32
      %505 = tpu.memref_slice %arg6[%c0_i32_325, %c20_i32_328, %c0_i32_329] : memref<2x64x128xf32, #tpu.memory_space<vmem>> -> memref<1x1x128xf32, #tpu.memory_space<vmem>>
      %506 = tpu.memref_squeeze %505 : memref<1x1x128xf32, #tpu.memory_space<vmem>> -> memref<1x128xf32, #tpu.memory_space<vmem>>
      %507 = tpu.memref_slice %arg7[%c0_i32_326] : memref<2x!tpu.dma_semaphore, #tpu.memory_space<semaphore_mem>> -> memref<1x!tpu.dma_semaphore, #tpu.memory_space<semaphore_mem>>
      %508 = tpu.memref_squeeze %507 : memref<1x!tpu.dma_semaphore, #tpu.memory_space<semaphore_mem>> -> memref<!tpu.dma_semaphore, #tpu.memory_space<semaphore_mem>>
      tpu.enqueue_dma source(%504 : memref<1x128xf32, #tpu.memory_space<any>>) target(%506 : memref<1x128xf32, #tpu.memory_space<vmem>>) target_semaphore(%508 : memref<!tpu.dma_semaphore, #tpu.memory_space<semaphore_mem>>)
      %c21_i32_330 = arith.constant 21 : i32
      %509 = arith.addi %340, %c21_i32_330 : i32
      %510 = arith.index_cast %509 : i32 to index
      %511 = memref.load %arg2[%510] : memref<256xi32, #tpu.memory_space<smem>>
      %c0_i32_331 = arith.constant 0 : i32
      %c0_i32_332 = arith.constant 0 : i32
      %c0_i32_333 = arith.constant 0 : i32
      %512 = tpu.memref_slice %arg3[%511, %c0_i32_333] : memref<128x128xf32, #tpu.memory_space<any>> -> memref<1x128xf32, #tpu.memory_space<any>>
      %c21_i32_334 = arith.constant 21 : i32
      %c0_i32_335 = arith.constant 0 : i32
      %513 = tpu.memref_slice %arg6[%c0_i32_331, %c21_i32_334, %c0_i32_335] : memref<2x64x128xf32, #tpu.memory_space<vmem>> -> memref<1x1x128xf32, #tpu.memory_space<vmem>>
      %514 = tpu.memref_squeeze %513 : memref<1x1x128xf32, #tpu.memory_space<vmem>> -> memref<1x128xf32, #tpu.memory_space<vmem>>
      %515 = tpu.memref_slice %arg7[%c0_i32_332] : memref<2x!tpu.dma_semaphore, #tpu.memory_space<semaphore_mem>> -> memref<1x!tpu.dma_semaphore, #tpu.memory_space<semaphore_mem>>
      %516 = tpu.memref_squeeze %515 : memref<1x!tpu.dma_semaphore, #tpu.memory_space<semaphore_mem>> -> memref<!tpu.dma_semaphore, #tpu.memory_space<semaphore_mem>>
      tpu.enqueue_dma source(%512 : memref<1x128xf32, #tpu.memory_space<any>>) target(%514 : memref<1x128xf32, #tpu.memory_space<vmem>>) target_semaphore(%516 : memref<!tpu.dma_semaphore, #tpu.memory_space<semaphore_mem>>)
      %c22_i32_336 = arith.constant 22 : i32
      %517 = arith.addi %340, %c22_i32_336 : i32
      %518 = arith.index_cast %517 : i32 to index
      %519 = memref.load %arg2[%518] : memref<256xi32, #tpu.memory_space<smem>>
      %c0_i32_337 = arith.constant 0 : i32
      %c0_i32_338 = arith.constant 0 : i32
      %c0_i32_339 = arith.constant 0 : i32
      %520 = tpu.memref_slice %arg3[%519, %c0_i32_339] : memref<128x128xf32, #tpu.memory_space<any>> -> memref<1x128xf32, #tpu.memory_space<any>>
      %c22_i32_340 = arith.constant 22 : i32
      %c0_i32_341 = arith.constant 0 : i32
      %521 = tpu.memref_slice %arg6[%c0_i32_337, %c22_i32_340, %c0_i32_341] : memref<2x64x128xf32, #tpu.memory_space<vmem>> -> memref<1x1x128xf32, #tpu.memory_space<vmem>>
      %522 = tpu.memref_squeeze %521 : memref<1x1x128xf32, #tpu.memory_space<vmem>> -> memref<1x128xf32, #tpu.memory_space<vmem>>
      %523 = tpu.memref_slice %arg7[%c0_i32_338] : memref<2x!tpu.dma_semaphore, #tpu.memory_space<semaphore_mem>> -> memref<1x!tpu.dma_semaphore, #tpu.memory_space<semaphore_mem>>
      %524 = tpu.memref_squeeze %523 : memref<1x!tpu.dma_semaphore, #tpu.memory_space<semaphore_mem>> -> memref<!tpu.dma_semaphore, #tpu.memory_space<semaphore_mem>>
      tpu.enqueue_dma source(%520 : memref<1x128xf32, #tpu.memory_space<any>>) target(%522 : memref<1x128xf32, #tpu.memory_space<vmem>>) target_semaphore(%524 : memref<!tpu.dma_semaphore, #tpu.memory_space<semaphore_mem>>)
      %c23_i32_342 = arith.constant 23 : i32
      %525 = arith.addi %340, %c23_i32_342 : i32
      %526 = arith.index_cast %525 : i32 to index
      %527 = memref.load %arg2[%526] : memref<256xi32, #tpu.memory_space<smem>>
      %c0_i32_343 = arith.constant 0 : i32
      %c0_i32_344 = arith.constant 0 : i32
      %c0_i32_345 = arith.constant 0 : i32
      %528 = tpu.memref_slice %arg3[%527, %c0_i32_345] : memref<128x128xf32, #tpu.memory_space<any>> -> memref<1x128xf32, #tpu.memory_space<any>>
      %c23_i32_346 = arith.constant 23 : i32
      %c0_i32_347 = arith.constant 0 : i32
      %529 = tpu.memref_slice %arg6[%c0_i32_343, %c23_i32_346, %c0_i32_347] : memref<2x64x128xf32, #tpu.memory_space<vmem>> -> memref<1x1x128xf32, #tpu.memory_space<vmem>>
      %530 = tpu.memref_squeeze %529 : memref<1x1x128xf32, #tpu.memory_space<vmem>> -> memref<1x128xf32, #tpu.memory_space<vmem>>
      %531 = tpu.memref_slice %arg7[%c0_i32_344] : memref<2x!tpu.dma_semaphore, #tpu.memory_space<semaphore_mem>> -> memref<1x!tpu.dma_semaphore, #tpu.memory_space<semaphore_mem>>
      %532 = tpu.memref_squeeze %531 : memref<1x!tpu.dma_semaphore, #tpu.memory_space<semaphore_mem>> -> memref<!tpu.dma_semaphore, #tpu.memory_space<semaphore_mem>>
      tpu.enqueue_dma source(%528 : memref<1x128xf32, #tpu.memory_space<any>>) target(%530 : memref<1x128xf32, #tpu.memory_space<vmem>>) target_semaphore(%532 : memref<!tpu.dma_semaphore, #tpu.memory_space<semaphore_mem>>)
      %c24_i32_348 = arith.constant 24 : i32
      %533 = arith.addi %340, %c24_i32_348 : i32
      %534 = arith.index_cast %533 : i32 to index
      %535 = memref.load %arg2[%534] : memref<256xi32, #tpu.memory_space<smem>>
      %c0_i32_349 = arith.constant 0 : i32
      %c0_i32_350 = arith.constant 0 : i32
      %c0_i32_351 = arith.constant 0 : i32
      %536 = tpu.memref_slice %arg3[%535, %c0_i32_351] : memref<128x128xf32, #tpu.memory_space<any>> -> memref<1x128xf32, #tpu.memory_space<any>>
      %c24_i32_352 = arith.constant 24 : i32
      %c0_i32_353 = arith.constant 0 : i32
      %537 = tpu.memref_slice %arg6[%c0_i32_349, %c24_i32_352, %c0_i32_353] : memref<2x64x128xf32, #tpu.memory_space<vmem>> -> memref<1x1x128xf32, #tpu.memory_space<vmem>>
      %538 = tpu.memref_squeeze %537 : memref<1x1x128xf32, #tpu.memory_space<vmem>> -> memref<1x128xf32, #tpu.memory_space<vmem>>
      %539 = tpu.memref_slice %arg7[%c0_i32_350] : memref<2x!tpu.dma_semaphore, #tpu.memory_space<semaphore_mem>> -> memref<1x!tpu.dma_semaphore, #tpu.memory_space<semaphore_mem>>
      %540 = tpu.memref_squeeze %539 : memref<1x!tpu.dma_semaphore, #tpu.memory_space<semaphore_mem>> -> memref<!tpu.dma_semaphore, #tpu.memory_space<semaphore_mem>>
      tpu.enqueue_dma source(%536 : memref<1x128xf32, #tpu.memory_space<any>>) target(%538 : memref<1x128xf32, #tpu.memory_space<vmem>>) target_semaphore(%540 : memref<!tpu.dma_semaphore, #tpu.memory_space<semaphore_mem>>)
      %c25_i32_354 = arith.constant 25 : i32
      %541 = arith.addi %340, %c25_i32_354 : i32
      %542 = arith.index_cast %541 : i32 to index
      %543 = memref.load %arg2[%542] : memref<256xi32, #tpu.memory_space<smem>>
      %c0_i32_355 = arith.constant 0 : i32
      %c0_i32_356 = arith.constant 0 : i32
      %c0_i32_357 = arith.constant 0 : i32
      %544 = tpu.memref_slice %arg3[%543, %c0_i32_357] : memref<128x128xf32, #tpu.memory_space<any>> -> memref<1x128xf32, #tpu.memory_space<any>>
      %c25_i32_358 = arith.constant 25 : i32
      %c0_i32_359 = arith.constant 0 : i32
      %545 = tpu.memref_slice %arg6[%c0_i32_355, %c25_i32_358, %c0_i32_359] : memref<2x64x128xf32, #tpu.memory_space<vmem>> -> memref<1x1x128xf32, #tpu.memory_space<vmem>>
      %546 = tpu.memref_squeeze %545 : memref<1x1x128xf32, #tpu.memory_space<vmem>> -> memref<1x128xf32, #tpu.memory_space<vmem>>
      %547 = tpu.memref_slice %arg7[%c0_i32_356] : memref<2x!tpu.dma_semaphore, #tpu.memory_space<semaphore_mem>> -> memref<1x!tpu.dma_semaphore, #tpu.memory_space<semaphore_mem>>
      %548 = tpu.memref_squeeze %547 : memref<1x!tpu.dma_semaphore, #tpu.memory_space<semaphore_mem>> -> memref<!tpu.dma_semaphore, #tpu.memory_space<semaphore_mem>>
      tpu.enqueue_dma source(%544 : memref<1x128xf32, #tpu.memory_space<any>>) target(%546 : memref<1x128xf32, #tpu.memory_space<vmem>>) target_semaphore(%548 : memref<!tpu.dma_semaphore, #tpu.memory_space<semaphore_mem>>)
      %c26_i32_360 = arith.constant 26 : i32
      %549 = arith.addi %340, %c26_i32_360 : i32
      %550 = arith.index_cast %549 : i32 to index
      %551 = memref.load %arg2[%550] : memref<256xi32, #tpu.memory_space<smem>>
      %c0_i32_361 = arith.constant 0 : i32
      %c0_i32_362 = arith.constant 0 : i32
      %c0_i32_363 = arith.constant 0 : i32
      %552 = tpu.memref_slice %arg3[%551, %c0_i32_363] : memref<128x128xf32, #tpu.memory_space<any>> -> memref<1x128xf32, #tpu.memory_space<any>>
      %c26_i32_364 = arith.constant 26 : i32
      %c0_i32_365 = arith.constant 0 : i32
      %553 = tpu.memref_slice %arg6[%c0_i32_361, %c26_i32_364, %c0_i32_365] : memref<2x64x128xf32, #tpu.memory_space<vmem>> -> memref<1x1x128xf32, #tpu.memory_space<vmem>>
      %554 = tpu.memref_squeeze %553 : memref<1x1x128xf32, #tpu.memory_space<vmem>> -> memref<1x128xf32, #tpu.memory_space<vmem>>
      %555 = tpu.memref_slice %arg7[%c0_i32_362] : memref<2x!tpu.dma_semaphore, #tpu.memory_space<semaphore_mem>> -> memref<1x!tpu.dma_semaphore, #tpu.memory_space<semaphore_mem>>
      %556 = tpu.memref_squeeze %555 : memref<1x!tpu.dma_semaphore, #tpu.memory_space<semaphore_mem>> -> memref<!tpu.dma_semaphore, #tpu.memory_space<semaphore_mem>>
      tpu.enqueue_dma source(%552 : memref<1x128xf32, #tpu.memory_space<any>>) target(%554 : memref<1x128xf32, #tpu.memory_space<vmem>>) target_semaphore(%556 : memref<!tpu.dma_semaphore, #tpu.memory_space<semaphore_mem>>)
      %c27_i32_366 = arith.constant 27 : i32
      %557 = arith.addi %340, %c27_i32_366 : i32
      %558 = arith.index_cast %557 : i32 to index
      %559 = memref.load %arg2[%558] : memref<256xi32, #tpu.memory_space<smem>>
      %c0_i32_367 = arith.constant 0 : i32
      %c0_i32_368 = arith.constant 0 : i32
      %c0_i32_369 = arith.constant 0 : i32
      %560 = tpu.memref_slice %arg3[%559, %c0_i32_369] : memref<128x128xf32, #tpu.memory_space<any>> -> memref<1x128xf32, #tpu.memory_space<any>>
      %c27_i32_370 = arith.constant 27 : i32
      %c0_i32_371 = arith.constant 0 : i32
      %561 = tpu.memref_slice %arg6[%c0_i32_367, %c27_i32_370, %c0_i32_371] : memref<2x64x128xf32, #tpu.memory_space<vmem>> -> memref<1x1x128xf32, #tpu.memory_space<vmem>>
      %562 = tpu.memref_squeeze %561 : memref<1x1x128xf32, #tpu.memory_space<vmem>> -> memref<1x128xf32, #tpu.memory_space<vmem>>
      %563 = tpu.memref_slice %arg7[%c0_i32_368] : memref<2x!tpu.dma_semaphore, #tpu.memory_space<semaphore_mem>> -> memref<1x!tpu.dma_semaphore, #tpu.memory_space<semaphore_mem>>
      %564 = tpu.memref_squeeze %563 : memref<1x!tpu.dma_semaphore, #tpu.memory_space<semaphore_mem>> -> memref<!tpu.dma_semaphore, #tpu.memory_space<semaphore_mem>>
      tpu.enqueue_dma source(%560 : memref<1x128xf32, #tpu.memory_space<any>>) target(%562 : memref<1x128xf32, #tpu.memory_space<vmem>>) target_semaphore(%564 : memref<!tpu.dma_semaphore, #tpu.memory_space<semaphore_mem>>)
      %c28_i32_372 = arith.constant 28 : i32
      %565 = arith.addi %340, %c28_i32_372 : i32
      %566 = arith.index_cast %565 : i32 to index
      %567 = memref.load %arg2[%566] : memref<256xi32, #tpu.memory_space<smem>>
      %c0_i32_373 = arith.constant 0 : i32
      %c0_i32_374 = arith.constant 0 : i32
      %c0_i32_375 = arith.constant 0 : i32
      %568 = tpu.memref_slice %arg3[%567, %c0_i32_375] : memref<128x128xf32, #tpu.memory_space<any>> -> memref<1x128xf32, #tpu.memory_space<any>>
      %c28_i32_376 = arith.constant 28 : i32
      %c0_i32_377 = arith.constant 0 : i32
      %569 = tpu.memref_slice %arg6[%c0_i32_373, %c28_i32_376, %c0_i32_377] : memref<2x64x128xf32, #tpu.memory_space<vmem>> -> memref<1x1x128xf32, #tpu.memory_space<vmem>>
      %570 = tpu.memref_squeeze %569 : memref<1x1x128xf32, #tpu.memory_space<vmem>> -> memref<1x128xf32, #tpu.memory_space<vmem>>
      %571 = tpu.memref_slice %arg7[%c0_i32_374] : memref<2x!tpu.dma_semaphore, #tpu.memory_space<semaphore_mem>> -> memref<1x!tpu.dma_semaphore, #tpu.memory_space<semaphore_mem>>
      %572 = tpu.memref_squeeze %571 : memref<1x!tpu.dma_semaphore, #tpu.memory_space<semaphore_mem>> -> memref<!tpu.dma_semaphore, #tpu.memory_space<semaphore_mem>>
      tpu.enqueue_dma source(%568 : memref<1x128xf32, #tpu.memory_space<any>>) target(%570 : memref<1x128xf32, #tpu.memory_space<vmem>>) target_semaphore(%572 : memref<!tpu.dma_semaphore, #tpu.memory_space<semaphore_mem>>)
      %c29_i32_378 = arith.constant 29 : i32
      %573 = arith.addi %340, %c29_i32_378 : i32
      %574 = arith.index_cast %573 : i32 to index
      %575 = memref.load %arg2[%574] : memref<256xi32, #tpu.memory_space<smem>>
      %c0_i32_379 = arith.constant 0 : i32
      %c0_i32_380 = arith.constant 0 : i32
      %c0_i32_381 = arith.constant 0 : i32
      %576 = tpu.memref_slice %arg3[%575, %c0_i32_381] : memref<128x128xf32, #tpu.memory_space<any>> -> memref<1x128xf32, #tpu.memory_space<any>>
      %c29_i32_382 = arith.constant 29 : i32
      %c0_i32_383 = arith.constant 0 : i32
      %577 = tpu.memref_slice %arg6[%c0_i32_379, %c29_i32_382, %c0_i32_383] : memref<2x64x128xf32, #tpu.memory_space<vmem>> -> memref<1x1x128xf32, #tpu.memory_space<vmem>>
      %578 = tpu.memref_squeeze %577 : memref<1x1x128xf32, #tpu.memory_space<vmem>> -> memref<1x128xf32, #tpu.memory_space<vmem>>
      %579 = tpu.memref_slice %arg7[%c0_i32_380] : memref<2x!tpu.dma_semaphore, #tpu.memory_space<semaphore_mem>> -> memref<1x!tpu.dma_semaphore, #tpu.memory_space<semaphore_mem>>
      %580 = tpu.memref_squeeze %579 : memref<1x!tpu.dma_semaphore, #tpu.memory_space<semaphore_mem>> -> memref<!tpu.dma_semaphore, #tpu.memory_space<semaphore_mem>>
      tpu.enqueue_dma source(%576 : memref<1x128xf32, #tpu.memory_space<any>>) target(%578 : memref<1x128xf32, #tpu.memory_space<vmem>>) target_semaphore(%580 : memref<!tpu.dma_semaphore, #tpu.memory_space<semaphore_mem>>)
      %c30_i32_384 = arith.constant 30 : i32
      %581 = arith.addi %340, %c30_i32_384 : i32
      %582 = arith.index_cast %581 : i32 to index
      %583 = memref.load %arg2[%582] : memref<256xi32, #tpu.memory_space<smem>>
      %c0_i32_385 = arith.constant 0 : i32
      %c0_i32_386 = arith.constant 0 : i32
      %c0_i32_387 = arith.constant 0 : i32
      %584 = tpu.memref_slice %arg3[%583, %c0_i32_387] : memref<128x128xf32, #tpu.memory_space<any>> -> memref<1x128xf32, #tpu.memory_space<any>>
      %c30_i32_388 = arith.constant 30 : i32
      %c0_i32_389 = arith.constant 0 : i32
      %585 = tpu.memref_slice %arg6[%c0_i32_385, %c30_i32_388, %c0_i32_389] : memref<2x64x128xf32, #tpu.memory_space<vmem>> -> memref<1x1x128xf32, #tpu.memory_space<vmem>>
      %586 = tpu.memref_squeeze %585 : memref<1x1x128xf32, #tpu.memory_space<vmem>> -> memref<1x128xf32, #tpu.memory_space<vmem>>
      %587 = tpu.memref_slice %arg7[%c0_i32_386] : memref<2x!tpu.dma_semaphore, #tpu.memory_space<semaphore_mem>> -> memref<1x!tpu.dma_semaphore, #tpu.memory_space<semaphore_mem>>
      %588 = tpu.memref_squeeze %587 : memref<1x!tpu.dma_semaphore, #tpu.memory_space<semaphore_mem>> -> memref<!tpu.dma_semaphore, #tpu.memory_space<semaphore_mem>>
      tpu.enqueue_dma source(%584 : memref<1x128xf32, #tpu.memory_space<any>>) target(%586 : memref<1x128xf32, #tpu.memory_space<vmem>>) target_semaphore(%588 : memref<!tpu.dma_semaphore, #tpu.memory_space<semaphore_mem>>)
      %c31_i32_390 = arith.constant 31 : i32
      %589 = arith.addi %340, %c31_i32_390 : i32
      %590 = arith.index_cast %589 : i32 to index
      %591 = memref.load %arg2[%590] : memref<256xi32, #tpu.memory_space<smem>>
      %c0_i32_391 = arith.constant 0 : i32
      %c0_i32_392 = arith.constant 0 : i32
      %c0_i32_393 = arith.constant 0 : i32
      %592 = tpu.memref_slice %arg3[%591, %c0_i32_393] : memref<128x128xf32, #tpu.memory_space<any>> -> memref<1x128xf32, #tpu.memory_space<any>>
      %c31_i32_394 = arith.constant 31 : i32
      %c0_i32_395 = arith.constant 0 : i32
      %593 = tpu.memref_slice %arg6[%c0_i32_391, %c31_i32_394, %c0_i32_395] : memref<2x64x128xf32, #tpu.memory_space<vmem>> -> memref<1x1x128xf32, #tpu.memory_space<vmem>>
      %594 = tpu.memref_squeeze %593 : memref<1x1x128xf32, #tpu.memory_space<vmem>> -> memref<1x128xf32, #tpu.memory_space<vmem>>
      %595 = tpu.memref_slice %arg7[%c0_i32_392] : memref<2x!tpu.dma_semaphore, #tpu.memory_space<semaphore_mem>> -> memref<1x!tpu.dma_semaphore, #tpu.memory_space<semaphore_mem>>
      %596 = tpu.memref_squeeze %595 : memref<1x!tpu.dma_semaphore, #tpu.memory_space<semaphore_mem>> -> memref<!tpu.dma_semaphore, #tpu.memory_space<semaphore_mem>>
      tpu.enqueue_dma source(%592 : memref<1x128xf32, #tpu.memory_space<any>>) target(%594 : memref<1x128xf32, #tpu.memory_space<vmem>>) target_semaphore(%596 : memref<!tpu.dma_semaphore, #tpu.memory_space<semaphore_mem>>)
      %c32_i32_396 = arith.constant 32 : i32
      %597 = arith.addi %340, %c32_i32_396 : i32
      %598 = arith.index_cast %597 : i32 to index
      %599 = memref.load %arg2[%598] : memref<256xi32, #tpu.memory_space<smem>>
      %c0_i32_397 = arith.constant 0 : i32
      %c0_i32_398 = arith.constant 0 : i32
      %c0_i32_399 = arith.constant 0 : i32
      %600 = tpu.memref_slice %arg3[%599, %c0_i32_399] : memref<128x128xf32, #tpu.memory_space<any>> -> memref<1x128xf32, #tpu.memory_space<any>>
      %c32_i32_400 = arith.constant 32 : i32
      %c0_i32_401 = arith.constant 0 : i32
      %601 = tpu.memref_slice %arg6[%c0_i32_397, %c32_i32_400, %c0_i32_401] : memref<2x64x128xf32, #tpu.memory_space<vmem>> -> memref<1x1x128xf32, #tpu.memory_space<vmem>>
      %602 = tpu.memref_squeeze %601 : memref<1x1x128xf32, #tpu.memory_space<vmem>> -> memref<1x128xf32, #tpu.memory_space<vmem>>
      %603 = tpu.memref_slice %arg7[%c0_i32_398] : memref<2x!tpu.dma_semaphore, #tpu.memory_space<semaphore_mem>> -> memref<1x!tpu.dma_semaphore, #tpu.memory_space<semaphore_mem>>
      %604 = tpu.memref_squeeze %603 : memref<1x!tpu.dma_semaphore, #tpu.memory_space<semaphore_mem>> -> memref<!tpu.dma_semaphore, #tpu.memory_space<semaphore_mem>>
      tpu.enqueue_dma source(%600 : memref<1x128xf32, #tpu.memory_space<any>>) target(%602 : memref<1x128xf32, #tpu.memory_space<vmem>>) target_semaphore(%604 : memref<!tpu.dma_semaphore, #tpu.memory_space<semaphore_mem>>)
      %c33_i32_402 = arith.constant 33 : i32
      %605 = arith.addi %340, %c33_i32_402 : i32
      %606 = arith.index_cast %605 : i32 to index
      %607 = memref.load %arg2[%606] : memref<256xi32, #tpu.memory_space<smem>>
      %c0_i32_403 = arith.constant 0 : i32
      %c0_i32_404 = arith.constant 0 : i32
      %c0_i32_405 = arith.constant 0 : i32
      %608 = tpu.memref_slice %arg3[%607, %c0_i32_405] : memref<128x128xf32, #tpu.memory_space<any>> -> memref<1x128xf32, #tpu.memory_space<any>>
      %c33_i32_406 = arith.constant 33 : i32
      %c0_i32_407 = arith.constant 0 : i32
      %609 = tpu.memref_slice %arg6[%c0_i32_403, %c33_i32_406, %c0_i32_407] : memref<2x64x128xf32, #tpu.memory_space<vmem>> -> memref<1x1x128xf32, #tpu.memory_space<vmem>>
      %610 = tpu.memref_squeeze %609 : memref<1x1x128xf32, #tpu.memory_space<vmem>> -> memref<1x128xf32, #tpu.memory_space<vmem>>
      %611 = tpu.memref_slice %arg7[%c0_i32_404] : memref<2x!tpu.dma_semaphore, #tpu.memory_space<semaphore_mem>> -> memref<1x!tpu.dma_semaphore, #tpu.memory_space<semaphore_mem>>
      %612 = tpu.memref_squeeze %611 : memref<1x!tpu.dma_semaphore, #tpu.memory_space<semaphore_mem>> -> memref<!tpu.dma_semaphore, #tpu.memory_space<semaphore_mem>>
      tpu.enqueue_dma source(%608 : memref<1x128xf32, #tpu.memory_space<any>>) target(%610 : memref<1x128xf32, #tpu.memory_space<vmem>>) target_semaphore(%612 : memref<!tpu.dma_semaphore, #tpu.memory_space<semaphore_mem>>)
      %c34_i32_408 = arith.constant 34 : i32
      %613 = arith.addi %340, %c34_i32_408 : i32
      %614 = arith.index_cast %613 : i32 to index
      %615 = memref.load %arg2[%614] : memref<256xi32, #tpu.memory_space<smem>>
      %c0_i32_409 = arith.constant 0 : i32
      %c0_i32_410 = arith.constant 0 : i32
      %c0_i32_411 = arith.constant 0 : i32
      %616 = tpu.memref_slice %arg3[%615, %c0_i32_411] : memref<128x128xf32, #tpu.memory_space<any>> -> memref<1x128xf32, #tpu.memory_space<any>>
      %c34_i32_412 = arith.constant 34 : i32
      %c0_i32_413 = arith.constant 0 : i32
      %617 = tpu.memref_slice %arg6[%c0_i32_409, %c34_i32_412, %c0_i32_413] : memref<2x64x128xf32, #tpu.memory_space<vmem>> -> memref<1x1x128xf32, #tpu.memory_space<vmem>>
      %618 = tpu.memref_squeeze %617 : memref<1x1x128xf32, #tpu.memory_space<vmem>> -> memref<1x128xf32, #tpu.memory_space<vmem>>
      %619 = tpu.memref_slice %arg7[%c0_i32_410] : memref<2x!tpu.dma_semaphore, #tpu.memory_space<semaphore_mem>> -> memref<1x!tpu.dma_semaphore, #tpu.memory_space<semaphore_mem>>
      %620 = tpu.memref_squeeze %619 : memref<1x!tpu.dma_semaphore, #tpu.memory_space<semaphore_mem>> -> memref<!tpu.dma_semaphore, #tpu.memory_space<semaphore_mem>>
      tpu.enqueue_dma source(%616 : memref<1x128xf32, #tpu.memory_space<any>>) target(%618 : memref<1x128xf32, #tpu.memory_space<vmem>>) target_semaphore(%620 : memref<!tpu.dma_semaphore, #tpu.memory_space<semaphore_mem>>)
      %c35_i32_414 = arith.constant 35 : i32
      %621 = arith.addi %340, %c35_i32_414 : i32
      %622 = arith.index_cast %621 : i32 to index
      %623 = memref.load %arg2[%622] : memref<256xi32, #tpu.memory_space<smem>>
      %c0_i32_415 = arith.constant 0 : i32
      %c0_i32_416 = arith.constant 0 : i32
      %c0_i32_417 = arith.constant 0 : i32
      %624 = tpu.memref_slice %arg3[%623, %c0_i32_417] : memref<128x128xf32, #tpu.memory_space<any>> -> memref<1x128xf32, #tpu.memory_space<any>>
      %c35_i32_418 = arith.constant 35 : i32
      %c0_i32_419 = arith.constant 0 : i32
      %625 = tpu.memref_slice %arg6[%c0_i32_415, %c35_i32_418, %c0_i32_419] : memref<2x64x128xf32, #tpu.memory_space<vmem>> -> memref<1x1x128xf32, #tpu.memory_space<vmem>>
      %626 = tpu.memref_squeeze %625 : memref<1x1x128xf32, #tpu.memory_space<vmem>> -> memref<1x128xf32, #tpu.memory_space<vmem>>
      %627 = tpu.memref_slice %arg7[%c0_i32_416] : memref<2x!tpu.dma_semaphore, #tpu.memory_space<semaphore_mem>> -> memref<1x!tpu.dma_semaphore, #tpu.memory_space<semaphore_mem>>
      %628 = tpu.memref_squeeze %627 : memref<1x!tpu.dma_semaphore, #tpu.memory_space<semaphore_mem>> -> memref<!tpu.dma_semaphore, #tpu.memory_space<semaphore_mem>>
      tpu.enqueue_dma source(%624 : memref<1x128xf32, #tpu.memory_space<any>>) target(%626 : memref<1x128xf32, #tpu.memory_space<vmem>>) target_semaphore(%628 : memref<!tpu.dma_semaphore, #tpu.memory_space<semaphore_mem>>)
      %c36_i32_420 = arith.constant 36 : i32
      %629 = arith.addi %340, %c36_i32_420 : i32
      %630 = arith.index_cast %629 : i32 to index
      %631 = memref.load %arg2[%630] : memref<256xi32, #tpu.memory_space<smem>>
      %c0_i32_421 = arith.constant 0 : i32
      %c0_i32_422 = arith.constant 0 : i32
      %c0_i32_423 = arith.constant 0 : i32
      %632 = tpu.memref_slice %arg3[%631, %c0_i32_423] : memref<128x128xf32, #tpu.memory_space<any>> -> memref<1x128xf32, #tpu.memory_space<any>>
      %c36_i32_424 = arith.constant 36 : i32
      %c0_i32_425 = arith.constant 0 : i32
      %633 = tpu.memref_slice %arg6[%c0_i32_421, %c36_i32_424, %c0_i32_425] : memref<2x64x128xf32, #tpu.memory_space<vmem>> -> memref<1x1x128xf32, #tpu.memory_space<vmem>>
      %634 = tpu.memref_squeeze %633 : memref<1x1x128xf32, #tpu.memory_space<vmem>> -> memref<1x128xf32, #tpu.memory_space<vmem>>
      %635 = tpu.memref_slice %arg7[%c0_i32_422] : memref<2x!tpu.dma_semaphore, #tpu.memory_space<semaphore_mem>> -> memref<1x!tpu.dma_semaphore, #tpu.memory_space<semaphore_mem>>
      %636 = tpu.memref_squeeze %635 : memref<1x!tpu.dma_semaphore, #tpu.memory_space<semaphore_mem>> -> memref<!tpu.dma_semaphore, #tpu.memory_space<semaphore_mem>>
      tpu.enqueue_dma source(%632 : memref<1x128xf32, #tpu.memory_space<any>>) target(%634 : memref<1x128xf32, #tpu.memory_space<vmem>>) target_semaphore(%636 : memref<!tpu.dma_semaphore, #tpu.memory_space<semaphore_mem>>)
      %c37_i32_426 = arith.constant 37 : i32
      %637 = arith.addi %340, %c37_i32_426 : i32
      %638 = arith.index_cast %637 : i32 to index
      %639 = memref.load %arg2[%638] : memref<256xi32, #tpu.memory_space<smem>>
      %c0_i32_427 = arith.constant 0 : i32
      %c0_i32_428 = arith.constant 0 : i32
      %c0_i32_429 = arith.constant 0 : i32
      %640 = tpu.memref_slice %arg3[%639, %c0_i32_429] : memref<128x128xf32, #tpu.memory_space<any>> -> memref<1x128xf32, #tpu.memory_space<any>>
      %c37_i32_430 = arith.constant 37 : i32
      %c0_i32_431 = arith.constant 0 : i32
      %641 = tpu.memref_slice %arg6[%c0_i32_427, %c37_i32_430, %c0_i32_431] : memref<2x64x128xf32, #tpu.memory_space<vmem>> -> memref<1x1x128xf32, #tpu.memory_space<vmem>>
      %642 = tpu.memref_squeeze %641 : memref<1x1x128xf32, #tpu.memory_space<vmem>> -> memref<1x128xf32, #tpu.memory_space<vmem>>
      %643 = tpu.memref_slice %arg7[%c0_i32_428] : memref<2x!tpu.dma_semaphore, #tpu.memory_space<semaphore_mem>> -> memref<1x!tpu.dma_semaphore, #tpu.memory_space<semaphore_mem>>
      %644 = tpu.memref_squeeze %643 : memref<1x!tpu.dma_semaphore, #tpu.memory_space<semaphore_mem>> -> memref<!tpu.dma_semaphore, #tpu.memory_space<semaphore_mem>>
      tpu.enqueue_dma source(%640 : memref<1x128xf32, #tpu.memory_space<any>>) target(%642 : memref<1x128xf32, #tpu.memory_space<vmem>>) target_semaphore(%644 : memref<!tpu.dma_semaphore, #tpu.memory_space<semaphore_mem>>)
      %c38_i32_432 = arith.constant 38 : i32
      %645 = arith.addi %340, %c38_i32_432 : i32
      %646 = arith.index_cast %645 : i32 to index
      %647 = memref.load %arg2[%646] : memref<256xi32, #tpu.memory_space<smem>>
      %c0_i32_433 = arith.constant 0 : i32
      %c0_i32_434 = arith.constant 0 : i32
      %c0_i32_435 = arith.constant 0 : i32
      %648 = tpu.memref_slice %arg3[%647, %c0_i32_435] : memref<128x128xf32, #tpu.memory_space<any>> -> memref<1x128xf32, #tpu.memory_space<any>>
      %c38_i32_436 = arith.constant 38 : i32
      %c0_i32_437 = arith.constant 0 : i32
      %649 = tpu.memref_slice %arg6[%c0_i32_433, %c38_i32_436, %c0_i32_437] : memref<2x64x128xf32, #tpu.memory_space<vmem>> -> memref<1x1x128xf32, #tpu.memory_space<vmem>>
      %650 = tpu.memref_squeeze %649 : memref<1x1x128xf32, #tpu.memory_space<vmem>> -> memref<1x128xf32, #tpu.memory_space<vmem>>
      %651 = tpu.memref_slice %arg7[%c0_i32_434] : memref<2x!tpu.dma_semaphore, #tpu.memory_space<semaphore_mem>> -> memref<1x!tpu.dma_semaphore, #tpu.memory_space<semaphore_mem>>
      %652 = tpu.memref_squeeze %651 : memref<1x!tpu.dma_semaphore, #tpu.memory_space<semaphore_mem>> -> memref<!tpu.dma_semaphore, #tpu.memory_space<semaphore_mem>>
      tpu.enqueue_dma source(%648 : memref<1x128xf32, #tpu.memory_space<any>>) target(%650 : memref<1x128xf32, #tpu.memory_space<vmem>>) target_semaphore(%652 : memref<!tpu.dma_semaphore, #tpu.memory_space<semaphore_mem>>)
      %c39_i32_438 = arith.constant 39 : i32
      %653 = arith.addi %340, %c39_i32_438 : i32
      %654 = arith.index_cast %653 : i32 to index
      %655 = memref.load %arg2[%654] : memref<256xi32, #tpu.memory_space<smem>>
      %c0_i32_439 = arith.constant 0 : i32
      %c0_i32_440 = arith.constant 0 : i32
      %c0_i32_441 = arith.constant 0 : i32
      %656 = tpu.memref_slice %arg3[%655, %c0_i32_441] : memref<128x128xf32, #tpu.memory_space<any>> -> memref<1x128xf32, #tpu.memory_space<any>>
      %c39_i32_442 = arith.constant 39 : i32
      %c0_i32_443 = arith.constant 0 : i32
      %657 = tpu.memref_slice %arg6[%c0_i32_439, %c39_i32_442, %c0_i32_443] : memref<2x64x128xf32, #tpu.memory_space<vmem>> -> memref<1x1x128xf32, #tpu.memory_space<vmem>>
      %658 = tpu.memref_squeeze %657 : memref<1x1x128xf32, #tpu.memory_space<vmem>> -> memref<1x128xf32, #tpu.memory_space<vmem>>
      %659 = tpu.memref_slice %arg7[%c0_i32_440] : memref<2x!tpu.dma_semaphore, #tpu.memory_space<semaphore_mem>> -> memref<1x!tpu.dma_semaphore, #tpu.memory_space<semaphore_mem>>
      %660 = tpu.memref_squeeze %659 : memref<1x!tpu.dma_semaphore, #tpu.memory_space<semaphore_mem>> -> memref<!tpu.dma_semaphore, #tpu.memory_space<semaphore_mem>>
      tpu.enqueue_dma source(%656 : memref<1x128xf32, #tpu.memory_space<any>>) target(%658 : memref<1x128xf32, #tpu.memory_space<vmem>>) target_semaphore(%660 : memref<!tpu.dma_semaphore, #tpu.memory_space<semaphore_mem>>)
      %c40_i32_444 = arith.constant 40 : i32
      %661 = arith.addi %340, %c40_i32_444 : i32
      %662 = arith.index_cast %661 : i32 to index
      %663 = memref.load %arg2[%662] : memref<256xi32, #tpu.memory_space<smem>>
      %c0_i32_445 = arith.constant 0 : i32
      %c0_i32_446 = arith.constant 0 : i32
      %c0_i32_447 = arith.constant 0 : i32
      %664 = tpu.memref_slice %arg3[%663, %c0_i32_447] : memref<128x128xf32, #tpu.memory_space<any>> -> memref<1x128xf32, #tpu.memory_space<any>>
      %c40_i32_448 = arith.constant 40 : i32
      %c0_i32_449 = arith.constant 0 : i32
      %665 = tpu.memref_slice %arg6[%c0_i32_445, %c40_i32_448, %c0_i32_449] : memref<2x64x128xf32, #tpu.memory_space<vmem>> -> memref<1x1x128xf32, #tpu.memory_space<vmem>>
      %666 = tpu.memref_squeeze %665 : memref<1x1x128xf32, #tpu.memory_space<vmem>> -> memref<1x128xf32, #tpu.memory_space<vmem>>
      %667 = tpu.memref_slice %arg7[%c0_i32_446] : memref<2x!tpu.dma_semaphore, #tpu.memory_space<semaphore_mem>> -> memref<1x!tpu.dma_semaphore, #tpu.memory_space<semaphore_mem>>
      %668 = tpu.memref_squeeze %667 : memref<1x!tpu.dma_semaphore, #tpu.memory_space<semaphore_mem>> -> memref<!tpu.dma_semaphore, #tpu.memory_space<semaphore_mem>>
      tpu.enqueue_dma source(%664 : memref<1x128xf32, #tpu.memory_space<any>>) target(%666 : memref<1x128xf32, #tpu.memory_space<vmem>>) target_semaphore(%668 : memref<!tpu.dma_semaphore, #tpu.memory_space<semaphore_mem>>)
      %c41_i32_450 = arith.constant 41 : i32
      %669 = arith.addi %340, %c41_i32_450 : i32
      %670 = arith.index_cast %669 : i32 to index
      %671 = memref.load %arg2[%670] : memref<256xi32, #tpu.memory_space<smem>>
      %c0_i32_451 = arith.constant 0 : i32
      %c0_i32_452 = arith.constant 0 : i32
      %c0_i32_453 = arith.constant 0 : i32
      %672 = tpu.memref_slice %arg3[%671, %c0_i32_453] : memref<128x128xf32, #tpu.memory_space<any>> -> memref<1x128xf32, #tpu.memory_space<any>>
      %c41_i32_454 = arith.constant 41 : i32
      %c0_i32_455 = arith.constant 0 : i32
      %673 = tpu.memref_slice %arg6[%c0_i32_451, %c41_i32_454, %c0_i32_455] : memref<2x64x128xf32, #tpu.memory_space<vmem>> -> memref<1x1x128xf32, #tpu.memory_space<vmem>>
      %674 = tpu.memref_squeeze %673 : memref<1x1x128xf32, #tpu.memory_space<vmem>> -> memref<1x128xf32, #tpu.memory_space<vmem>>
      %675 = tpu.memref_slice %arg7[%c0_i32_452] : memref<2x!tpu.dma_semaphore, #tpu.memory_space<semaphore_mem>> -> memref<1x!tpu.dma_semaphore, #tpu.memory_space<semaphore_mem>>
      %676 = tpu.memref_squeeze %675 : memref<1x!tpu.dma_semaphore, #tpu.memory_space<semaphore_mem>> -> memref<!tpu.dma_semaphore, #tpu.memory_space<semaphore_mem>>
      tpu.enqueue_dma source(%672 : memref<1x128xf32, #tpu.memory_space<any>>) target(%674 : memref<1x128xf32, #tpu.memory_space<vmem>>) target_semaphore(%676 : memref<!tpu.dma_semaphore, #tpu.memory_space<semaphore_mem>>)
      %c42_i32_456 = arith.constant 42 : i32
      %677 = arith.addi %340, %c42_i32_456 : i32
      %678 = arith.index_cast %677 : i32 to index
      %679 = memref.load %arg2[%678] : memref<256xi32, #tpu.memory_space<smem>>
      %c0_i32_457 = arith.constant 0 : i32
      %c0_i32_458 = arith.constant 0 : i32
      %c0_i32_459 = arith.constant 0 : i32
      %680 = tpu.memref_slice %arg3[%679, %c0_i32_459] : memref<128x128xf32, #tpu.memory_space<any>> -> memref<1x128xf32, #tpu.memory_space<any>>
      %c42_i32_460 = arith.constant 42 : i32
      %c0_i32_461 = arith.constant 0 : i32
      %681 = tpu.memref_slice %arg6[%c0_i32_457, %c42_i32_460, %c0_i32_461] : memref<2x64x128xf32, #tpu.memory_space<vmem>> -> memref<1x1x128xf32, #tpu.memory_space<vmem>>
      %682 = tpu.memref_squeeze %681 : memref<1x1x128xf32, #tpu.memory_space<vmem>> -> memref<1x128xf32, #tpu.memory_space<vmem>>
      %683 = tpu.memref_slice %arg7[%c0_i32_458] : memref<2x!tpu.dma_semaphore, #tpu.memory_space<semaphore_mem>> -> memref<1x!tpu.dma_semaphore, #tpu.memory_space<semaphore_mem>>
      %684 = tpu.memref_squeeze %683 : memref<1x!tpu.dma_semaphore, #tpu.memory_space<semaphore_mem>> -> memref<!tpu.dma_semaphore, #tpu.memory_space<semaphore_mem>>
      tpu.enqueue_dma source(%680 : memref<1x128xf32, #tpu.memory_space<any>>) target(%682 : memref<1x128xf32, #tpu.memory_space<vmem>>) target_semaphore(%684 : memref<!tpu.dma_semaphore, #tpu.memory_space<semaphore_mem>>)
      %c43_i32_462 = arith.constant 43 : i32
      %685 = arith.addi %340, %c43_i32_462 : i32
      %686 = arith.index_cast %685 : i32 to index
      %687 = memref.load %arg2[%686] : memref<256xi32, #tpu.memory_space<smem>>
      %c0_i32_463 = arith.constant 0 : i32
      %c0_i32_464 = arith.constant 0 : i32
      %c0_i32_465 = arith.constant 0 : i32
      %688 = tpu.memref_slice %arg3[%687, %c0_i32_465] : memref<128x128xf32, #tpu.memory_space<any>> -> memref<1x128xf32, #tpu.memory_space<any>>
      %c43_i32_466 = arith.constant 43 : i32
      %c0_i32_467 = arith.constant 0 : i32
      %689 = tpu.memref_slice %arg6[%c0_i32_463, %c43_i32_466, %c0_i32_467] : memref<2x64x128xf32, #tpu.memory_space<vmem>> -> memref<1x1x128xf32, #tpu.memory_space<vmem>>
      %690 = tpu.memref_squeeze %689 : memref<1x1x128xf32, #tpu.memory_space<vmem>> -> memref<1x128xf32, #tpu.memory_space<vmem>>
      %691 = tpu.memref_slice %arg7[%c0_i32_464] : memref<2x!tpu.dma_semaphore, #tpu.memory_space<semaphore_mem>> -> memref<1x!tpu.dma_semaphore, #tpu.memory_space<semaphore_mem>>
      %692 = tpu.memref_squeeze %691 : memref<1x!tpu.dma_semaphore, #tpu.memory_space<semaphore_mem>> -> memref<!tpu.dma_semaphore, #tpu.memory_space<semaphore_mem>>
      tpu.enqueue_dma source(%688 : memref<1x128xf32, #tpu.memory_space<any>>) target(%690 : memref<1x128xf32, #tpu.memory_space<vmem>>) target_semaphore(%692 : memref<!tpu.dma_semaphore, #tpu.memory_space<semaphore_mem>>)
      %c44_i32_468 = arith.constant 44 : i32
      %693 = arith.addi %340, %c44_i32_468 : i32
      %694 = arith.index_cast %693 : i32 to index
      %695 = memref.load %arg2[%694] : memref<256xi32, #tpu.memory_space<smem>>
      %c0_i32_469 = arith.constant 0 : i32
      %c0_i32_470 = arith.constant 0 : i32
      %c0_i32_471 = arith.constant 0 : i32
      %696 = tpu.memref_slice %arg3[%695, %c0_i32_471] : memref<128x128xf32, #tpu.memory_space<any>> -> memref<1x128xf32, #tpu.memory_space<any>>
      %c44_i32_472 = arith.constant 44 : i32
      %c0_i32_473 = arith.constant 0 : i32
      %697 = tpu.memref_slice %arg6[%c0_i32_469, %c44_i32_472, %c0_i32_473] : memref<2x64x128xf32, #tpu.memory_space<vmem>> -> memref<1x1x128xf32, #tpu.memory_space<vmem>>
      %698 = tpu.memref_squeeze %697 : memref<1x1x128xf32, #tpu.memory_space<vmem>> -> memref<1x128xf32, #tpu.memory_space<vmem>>
      %699 = tpu.memref_slice %arg7[%c0_i32_470] : memref<2x!tpu.dma_semaphore, #tpu.memory_space<semaphore_mem>> -> memref<1x!tpu.dma_semaphore, #tpu.memory_space<semaphore_mem>>
      %700 = tpu.memref_squeeze %699 : memref<1x!tpu.dma_semaphore, #tpu.memory_space<semaphore_mem>> -> memref<!tpu.dma_semaphore, #tpu.memory_space<semaphore_mem>>
      tpu.enqueue_dma source(%696 : memref<1x128xf32, #tpu.memory_space<any>>) target(%698 : memref<1x128xf32, #tpu.memory_space<vmem>>) target_semaphore(%700 : memref<!tpu.dma_semaphore, #tpu.memory_space<semaphore_mem>>)
      %c45_i32_474 = arith.constant 45 : i32
      %701 = arith.addi %340, %c45_i32_474 : i32
      %702 = arith.index_cast %701 : i32 to index
      %703 = memref.load %arg2[%702] : memref<256xi32, #tpu.memory_space<smem>>
      %c0_i32_475 = arith.constant 0 : i32
      %c0_i32_476 = arith.constant 0 : i32
      %c0_i32_477 = arith.constant 0 : i32
      %704 = tpu.memref_slice %arg3[%703, %c0_i32_477] : memref<128x128xf32, #tpu.memory_space<any>> -> memref<1x128xf32, #tpu.memory_space<any>>
      %c45_i32_478 = arith.constant 45 : i32
      %c0_i32_479 = arith.constant 0 : i32
      %705 = tpu.memref_slice %arg6[%c0_i32_475, %c45_i32_478, %c0_i32_479] : memref<2x64x128xf32, #tpu.memory_space<vmem>> -> memref<1x1x128xf32, #tpu.memory_space<vmem>>
      %706 = tpu.memref_squeeze %705 : memref<1x1x128xf32, #tpu.memory_space<vmem>> -> memref<1x128xf32, #tpu.memory_space<vmem>>
      %707 = tpu.memref_slice %arg7[%c0_i32_476] : memref<2x!tpu.dma_semaphore, #tpu.memory_space<semaphore_mem>> -> memref<1x!tpu.dma_semaphore, #tpu.memory_space<semaphore_mem>>
      %708 = tpu.memref_squeeze %707 : memref<1x!tpu.dma_semaphore, #tpu.memory_space<semaphore_mem>> -> memref<!tpu.dma_semaphore, #tpu.memory_space<semaphore_mem>>
      tpu.enqueue_dma source(%704 : memref<1x128xf32, #tpu.memory_space<any>>) target(%706 : memref<1x128xf32, #tpu.memory_space<vmem>>) target_semaphore(%708 : memref<!tpu.dma_semaphore, #tpu.memory_space<semaphore_mem>>)
      %c46_i32_480 = arith.constant 46 : i32
      %709 = arith.addi %340, %c46_i32_480 : i32
      %710 = arith.index_cast %709 : i32 to index
      %711 = memref.load %arg2[%710] : memref<256xi32, #tpu.memory_space<smem>>
      %c0_i32_481 = arith.constant 0 : i32
      %c0_i32_482 = arith.constant 0 : i32
      %c0_i32_483 = arith.constant 0 : i32
      %712 = tpu.memref_slice %arg3[%711, %c0_i32_483] : memref<128x128xf32, #tpu.memory_space<any>> -> memref<1x128xf32, #tpu.memory_space<any>>
      %c46_i32_484 = arith.constant 46 : i32
      %c0_i32_485 = arith.constant 0 : i32
      %713 = tpu.memref_slice %arg6[%c0_i32_481, %c46_i32_484, %c0_i32_485] : memref<2x64x128xf32, #tpu.memory_space<vmem>> -> memref<1x1x128xf32, #tpu.memory_space<vmem>>
      %714 = tpu.memref_squeeze %713 : memref<1x1x128xf32, #tpu.memory_space<vmem>> -> memref<1x128xf32, #tpu.memory_space<vmem>>
      %715 = tpu.memref_slice %arg7[%c0_i32_482] : memref<2x!tpu.dma_semaphore, #tpu.memory_space<semaphore_mem>> -> memref<1x!tpu.dma_semaphore, #tpu.memory_space<semaphore_mem>>
      %716 = tpu.memref_squeeze %715 : memref<1x!tpu.dma_semaphore, #tpu.memory_space<semaphore_mem>> -> memref<!tpu.dma_semaphore, #tpu.memory_space<semaphore_mem>>
      tpu.enqueue_dma source(%712 : memref<1x128xf32, #tpu.memory_space<any>>) target(%714 : memref<1x128xf32, #tpu.memory_space<vmem>>) target_semaphore(%716 : memref<!tpu.dma_semaphore, #tpu.memory_space<semaphore_mem>>)
      %c47_i32_486 = arith.constant 47 : i32
      %717 = arith.addi %340, %c47_i32_486 : i32
      %718 = arith.index_cast %717 : i32 to index
      %719 = memref.load %arg2[%718] : memref<256xi32, #tpu.memory_space<smem>>
      %c0_i32_487 = arith.constant 0 : i32
      %c0_i32_488 = arith.constant 0 : i32
      %c0_i32_489 = arith.constant 0 : i32
      %720 = tpu.memref_slice %arg3[%719, %c0_i32_489] : memref<128x128xf32, #tpu.memory_space<any>> -> memref<1x128xf32, #tpu.memory_space<any>>
      %c47_i32_490 = arith.constant 47 : i32
      %c0_i32_491 = arith.constant 0 : i32
      %721 = tpu.memref_slice %arg6[%c0_i32_487, %c47_i32_490, %c0_i32_491] : memref<2x64x128xf32, #tpu.memory_space<vmem>> -> memref<1x1x128xf32, #tpu.memory_space<vmem>>
      %722 = tpu.memref_squeeze %721 : memref<1x1x128xf32, #tpu.memory_space<vmem>> -> memref<1x128xf32, #tpu.memory_space<vmem>>
      %723 = tpu.memref_slice %arg7[%c0_i32_488] : memref<2x!tpu.dma_semaphore, #tpu.memory_space<semaphore_mem>> -> memref<1x!tpu.dma_semaphore, #tpu.memory_space<semaphore_mem>>
      %724 = tpu.memref_squeeze %723 : memref<1x!tpu.dma_semaphore, #tpu.memory_space<semaphore_mem>> -> memref<!tpu.dma_semaphore, #tpu.memory_space<semaphore_mem>>
      tpu.enqueue_dma source(%720 : memref<1x128xf32, #tpu.memory_space<any>>) target(%722 : memref<1x128xf32, #tpu.memory_space<vmem>>) target_semaphore(%724 : memref<!tpu.dma_semaphore, #tpu.memory_space<semaphore_mem>>)
      %c48_i32_492 = arith.constant 48 : i32
      %725 = arith.addi %340, %c48_i32_492 : i32
      %726 = arith.index_cast %725 : i32 to index
      %727 = memref.load %arg2[%726] : memref<256xi32, #tpu.memory_space<smem>>
      %c0_i32_493 = arith.constant 0 : i32
      %c0_i32_494 = arith.constant 0 : i32
      %c0_i32_495 = arith.constant 0 : i32
      %728 = tpu.memref_slice %arg3[%727, %c0_i32_495] : memref<128x128xf32, #tpu.memory_space<any>> -> memref<1x128xf32, #tpu.memory_space<any>>
      %c48_i32_496 = arith.constant 48 : i32
      %c0_i32_497 = arith.constant 0 : i32
      %729 = tpu.memref_slice %arg6[%c0_i32_493, %c48_i32_496, %c0_i32_497] : memref<2x64x128xf32, #tpu.memory_space<vmem>> -> memref<1x1x128xf32, #tpu.memory_space<vmem>>
      %730 = tpu.memref_squeeze %729 : memref<1x1x128xf32, #tpu.memory_space<vmem>> -> memref<1x128xf32, #tpu.memory_space<vmem>>
      %731 = tpu.memref_slice %arg7[%c0_i32_494] : memref<2x!tpu.dma_semaphore, #tpu.memory_space<semaphore_mem>> -> memref<1x!tpu.dma_semaphore, #tpu.memory_space<semaphore_mem>>
      %732 = tpu.memref_squeeze %731 : memref<1x!tpu.dma_semaphore, #tpu.memory_space<semaphore_mem>> -> memref<!tpu.dma_semaphore, #tpu.memory_space<semaphore_mem>>
      tpu.enqueue_dma source(%728 : memref<1x128xf32, #tpu.memory_space<any>>) target(%730 : memref<1x128xf32, #tpu.memory_space<vmem>>) target_semaphore(%732 : memref<!tpu.dma_semaphore, #tpu.memory_space<semaphore_mem>>)
      %c49_i32_498 = arith.constant 49 : i32
      %733 = arith.addi %340, %c49_i32_498 : i32
      %734 = arith.index_cast %733 : i32 to index
      %735 = memref.load %arg2[%734] : memref<256xi32, #tpu.memory_space<smem>>
      %c0_i32_499 = arith.constant 0 : i32
      %c0_i32_500 = arith.constant 0 : i32
      %c0_i32_501 = arith.constant 0 : i32
      %736 = tpu.memref_slice %arg3[%735, %c0_i32_501] : memref<128x128xf32, #tpu.memory_space<any>> -> memref<1x128xf32, #tpu.memory_space<any>>
      %c49_i32_502 = arith.constant 49 : i32
      %c0_i32_503 = arith.constant 0 : i32
      %737 = tpu.memref_slice %arg6[%c0_i32_499, %c49_i32_502, %c0_i32_503] : memref<2x64x128xf32, #tpu.memory_space<vmem>> -> memref<1x1x128xf32, #tpu.memory_space<vmem>>
      %738 = tpu.memref_squeeze %737 : memref<1x1x128xf32, #tpu.memory_space<vmem>> -> memref<1x128xf32, #tpu.memory_space<vmem>>
      %739 = tpu.memref_slice %arg7[%c0_i32_500] : memref<2x!tpu.dma_semaphore, #tpu.memory_space<semaphore_mem>> -> memref<1x!tpu.dma_semaphore, #tpu.memory_space<semaphore_mem>>
      %740 = tpu.memref_squeeze %739 : memref<1x!tpu.dma_semaphore, #tpu.memory_space<semaphore_mem>> -> memref<!tpu.dma_semaphore, #tpu.memory_space<semaphore_mem>>
      tpu.enqueue_dma source(%736 : memref<1x128xf32, #tpu.memory_space<any>>) target(%738 : memref<1x128xf32, #tpu.memory_space<vmem>>) target_semaphore(%740 : memref<!tpu.dma_semaphore, #tpu.memory_space<semaphore_mem>>)
      %c50_i32_504 = arith.constant 50 : i32
      %741 = arith.addi %340, %c50_i32_504 : i32
      %742 = arith.index_cast %741 : i32 to index
      %743 = memref.load %arg2[%742] : memref<256xi32, #tpu.memory_space<smem>>
      %c0_i32_505 = arith.constant 0 : i32
      %c0_i32_506 = arith.constant 0 : i32
      %c0_i32_507 = arith.constant 0 : i32
      %744 = tpu.memref_slice %arg3[%743, %c0_i32_507] : memref<128x128xf32, #tpu.memory_space<any>> -> memref<1x128xf32, #tpu.memory_space<any>>
      %c50_i32_508 = arith.constant 50 : i32
      %c0_i32_509 = arith.constant 0 : i32
      %745 = tpu.memref_slice %arg6[%c0_i32_505, %c50_i32_508, %c0_i32_509] : memref<2x64x128xf32, #tpu.memory_space<vmem>> -> memref<1x1x128xf32, #tpu.memory_space<vmem>>
      %746 = tpu.memref_squeeze %745 : memref<1x1x128xf32, #tpu.memory_space<vmem>> -> memref<1x128xf32, #tpu.memory_space<vmem>>
      %747 = tpu.memref_slice %arg7[%c0_i32_506] : memref<2x!tpu.dma_semaphore, #tpu.memory_space<semaphore_mem>> -> memref<1x!tpu.dma_semaphore, #tpu.memory_space<semaphore_mem>>
      %748 = tpu.memref_squeeze %747 : memref<1x!tpu.dma_semaphore, #tpu.memory_space<semaphore_mem>> -> memref<!tpu.dma_semaphore, #tpu.memory_space<semaphore_mem>>
      tpu.enqueue_dma source(%744 : memref<1x128xf32, #tpu.memory_space<any>>) target(%746 : memref<1x128xf32, #tpu.memory_space<vmem>>) target_semaphore(%748 : memref<!tpu.dma_semaphore, #tpu.memory_space<semaphore_mem>>)
      %c51_i32_510 = arith.constant 51 : i32
      %749 = arith.addi %340, %c51_i32_510 : i32
      %750 = arith.index_cast %749 : i32 to index
      %751 = memref.load %arg2[%750] : memref<256xi32, #tpu.memory_space<smem>>
      %c0_i32_511 = arith.constant 0 : i32
      %c0_i32_512 = arith.constant 0 : i32
      %c0_i32_513 = arith.constant 0 : i32
      %752 = tpu.memref_slice %arg3[%751, %c0_i32_513] : memref<128x128xf32, #tpu.memory_space<any>> -> memref<1x128xf32, #tpu.memory_space<any>>
      %c51_i32_514 = arith.constant 51 : i32
      %c0_i32_515 = arith.constant 0 : i32
      %753 = tpu.memref_slice %arg6[%c0_i32_511, %c51_i32_514, %c0_i32_515] : memref<2x64x128xf32, #tpu.memory_space<vmem>> -> memref<1x1x128xf32, #tpu.memory_space<vmem>>
      %754 = tpu.memref_squeeze %753 : memref<1x1x128xf32, #tpu.memory_space<vmem>> -> memref<1x128xf32, #tpu.memory_space<vmem>>
      %755 = tpu.memref_slice %arg7[%c0_i32_512] : memref<2x!tpu.dma_semaphore, #tpu.memory_space<semaphore_mem>> -> memref<1x!tpu.dma_semaphore, #tpu.memory_space<semaphore_mem>>
      %756 = tpu.memref_squeeze %755 : memref<1x!tpu.dma_semaphore, #tpu.memory_space<semaphore_mem>> -> memref<!tpu.dma_semaphore, #tpu.memory_space<semaphore_mem>>
      tpu.enqueue_dma source(%752 : memref<1x128xf32, #tpu.memory_space<any>>) target(%754 : memref<1x128xf32, #tpu.memory_space<vmem>>) target_semaphore(%756 : memref<!tpu.dma_semaphore, #tpu.memory_space<semaphore_mem>>)
      %c52_i32_516 = arith.constant 52 : i32
      %757 = arith.addi %340, %c52_i32_516 : i32
      %758 = arith.index_cast %757 : i32 to index
      %759 = memref.load %arg2[%758] : memref<256xi32, #tpu.memory_space<smem>>
      %c0_i32_517 = arith.constant 0 : i32
      %c0_i32_518 = arith.constant 0 : i32
      %c0_i32_519 = arith.constant 0 : i32
      %760 = tpu.memref_slice %arg3[%759, %c0_i32_519] : memref<128x128xf32, #tpu.memory_space<any>> -> memref<1x128xf32, #tpu.memory_space<any>>
      %c52_i32_520 = arith.constant 52 : i32
      %c0_i32_521 = arith.constant 0 : i32
      %761 = tpu.memref_slice %arg6[%c0_i32_517, %c52_i32_520, %c0_i32_521] : memref<2x64x128xf32, #tpu.memory_space<vmem>> -> memref<1x1x128xf32, #tpu.memory_space<vmem>>
      %762 = tpu.memref_squeeze %761 : memref<1x1x128xf32, #tpu.memory_space<vmem>> -> memref<1x128xf32, #tpu.memory_space<vmem>>
      %763 = tpu.memref_slice %arg7[%c0_i32_518] : memref<2x!tpu.dma_semaphore, #tpu.memory_space<semaphore_mem>> -> memref<1x!tpu.dma_semaphore, #tpu.memory_space<semaphore_mem>>
      %764 = tpu.memref_squeeze %763 : memref<1x!tpu.dma_semaphore, #tpu.memory_space<semaphore_mem>> -> memref<!tpu.dma_semaphore, #tpu.memory_space<semaphore_mem>>
      tpu.enqueue_dma source(%760 : memref<1x128xf32, #tpu.memory_space<any>>) target(%762 : memref<1x128xf32, #tpu.memory_space<vmem>>) target_semaphore(%764 : memref<!tpu.dma_semaphore, #tpu.memory_space<semaphore_mem>>)
      %c53_i32_522 = arith.constant 53 : i32
      %765 = arith.addi %340, %c53_i32_522 : i32
      %766 = arith.index_cast %765 : i32 to index
      %767 = memref.load %arg2[%766] : memref<256xi32, #tpu.memory_space<smem>>
      %c0_i32_523 = arith.constant 0 : i32
      %c0_i32_524 = arith.constant 0 : i32
      %c0_i32_525 = arith.constant 0 : i32
      %768 = tpu.memref_slice %arg3[%767, %c0_i32_525] : memref<128x128xf32, #tpu.memory_space<any>> -> memref<1x128xf32, #tpu.memory_space<any>>
      %c53_i32_526 = arith.constant 53 : i32
      %c0_i32_527 = arith.constant 0 : i32
      %769 = tpu.memref_slice %arg6[%c0_i32_523, %c53_i32_526, %c0_i32_527] : memref<2x64x128xf32, #tpu.memory_space<vmem>> -> memref<1x1x128xf32, #tpu.memory_space<vmem>>
      %770 = tpu.memref_squeeze %769 : memref<1x1x128xf32, #tpu.memory_space<vmem>> -> memref<1x128xf32, #tpu.memory_space<vmem>>
      %771 = tpu.memref_slice %arg7[%c0_i32_524] : memref<2x!tpu.dma_semaphore, #tpu.memory_space<semaphore_mem>> -> memref<1x!tpu.dma_semaphore, #tpu.memory_space<semaphore_mem>>
      %772 = tpu.memref_squeeze %771 : memref<1x!tpu.dma_semaphore, #tpu.memory_space<semaphore_mem>> -> memref<!tpu.dma_semaphore, #tpu.memory_space<semaphore_mem>>
      tpu.enqueue_dma source(%768 : memref<1x128xf32, #tpu.memory_space<any>>) target(%770 : memref<1x128xf32, #tpu.memory_space<vmem>>) target_semaphore(%772 : memref<!tpu.dma_semaphore, #tpu.memory_space<semaphore_mem>>)
      %c54_i32_528 = arith.constant 54 : i32
      %773 = arith.addi %340, %c54_i32_528 : i32
      %774 = arith.index_cast %773 : i32 to index
      %775 = memref.load %arg2[%774] : memref<256xi32, #tpu.memory_space<smem>>
      %c0_i32_529 = arith.constant 0 : i32
      %c0_i32_530 = arith.constant 0 : i32
      %c0_i32_531 = arith.constant 0 : i32
      %776 = tpu.memref_slice %arg3[%775, %c0_i32_531] : memref<128x128xf32, #tpu.memory_space<any>> -> memref<1x128xf32, #tpu.memory_space<any>>
      %c54_i32_532 = arith.constant 54 : i32
      %c0_i32_533 = arith.constant 0 : i32
      %777 = tpu.memref_slice %arg6[%c0_i32_529, %c54_i32_532, %c0_i32_533] : memref<2x64x128xf32, #tpu.memory_space<vmem>> -> memref<1x1x128xf32, #tpu.memory_space<vmem>>
      %778 = tpu.memref_squeeze %777 : memref<1x1x128xf32, #tpu.memory_space<vmem>> -> memref<1x128xf32, #tpu.memory_space<vmem>>
      %779 = tpu.memref_slice %arg7[%c0_i32_530] : memref<2x!tpu.dma_semaphore, #tpu.memory_space<semaphore_mem>> -> memref<1x!tpu.dma_semaphore, #tpu.memory_space<semaphore_mem>>
      %780 = tpu.memref_squeeze %779 : memref<1x!tpu.dma_semaphore, #tpu.memory_space<semaphore_mem>> -> memref<!tpu.dma_semaphore, #tpu.memory_space<semaphore_mem>>
      tpu.enqueue_dma source(%776 : memref<1x128xf32, #tpu.memory_space<any>>) target(%778 : memref<1x128xf32, #tpu.memory_space<vmem>>) target_semaphore(%780 : memref<!tpu.dma_semaphore, #tpu.memory_space<semaphore_mem>>)
      %c55_i32_534 = arith.constant 55 : i32
      %781 = arith.addi %340, %c55_i32_534 : i32
      %782 = arith.index_cast %781 : i32 to index
      %783 = memref.load %arg2[%782] : memref<256xi32, #tpu.memory_space<smem>>
      %c0_i32_535 = arith.constant 0 : i32
      %c0_i32_536 = arith.constant 0 : i32
      %c0_i32_537 = arith.constant 0 : i32
      %784 = tpu.memref_slice %arg3[%783, %c0_i32_537] : memref<128x128xf32, #tpu.memory_space<any>> -> memref<1x128xf32, #tpu.memory_space<any>>
      %c55_i32_538 = arith.constant 55 : i32
      %c0_i32_539 = arith.constant 0 : i32
      %785 = tpu.memref_slice %arg6[%c0_i32_535, %c55_i32_538, %c0_i32_539] : memref<2x64x128xf32, #tpu.memory_space<vmem>> -> memref<1x1x128xf32, #tpu.memory_space<vmem>>
      %786 = tpu.memref_squeeze %785 : memref<1x1x128xf32, #tpu.memory_space<vmem>> -> memref<1x128xf32, #tpu.memory_space<vmem>>
      %787 = tpu.memref_slice %arg7[%c0_i32_536] : memref<2x!tpu.dma_semaphore, #tpu.memory_space<semaphore_mem>> -> memref<1x!tpu.dma_semaphore, #tpu.memory_space<semaphore_mem>>
      %788 = tpu.memref_squeeze %787 : memref<1x!tpu.dma_semaphore, #tpu.memory_space<semaphore_mem>> -> memref<!tpu.dma_semaphore, #tpu.memory_space<semaphore_mem>>
      tpu.enqueue_dma source(%784 : memref<1x128xf32, #tpu.memory_space<any>>) target(%786 : memref<1x128xf32, #tpu.memory_space<vmem>>) target_semaphore(%788 : memref<!tpu.dma_semaphore, #tpu.memory_space<semaphore_mem>>)
      %c56_i32_540 = arith.constant 56 : i32
      %789 = arith.addi %340, %c56_i32_540 : i32
      %790 = arith.index_cast %789 : i32 to index
      %791 = memref.load %arg2[%790] : memref<256xi32, #tpu.memory_space<smem>>
      %c0_i32_541 = arith.constant 0 : i32
      %c0_i32_542 = arith.constant 0 : i32
      %c0_i32_543 = arith.constant 0 : i32
      %792 = tpu.memref_slice %arg3[%791, %c0_i32_543] : memref<128x128xf32, #tpu.memory_space<any>> -> memref<1x128xf32, #tpu.memory_space<any>>
      %c56_i32_544 = arith.constant 56 : i32
      %c0_i32_545 = arith.constant 0 : i32
      %793 = tpu.memref_slice %arg6[%c0_i32_541, %c56_i32_544, %c0_i32_545] : memref<2x64x128xf32, #tpu.memory_space<vmem>> -> memref<1x1x128xf32, #tpu.memory_space<vmem>>
      %794 = tpu.memref_squeeze %793 : memref<1x1x128xf32, #tpu.memory_space<vmem>> -> memref<1x128xf32, #tpu.memory_space<vmem>>
      %795 = tpu.memref_slice %arg7[%c0_i32_542] : memref<2x!tpu.dma_semaphore, #tpu.memory_space<semaphore_mem>> -> memref<1x!tpu.dma_semaphore, #tpu.memory_space<semaphore_mem>>
      %796 = tpu.memref_squeeze %795 : memref<1x!tpu.dma_semaphore, #tpu.memory_space<semaphore_mem>> -> memref<!tpu.dma_semaphore, #tpu.memory_space<semaphore_mem>>
      tpu.enqueue_dma source(%792 : memref<1x128xf32, #tpu.memory_space<any>>) target(%794 : memref<1x128xf32, #tpu.memory_space<vmem>>) target_semaphore(%796 : memref<!tpu.dma_semaphore, #tpu.memory_space<semaphore_mem>>)
      %c57_i32_546 = arith.constant 57 : i32
      %797 = arith.addi %340, %c57_i32_546 : i32
      %798 = arith.index_cast %797 : i32 to index
      %799 = memref.load %arg2[%798] : memref<256xi32, #tpu.memory_space<smem>>
      %c0_i32_547 = arith.constant 0 : i32
      %c0_i32_548 = arith.constant 0 : i32
      %c0_i32_549 = arith.constant 0 : i32
      %800 = tpu.memref_slice %arg3[%799, %c0_i32_549] : memref<128x128xf32, #tpu.memory_space<any>> -> memref<1x128xf32, #tpu.memory_space<any>>
      %c57_i32_550 = arith.constant 57 : i32
      %c0_i32_551 = arith.constant 0 : i32
      %801 = tpu.memref_slice %arg6[%c0_i32_547, %c57_i32_550, %c0_i32_551] : memref<2x64x128xf32, #tpu.memory_space<vmem>> -> memref<1x1x128xf32, #tpu.memory_space<vmem>>
      %802 = tpu.memref_squeeze %801 : memref<1x1x128xf32, #tpu.memory_space<vmem>> -> memref<1x128xf32, #tpu.memory_space<vmem>>
      %803 = tpu.memref_slice %arg7[%c0_i32_548] : memref<2x!tpu.dma_semaphore, #tpu.memory_space<semaphore_mem>> -> memref<1x!tpu.dma_semaphore, #tpu.memory_space<semaphore_mem>>
      %804 = tpu.memref_squeeze %803 : memref<1x!tpu.dma_semaphore, #tpu.memory_space<semaphore_mem>> -> memref<!tpu.dma_semaphore, #tpu.memory_space<semaphore_mem>>
      tpu.enqueue_dma source(%800 : memref<1x128xf32, #tpu.memory_space<any>>) target(%802 : memref<1x128xf32, #tpu.memory_space<vmem>>) target_semaphore(%804 : memref<!tpu.dma_semaphore, #tpu.memory_space<semaphore_mem>>)
      %c58_i32_552 = arith.constant 58 : i32
      %805 = arith.addi %340, %c58_i32_552 : i32
      %806 = arith.index_cast %805 : i32 to index
      %807 = memref.load %arg2[%806] : memref<256xi32, #tpu.memory_space<smem>>
      %c0_i32_553 = arith.constant 0 : i32
      %c0_i32_554 = arith.constant 0 : i32
      %c0_i32_555 = arith.constant 0 : i32
      %808 = tpu.memref_slice %arg3[%807, %c0_i32_555] : memref<128x128xf32, #tpu.memory_space<any>> -> memref<1x128xf32, #tpu.memory_space<any>>
      %c58_i32_556 = arith.constant 58 : i32
      %c0_i32_557 = arith.constant 0 : i32
      %809 = tpu.memref_slice %arg6[%c0_i32_553, %c58_i32_556, %c0_i32_557] : memref<2x64x128xf32, #tpu.memory_space<vmem>> -> memref<1x1x128xf32, #tpu.memory_space<vmem>>
      %810 = tpu.memref_squeeze %809 : memref<1x1x128xf32, #tpu.memory_space<vmem>> -> memref<1x128xf32, #tpu.memory_space<vmem>>
      %811 = tpu.memref_slice %arg7[%c0_i32_554] : memref<2x!tpu.dma_semaphore, #tpu.memory_space<semaphore_mem>> -> memref<1x!tpu.dma_semaphore, #tpu.memory_space<semaphore_mem>>
      %812 = tpu.memref_squeeze %811 : memref<1x!tpu.dma_semaphore, #tpu.memory_space<semaphore_mem>> -> memref<!tpu.dma_semaphore, #tpu.memory_space<semaphore_mem>>
      tpu.enqueue_dma source(%808 : memref<1x128xf32, #tpu.memory_space<any>>) target(%810 : memref<1x128xf32, #tpu.memory_space<vmem>>) target_semaphore(%812 : memref<!tpu.dma_semaphore, #tpu.memory_space<semaphore_mem>>)
      %c59_i32_558 = arith.constant 59 : i32
      %813 = arith.addi %340, %c59_i32_558 : i32
      %814 = arith.index_cast %813 : i32 to index
      %815 = memref.load %arg2[%814] : memref<256xi32, #tpu.memory_space<smem>>
      %c0_i32_559 = arith.constant 0 : i32
      %c0_i32_560 = arith.constant 0 : i32
      %c0_i32_561 = arith.constant 0 : i32
      %816 = tpu.memref_slice %arg3[%815, %c0_i32_561] : memref<128x128xf32, #tpu.memory_space<any>> -> memref<1x128xf32, #tpu.memory_space<any>>
      %c59_i32_562 = arith.constant 59 : i32
      %c0_i32_563 = arith.constant 0 : i32
      %817 = tpu.memref_slice %arg6[%c0_i32_559, %c59_i32_562, %c0_i32_563] : memref<2x64x128xf32, #tpu.memory_space<vmem>> -> memref<1x1x128xf32, #tpu.memory_space<vmem>>
      %818 = tpu.memref_squeeze %817 : memref<1x1x128xf32, #tpu.memory_space<vmem>> -> memref<1x128xf32, #tpu.memory_space<vmem>>
      %819 = tpu.memref_slice %arg7[%c0_i32_560] : memref<2x!tpu.dma_semaphore, #tpu.memory_space<semaphore_mem>> -> memref<1x!tpu.dma_semaphore, #tpu.memory_space<semaphore_mem>>
      %820 = tpu.memref_squeeze %819 : memref<1x!tpu.dma_semaphore, #tpu.memory_space<semaphore_mem>> -> memref<!tpu.dma_semaphore, #tpu.memory_space<semaphore_mem>>
      tpu.enqueue_dma source(%816 : memref<1x128xf32, #tpu.memory_space<any>>) target(%818 : memref<1x128xf32, #tpu.memory_space<vmem>>) target_semaphore(%820 : memref<!tpu.dma_semaphore, #tpu.memory_space<semaphore_mem>>)
      %c60_i32_564 = arith.constant 60 : i32
      %821 = arith.addi %340, %c60_i32_564 : i32
      %822 = arith.index_cast %821 : i32 to index
      %823 = memref.load %arg2[%822] : memref<256xi32, #tpu.memory_space<smem>>
      %c0_i32_565 = arith.constant 0 : i32
      %c0_i32_566 = arith.constant 0 : i32
      %c0_i32_567 = arith.constant 0 : i32
      %824 = tpu.memref_slice %arg3[%823, %c0_i32_567] : memref<128x128xf32, #tpu.memory_space<any>> -> memref<1x128xf32, #tpu.memory_space<any>>
      %c60_i32_568 = arith.constant 60 : i32
      %c0_i32_569 = arith.constant 0 : i32
      %825 = tpu.memref_slice %arg6[%c0_i32_565, %c60_i32_568, %c0_i32_569] : memref<2x64x128xf32, #tpu.memory_space<vmem>> -> memref<1x1x128xf32, #tpu.memory_space<vmem>>
      %826 = tpu.memref_squeeze %825 : memref<1x1x128xf32, #tpu.memory_space<vmem>> -> memref<1x128xf32, #tpu.memory_space<vmem>>
      %827 = tpu.memref_slice %arg7[%c0_i32_566] : memref<2x!tpu.dma_semaphore, #tpu.memory_space<semaphore_mem>> -> memref<1x!tpu.dma_semaphore, #tpu.memory_space<semaphore_mem>>
      %828 = tpu.memref_squeeze %827 : memref<1x!tpu.dma_semaphore, #tpu.memory_space<semaphore_mem>> -> memref<!tpu.dma_semaphore, #tpu.memory_space<semaphore_mem>>
      tpu.enqueue_dma source(%824 : memref<1x128xf32, #tpu.memory_space<any>>) target(%826 : memref<1x128xf32, #tpu.memory_space<vmem>>) target_semaphore(%828 : memref<!tpu.dma_semaphore, #tpu.memory_space<semaphore_mem>>)
      %c61_i32_570 = arith.constant 61 : i32
      %829 = arith.addi %340, %c61_i32_570 : i32
      %830 = arith.index_cast %829 : i32 to index
      %831 = memref.load %arg2[%830] : memref<256xi32, #tpu.memory_space<smem>>
      %c0_i32_571 = arith.constant 0 : i32
      %c0_i32_572 = arith.constant 0 : i32
      %c0_i32_573 = arith.constant 0 : i32
      %832 = tpu.memref_slice %arg3[%831, %c0_i32_573] : memref<128x128xf32, #tpu.memory_space<any>> -> memref<1x128xf32, #tpu.memory_space<any>>
      %c61_i32_574 = arith.constant 61 : i32
      %c0_i32_575 = arith.constant 0 : i32
      %833 = tpu.memref_slice %arg6[%c0_i32_571, %c61_i32_574, %c0_i32_575] : memref<2x64x128xf32, #tpu.memory_space<vmem>> -> memref<1x1x128xf32, #tpu.memory_space<vmem>>
      %834 = tpu.memref_squeeze %833 : memref<1x1x128xf32, #tpu.memory_space<vmem>> -> memref<1x128xf32, #tpu.memory_space<vmem>>
      %835 = tpu.memref_slice %arg7[%c0_i32_572] : memref<2x!tpu.dma_semaphore, #tpu.memory_space<semaphore_mem>> -> memref<1x!tpu.dma_semaphore, #tpu.memory_space<semaphore_mem>>
      %836 = tpu.memref_squeeze %835 : memref<1x!tpu.dma_semaphore, #tpu.memory_space<semaphore_mem>> -> memref<!tpu.dma_semaphore, #tpu.memory_space<semaphore_mem>>
      tpu.enqueue_dma source(%832 : memref<1x128xf32, #tpu.memory_space<any>>) target(%834 : memref<1x128xf32, #tpu.memory_space<vmem>>) target_semaphore(%836 : memref<!tpu.dma_semaphore, #tpu.memory_space<semaphore_mem>>)
      %c62_i32_576 = arith.constant 62 : i32
      %837 = arith.addi %340, %c62_i32_576 : i32
      %838 = arith.index_cast %837 : i32 to index
      %839 = memref.load %arg2[%838] : memref<256xi32, #tpu.memory_space<smem>>
      %c0_i32_577 = arith.constant 0 : i32
      %c0_i32_578 = arith.constant 0 : i32
      %c0_i32_579 = arith.constant 0 : i32
      %840 = tpu.memref_slice %arg3[%839, %c0_i32_579] : memref<128x128xf32, #tpu.memory_space<any>> -> memref<1x128xf32, #tpu.memory_space<any>>
      %c62_i32_580 = arith.constant 62 : i32
      %c0_i32_581 = arith.constant 0 : i32
      %841 = tpu.memref_slice %arg6[%c0_i32_577, %c62_i32_580, %c0_i32_581] : memref<2x64x128xf32, #tpu.memory_space<vmem>> -> memref<1x1x128xf32, #tpu.memory_space<vmem>>
      %842 = tpu.memref_squeeze %841 : memref<1x1x128xf32, #tpu.memory_space<vmem>> -> memref<1x128xf32, #tpu.memory_space<vmem>>
      %843 = tpu.memref_slice %arg7[%c0_i32_578] : memref<2x!tpu.dma_semaphore, #tpu.memory_space<semaphore_mem>> -> memref<1x!tpu.dma_semaphore, #tpu.memory_space<semaphore_mem>>
      %844 = tpu.memref_squeeze %843 : memref<1x!tpu.dma_semaphore, #tpu.memory_space<semaphore_mem>> -> memref<!tpu.dma_semaphore, #tpu.memory_space<semaphore_mem>>
      tpu.enqueue_dma source(%840 : memref<1x128xf32, #tpu.memory_space<any>>) target(%842 : memref<1x128xf32, #tpu.memory_space<vmem>>) target_semaphore(%844 : memref<!tpu.dma_semaphore, #tpu.memory_space<semaphore_mem>>)
      %c63_i32_582 = arith.constant 63 : i32
      %845 = arith.addi %340, %c63_i32_582 : i32
      %846 = arith.index_cast %845 : i32 to index
      %847 = memref.load %arg2[%846] : memref<256xi32, #tpu.memory_space<smem>>
      %c0_i32_583 = arith.constant 0 : i32
      %c0_i32_584 = arith.constant 0 : i32
      %c0_i32_585 = arith.constant 0 : i32
      %848 = tpu.memref_slice %arg3[%847, %c0_i32_585] : memref<128x128xf32, #tpu.memory_space<any>> -> memref<1x128xf32, #tpu.memory_space<any>>
      %c63_i32_586 = arith.constant 63 : i32
      %c0_i32_587 = arith.constant 0 : i32
      %849 = tpu.memref_slice %arg6[%c0_i32_583, %c63_i32_586, %c0_i32_587] : memref<2x64x128xf32, #tpu.memory_space<vmem>> -> memref<1x1x128xf32, #tpu.memory_space<vmem>>
      %850 = tpu.memref_squeeze %849 : memref<1x1x128xf32, #tpu.memory_space<vmem>> -> memref<1x128xf32, #tpu.memory_space<vmem>>
      %851 = tpu.memref_slice %arg7[%c0_i32_584] : memref<2x!tpu.dma_semaphore, #tpu.memory_space<semaphore_mem>> -> memref<1x!tpu.dma_semaphore, #tpu.memory_space<semaphore_mem>>
      %852 = tpu.memref_squeeze %851 : memref<1x!tpu.dma_semaphore, #tpu.memory_space<semaphore_mem>> -> memref<!tpu.dma_semaphore, #tpu.memory_space<semaphore_mem>>
      tpu.enqueue_dma source(%848 : memref<1x128xf32, #tpu.memory_space<any>>) target(%850 : memref<1x128xf32, #tpu.memory_space<vmem>>) target_semaphore(%852 : memref<!tpu.dma_semaphore, #tpu.memory_space<semaphore_mem>>)
    } else {
    }
    %c1_i32 = arith.constant 1 : i32
    %4 = arith.addi %arg1, %c1_i32 : i32
    %c2_i32_1 = arith.constant 2 : i32
    %5 = arith.cmpi slt, %4, %c2_i32_1 : i32
    %6 = arith.extui %5 : i1 to i32
    %c0_i32_2 = arith.constant 0 : i32
    %7 = arith.cmpi ne, %6, %c0_i32_2 : i32
    scf.if %7 {
      %c1_i32_203 = arith.constant 1 : i32
      %339 = arith.addi %arg1, %c1_i32_203 : i32
      %c1_i32_204 = arith.constant 1 : i32
      %340 = arith.subi %c1_i32_204, %0 : i32
      %c128_i32 = arith.constant 128 : i32
      %341 = arith.muli %arg0, %c128_i32 : i32
      %c64_i32_205 = arith.constant 64 : i32
      %342 = arith.muli %339, %c64_i32_205 : i32
      %343 = arith.addi %341, %342 : i32
      %c0_i32_206 = arith.constant 0 : i32
      %344 = arith.addi %343, %c0_i32_206 : i32
      %345 = arith.index_cast %344 : i32 to index
      %346 = memref.load %arg2[%345] : memref<256xi32, #tpu.memory_space<smem>>
      %c0_i32_207 = arith.constant 0 : i32
      %347 = tpu.memref_slice %arg3[%346, %c0_i32_207] : memref<128x128xf32, #tpu.memory_space<any>> -> memref<1x128xf32, #tpu.memory_space<any>>
      %c0_i32_208 = arith.constant 0 : i32
      %c0_i32_209 = arith.constant 0 : i32
      %348 = tpu.memref_slice %arg6[%340, %c0_i32_208, %c0_i32_209] : memref<2x64x128xf32, #tpu.memory_space<vmem>> -> memref<1x1x128xf32, #tpu.memory_space<vmem>>
      %349 = tpu.memref_squeeze %348 : memref<1x1x128xf32, #tpu.memory_space<vmem>> -> memref<1x128xf32, #tpu.memory_space<vmem>>
      %350 = tpu.memref_slice %arg7[%340] : memref<2x!tpu.dma_semaphore, #tpu.memory_space<semaphore_mem>> -> memref<1x!tpu.dma_semaphore, #tpu.memory_space<semaphore_mem>>
      %351 = tpu.memref_squeeze %350 : memref<1x!tpu.dma_semaphore, #tpu.memory_space<semaphore_mem>> -> memref<!tpu.dma_semaphore, #tpu.memory_space<semaphore_mem>>
      tpu.enqueue_dma source(%347 : memref<1x128xf32, #tpu.memory_space<any>>) target(%349 : memref<1x128xf32, #tpu.memory_space<vmem>>) target_semaphore(%351 : memref<!tpu.dma_semaphore, #tpu.memory_space<semaphore_mem>>)
      %c1_i32_210 = arith.constant 1 : i32
      %352 = arith.addi %343, %c1_i32_210 : i32
      %353 = arith.index_cast %352 : i32 to index
      %354 = memref.load %arg2[%353] : memref<256xi32, #tpu.memory_space<smem>>
      %c0_i32_211 = arith.constant 0 : i32
      %355 = tpu.memref_slice %arg3[%354, %c0_i32_211] : memref<128x128xf32, #tpu.memory_space<any>> -> memref<1x128xf32, #tpu.memory_space<any>>
      %c1_i32_212 = arith.constant 1 : i32
      %c0_i32_213 = arith.constant 0 : i32
      %356 = tpu.memref_slice %arg6[%340, %c1_i32_212, %c0_i32_213] : memref<2x64x128xf32, #tpu.memory_space<vmem>> -> memref<1x1x128xf32, #tpu.memory_space<vmem>>
      %357 = tpu.memref_squeeze %356 : memref<1x1x128xf32, #tpu.memory_space<vmem>> -> memref<1x128xf32, #tpu.memory_space<vmem>>
      %358 = tpu.memref_slice %arg7[%340] : memref<2x!tpu.dma_semaphore, #tpu.memory_space<semaphore_mem>> -> memref<1x!tpu.dma_semaphore, #tpu.memory_space<semaphore_mem>>
      %359 = tpu.memref_squeeze %358 : memref<1x!tpu.dma_semaphore, #tpu.memory_space<semaphore_mem>> -> memref<!tpu.dma_semaphore, #tpu.memory_space<semaphore_mem>>
      tpu.enqueue_dma source(%355 : memref<1x128xf32, #tpu.memory_space<any>>) target(%357 : memref<1x128xf32, #tpu.memory_space<vmem>>) target_semaphore(%359 : memref<!tpu.dma_semaphore, #tpu.memory_space<semaphore_mem>>)
      %c2_i32_214 = arith.constant 2 : i32
      %360 = arith.addi %343, %c2_i32_214 : i32
      %361 = arith.index_cast %360 : i32 to index
      %362 = memref.load %arg2[%361] : memref<256xi32, #tpu.memory_space<smem>>
      %c0_i32_215 = arith.constant 0 : i32
      %363 = tpu.memref_slice %arg3[%362, %c0_i32_215] : memref<128x128xf32, #tpu.memory_space<any>> -> memref<1x128xf32, #tpu.memory_space<any>>
      %c2_i32_216 = arith.constant 2 : i32
      %c0_i32_217 = arith.constant 0 : i32
      %364 = tpu.memref_slice %arg6[%340, %c2_i32_216, %c0_i32_217] : memref<2x64x128xf32, #tpu.memory_space<vmem>> -> memref<1x1x128xf32, #tpu.memory_space<vmem>>
      %365 = tpu.memref_squeeze %364 : memref<1x1x128xf32, #tpu.memory_space<vmem>> -> memref<1x128xf32, #tpu.memory_space<vmem>>
      %366 = tpu.memref_slice %arg7[%340] : memref<2x!tpu.dma_semaphore, #tpu.memory_space<semaphore_mem>> -> memref<1x!tpu.dma_semaphore, #tpu.memory_space<semaphore_mem>>
      %367 = tpu.memref_squeeze %366 : memref<1x!tpu.dma_semaphore, #tpu.memory_space<semaphore_mem>> -> memref<!tpu.dma_semaphore, #tpu.memory_space<semaphore_mem>>
      tpu.enqueue_dma source(%363 : memref<1x128xf32, #tpu.memory_space<any>>) target(%365 : memref<1x128xf32, #tpu.memory_space<vmem>>) target_semaphore(%367 : memref<!tpu.dma_semaphore, #tpu.memory_space<semaphore_mem>>)
      %c3_i32_218 = arith.constant 3 : i32
      %368 = arith.addi %343, %c3_i32_218 : i32
      %369 = arith.index_cast %368 : i32 to index
      %370 = memref.load %arg2[%369] : memref<256xi32, #tpu.memory_space<smem>>
      %c0_i32_219 = arith.constant 0 : i32
      %371 = tpu.memref_slice %arg3[%370, %c0_i32_219] : memref<128x128xf32, #tpu.memory_space<any>> -> memref<1x128xf32, #tpu.memory_space<any>>
      %c3_i32_220 = arith.constant 3 : i32
      %c0_i32_221 = arith.constant 0 : i32
      %372 = tpu.memref_slice %arg6[%340, %c3_i32_220, %c0_i32_221] : memref<2x64x128xf32, #tpu.memory_space<vmem>> -> memref<1x1x128xf32, #tpu.memory_space<vmem>>
      %373 = tpu.memref_squeeze %372 : memref<1x1x128xf32, #tpu.memory_space<vmem>> -> memref<1x128xf32, #tpu.memory_space<vmem>>
      %374 = tpu.memref_slice %arg7[%340] : memref<2x!tpu.dma_semaphore, #tpu.memory_space<semaphore_mem>> -> memref<1x!tpu.dma_semaphore, #tpu.memory_space<semaphore_mem>>
      %375 = tpu.memref_squeeze %374 : memref<1x!tpu.dma_semaphore, #tpu.memory_space<semaphore_mem>> -> memref<!tpu.dma_semaphore, #tpu.memory_space<semaphore_mem>>
      tpu.enqueue_dma source(%371 : memref<1x128xf32, #tpu.memory_space<any>>) target(%373 : memref<1x128xf32, #tpu.memory_space<vmem>>) target_semaphore(%375 : memref<!tpu.dma_semaphore, #tpu.memory_space<semaphore_mem>>)
      %c4_i32_222 = arith.constant 4 : i32
      %376 = arith.addi %343, %c4_i32_222 : i32
      %377 = arith.index_cast %376 : i32 to index
      %378 = memref.load %arg2[%377] : memref<256xi32, #tpu.memory_space<smem>>
      %c0_i32_223 = arith.constant 0 : i32
      %379 = tpu.memref_slice %arg3[%378, %c0_i32_223] : memref<128x128xf32, #tpu.memory_space<any>> -> memref<1x128xf32, #tpu.memory_space<any>>
      %c4_i32_224 = arith.constant 4 : i32
      %c0_i32_225 = arith.constant 0 : i32
      %380 = tpu.memref_slice %arg6[%340, %c4_i32_224, %c0_i32_225] : memref<2x64x128xf32, #tpu.memory_space<vmem>> -> memref<1x1x128xf32, #tpu.memory_space<vmem>>
      %381 = tpu.memref_squeeze %380 : memref<1x1x128xf32, #tpu.memory_space<vmem>> -> memref<1x128xf32, #tpu.memory_space<vmem>>
      %382 = tpu.memref_slice %arg7[%340] : memref<2x!tpu.dma_semaphore, #tpu.memory_space<semaphore_mem>> -> memref<1x!tpu.dma_semaphore, #tpu.memory_space<semaphore_mem>>
      %383 = tpu.memref_squeeze %382 : memref<1x!tpu.dma_semaphore, #tpu.memory_space<semaphore_mem>> -> memref<!tpu.dma_semaphore, #tpu.memory_space<semaphore_mem>>
      tpu.enqueue_dma source(%379 : memref<1x128xf32, #tpu.memory_space<any>>) target(%381 : memref<1x128xf32, #tpu.memory_space<vmem>>) target_semaphore(%383 : memref<!tpu.dma_semaphore, #tpu.memory_space<semaphore_mem>>)
      %c5_i32_226 = arith.constant 5 : i32
      %384 = arith.addi %343, %c5_i32_226 : i32
      %385 = arith.index_cast %384 : i32 to index
      %386 = memref.load %arg2[%385] : memref<256xi32, #tpu.memory_space<smem>>
      %c0_i32_227 = arith.constant 0 : i32
      %387 = tpu.memref_slice %arg3[%386, %c0_i32_227] : memref<128x128xf32, #tpu.memory_space<any>> -> memref<1x128xf32, #tpu.memory_space<any>>
      %c5_i32_228 = arith.constant 5 : i32
      %c0_i32_229 = arith.constant 0 : i32
      %388 = tpu.memref_slice %arg6[%340, %c5_i32_228, %c0_i32_229] : memref<2x64x128xf32, #tpu.memory_space<vmem>> -> memref<1x1x128xf32, #tpu.memory_space<vmem>>
      %389 = tpu.memref_squeeze %388 : memref<1x1x128xf32, #tpu.memory_space<vmem>> -> memref<1x128xf32, #tpu.memory_space<vmem>>
      %390 = tpu.memref_slice %arg7[%340] : memref<2x!tpu.dma_semaphore, #tpu.memory_space<semaphore_mem>> -> memref<1x!tpu.dma_semaphore, #tpu.memory_space<semaphore_mem>>
      %391 = tpu.memref_squeeze %390 : memref<1x!tpu.dma_semaphore, #tpu.memory_space<semaphore_mem>> -> memref<!tpu.dma_semaphore, #tpu.memory_space<semaphore_mem>>
      tpu.enqueue_dma source(%387 : memref<1x128xf32, #tpu.memory_space<any>>) target(%389 : memref<1x128xf32, #tpu.memory_space<vmem>>) target_semaphore(%391 : memref<!tpu.dma_semaphore, #tpu.memory_space<semaphore_mem>>)
      %c6_i32_230 = arith.constant 6 : i32
      %392 = arith.addi %343, %c6_i32_230 : i32
      %393 = arith.index_cast %392 : i32 to index
      %394 = memref.load %arg2[%393] : memref<256xi32, #tpu.memory_space<smem>>
      %c0_i32_231 = arith.constant 0 : i32
      %395 = tpu.memref_slice %arg3[%394, %c0_i32_231] : memref<128x128xf32, #tpu.memory_space<any>> -> memref<1x128xf32, #tpu.memory_space<any>>
      %c6_i32_232 = arith.constant 6 : i32
      %c0_i32_233 = arith.constant 0 : i32
      %396 = tpu.memref_slice %arg6[%340, %c6_i32_232, %c0_i32_233] : memref<2x64x128xf32, #tpu.memory_space<vmem>> -> memref<1x1x128xf32, #tpu.memory_space<vmem>>
      %397 = tpu.memref_squeeze %396 : memref<1x1x128xf32, #tpu.memory_space<vmem>> -> memref<1x128xf32, #tpu.memory_space<vmem>>
      %398 = tpu.memref_slice %arg7[%340] : memref<2x!tpu.dma_semaphore, #tpu.memory_space<semaphore_mem>> -> memref<1x!tpu.dma_semaphore, #tpu.memory_space<semaphore_mem>>
      %399 = tpu.memref_squeeze %398 : memref<1x!tpu.dma_semaphore, #tpu.memory_space<semaphore_mem>> -> memref<!tpu.dma_semaphore, #tpu.memory_space<semaphore_mem>>
      tpu.enqueue_dma source(%395 : memref<1x128xf32, #tpu.memory_space<any>>) target(%397 : memref<1x128xf32, #tpu.memory_space<vmem>>) target_semaphore(%399 : memref<!tpu.dma_semaphore, #tpu.memory_space<semaphore_mem>>)
      %c7_i32_234 = arith.constant 7 : i32
      %400 = arith.addi %343, %c7_i32_234 : i32
      %401 = arith.index_cast %400 : i32 to index
      %402 = memref.load %arg2[%401] : memref<256xi32, #tpu.memory_space<smem>>
      %c0_i32_235 = arith.constant 0 : i32
      %403 = tpu.memref_slice %arg3[%402, %c0_i32_235] : memref<128x128xf32, #tpu.memory_space<any>> -> memref<1x128xf32, #tpu.memory_space<any>>
      %c7_i32_236 = arith.constant 7 : i32
      %c0_i32_237 = arith.constant 0 : i32
      %404 = tpu.memref_slice %arg6[%340, %c7_i32_236, %c0_i32_237] : memref<2x64x128xf32, #tpu.memory_space<vmem>> -> memref<1x1x128xf32, #tpu.memory_space<vmem>>
      %405 = tpu.memref_squeeze %404 : memref<1x1x128xf32, #tpu.memory_space<vmem>> -> memref<1x128xf32, #tpu.memory_space<vmem>>
      %406 = tpu.memref_slice %arg7[%340] : memref<2x!tpu.dma_semaphore, #tpu.memory_space<semaphore_mem>> -> memref<1x!tpu.dma_semaphore, #tpu.memory_space<semaphore_mem>>
      %407 = tpu.memref_squeeze %406 : memref<1x!tpu.dma_semaphore, #tpu.memory_space<semaphore_mem>> -> memref<!tpu.dma_semaphore, #tpu.memory_space<semaphore_mem>>
      tpu.enqueue_dma source(%403 : memref<1x128xf32, #tpu.memory_space<any>>) target(%405 : memref<1x128xf32, #tpu.memory_space<vmem>>) target_semaphore(%407 : memref<!tpu.dma_semaphore, #tpu.memory_space<semaphore_mem>>)
      %c8_i32_238 = arith.constant 8 : i32
      %408 = arith.addi %343, %c8_i32_238 : i32
      %409 = arith.index_cast %408 : i32 to index
      %410 = memref.load %arg2[%409] : memref<256xi32, #tpu.memory_space<smem>>
      %c0_i32_239 = arith.constant 0 : i32
      %411 = tpu.memref_slice %arg3[%410, %c0_i32_239] : memref<128x128xf32, #tpu.memory_space<any>> -> memref<1x128xf32, #tpu.memory_space<any>>
      %c8_i32_240 = arith.constant 8 : i32
      %c0_i32_241 = arith.constant 0 : i32
      %412 = tpu.memref_slice %arg6[%340, %c8_i32_240, %c0_i32_241] : memref<2x64x128xf32, #tpu.memory_space<vmem>> -> memref<1x1x128xf32, #tpu.memory_space<vmem>>
      %413 = tpu.memref_squeeze %412 : memref<1x1x128xf32, #tpu.memory_space<vmem>> -> memref<1x128xf32, #tpu.memory_space<vmem>>
      %414 = tpu.memref_slice %arg7[%340] : memref<2x!tpu.dma_semaphore, #tpu.memory_space<semaphore_mem>> -> memref<1x!tpu.dma_semaphore, #tpu.memory_space<semaphore_mem>>
      %415 = tpu.memref_squeeze %414 : memref<1x!tpu.dma_semaphore, #tpu.memory_space<semaphore_mem>> -> memref<!tpu.dma_semaphore, #tpu.memory_space<semaphore_mem>>
      tpu.enqueue_dma source(%411 : memref<1x128xf32, #tpu.memory_space<any>>) target(%413 : memref<1x128xf32, #tpu.memory_space<vmem>>) target_semaphore(%415 : memref<!tpu.dma_semaphore, #tpu.memory_space<semaphore_mem>>)
      %c9_i32_242 = arith.constant 9 : i32
      %416 = arith.addi %343, %c9_i32_242 : i32
      %417 = arith.index_cast %416 : i32 to index
      %418 = memref.load %arg2[%417] : memref<256xi32, #tpu.memory_space<smem>>
      %c0_i32_243 = arith.constant 0 : i32
      %419 = tpu.memref_slice %arg3[%418, %c0_i32_243] : memref<128x128xf32, #tpu.memory_space<any>> -> memref<1x128xf32, #tpu.memory_space<any>>
      %c9_i32_244 = arith.constant 9 : i32
      %c0_i32_245 = arith.constant 0 : i32
      %420 = tpu.memref_slice %arg6[%340, %c9_i32_244, %c0_i32_245] : memref<2x64x128xf32, #tpu.memory_space<vmem>> -> memref<1x1x128xf32, #tpu.memory_space<vmem>>
      %421 = tpu.memref_squeeze %420 : memref<1x1x128xf32, #tpu.memory_space<vmem>> -> memref<1x128xf32, #tpu.memory_space<vmem>>
      %422 = tpu.memref_slice %arg7[%340] : memref<2x!tpu.dma_semaphore, #tpu.memory_space<semaphore_mem>> -> memref<1x!tpu.dma_semaphore, #tpu.memory_space<semaphore_mem>>
      %423 = tpu.memref_squeeze %422 : memref<1x!tpu.dma_semaphore, #tpu.memory_space<semaphore_mem>> -> memref<!tpu.dma_semaphore, #tpu.memory_space<semaphore_mem>>
      tpu.enqueue_dma source(%419 : memref<1x128xf32, #tpu.memory_space<any>>) target(%421 : memref<1x128xf32, #tpu.memory_space<vmem>>) target_semaphore(%423 : memref<!tpu.dma_semaphore, #tpu.memory_space<semaphore_mem>>)
      %c10_i32_246 = arith.constant 10 : i32
      %424 = arith.addi %343, %c10_i32_246 : i32
      %425 = arith.index_cast %424 : i32 to index
      %426 = memref.load %arg2[%425] : memref<256xi32, #tpu.memory_space<smem>>
      %c0_i32_247 = arith.constant 0 : i32
      %427 = tpu.memref_slice %arg3[%426, %c0_i32_247] : memref<128x128xf32, #tpu.memory_space<any>> -> memref<1x128xf32, #tpu.memory_space<any>>
      %c10_i32_248 = arith.constant 10 : i32
      %c0_i32_249 = arith.constant 0 : i32
      %428 = tpu.memref_slice %arg6[%340, %c10_i32_248, %c0_i32_249] : memref<2x64x128xf32, #tpu.memory_space<vmem>> -> memref<1x1x128xf32, #tpu.memory_space<vmem>>
      %429 = tpu.memref_squeeze %428 : memref<1x1x128xf32, #tpu.memory_space<vmem>> -> memref<1x128xf32, #tpu.memory_space<vmem>>
      %430 = tpu.memref_slice %arg7[%340] : memref<2x!tpu.dma_semaphore, #tpu.memory_space<semaphore_mem>> -> memref<1x!tpu.dma_semaphore, #tpu.memory_space<semaphore_mem>>
      %431 = tpu.memref_squeeze %430 : memref<1x!tpu.dma_semaphore, #tpu.memory_space<semaphore_mem>> -> memref<!tpu.dma_semaphore, #tpu.memory_space<semaphore_mem>>
      tpu.enqueue_dma source(%427 : memref<1x128xf32, #tpu.memory_space<any>>) target(%429 : memref<1x128xf32, #tpu.memory_space<vmem>>) target_semaphore(%431 : memref<!tpu.dma_semaphore, #tpu.memory_space<semaphore_mem>>)
      %c11_i32_250 = arith.constant 11 : i32
      %432 = arith.addi %343, %c11_i32_250 : i32
      %433 = arith.index_cast %432 : i32 to index
      %434 = memref.load %arg2[%433] : memref<256xi32, #tpu.memory_space<smem>>
      %c0_i32_251 = arith.constant 0 : i32
      %435 = tpu.memref_slice %arg3[%434, %c0_i32_251] : memref<128x128xf32, #tpu.memory_space<any>> -> memref<1x128xf32, #tpu.memory_space<any>>
      %c11_i32_252 = arith.constant 11 : i32
      %c0_i32_253 = arith.constant 0 : i32
      %436 = tpu.memref_slice %arg6[%340, %c11_i32_252, %c0_i32_253] : memref<2x64x128xf32, #tpu.memory_space<vmem>> -> memref<1x1x128xf32, #tpu.memory_space<vmem>>
      %437 = tpu.memref_squeeze %436 : memref<1x1x128xf32, #tpu.memory_space<vmem>> -> memref<1x128xf32, #tpu.memory_space<vmem>>
      %438 = tpu.memref_slice %arg7[%340] : memref<2x!tpu.dma_semaphore, #tpu.memory_space<semaphore_mem>> -> memref<1x!tpu.dma_semaphore, #tpu.memory_space<semaphore_mem>>
      %439 = tpu.memref_squeeze %438 : memref<1x!tpu.dma_semaphore, #tpu.memory_space<semaphore_mem>> -> memref<!tpu.dma_semaphore, #tpu.memory_space<semaphore_mem>>
      tpu.enqueue_dma source(%435 : memref<1x128xf32, #tpu.memory_space<any>>) target(%437 : memref<1x128xf32, #tpu.memory_space<vmem>>) target_semaphore(%439 : memref<!tpu.dma_semaphore, #tpu.memory_space<semaphore_mem>>)
      %c12_i32_254 = arith.constant 12 : i32
      %440 = arith.addi %343, %c12_i32_254 : i32
      %441 = arith.index_cast %440 : i32 to index
      %442 = memref.load %arg2[%441] : memref<256xi32, #tpu.memory_space<smem>>
      %c0_i32_255 = arith.constant 0 : i32
      %443 = tpu.memref_slice %arg3[%442, %c0_i32_255] : memref<128x128xf32, #tpu.memory_space<any>> -> memref<1x128xf32, #tpu.memory_space<any>>
      %c12_i32_256 = arith.constant 12 : i32
      %c0_i32_257 = arith.constant 0 : i32
      %444 = tpu.memref_slice %arg6[%340, %c12_i32_256, %c0_i32_257] : memref<2x64x128xf32, #tpu.memory_space<vmem>> -> memref<1x1x128xf32, #tpu.memory_space<vmem>>
      %445 = tpu.memref_squeeze %444 : memref<1x1x128xf32, #tpu.memory_space<vmem>> -> memref<1x128xf32, #tpu.memory_space<vmem>>
      %446 = tpu.memref_slice %arg7[%340] : memref<2x!tpu.dma_semaphore, #tpu.memory_space<semaphore_mem>> -> memref<1x!tpu.dma_semaphore, #tpu.memory_space<semaphore_mem>>
      %447 = tpu.memref_squeeze %446 : memref<1x!tpu.dma_semaphore, #tpu.memory_space<semaphore_mem>> -> memref<!tpu.dma_semaphore, #tpu.memory_space<semaphore_mem>>
      tpu.enqueue_dma source(%443 : memref<1x128xf32, #tpu.memory_space<any>>) target(%445 : memref<1x128xf32, #tpu.memory_space<vmem>>) target_semaphore(%447 : memref<!tpu.dma_semaphore, #tpu.memory_space<semaphore_mem>>)
      %c13_i32_258 = arith.constant 13 : i32
      %448 = arith.addi %343, %c13_i32_258 : i32
      %449 = arith.index_cast %448 : i32 to index
      %450 = memref.load %arg2[%449] : memref<256xi32, #tpu.memory_space<smem>>
      %c0_i32_259 = arith.constant 0 : i32
      %451 = tpu.memref_slice %arg3[%450, %c0_i32_259] : memref<128x128xf32, #tpu.memory_space<any>> -> memref<1x128xf32, #tpu.memory_space<any>>
      %c13_i32_260 = arith.constant 13 : i32
      %c0_i32_261 = arith.constant 0 : i32
      %452 = tpu.memref_slice %arg6[%340, %c13_i32_260, %c0_i32_261] : memref<2x64x128xf32, #tpu.memory_space<vmem>> -> memref<1x1x128xf32, #tpu.memory_space<vmem>>
      %453 = tpu.memref_squeeze %452 : memref<1x1x128xf32, #tpu.memory_space<vmem>> -> memref<1x128xf32, #tpu.memory_space<vmem>>
      %454 = tpu.memref_slice %arg7[%340] : memref<2x!tpu.dma_semaphore, #tpu.memory_space<semaphore_mem>> -> memref<1x!tpu.dma_semaphore, #tpu.memory_space<semaphore_mem>>
      %455 = tpu.memref_squeeze %454 : memref<1x!tpu.dma_semaphore, #tpu.memory_space<semaphore_mem>> -> memref<!tpu.dma_semaphore, #tpu.memory_space<semaphore_mem>>
      tpu.enqueue_dma source(%451 : memref<1x128xf32, #tpu.memory_space<any>>) target(%453 : memref<1x128xf32, #tpu.memory_space<vmem>>) target_semaphore(%455 : memref<!tpu.dma_semaphore, #tpu.memory_space<semaphore_mem>>)
      %c14_i32_262 = arith.constant 14 : i32
      %456 = arith.addi %343, %c14_i32_262 : i32
      %457 = arith.index_cast %456 : i32 to index
      %458 = memref.load %arg2[%457] : memref<256xi32, #tpu.memory_space<smem>>
      %c0_i32_263 = arith.constant 0 : i32
      %459 = tpu.memref_slice %arg3[%458, %c0_i32_263] : memref<128x128xf32, #tpu.memory_space<any>> -> memref<1x128xf32, #tpu.memory_space<any>>
      %c14_i32_264 = arith.constant 14 : i32
      %c0_i32_265 = arith.constant 0 : i32
      %460 = tpu.memref_slice %arg6[%340, %c14_i32_264, %c0_i32_265] : memref<2x64x128xf32, #tpu.memory_space<vmem>> -> memref<1x1x128xf32, #tpu.memory_space<vmem>>
      %461 = tpu.memref_squeeze %460 : memref<1x1x128xf32, #tpu.memory_space<vmem>> -> memref<1x128xf32, #tpu.memory_space<vmem>>
      %462 = tpu.memref_slice %arg7[%340] : memref<2x!tpu.dma_semaphore, #tpu.memory_space<semaphore_mem>> -> memref<1x!tpu.dma_semaphore, #tpu.memory_space<semaphore_mem>>
      %463 = tpu.memref_squeeze %462 : memref<1x!tpu.dma_semaphore, #tpu.memory_space<semaphore_mem>> -> memref<!tpu.dma_semaphore, #tpu.memory_space<semaphore_mem>>
      tpu.enqueue_dma source(%459 : memref<1x128xf32, #tpu.memory_space<any>>) target(%461 : memref<1x128xf32, #tpu.memory_space<vmem>>) target_semaphore(%463 : memref<!tpu.dma_semaphore, #tpu.memory_space<semaphore_mem>>)
      %c15_i32_266 = arith.constant 15 : i32
      %464 = arith.addi %343, %c15_i32_266 : i32
      %465 = arith.index_cast %464 : i32 to index
      %466 = memref.load %arg2[%465] : memref<256xi32, #tpu.memory_space<smem>>
      %c0_i32_267 = arith.constant 0 : i32
      %467 = tpu.memref_slice %arg3[%466, %c0_i32_267] : memref<128x128xf32, #tpu.memory_space<any>> -> memref<1x128xf32, #tpu.memory_space<any>>
      %c15_i32_268 = arith.constant 15 : i32
      %c0_i32_269 = arith.constant 0 : i32
      %468 = tpu.memref_slice %arg6[%340, %c15_i32_268, %c0_i32_269] : memref<2x64x128xf32, #tpu.memory_space<vmem>> -> memref<1x1x128xf32, #tpu.memory_space<vmem>>
      %469 = tpu.memref_squeeze %468 : memref<1x1x128xf32, #tpu.memory_space<vmem>> -> memref<1x128xf32, #tpu.memory_space<vmem>>
      %470 = tpu.memref_slice %arg7[%340] : memref<2x!tpu.dma_semaphore, #tpu.memory_space<semaphore_mem>> -> memref<1x!tpu.dma_semaphore, #tpu.memory_space<semaphore_mem>>
      %471 = tpu.memref_squeeze %470 : memref<1x!tpu.dma_semaphore, #tpu.memory_space<semaphore_mem>> -> memref<!tpu.dma_semaphore, #tpu.memory_space<semaphore_mem>>
      tpu.enqueue_dma source(%467 : memref<1x128xf32, #tpu.memory_space<any>>) target(%469 : memref<1x128xf32, #tpu.memory_space<vmem>>) target_semaphore(%471 : memref<!tpu.dma_semaphore, #tpu.memory_space<semaphore_mem>>)
      %c16_i32_270 = arith.constant 16 : i32
      %472 = arith.addi %343, %c16_i32_270 : i32
      %473 = arith.index_cast %472 : i32 to index
      %474 = memref.load %arg2[%473] : memref<256xi32, #tpu.memory_space<smem>>
      %c0_i32_271 = arith.constant 0 : i32
      %475 = tpu.memref_slice %arg3[%474, %c0_i32_271] : memref<128x128xf32, #tpu.memory_space<any>> -> memref<1x128xf32, #tpu.memory_space<any>>
      %c16_i32_272 = arith.constant 16 : i32
      %c0_i32_273 = arith.constant 0 : i32
      %476 = tpu.memref_slice %arg6[%340, %c16_i32_272, %c0_i32_273] : memref<2x64x128xf32, #tpu.memory_space<vmem>> -> memref<1x1x128xf32, #tpu.memory_space<vmem>>
      %477 = tpu.memref_squeeze %476 : memref<1x1x128xf32, #tpu.memory_space<vmem>> -> memref<1x128xf32, #tpu.memory_space<vmem>>
      %478 = tpu.memref_slice %arg7[%340] : memref<2x!tpu.dma_semaphore, #tpu.memory_space<semaphore_mem>> -> memref<1x!tpu.dma_semaphore, #tpu.memory_space<semaphore_mem>>
      %479 = tpu.memref_squeeze %478 : memref<1x!tpu.dma_semaphore, #tpu.memory_space<semaphore_mem>> -> memref<!tpu.dma_semaphore, #tpu.memory_space<semaphore_mem>>
      tpu.enqueue_dma source(%475 : memref<1x128xf32, #tpu.memory_space<any>>) target(%477 : memref<1x128xf32, #tpu.memory_space<vmem>>) target_semaphore(%479 : memref<!tpu.dma_semaphore, #tpu.memory_space<semaphore_mem>>)
      %c17_i32_274 = arith.constant 17 : i32
      %480 = arith.addi %343, %c17_i32_274 : i32
      %481 = arith.index_cast %480 : i32 to index
      %482 = memref.load %arg2[%481] : memref<256xi32, #tpu.memory_space<smem>>
      %c0_i32_275 = arith.constant 0 : i32
      %483 = tpu.memref_slice %arg3[%482, %c0_i32_275] : memref<128x128xf32, #tpu.memory_space<any>> -> memref<1x128xf32, #tpu.memory_space<any>>
      %c17_i32_276 = arith.constant 17 : i32
      %c0_i32_277 = arith.constant 0 : i32
      %484 = tpu.memref_slice %arg6[%340, %c17_i32_276, %c0_i32_277] : memref<2x64x128xf32, #tpu.memory_space<vmem>> -> memref<1x1x128xf32, #tpu.memory_space<vmem>>
      %485 = tpu.memref_squeeze %484 : memref<1x1x128xf32, #tpu.memory_space<vmem>> -> memref<1x128xf32, #tpu.memory_space<vmem>>
      %486 = tpu.memref_slice %arg7[%340] : memref<2x!tpu.dma_semaphore, #tpu.memory_space<semaphore_mem>> -> memref<1x!tpu.dma_semaphore, #tpu.memory_space<semaphore_mem>>
      %487 = tpu.memref_squeeze %486 : memref<1x!tpu.dma_semaphore, #tpu.memory_space<semaphore_mem>> -> memref<!tpu.dma_semaphore, #tpu.memory_space<semaphore_mem>>
      tpu.enqueue_dma source(%483 : memref<1x128xf32, #tpu.memory_space<any>>) target(%485 : memref<1x128xf32, #tpu.memory_space<vmem>>) target_semaphore(%487 : memref<!tpu.dma_semaphore, #tpu.memory_space<semaphore_mem>>)
      %c18_i32_278 = arith.constant 18 : i32
      %488 = arith.addi %343, %c18_i32_278 : i32
      %489 = arith.index_cast %488 : i32 to index
      %490 = memref.load %arg2[%489] : memref<256xi32, #tpu.memory_space<smem>>
      %c0_i32_279 = arith.constant 0 : i32
      %491 = tpu.memref_slice %arg3[%490, %c0_i32_279] : memref<128x128xf32, #tpu.memory_space<any>> -> memref<1x128xf32, #tpu.memory_space<any>>
      %c18_i32_280 = arith.constant 18 : i32
      %c0_i32_281 = arith.constant 0 : i32
      %492 = tpu.memref_slice %arg6[%340, %c18_i32_280, %c0_i32_281] : memref<2x64x128xf32, #tpu.memory_space<vmem>> -> memref<1x1x128xf32, #tpu.memory_space<vmem>>
      %493 = tpu.memref_squeeze %492 : memref<1x1x128xf32, #tpu.memory_space<vmem>> -> memref<1x128xf32, #tpu.memory_space<vmem>>
      %494 = tpu.memref_slice %arg7[%340] : memref<2x!tpu.dma_semaphore, #tpu.memory_space<semaphore_mem>> -> memref<1x!tpu.dma_semaphore, #tpu.memory_space<semaphore_mem>>
      %495 = tpu.memref_squeeze %494 : memref<1x!tpu.dma_semaphore, #tpu.memory_space<semaphore_mem>> -> memref<!tpu.dma_semaphore, #tpu.memory_space<semaphore_mem>>
      tpu.enqueue_dma source(%491 : memref<1x128xf32, #tpu.memory_space<any>>) target(%493 : memref<1x128xf32, #tpu.memory_space<vmem>>) target_semaphore(%495 : memref<!tpu.dma_semaphore, #tpu.memory_space<semaphore_mem>>)
      %c19_i32_282 = arith.constant 19 : i32
      %496 = arith.addi %343, %c19_i32_282 : i32
      %497 = arith.index_cast %496 : i32 to index
      %498 = memref.load %arg2[%497] : memref<256xi32, #tpu.memory_space<smem>>
      %c0_i32_283 = arith.constant 0 : i32
      %499 = tpu.memref_slice %arg3[%498, %c0_i32_283] : memref<128x128xf32, #tpu.memory_space<any>> -> memref<1x128xf32, #tpu.memory_space<any>>
      %c19_i32_284 = arith.constant 19 : i32
      %c0_i32_285 = arith.constant 0 : i32
      %500 = tpu.memref_slice %arg6[%340, %c19_i32_284, %c0_i32_285] : memref<2x64x128xf32, #tpu.memory_space<vmem>> -> memref<1x1x128xf32, #tpu.memory_space<vmem>>
      %501 = tpu.memref_squeeze %500 : memref<1x1x128xf32, #tpu.memory_space<vmem>> -> memref<1x128xf32, #tpu.memory_space<vmem>>
      %502 = tpu.memref_slice %arg7[%340] : memref<2x!tpu.dma_semaphore, #tpu.memory_space<semaphore_mem>> -> memref<1x!tpu.dma_semaphore, #tpu.memory_space<semaphore_mem>>
      %503 = tpu.memref_squeeze %502 : memref<1x!tpu.dma_semaphore, #tpu.memory_space<semaphore_mem>> -> memref<!tpu.dma_semaphore, #tpu.memory_space<semaphore_mem>>
      tpu.enqueue_dma source(%499 : memref<1x128xf32, #tpu.memory_space<any>>) target(%501 : memref<1x128xf32, #tpu.memory_space<vmem>>) target_semaphore(%503 : memref<!tpu.dma_semaphore, #tpu.memory_space<semaphore_mem>>)
      %c20_i32_286 = arith.constant 20 : i32
      %504 = arith.addi %343, %c20_i32_286 : i32
      %505 = arith.index_cast %504 : i32 to index
      %506 = memref.load %arg2[%505] : memref<256xi32, #tpu.memory_space<smem>>
      %c0_i32_287 = arith.constant 0 : i32
      %507 = tpu.memref_slice %arg3[%506, %c0_i32_287] : memref<128x128xf32, #tpu.memory_space<any>> -> memref<1x128xf32, #tpu.memory_space<any>>
      %c20_i32_288 = arith.constant 20 : i32
      %c0_i32_289 = arith.constant 0 : i32
      %508 = tpu.memref_slice %arg6[%340, %c20_i32_288, %c0_i32_289] : memref<2x64x128xf32, #tpu.memory_space<vmem>> -> memref<1x1x128xf32, #tpu.memory_space<vmem>>
      %509 = tpu.memref_squeeze %508 : memref<1x1x128xf32, #tpu.memory_space<vmem>> -> memref<1x128xf32, #tpu.memory_space<vmem>>
      %510 = tpu.memref_slice %arg7[%340] : memref<2x!tpu.dma_semaphore, #tpu.memory_space<semaphore_mem>> -> memref<1x!tpu.dma_semaphore, #tpu.memory_space<semaphore_mem>>
      %511 = tpu.memref_squeeze %510 : memref<1x!tpu.dma_semaphore, #tpu.memory_space<semaphore_mem>> -> memref<!tpu.dma_semaphore, #tpu.memory_space<semaphore_mem>>
      tpu.enqueue_dma source(%507 : memref<1x128xf32, #tpu.memory_space<any>>) target(%509 : memref<1x128xf32, #tpu.memory_space<vmem>>) target_semaphore(%511 : memref<!tpu.dma_semaphore, #tpu.memory_space<semaphore_mem>>)
      %c21_i32_290 = arith.constant 21 : i32
      %512 = arith.addi %343, %c21_i32_290 : i32
      %513 = arith.index_cast %512 : i32 to index
      %514 = memref.load %arg2[%513] : memref<256xi32, #tpu.memory_space<smem>>
      %c0_i32_291 = arith.constant 0 : i32
      %515 = tpu.memref_slice %arg3[%514, %c0_i32_291] : memref<128x128xf32, #tpu.memory_space<any>> -> memref<1x128xf32, #tpu.memory_space<any>>
      %c21_i32_292 = arith.constant 21 : i32
      %c0_i32_293 = arith.constant 0 : i32
      %516 = tpu.memref_slice %arg6[%340, %c21_i32_292, %c0_i32_293] : memref<2x64x128xf32, #tpu.memory_space<vmem>> -> memref<1x1x128xf32, #tpu.memory_space<vmem>>
      %517 = tpu.memref_squeeze %516 : memref<1x1x128xf32, #tpu.memory_space<vmem>> -> memref<1x128xf32, #tpu.memory_space<vmem>>
      %518 = tpu.memref_slice %arg7[%340] : memref<2x!tpu.dma_semaphore, #tpu.memory_space<semaphore_mem>> -> memref<1x!tpu.dma_semaphore, #tpu.memory_space<semaphore_mem>>
      %519 = tpu.memref_squeeze %518 : memref<1x!tpu.dma_semaphore, #tpu.memory_space<semaphore_mem>> -> memref<!tpu.dma_semaphore, #tpu.memory_space<semaphore_mem>>
      tpu.enqueue_dma source(%515 : memref<1x128xf32, #tpu.memory_space<any>>) target(%517 : memref<1x128xf32, #tpu.memory_space<vmem>>) target_semaphore(%519 : memref<!tpu.dma_semaphore, #tpu.memory_space<semaphore_mem>>)
      %c22_i32_294 = arith.constant 22 : i32
      %520 = arith.addi %343, %c22_i32_294 : i32
      %521 = arith.index_cast %520 : i32 to index
      %522 = memref.load %arg2[%521] : memref<256xi32, #tpu.memory_space<smem>>
      %c0_i32_295 = arith.constant 0 : i32
      %523 = tpu.memref_slice %arg3[%522, %c0_i32_295] : memref<128x128xf32, #tpu.memory_space<any>> -> memref<1x128xf32, #tpu.memory_space<any>>
      %c22_i32_296 = arith.constant 22 : i32
      %c0_i32_297 = arith.constant 0 : i32
      %524 = tpu.memref_slice %arg6[%340, %c22_i32_296, %c0_i32_297] : memref<2x64x128xf32, #tpu.memory_space<vmem>> -> memref<1x1x128xf32, #tpu.memory_space<vmem>>
      %525 = tpu.memref_squeeze %524 : memref<1x1x128xf32, #tpu.memory_space<vmem>> -> memref<1x128xf32, #tpu.memory_space<vmem>>
      %526 = tpu.memref_slice %arg7[%340] : memref<2x!tpu.dma_semaphore, #tpu.memory_space<semaphore_mem>> -> memref<1x!tpu.dma_semaphore, #tpu.memory_space<semaphore_mem>>
      %527 = tpu.memref_squeeze %526 : memref<1x!tpu.dma_semaphore, #tpu.memory_space<semaphore_mem>> -> memref<!tpu.dma_semaphore, #tpu.memory_space<semaphore_mem>>
      tpu.enqueue_dma source(%523 : memref<1x128xf32, #tpu.memory_space<any>>) target(%525 : memref<1x128xf32, #tpu.memory_space<vmem>>) target_semaphore(%527 : memref<!tpu.dma_semaphore, #tpu.memory_space<semaphore_mem>>)
      %c23_i32_298 = arith.constant 23 : i32
      %528 = arith.addi %343, %c23_i32_298 : i32
      %529 = arith.index_cast %528 : i32 to index
      %530 = memref.load %arg2[%529] : memref<256xi32, #tpu.memory_space<smem>>
      %c0_i32_299 = arith.constant 0 : i32
      %531 = tpu.memref_slice %arg3[%530, %c0_i32_299] : memref<128x128xf32, #tpu.memory_space<any>> -> memref<1x128xf32, #tpu.memory_space<any>>
      %c23_i32_300 = arith.constant 23 : i32
      %c0_i32_301 = arith.constant 0 : i32
      %532 = tpu.memref_slice %arg6[%340, %c23_i32_300, %c0_i32_301] : memref<2x64x128xf32, #tpu.memory_space<vmem>> -> memref<1x1x128xf32, #tpu.memory_space<vmem>>
      %533 = tpu.memref_squeeze %532 : memref<1x1x128xf32, #tpu.memory_space<vmem>> -> memref<1x128xf32, #tpu.memory_space<vmem>>
      %534 = tpu.memref_slice %arg7[%340] : memref<2x!tpu.dma_semaphore, #tpu.memory_space<semaphore_mem>> -> memref<1x!tpu.dma_semaphore, #tpu.memory_space<semaphore_mem>>
      %535 = tpu.memref_squeeze %534 : memref<1x!tpu.dma_semaphore, #tpu.memory_space<semaphore_mem>> -> memref<!tpu.dma_semaphore, #tpu.memory_space<semaphore_mem>>
      tpu.enqueue_dma source(%531 : memref<1x128xf32, #tpu.memory_space<any>>) target(%533 : memref<1x128xf32, #tpu.memory_space<vmem>>) target_semaphore(%535 : memref<!tpu.dma_semaphore, #tpu.memory_space<semaphore_mem>>)
      %c24_i32_302 = arith.constant 24 : i32
      %536 = arith.addi %343, %c24_i32_302 : i32
      %537 = arith.index_cast %536 : i32 to index
      %538 = memref.load %arg2[%537] : memref<256xi32, #tpu.memory_space<smem>>
      %c0_i32_303 = arith.constant 0 : i32
      %539 = tpu.memref_slice %arg3[%538, %c0_i32_303] : memref<128x128xf32, #tpu.memory_space<any>> -> memref<1x128xf32, #tpu.memory_space<any>>
      %c24_i32_304 = arith.constant 24 : i32
      %c0_i32_305 = arith.constant 0 : i32
      %540 = tpu.memref_slice %arg6[%340, %c24_i32_304, %c0_i32_305] : memref<2x64x128xf32, #tpu.memory_space<vmem>> -> memref<1x1x128xf32, #tpu.memory_space<vmem>>
      %541 = tpu.memref_squeeze %540 : memref<1x1x128xf32, #tpu.memory_space<vmem>> -> memref<1x128xf32, #tpu.memory_space<vmem>>
      %542 = tpu.memref_slice %arg7[%340] : memref<2x!tpu.dma_semaphore, #tpu.memory_space<semaphore_mem>> -> memref<1x!tpu.dma_semaphore, #tpu.memory_space<semaphore_mem>>
      %543 = tpu.memref_squeeze %542 : memref<1x!tpu.dma_semaphore, #tpu.memory_space<semaphore_mem>> -> memref<!tpu.dma_semaphore, #tpu.memory_space<semaphore_mem>>
      tpu.enqueue_dma source(%539 : memref<1x128xf32, #tpu.memory_space<any>>) target(%541 : memref<1x128xf32, #tpu.memory_space<vmem>>) target_semaphore(%543 : memref<!tpu.dma_semaphore, #tpu.memory_space<semaphore_mem>>)
      %c25_i32_306 = arith.constant 25 : i32
      %544 = arith.addi %343, %c25_i32_306 : i32
      %545 = arith.index_cast %544 : i32 to index
      %546 = memref.load %arg2[%545] : memref<256xi32, #tpu.memory_space<smem>>
      %c0_i32_307 = arith.constant 0 : i32
      %547 = tpu.memref_slice %arg3[%546, %c0_i32_307] : memref<128x128xf32, #tpu.memory_space<any>> -> memref<1x128xf32, #tpu.memory_space<any>>
      %c25_i32_308 = arith.constant 25 : i32
      %c0_i32_309 = arith.constant 0 : i32
      %548 = tpu.memref_slice %arg6[%340, %c25_i32_308, %c0_i32_309] : memref<2x64x128xf32, #tpu.memory_space<vmem>> -> memref<1x1x128xf32, #tpu.memory_space<vmem>>
      %549 = tpu.memref_squeeze %548 : memref<1x1x128xf32, #tpu.memory_space<vmem>> -> memref<1x128xf32, #tpu.memory_space<vmem>>
      %550 = tpu.memref_slice %arg7[%340] : memref<2x!tpu.dma_semaphore, #tpu.memory_space<semaphore_mem>> -> memref<1x!tpu.dma_semaphore, #tpu.memory_space<semaphore_mem>>
      %551 = tpu.memref_squeeze %550 : memref<1x!tpu.dma_semaphore, #tpu.memory_space<semaphore_mem>> -> memref<!tpu.dma_semaphore, #tpu.memory_space<semaphore_mem>>
      tpu.enqueue_dma source(%547 : memref<1x128xf32, #tpu.memory_space<any>>) target(%549 : memref<1x128xf32, #tpu.memory_space<vmem>>) target_semaphore(%551 : memref<!tpu.dma_semaphore, #tpu.memory_space<semaphore_mem>>)
      %c26_i32_310 = arith.constant 26 : i32
      %552 = arith.addi %343, %c26_i32_310 : i32
      %553 = arith.index_cast %552 : i32 to index
      %554 = memref.load %arg2[%553] : memref<256xi32, #tpu.memory_space<smem>>
      %c0_i32_311 = arith.constant 0 : i32
      %555 = tpu.memref_slice %arg3[%554, %c0_i32_311] : memref<128x128xf32, #tpu.memory_space<any>> -> memref<1x128xf32, #tpu.memory_space<any>>
      %c26_i32_312 = arith.constant 26 : i32
      %c0_i32_313 = arith.constant 0 : i32
      %556 = tpu.memref_slice %arg6[%340, %c26_i32_312, %c0_i32_313] : memref<2x64x128xf32, #tpu.memory_space<vmem>> -> memref<1x1x128xf32, #tpu.memory_space<vmem>>
      %557 = tpu.memref_squeeze %556 : memref<1x1x128xf32, #tpu.memory_space<vmem>> -> memref<1x128xf32, #tpu.memory_space<vmem>>
      %558 = tpu.memref_slice %arg7[%340] : memref<2x!tpu.dma_semaphore, #tpu.memory_space<semaphore_mem>> -> memref<1x!tpu.dma_semaphore, #tpu.memory_space<semaphore_mem>>
      %559 = tpu.memref_squeeze %558 : memref<1x!tpu.dma_semaphore, #tpu.memory_space<semaphore_mem>> -> memref<!tpu.dma_semaphore, #tpu.memory_space<semaphore_mem>>
      tpu.enqueue_dma source(%555 : memref<1x128xf32, #tpu.memory_space<any>>) target(%557 : memref<1x128xf32, #tpu.memory_space<vmem>>) target_semaphore(%559 : memref<!tpu.dma_semaphore, #tpu.memory_space<semaphore_mem>>)
      %c27_i32_314 = arith.constant 27 : i32
      %560 = arith.addi %343, %c27_i32_314 : i32
      %561 = arith.index_cast %560 : i32 to index
      %562 = memref.load %arg2[%561] : memref<256xi32, #tpu.memory_space<smem>>
      %c0_i32_315 = arith.constant 0 : i32
      %563 = tpu.memref_slice %arg3[%562, %c0_i32_315] : memref<128x128xf32, #tpu.memory_space<any>> -> memref<1x128xf32, #tpu.memory_space<any>>
      %c27_i32_316 = arith.constant 27 : i32
      %c0_i32_317 = arith.constant 0 : i32
      %564 = tpu.memref_slice %arg6[%340, %c27_i32_316, %c0_i32_317] : memref<2x64x128xf32, #tpu.memory_space<vmem>> -> memref<1x1x128xf32, #tpu.memory_space<vmem>>
      %565 = tpu.memref_squeeze %564 : memref<1x1x128xf32, #tpu.memory_space<vmem>> -> memref<1x128xf32, #tpu.memory_space<vmem>>
      %566 = tpu.memref_slice %arg7[%340] : memref<2x!tpu.dma_semaphore, #tpu.memory_space<semaphore_mem>> -> memref<1x!tpu.dma_semaphore, #tpu.memory_space<semaphore_mem>>
      %567 = tpu.memref_squeeze %566 : memref<1x!tpu.dma_semaphore, #tpu.memory_space<semaphore_mem>> -> memref<!tpu.dma_semaphore, #tpu.memory_space<semaphore_mem>>
      tpu.enqueue_dma source(%563 : memref<1x128xf32, #tpu.memory_space<any>>) target(%565 : memref<1x128xf32, #tpu.memory_space<vmem>>) target_semaphore(%567 : memref<!tpu.dma_semaphore, #tpu.memory_space<semaphore_mem>>)
      %c28_i32_318 = arith.constant 28 : i32
      %568 = arith.addi %343, %c28_i32_318 : i32
      %569 = arith.index_cast %568 : i32 to index
      %570 = memref.load %arg2[%569] : memref<256xi32, #tpu.memory_space<smem>>
      %c0_i32_319 = arith.constant 0 : i32
      %571 = tpu.memref_slice %arg3[%570, %c0_i32_319] : memref<128x128xf32, #tpu.memory_space<any>> -> memref<1x128xf32, #tpu.memory_space<any>>
      %c28_i32_320 = arith.constant 28 : i32
      %c0_i32_321 = arith.constant 0 : i32
      %572 = tpu.memref_slice %arg6[%340, %c28_i32_320, %c0_i32_321] : memref<2x64x128xf32, #tpu.memory_space<vmem>> -> memref<1x1x128xf32, #tpu.memory_space<vmem>>
      %573 = tpu.memref_squeeze %572 : memref<1x1x128xf32, #tpu.memory_space<vmem>> -> memref<1x128xf32, #tpu.memory_space<vmem>>
      %574 = tpu.memref_slice %arg7[%340] : memref<2x!tpu.dma_semaphore, #tpu.memory_space<semaphore_mem>> -> memref<1x!tpu.dma_semaphore, #tpu.memory_space<semaphore_mem>>
      %575 = tpu.memref_squeeze %574 : memref<1x!tpu.dma_semaphore, #tpu.memory_space<semaphore_mem>> -> memref<!tpu.dma_semaphore, #tpu.memory_space<semaphore_mem>>
      tpu.enqueue_dma source(%571 : memref<1x128xf32, #tpu.memory_space<any>>) target(%573 : memref<1x128xf32, #tpu.memory_space<vmem>>) target_semaphore(%575 : memref<!tpu.dma_semaphore, #tpu.memory_space<semaphore_mem>>)
      %c29_i32_322 = arith.constant 29 : i32
      %576 = arith.addi %343, %c29_i32_322 : i32
      %577 = arith.index_cast %576 : i32 to index
      %578 = memref.load %arg2[%577] : memref<256xi32, #tpu.memory_space<smem>>
      %c0_i32_323 = arith.constant 0 : i32
      %579 = tpu.memref_slice %arg3[%578, %c0_i32_323] : memref<128x128xf32, #tpu.memory_space<any>> -> memref<1x128xf32, #tpu.memory_space<any>>
      %c29_i32_324 = arith.constant 29 : i32
      %c0_i32_325 = arith.constant 0 : i32
      %580 = tpu.memref_slice %arg6[%340, %c29_i32_324, %c0_i32_325] : memref<2x64x128xf32, #tpu.memory_space<vmem>> -> memref<1x1x128xf32, #tpu.memory_space<vmem>>
      %581 = tpu.memref_squeeze %580 : memref<1x1x128xf32, #tpu.memory_space<vmem>> -> memref<1x128xf32, #tpu.memory_space<vmem>>
      %582 = tpu.memref_slice %arg7[%340] : memref<2x!tpu.dma_semaphore, #tpu.memory_space<semaphore_mem>> -> memref<1x!tpu.dma_semaphore, #tpu.memory_space<semaphore_mem>>
      %583 = tpu.memref_squeeze %582 : memref<1x!tpu.dma_semaphore, #tpu.memory_space<semaphore_mem>> -> memref<!tpu.dma_semaphore, #tpu.memory_space<semaphore_mem>>
      tpu.enqueue_dma source(%579 : memref<1x128xf32, #tpu.memory_space<any>>) target(%581 : memref<1x128xf32, #tpu.memory_space<vmem>>) target_semaphore(%583 : memref<!tpu.dma_semaphore, #tpu.memory_space<semaphore_mem>>)
      %c30_i32_326 = arith.constant 30 : i32
      %584 = arith.addi %343, %c30_i32_326 : i32
      %585 = arith.index_cast %584 : i32 to index
      %586 = memref.load %arg2[%585] : memref<256xi32, #tpu.memory_space<smem>>
      %c0_i32_327 = arith.constant 0 : i32
      %587 = tpu.memref_slice %arg3[%586, %c0_i32_327] : memref<128x128xf32, #tpu.memory_space<any>> -> memref<1x128xf32, #tpu.memory_space<any>>
      %c30_i32_328 = arith.constant 30 : i32
      %c0_i32_329 = arith.constant 0 : i32
      %588 = tpu.memref_slice %arg6[%340, %c30_i32_328, %c0_i32_329] : memref<2x64x128xf32, #tpu.memory_space<vmem>> -> memref<1x1x128xf32, #tpu.memory_space<vmem>>
      %589 = tpu.memref_squeeze %588 : memref<1x1x128xf32, #tpu.memory_space<vmem>> -> memref<1x128xf32, #tpu.memory_space<vmem>>
      %590 = tpu.memref_slice %arg7[%340] : memref<2x!tpu.dma_semaphore, #tpu.memory_space<semaphore_mem>> -> memref<1x!tpu.dma_semaphore, #tpu.memory_space<semaphore_mem>>
      %591 = tpu.memref_squeeze %590 : memref<1x!tpu.dma_semaphore, #tpu.memory_space<semaphore_mem>> -> memref<!tpu.dma_semaphore, #tpu.memory_space<semaphore_mem>>
      tpu.enqueue_dma source(%587 : memref<1x128xf32, #tpu.memory_space<any>>) target(%589 : memref<1x128xf32, #tpu.memory_space<vmem>>) target_semaphore(%591 : memref<!tpu.dma_semaphore, #tpu.memory_space<semaphore_mem>>)
      %c31_i32_330 = arith.constant 31 : i32
      %592 = arith.addi %343, %c31_i32_330 : i32
      %593 = arith.index_cast %592 : i32 to index
      %594 = memref.load %arg2[%593] : memref<256xi32, #tpu.memory_space<smem>>
      %c0_i32_331 = arith.constant 0 : i32
      %595 = tpu.memref_slice %arg3[%594, %c0_i32_331] : memref<128x128xf32, #tpu.memory_space<any>> -> memref<1x128xf32, #tpu.memory_space<any>>
      %c31_i32_332 = arith.constant 31 : i32
      %c0_i32_333 = arith.constant 0 : i32
      %596 = tpu.memref_slice %arg6[%340, %c31_i32_332, %c0_i32_333] : memref<2x64x128xf32, #tpu.memory_space<vmem>> -> memref<1x1x128xf32, #tpu.memory_space<vmem>>
      %597 = tpu.memref_squeeze %596 : memref<1x1x128xf32, #tpu.memory_space<vmem>> -> memref<1x128xf32, #tpu.memory_space<vmem>>
      %598 = tpu.memref_slice %arg7[%340] : memref<2x!tpu.dma_semaphore, #tpu.memory_space<semaphore_mem>> -> memref<1x!tpu.dma_semaphore, #tpu.memory_space<semaphore_mem>>
      %599 = tpu.memref_squeeze %598 : memref<1x!tpu.dma_semaphore, #tpu.memory_space<semaphore_mem>> -> memref<!tpu.dma_semaphore, #tpu.memory_space<semaphore_mem>>
      tpu.enqueue_dma source(%595 : memref<1x128xf32, #tpu.memory_space<any>>) target(%597 : memref<1x128xf32, #tpu.memory_space<vmem>>) target_semaphore(%599 : memref<!tpu.dma_semaphore, #tpu.memory_space<semaphore_mem>>)
      %c32_i32_334 = arith.constant 32 : i32
      %600 = arith.addi %343, %c32_i32_334 : i32
      %601 = arith.index_cast %600 : i32 to index
      %602 = memref.load %arg2[%601] : memref<256xi32, #tpu.memory_space<smem>>
      %c0_i32_335 = arith.constant 0 : i32
      %603 = tpu.memref_slice %arg3[%602, %c0_i32_335] : memref<128x128xf32, #tpu.memory_space<any>> -> memref<1x128xf32, #tpu.memory_space<any>>
      %c32_i32_336 = arith.constant 32 : i32
      %c0_i32_337 = arith.constant 0 : i32
      %604 = tpu.memref_slice %arg6[%340, %c32_i32_336, %c0_i32_337] : memref<2x64x128xf32, #tpu.memory_space<vmem>> -> memref<1x1x128xf32, #tpu.memory_space<vmem>>
      %605 = tpu.memref_squeeze %604 : memref<1x1x128xf32, #tpu.memory_space<vmem>> -> memref<1x128xf32, #tpu.memory_space<vmem>>
      %606 = tpu.memref_slice %arg7[%340] : memref<2x!tpu.dma_semaphore, #tpu.memory_space<semaphore_mem>> -> memref<1x!tpu.dma_semaphore, #tpu.memory_space<semaphore_mem>>
      %607 = tpu.memref_squeeze %606 : memref<1x!tpu.dma_semaphore, #tpu.memory_space<semaphore_mem>> -> memref<!tpu.dma_semaphore, #tpu.memory_space<semaphore_mem>>
      tpu.enqueue_dma source(%603 : memref<1x128xf32, #tpu.memory_space<any>>) target(%605 : memref<1x128xf32, #tpu.memory_space<vmem>>) target_semaphore(%607 : memref<!tpu.dma_semaphore, #tpu.memory_space<semaphore_mem>>)
      %c33_i32_338 = arith.constant 33 : i32
      %608 = arith.addi %343, %c33_i32_338 : i32
      %609 = arith.index_cast %608 : i32 to index
      %610 = memref.load %arg2[%609] : memref<256xi32, #tpu.memory_space<smem>>
      %c0_i32_339 = arith.constant 0 : i32
      %611 = tpu.memref_slice %arg3[%610, %c0_i32_339] : memref<128x128xf32, #tpu.memory_space<any>> -> memref<1x128xf32, #tpu.memory_space<any>>
      %c33_i32_340 = arith.constant 33 : i32
      %c0_i32_341 = arith.constant 0 : i32
      %612 = tpu.memref_slice %arg6[%340, %c33_i32_340, %c0_i32_341] : memref<2x64x128xf32, #tpu.memory_space<vmem>> -> memref<1x1x128xf32, #tpu.memory_space<vmem>>
      %613 = tpu.memref_squeeze %612 : memref<1x1x128xf32, #tpu.memory_space<vmem>> -> memref<1x128xf32, #tpu.memory_space<vmem>>
      %614 = tpu.memref_slice %arg7[%340] : memref<2x!tpu.dma_semaphore, #tpu.memory_space<semaphore_mem>> -> memref<1x!tpu.dma_semaphore, #tpu.memory_space<semaphore_mem>>
      %615 = tpu.memref_squeeze %614 : memref<1x!tpu.dma_semaphore, #tpu.memory_space<semaphore_mem>> -> memref<!tpu.dma_semaphore, #tpu.memory_space<semaphore_mem>>
      tpu.enqueue_dma source(%611 : memref<1x128xf32, #tpu.memory_space<any>>) target(%613 : memref<1x128xf32, #tpu.memory_space<vmem>>) target_semaphore(%615 : memref<!tpu.dma_semaphore, #tpu.memory_space<semaphore_mem>>)
      %c34_i32_342 = arith.constant 34 : i32
      %616 = arith.addi %343, %c34_i32_342 : i32
      %617 = arith.index_cast %616 : i32 to index
      %618 = memref.load %arg2[%617] : memref<256xi32, #tpu.memory_space<smem>>
      %c0_i32_343 = arith.constant 0 : i32
      %619 = tpu.memref_slice %arg3[%618, %c0_i32_343] : memref<128x128xf32, #tpu.memory_space<any>> -> memref<1x128xf32, #tpu.memory_space<any>>
      %c34_i32_344 = arith.constant 34 : i32
      %c0_i32_345 = arith.constant 0 : i32
      %620 = tpu.memref_slice %arg6[%340, %c34_i32_344, %c0_i32_345] : memref<2x64x128xf32, #tpu.memory_space<vmem>> -> memref<1x1x128xf32, #tpu.memory_space<vmem>>
      %621 = tpu.memref_squeeze %620 : memref<1x1x128xf32, #tpu.memory_space<vmem>> -> memref<1x128xf32, #tpu.memory_space<vmem>>
      %622 = tpu.memref_slice %arg7[%340] : memref<2x!tpu.dma_semaphore, #tpu.memory_space<semaphore_mem>> -> memref<1x!tpu.dma_semaphore, #tpu.memory_space<semaphore_mem>>
      %623 = tpu.memref_squeeze %622 : memref<1x!tpu.dma_semaphore, #tpu.memory_space<semaphore_mem>> -> memref<!tpu.dma_semaphore, #tpu.memory_space<semaphore_mem>>
      tpu.enqueue_dma source(%619 : memref<1x128xf32, #tpu.memory_space<any>>) target(%621 : memref<1x128xf32, #tpu.memory_space<vmem>>) target_semaphore(%623 : memref<!tpu.dma_semaphore, #tpu.memory_space<semaphore_mem>>)
      %c35_i32_346 = arith.constant 35 : i32
      %624 = arith.addi %343, %c35_i32_346 : i32
      %625 = arith.index_cast %624 : i32 to index
      %626 = memref.load %arg2[%625] : memref<256xi32, #tpu.memory_space<smem>>
      %c0_i32_347 = arith.constant 0 : i32
      %627 = tpu.memref_slice %arg3[%626, %c0_i32_347] : memref<128x128xf32, #tpu.memory_space<any>> -> memref<1x128xf32, #tpu.memory_space<any>>
      %c35_i32_348 = arith.constant 35 : i32
      %c0_i32_349 = arith.constant 0 : i32
      %628 = tpu.memref_slice %arg6[%340, %c35_i32_348, %c0_i32_349] : memref<2x64x128xf32, #tpu.memory_space<vmem>> -> memref<1x1x128xf32, #tpu.memory_space<vmem>>
      %629 = tpu.memref_squeeze %628 : memref<1x1x128xf32, #tpu.memory_space<vmem>> -> memref<1x128xf32, #tpu.memory_space<vmem>>
      %630 = tpu.memref_slice %arg7[%340] : memref<2x!tpu.dma_semaphore, #tpu.memory_space<semaphore_mem>> -> memref<1x!tpu.dma_semaphore, #tpu.memory_space<semaphore_mem>>
      %631 = tpu.memref_squeeze %630 : memref<1x!tpu.dma_semaphore, #tpu.memory_space<semaphore_mem>> -> memref<!tpu.dma_semaphore, #tpu.memory_space<semaphore_mem>>
      tpu.enqueue_dma source(%627 : memref<1x128xf32, #tpu.memory_space<any>>) target(%629 : memref<1x128xf32, #tpu.memory_space<vmem>>) target_semaphore(%631 : memref<!tpu.dma_semaphore, #tpu.memory_space<semaphore_mem>>)
      %c36_i32_350 = arith.constant 36 : i32
      %632 = arith.addi %343, %c36_i32_350 : i32
      %633 = arith.index_cast %632 : i32 to index
      %634 = memref.load %arg2[%633] : memref<256xi32, #tpu.memory_space<smem>>
      %c0_i32_351 = arith.constant 0 : i32
      %635 = tpu.memref_slice %arg3[%634, %c0_i32_351] : memref<128x128xf32, #tpu.memory_space<any>> -> memref<1x128xf32, #tpu.memory_space<any>>
      %c36_i32_352 = arith.constant 36 : i32
      %c0_i32_353 = arith.constant 0 : i32
      %636 = tpu.memref_slice %arg6[%340, %c36_i32_352, %c0_i32_353] : memref<2x64x128xf32, #tpu.memory_space<vmem>> -> memref<1x1x128xf32, #tpu.memory_space<vmem>>
      %637 = tpu.memref_squeeze %636 : memref<1x1x128xf32, #tpu.memory_space<vmem>> -> memref<1x128xf32, #tpu.memory_space<vmem>>
      %638 = tpu.memref_slice %arg7[%340] : memref<2x!tpu.dma_semaphore, #tpu.memory_space<semaphore_mem>> -> memref<1x!tpu.dma_semaphore, #tpu.memory_space<semaphore_mem>>
      %639 = tpu.memref_squeeze %638 : memref<1x!tpu.dma_semaphore, #tpu.memory_space<semaphore_mem>> -> memref<!tpu.dma_semaphore, #tpu.memory_space<semaphore_mem>>
      tpu.enqueue_dma source(%635 : memref<1x128xf32, #tpu.memory_space<any>>) target(%637 : memref<1x128xf32, #tpu.memory_space<vmem>>) target_semaphore(%639 : memref<!tpu.dma_semaphore, #tpu.memory_space<semaphore_mem>>)
      %c37_i32_354 = arith.constant 37 : i32
      %640 = arith.addi %343, %c37_i32_354 : i32
      %641 = arith.index_cast %640 : i32 to index
      %642 = memref.load %arg2[%641] : memref<256xi32, #tpu.memory_space<smem>>
      %c0_i32_355 = arith.constant 0 : i32
      %643 = tpu.memref_slice %arg3[%642, %c0_i32_355] : memref<128x128xf32, #tpu.memory_space<any>> -> memref<1x128xf32, #tpu.memory_space<any>>
      %c37_i32_356 = arith.constant 37 : i32
      %c0_i32_357 = arith.constant 0 : i32
      %644 = tpu.memref_slice %arg6[%340, %c37_i32_356, %c0_i32_357] : memref<2x64x128xf32, #tpu.memory_space<vmem>> -> memref<1x1x128xf32, #tpu.memory_space<vmem>>
      %645 = tpu.memref_squeeze %644 : memref<1x1x128xf32, #tpu.memory_space<vmem>> -> memref<1x128xf32, #tpu.memory_space<vmem>>
      %646 = tpu.memref_slice %arg7[%340] : memref<2x!tpu.dma_semaphore, #tpu.memory_space<semaphore_mem>> -> memref<1x!tpu.dma_semaphore, #tpu.memory_space<semaphore_mem>>
      %647 = tpu.memref_squeeze %646 : memref<1x!tpu.dma_semaphore, #tpu.memory_space<semaphore_mem>> -> memref<!tpu.dma_semaphore, #tpu.memory_space<semaphore_mem>>
      tpu.enqueue_dma source(%643 : memref<1x128xf32, #tpu.memory_space<any>>) target(%645 : memref<1x128xf32, #tpu.memory_space<vmem>>) target_semaphore(%647 : memref<!tpu.dma_semaphore, #tpu.memory_space<semaphore_mem>>)
      %c38_i32_358 = arith.constant 38 : i32
      %648 = arith.addi %343, %c38_i32_358 : i32
      %649 = arith.index_cast %648 : i32 to index
      %650 = memref.load %arg2[%649] : memref<256xi32, #tpu.memory_space<smem>>
      %c0_i32_359 = arith.constant 0 : i32
      %651 = tpu.memref_slice %arg3[%650, %c0_i32_359] : memref<128x128xf32, #tpu.memory_space<any>> -> memref<1x128xf32, #tpu.memory_space<any>>
      %c38_i32_360 = arith.constant 38 : i32
      %c0_i32_361 = arith.constant 0 : i32
      %652 = tpu.memref_slice %arg6[%340, %c38_i32_360, %c0_i32_361] : memref<2x64x128xf32, #tpu.memory_space<vmem>> -> memref<1x1x128xf32, #tpu.memory_space<vmem>>
      %653 = tpu.memref_squeeze %652 : memref<1x1x128xf32, #tpu.memory_space<vmem>> -> memref<1x128xf32, #tpu.memory_space<vmem>>
      %654 = tpu.memref_slice %arg7[%340] : memref<2x!tpu.dma_semaphore, #tpu.memory_space<semaphore_mem>> -> memref<1x!tpu.dma_semaphore, #tpu.memory_space<semaphore_mem>>
      %655 = tpu.memref_squeeze %654 : memref<1x!tpu.dma_semaphore, #tpu.memory_space<semaphore_mem>> -> memref<!tpu.dma_semaphore, #tpu.memory_space<semaphore_mem>>
      tpu.enqueue_dma source(%651 : memref<1x128xf32, #tpu.memory_space<any>>) target(%653 : memref<1x128xf32, #tpu.memory_space<vmem>>) target_semaphore(%655 : memref<!tpu.dma_semaphore, #tpu.memory_space<semaphore_mem>>)
      %c39_i32_362 = arith.constant 39 : i32
      %656 = arith.addi %343, %c39_i32_362 : i32
      %657 = arith.index_cast %656 : i32 to index
      %658 = memref.load %arg2[%657] : memref<256xi32, #tpu.memory_space<smem>>
      %c0_i32_363 = arith.constant 0 : i32
      %659 = tpu.memref_slice %arg3[%658, %c0_i32_363] : memref<128x128xf32, #tpu.memory_space<any>> -> memref<1x128xf32, #tpu.memory_space<any>>
      %c39_i32_364 = arith.constant 39 : i32
      %c0_i32_365 = arith.constant 0 : i32
      %660 = tpu.memref_slice %arg6[%340, %c39_i32_364, %c0_i32_365] : memref<2x64x128xf32, #tpu.memory_space<vmem>> -> memref<1x1x128xf32, #tpu.memory_space<vmem>>
      %661 = tpu.memref_squeeze %660 : memref<1x1x128xf32, #tpu.memory_space<vmem>> -> memref<1x128xf32, #tpu.memory_space<vmem>>
      %662 = tpu.memref_slice %arg7[%340] : memref<2x!tpu.dma_semaphore, #tpu.memory_space<semaphore_mem>> -> memref<1x!tpu.dma_semaphore, #tpu.memory_space<semaphore_mem>>
      %663 = tpu.memref_squeeze %662 : memref<1x!tpu.dma_semaphore, #tpu.memory_space<semaphore_mem>> -> memref<!tpu.dma_semaphore, #tpu.memory_space<semaphore_mem>>
      tpu.enqueue_dma source(%659 : memref<1x128xf32, #tpu.memory_space<any>>) target(%661 : memref<1x128xf32, #tpu.memory_space<vmem>>) target_semaphore(%663 : memref<!tpu.dma_semaphore, #tpu.memory_space<semaphore_mem>>)
      %c40_i32_366 = arith.constant 40 : i32
      %664 = arith.addi %343, %c40_i32_366 : i32
      %665 = arith.index_cast %664 : i32 to index
      %666 = memref.load %arg2[%665] : memref<256xi32, #tpu.memory_space<smem>>
      %c0_i32_367 = arith.constant 0 : i32
      %667 = tpu.memref_slice %arg3[%666, %c0_i32_367] : memref<128x128xf32, #tpu.memory_space<any>> -> memref<1x128xf32, #tpu.memory_space<any>>
      %c40_i32_368 = arith.constant 40 : i32
      %c0_i32_369 = arith.constant 0 : i32
      %668 = tpu.memref_slice %arg6[%340, %c40_i32_368, %c0_i32_369] : memref<2x64x128xf32, #tpu.memory_space<vmem>> -> memref<1x1x128xf32, #tpu.memory_space<vmem>>
      %669 = tpu.memref_squeeze %668 : memref<1x1x128xf32, #tpu.memory_space<vmem>> -> memref<1x128xf32, #tpu.memory_space<vmem>>
      %670 = tpu.memref_slice %arg7[%340] : memref<2x!tpu.dma_semaphore, #tpu.memory_space<semaphore_mem>> -> memref<1x!tpu.dma_semaphore, #tpu.memory_space<semaphore_mem>>
      %671 = tpu.memref_squeeze %670 : memref<1x!tpu.dma_semaphore, #tpu.memory_space<semaphore_mem>> -> memref<!tpu.dma_semaphore, #tpu.memory_space<semaphore_mem>>
      tpu.enqueue_dma source(%667 : memref<1x128xf32, #tpu.memory_space<any>>) target(%669 : memref<1x128xf32, #tpu.memory_space<vmem>>) target_semaphore(%671 : memref<!tpu.dma_semaphore, #tpu.memory_space<semaphore_mem>>)
      %c41_i32_370 = arith.constant 41 : i32
      %672 = arith.addi %343, %c41_i32_370 : i32
      %673 = arith.index_cast %672 : i32 to index
      %674 = memref.load %arg2[%673] : memref<256xi32, #tpu.memory_space<smem>>
      %c0_i32_371 = arith.constant 0 : i32
      %675 = tpu.memref_slice %arg3[%674, %c0_i32_371] : memref<128x128xf32, #tpu.memory_space<any>> -> memref<1x128xf32, #tpu.memory_space<any>>
      %c41_i32_372 = arith.constant 41 : i32
      %c0_i32_373 = arith.constant 0 : i32
      %676 = tpu.memref_slice %arg6[%340, %c41_i32_372, %c0_i32_373] : memref<2x64x128xf32, #tpu.memory_space<vmem>> -> memref<1x1x128xf32, #tpu.memory_space<vmem>>
      %677 = tpu.memref_squeeze %676 : memref<1x1x128xf32, #tpu.memory_space<vmem>> -> memref<1x128xf32, #tpu.memory_space<vmem>>
      %678 = tpu.memref_slice %arg7[%340] : memref<2x!tpu.dma_semaphore, #tpu.memory_space<semaphore_mem>> -> memref<1x!tpu.dma_semaphore, #tpu.memory_space<semaphore_mem>>
      %679 = tpu.memref_squeeze %678 : memref<1x!tpu.dma_semaphore, #tpu.memory_space<semaphore_mem>> -> memref<!tpu.dma_semaphore, #tpu.memory_space<semaphore_mem>>
      tpu.enqueue_dma source(%675 : memref<1x128xf32, #tpu.memory_space<any>>) target(%677 : memref<1x128xf32, #tpu.memory_space<vmem>>) target_semaphore(%679 : memref<!tpu.dma_semaphore, #tpu.memory_space<semaphore_mem>>)
      %c42_i32_374 = arith.constant 42 : i32
      %680 = arith.addi %343, %c42_i32_374 : i32
      %681 = arith.index_cast %680 : i32 to index
      %682 = memref.load %arg2[%681] : memref<256xi32, #tpu.memory_space<smem>>
      %c0_i32_375 = arith.constant 0 : i32
      %683 = tpu.memref_slice %arg3[%682, %c0_i32_375] : memref<128x128xf32, #tpu.memory_space<any>> -> memref<1x128xf32, #tpu.memory_space<any>>
      %c42_i32_376 = arith.constant 42 : i32
      %c0_i32_377 = arith.constant 0 : i32
      %684 = tpu.memref_slice %arg6[%340, %c42_i32_376, %c0_i32_377] : memref<2x64x128xf32, #tpu.memory_space<vmem>> -> memref<1x1x128xf32, #tpu.memory_space<vmem>>
      %685 = tpu.memref_squeeze %684 : memref<1x1x128xf32, #tpu.memory_space<vmem>> -> memref<1x128xf32, #tpu.memory_space<vmem>>
      %686 = tpu.memref_slice %arg7[%340] : memref<2x!tpu.dma_semaphore, #tpu.memory_space<semaphore_mem>> -> memref<1x!tpu.dma_semaphore, #tpu.memory_space<semaphore_mem>>
      %687 = tpu.memref_squeeze %686 : memref<1x!tpu.dma_semaphore, #tpu.memory_space<semaphore_mem>> -> memref<!tpu.dma_semaphore, #tpu.memory_space<semaphore_mem>>
      tpu.enqueue_dma source(%683 : memref<1x128xf32, #tpu.memory_space<any>>) target(%685 : memref<1x128xf32, #tpu.memory_space<vmem>>) target_semaphore(%687 : memref<!tpu.dma_semaphore, #tpu.memory_space<semaphore_mem>>)
      %c43_i32_378 = arith.constant 43 : i32
      %688 = arith.addi %343, %c43_i32_378 : i32
      %689 = arith.index_cast %688 : i32 to index
      %690 = memref.load %arg2[%689] : memref<256xi32, #tpu.memory_space<smem>>
      %c0_i32_379 = arith.constant 0 : i32
      %691 = tpu.memref_slice %arg3[%690, %c0_i32_379] : memref<128x128xf32, #tpu.memory_space<any>> -> memref<1x128xf32, #tpu.memory_space<any>>
      %c43_i32_380 = arith.constant 43 : i32
      %c0_i32_381 = arith.constant 0 : i32
      %692 = tpu.memref_slice %arg6[%340, %c43_i32_380, %c0_i32_381] : memref<2x64x128xf32, #tpu.memory_space<vmem>> -> memref<1x1x128xf32, #tpu.memory_space<vmem>>
      %693 = tpu.memref_squeeze %692 : memref<1x1x128xf32, #tpu.memory_space<vmem>> -> memref<1x128xf32, #tpu.memory_space<vmem>>
      %694 = tpu.memref_slice %arg7[%340] : memref<2x!tpu.dma_semaphore, #tpu.memory_space<semaphore_mem>> -> memref<1x!tpu.dma_semaphore, #tpu.memory_space<semaphore_mem>>
      %695 = tpu.memref_squeeze %694 : memref<1x!tpu.dma_semaphore, #tpu.memory_space<semaphore_mem>> -> memref<!tpu.dma_semaphore, #tpu.memory_space<semaphore_mem>>
      tpu.enqueue_dma source(%691 : memref<1x128xf32, #tpu.memory_space<any>>) target(%693 : memref<1x128xf32, #tpu.memory_space<vmem>>) target_semaphore(%695 : memref<!tpu.dma_semaphore, #tpu.memory_space<semaphore_mem>>)
      %c44_i32_382 = arith.constant 44 : i32
      %696 = arith.addi %343, %c44_i32_382 : i32
      %697 = arith.index_cast %696 : i32 to index
      %698 = memref.load %arg2[%697] : memref<256xi32, #tpu.memory_space<smem>>
      %c0_i32_383 = arith.constant 0 : i32
      %699 = tpu.memref_slice %arg3[%698, %c0_i32_383] : memref<128x128xf32, #tpu.memory_space<any>> -> memref<1x128xf32, #tpu.memory_space<any>>
      %c44_i32_384 = arith.constant 44 : i32
      %c0_i32_385 = arith.constant 0 : i32
      %700 = tpu.memref_slice %arg6[%340, %c44_i32_384, %c0_i32_385] : memref<2x64x128xf32, #tpu.memory_space<vmem>> -> memref<1x1x128xf32, #tpu.memory_space<vmem>>
      %701 = tpu.memref_squeeze %700 : memref<1x1x128xf32, #tpu.memory_space<vmem>> -> memref<1x128xf32, #tpu.memory_space<vmem>>
      %702 = tpu.memref_slice %arg7[%340] : memref<2x!tpu.dma_semaphore, #tpu.memory_space<semaphore_mem>> -> memref<1x!tpu.dma_semaphore, #tpu.memory_space<semaphore_mem>>
      %703 = tpu.memref_squeeze %702 : memref<1x!tpu.dma_semaphore, #tpu.memory_space<semaphore_mem>> -> memref<!tpu.dma_semaphore, #tpu.memory_space<semaphore_mem>>
      tpu.enqueue_dma source(%699 : memref<1x128xf32, #tpu.memory_space<any>>) target(%701 : memref<1x128xf32, #tpu.memory_space<vmem>>) target_semaphore(%703 : memref<!tpu.dma_semaphore, #tpu.memory_space<semaphore_mem>>)
      %c45_i32_386 = arith.constant 45 : i32
      %704 = arith.addi %343, %c45_i32_386 : i32
      %705 = arith.index_cast %704 : i32 to index
      %706 = memref.load %arg2[%705] : memref<256xi32, #tpu.memory_space<smem>>
      %c0_i32_387 = arith.constant 0 : i32
      %707 = tpu.memref_slice %arg3[%706, %c0_i32_387] : memref<128x128xf32, #tpu.memory_space<any>> -> memref<1x128xf32, #tpu.memory_space<any>>
      %c45_i32_388 = arith.constant 45 : i32
      %c0_i32_389 = arith.constant 0 : i32
      %708 = tpu.memref_slice %arg6[%340, %c45_i32_388, %c0_i32_389] : memref<2x64x128xf32, #tpu.memory_space<vmem>> -> memref<1x1x128xf32, #tpu.memory_space<vmem>>
      %709 = tpu.memref_squeeze %708 : memref<1x1x128xf32, #tpu.memory_space<vmem>> -> memref<1x128xf32, #tpu.memory_space<vmem>>
      %710 = tpu.memref_slice %arg7[%340] : memref<2x!tpu.dma_semaphore, #tpu.memory_space<semaphore_mem>> -> memref<1x!tpu.dma_semaphore, #tpu.memory_space<semaphore_mem>>
      %711 = tpu.memref_squeeze %710 : memref<1x!tpu.dma_semaphore, #tpu.memory_space<semaphore_mem>> -> memref<!tpu.dma_semaphore, #tpu.memory_space<semaphore_mem>>
      tpu.enqueue_dma source(%707 : memref<1x128xf32, #tpu.memory_space<any>>) target(%709 : memref<1x128xf32, #tpu.memory_space<vmem>>) target_semaphore(%711 : memref<!tpu.dma_semaphore, #tpu.memory_space<semaphore_mem>>)
      %c46_i32_390 = arith.constant 46 : i32
      %712 = arith.addi %343, %c46_i32_390 : i32
      %713 = arith.index_cast %712 : i32 to index
      %714 = memref.load %arg2[%713] : memref<256xi32, #tpu.memory_space<smem>>
      %c0_i32_391 = arith.constant 0 : i32
      %715 = tpu.memref_slice %arg3[%714, %c0_i32_391] : memref<128x128xf32, #tpu.memory_space<any>> -> memref<1x128xf32, #tpu.memory_space<any>>
      %c46_i32_392 = arith.constant 46 : i32
      %c0_i32_393 = arith.constant 0 : i32
      %716 = tpu.memref_slice %arg6[%340, %c46_i32_392, %c0_i32_393] : memref<2x64x128xf32, #tpu.memory_space<vmem>> -> memref<1x1x128xf32, #tpu.memory_space<vmem>>
      %717 = tpu.memref_squeeze %716 : memref<1x1x128xf32, #tpu.memory_space<vmem>> -> memref<1x128xf32, #tpu.memory_space<vmem>>
      %718 = tpu.memref_slice %arg7[%340] : memref<2x!tpu.dma_semaphore, #tpu.memory_space<semaphore_mem>> -> memref<1x!tpu.dma_semaphore, #tpu.memory_space<semaphore_mem>>
      %719 = tpu.memref_squeeze %718 : memref<1x!tpu.dma_semaphore, #tpu.memory_space<semaphore_mem>> -> memref<!tpu.dma_semaphore, #tpu.memory_space<semaphore_mem>>
      tpu.enqueue_dma source(%715 : memref<1x128xf32, #tpu.memory_space<any>>) target(%717 : memref<1x128xf32, #tpu.memory_space<vmem>>) target_semaphore(%719 : memref<!tpu.dma_semaphore, #tpu.memory_space<semaphore_mem>>)
      %c47_i32_394 = arith.constant 47 : i32
      %720 = arith.addi %343, %c47_i32_394 : i32
      %721 = arith.index_cast %720 : i32 to index
      %722 = memref.load %arg2[%721] : memref<256xi32, #tpu.memory_space<smem>>
      %c0_i32_395 = arith.constant 0 : i32
      %723 = tpu.memref_slice %arg3[%722, %c0_i32_395] : memref<128x128xf32, #tpu.memory_space<any>> -> memref<1x128xf32, #tpu.memory_space<any>>
      %c47_i32_396 = arith.constant 47 : i32
      %c0_i32_397 = arith.constant 0 : i32
      %724 = tpu.memref_slice %arg6[%340, %c47_i32_396, %c0_i32_397] : memref<2x64x128xf32, #tpu.memory_space<vmem>> -> memref<1x1x128xf32, #tpu.memory_space<vmem>>
      %725 = tpu.memref_squeeze %724 : memref<1x1x128xf32, #tpu.memory_space<vmem>> -> memref<1x128xf32, #tpu.memory_space<vmem>>
      %726 = tpu.memref_slice %arg7[%340] : memref<2x!tpu.dma_semaphore, #tpu.memory_space<semaphore_mem>> -> memref<1x!tpu.dma_semaphore, #tpu.memory_space<semaphore_mem>>
      %727 = tpu.memref_squeeze %726 : memref<1x!tpu.dma_semaphore, #tpu.memory_space<semaphore_mem>> -> memref<!tpu.dma_semaphore, #tpu.memory_space<semaphore_mem>>
      tpu.enqueue_dma source(%723 : memref<1x128xf32, #tpu.memory_space<any>>) target(%725 : memref<1x128xf32, #tpu.memory_space<vmem>>) target_semaphore(%727 : memref<!tpu.dma_semaphore, #tpu.memory_space<semaphore_mem>>)
      %c48_i32_398 = arith.constant 48 : i32
      %728 = arith.addi %343, %c48_i32_398 : i32
      %729 = arith.index_cast %728 : i32 to index
      %730 = memref.load %arg2[%729] : memref<256xi32, #tpu.memory_space<smem>>
      %c0_i32_399 = arith.constant 0 : i32
      %731 = tpu.memref_slice %arg3[%730, %c0_i32_399] : memref<128x128xf32, #tpu.memory_space<any>> -> memref<1x128xf32, #tpu.memory_space<any>>
      %c48_i32_400 = arith.constant 48 : i32
      %c0_i32_401 = arith.constant 0 : i32
      %732 = tpu.memref_slice %arg6[%340, %c48_i32_400, %c0_i32_401] : memref<2x64x128xf32, #tpu.memory_space<vmem>> -> memref<1x1x128xf32, #tpu.memory_space<vmem>>
      %733 = tpu.memref_squeeze %732 : memref<1x1x128xf32, #tpu.memory_space<vmem>> -> memref<1x128xf32, #tpu.memory_space<vmem>>
      %734 = tpu.memref_slice %arg7[%340] : memref<2x!tpu.dma_semaphore, #tpu.memory_space<semaphore_mem>> -> memref<1x!tpu.dma_semaphore, #tpu.memory_space<semaphore_mem>>
      %735 = tpu.memref_squeeze %734 : memref<1x!tpu.dma_semaphore, #tpu.memory_space<semaphore_mem>> -> memref<!tpu.dma_semaphore, #tpu.memory_space<semaphore_mem>>
      tpu.enqueue_dma source(%731 : memref<1x128xf32, #tpu.memory_space<any>>) target(%733 : memref<1x128xf32, #tpu.memory_space<vmem>>) target_semaphore(%735 : memref<!tpu.dma_semaphore, #tpu.memory_space<semaphore_mem>>)
      %c49_i32_402 = arith.constant 49 : i32
      %736 = arith.addi %343, %c49_i32_402 : i32
      %737 = arith.index_cast %736 : i32 to index
      %738 = memref.load %arg2[%737] : memref<256xi32, #tpu.memory_space<smem>>
      %c0_i32_403 = arith.constant 0 : i32
      %739 = tpu.memref_slice %arg3[%738, %c0_i32_403] : memref<128x128xf32, #tpu.memory_space<any>> -> memref<1x128xf32, #tpu.memory_space<any>>
      %c49_i32_404 = arith.constant 49 : i32
      %c0_i32_405 = arith.constant 0 : i32
      %740 = tpu.memref_slice %arg6[%340, %c49_i32_404, %c0_i32_405] : memref<2x64x128xf32, #tpu.memory_space<vmem>> -> memref<1x1x128xf32, #tpu.memory_space<vmem>>
      %741 = tpu.memref_squeeze %740 : memref<1x1x128xf32, #tpu.memory_space<vmem>> -> memref<1x128xf32, #tpu.memory_space<vmem>>
      %742 = tpu.memref_slice %arg7[%340] : memref<2x!tpu.dma_semaphore, #tpu.memory_space<semaphore_mem>> -> memref<1x!tpu.dma_semaphore, #tpu.memory_space<semaphore_mem>>
      %743 = tpu.memref_squeeze %742 : memref<1x!tpu.dma_semaphore, #tpu.memory_space<semaphore_mem>> -> memref<!tpu.dma_semaphore, #tpu.memory_space<semaphore_mem>>
      tpu.enqueue_dma source(%739 : memref<1x128xf32, #tpu.memory_space<any>>) target(%741 : memref<1x128xf32, #tpu.memory_space<vmem>>) target_semaphore(%743 : memref<!tpu.dma_semaphore, #tpu.memory_space<semaphore_mem>>)
      %c50_i32_406 = arith.constant 50 : i32
      %744 = arith.addi %343, %c50_i32_406 : i32
      %745 = arith.index_cast %744 : i32 to index
      %746 = memref.load %arg2[%745] : memref<256xi32, #tpu.memory_space<smem>>
      %c0_i32_407 = arith.constant 0 : i32
      %747 = tpu.memref_slice %arg3[%746, %c0_i32_407] : memref<128x128xf32, #tpu.memory_space<any>> -> memref<1x128xf32, #tpu.memory_space<any>>
      %c50_i32_408 = arith.constant 50 : i32
      %c0_i32_409 = arith.constant 0 : i32
      %748 = tpu.memref_slice %arg6[%340, %c50_i32_408, %c0_i32_409] : memref<2x64x128xf32, #tpu.memory_space<vmem>> -> memref<1x1x128xf32, #tpu.memory_space<vmem>>
      %749 = tpu.memref_squeeze %748 : memref<1x1x128xf32, #tpu.memory_space<vmem>> -> memref<1x128xf32, #tpu.memory_space<vmem>>
      %750 = tpu.memref_slice %arg7[%340] : memref<2x!tpu.dma_semaphore, #tpu.memory_space<semaphore_mem>> -> memref<1x!tpu.dma_semaphore, #tpu.memory_space<semaphore_mem>>
      %751 = tpu.memref_squeeze %750 : memref<1x!tpu.dma_semaphore, #tpu.memory_space<semaphore_mem>> -> memref<!tpu.dma_semaphore, #tpu.memory_space<semaphore_mem>>
      tpu.enqueue_dma source(%747 : memref<1x128xf32, #tpu.memory_space<any>>) target(%749 : memref<1x128xf32, #tpu.memory_space<vmem>>) target_semaphore(%751 : memref<!tpu.dma_semaphore, #tpu.memory_space<semaphore_mem>>)
      %c51_i32_410 = arith.constant 51 : i32
      %752 = arith.addi %343, %c51_i32_410 : i32
      %753 = arith.index_cast %752 : i32 to index
      %754 = memref.load %arg2[%753] : memref<256xi32, #tpu.memory_space<smem>>
      %c0_i32_411 = arith.constant 0 : i32
      %755 = tpu.memref_slice %arg3[%754, %c0_i32_411] : memref<128x128xf32, #tpu.memory_space<any>> -> memref<1x128xf32, #tpu.memory_space<any>>
      %c51_i32_412 = arith.constant 51 : i32
      %c0_i32_413 = arith.constant 0 : i32
      %756 = tpu.memref_slice %arg6[%340, %c51_i32_412, %c0_i32_413] : memref<2x64x128xf32, #tpu.memory_space<vmem>> -> memref<1x1x128xf32, #tpu.memory_space<vmem>>
      %757 = tpu.memref_squeeze %756 : memref<1x1x128xf32, #tpu.memory_space<vmem>> -> memref<1x128xf32, #tpu.memory_space<vmem>>
      %758 = tpu.memref_slice %arg7[%340] : memref<2x!tpu.dma_semaphore, #tpu.memory_space<semaphore_mem>> -> memref<1x!tpu.dma_semaphore, #tpu.memory_space<semaphore_mem>>
      %759 = tpu.memref_squeeze %758 : memref<1x!tpu.dma_semaphore, #tpu.memory_space<semaphore_mem>> -> memref<!tpu.dma_semaphore, #tpu.memory_space<semaphore_mem>>
      tpu.enqueue_dma source(%755 : memref<1x128xf32, #tpu.memory_space<any>>) target(%757 : memref<1x128xf32, #tpu.memory_space<vmem>>) target_semaphore(%759 : memref<!tpu.dma_semaphore, #tpu.memory_space<semaphore_mem>>)
      %c52_i32_414 = arith.constant 52 : i32
      %760 = arith.addi %343, %c52_i32_414 : i32
      %761 = arith.index_cast %760 : i32 to index
      %762 = memref.load %arg2[%761] : memref<256xi32, #tpu.memory_space<smem>>
      %c0_i32_415 = arith.constant 0 : i32
      %763 = tpu.memref_slice %arg3[%762, %c0_i32_415] : memref<128x128xf32, #tpu.memory_space<any>> -> memref<1x128xf32, #tpu.memory_space<any>>
      %c52_i32_416 = arith.constant 52 : i32
      %c0_i32_417 = arith.constant 0 : i32
      %764 = tpu.memref_slice %arg6[%340, %c52_i32_416, %c0_i32_417] : memref<2x64x128xf32, #tpu.memory_space<vmem>> -> memref<1x1x128xf32, #tpu.memory_space<vmem>>
      %765 = tpu.memref_squeeze %764 : memref<1x1x128xf32, #tpu.memory_space<vmem>> -> memref<1x128xf32, #tpu.memory_space<vmem>>
      %766 = tpu.memref_slice %arg7[%340] : memref<2x!tpu.dma_semaphore, #tpu.memory_space<semaphore_mem>> -> memref<1x!tpu.dma_semaphore, #tpu.memory_space<semaphore_mem>>
      %767 = tpu.memref_squeeze %766 : memref<1x!tpu.dma_semaphore, #tpu.memory_space<semaphore_mem>> -> memref<!tpu.dma_semaphore, #tpu.memory_space<semaphore_mem>>
      tpu.enqueue_dma source(%763 : memref<1x128xf32, #tpu.memory_space<any>>) target(%765 : memref<1x128xf32, #tpu.memory_space<vmem>>) target_semaphore(%767 : memref<!tpu.dma_semaphore, #tpu.memory_space<semaphore_mem>>)
      %c53_i32_418 = arith.constant 53 : i32
      %768 = arith.addi %343, %c53_i32_418 : i32
      %769 = arith.index_cast %768 : i32 to index
      %770 = memref.load %arg2[%769] : memref<256xi32, #tpu.memory_space<smem>>
      %c0_i32_419 = arith.constant 0 : i32
      %771 = tpu.memref_slice %arg3[%770, %c0_i32_419] : memref<128x128xf32, #tpu.memory_space<any>> -> memref<1x128xf32, #tpu.memory_space<any>>
      %c53_i32_420 = arith.constant 53 : i32
      %c0_i32_421 = arith.constant 0 : i32
      %772 = tpu.memref_slice %arg6[%340, %c53_i32_420, %c0_i32_421] : memref<2x64x128xf32, #tpu.memory_space<vmem>> -> memref<1x1x128xf32, #tpu.memory_space<vmem>>
      %773 = tpu.memref_squeeze %772 : memref<1x1x128xf32, #tpu.memory_space<vmem>> -> memref<1x128xf32, #tpu.memory_space<vmem>>
      %774 = tpu.memref_slice %arg7[%340] : memref<2x!tpu.dma_semaphore, #tpu.memory_space<semaphore_mem>> -> memref<1x!tpu.dma_semaphore, #tpu.memory_space<semaphore_mem>>
      %775 = tpu.memref_squeeze %774 : memref<1x!tpu.dma_semaphore, #tpu.memory_space<semaphore_mem>> -> memref<!tpu.dma_semaphore, #tpu.memory_space<semaphore_mem>>
      tpu.enqueue_dma source(%771 : memref<1x128xf32, #tpu.memory_space<any>>) target(%773 : memref<1x128xf32, #tpu.memory_space<vmem>>) target_semaphore(%775 : memref<!tpu.dma_semaphore, #tpu.memory_space<semaphore_mem>>)
      %c54_i32_422 = arith.constant 54 : i32
      %776 = arith.addi %343, %c54_i32_422 : i32
      %777 = arith.index_cast %776 : i32 to index
      %778 = memref.load %arg2[%777] : memref<256xi32, #tpu.memory_space<smem>>
      %c0_i32_423 = arith.constant 0 : i32
      %779 = tpu.memref_slice %arg3[%778, %c0_i32_423] : memref<128x128xf32, #tpu.memory_space<any>> -> memref<1x128xf32, #tpu.memory_space<any>>
      %c54_i32_424 = arith.constant 54 : i32
      %c0_i32_425 = arith.constant 0 : i32
      %780 = tpu.memref_slice %arg6[%340, %c54_i32_424, %c0_i32_425] : memref<2x64x128xf32, #tpu.memory_space<vmem>> -> memref<1x1x128xf32, #tpu.memory_space<vmem>>
      %781 = tpu.memref_squeeze %780 : memref<1x1x128xf32, #tpu.memory_space<vmem>> -> memref<1x128xf32, #tpu.memory_space<vmem>>
      %782 = tpu.memref_slice %arg7[%340] : memref<2x!tpu.dma_semaphore, #tpu.memory_space<semaphore_mem>> -> memref<1x!tpu.dma_semaphore, #tpu.memory_space<semaphore_mem>>
      %783 = tpu.memref_squeeze %782 : memref<1x!tpu.dma_semaphore, #tpu.memory_space<semaphore_mem>> -> memref<!tpu.dma_semaphore, #tpu.memory_space<semaphore_mem>>
      tpu.enqueue_dma source(%779 : memref<1x128xf32, #tpu.memory_space<any>>) target(%781 : memref<1x128xf32, #tpu.memory_space<vmem>>) target_semaphore(%783 : memref<!tpu.dma_semaphore, #tpu.memory_space<semaphore_mem>>)
      %c55_i32_426 = arith.constant 55 : i32
      %784 = arith.addi %343, %c55_i32_426 : i32
      %785 = arith.index_cast %784 : i32 to index
      %786 = memref.load %arg2[%785] : memref<256xi32, #tpu.memory_space<smem>>
      %c0_i32_427 = arith.constant 0 : i32
      %787 = tpu.memref_slice %arg3[%786, %c0_i32_427] : memref<128x128xf32, #tpu.memory_space<any>> -> memref<1x128xf32, #tpu.memory_space<any>>
      %c55_i32_428 = arith.constant 55 : i32
      %c0_i32_429 = arith.constant 0 : i32
      %788 = tpu.memref_slice %arg6[%340, %c55_i32_428, %c0_i32_429] : memref<2x64x128xf32, #tpu.memory_space<vmem>> -> memref<1x1x128xf32, #tpu.memory_space<vmem>>
      %789 = tpu.memref_squeeze %788 : memref<1x1x128xf32, #tpu.memory_space<vmem>> -> memref<1x128xf32, #tpu.memory_space<vmem>>
      %790 = tpu.memref_slice %arg7[%340] : memref<2x!tpu.dma_semaphore, #tpu.memory_space<semaphore_mem>> -> memref<1x!tpu.dma_semaphore, #tpu.memory_space<semaphore_mem>>
      %791 = tpu.memref_squeeze %790 : memref<1x!tpu.dma_semaphore, #tpu.memory_space<semaphore_mem>> -> memref<!tpu.dma_semaphore, #tpu.memory_space<semaphore_mem>>
      tpu.enqueue_dma source(%787 : memref<1x128xf32, #tpu.memory_space<any>>) target(%789 : memref<1x128xf32, #tpu.memory_space<vmem>>) target_semaphore(%791 : memref<!tpu.dma_semaphore, #tpu.memory_space<semaphore_mem>>)
      %c56_i32_430 = arith.constant 56 : i32
      %792 = arith.addi %343, %c56_i32_430 : i32
      %793 = arith.index_cast %792 : i32 to index
      %794 = memref.load %arg2[%793] : memref<256xi32, #tpu.memory_space<smem>>
      %c0_i32_431 = arith.constant 0 : i32
      %795 = tpu.memref_slice %arg3[%794, %c0_i32_431] : memref<128x128xf32, #tpu.memory_space<any>> -> memref<1x128xf32, #tpu.memory_space<any>>
      %c56_i32_432 = arith.constant 56 : i32
      %c0_i32_433 = arith.constant 0 : i32
      %796 = tpu.memref_slice %arg6[%340, %c56_i32_432, %c0_i32_433] : memref<2x64x128xf32, #tpu.memory_space<vmem>> -> memref<1x1x128xf32, #tpu.memory_space<vmem>>
      %797 = tpu.memref_squeeze %796 : memref<1x1x128xf32, #tpu.memory_space<vmem>> -> memref<1x128xf32, #tpu.memory_space<vmem>>
      %798 = tpu.memref_slice %arg7[%340] : memref<2x!tpu.dma_semaphore, #tpu.memory_space<semaphore_mem>> -> memref<1x!tpu.dma_semaphore, #tpu.memory_space<semaphore_mem>>
      %799 = tpu.memref_squeeze %798 : memref<1x!tpu.dma_semaphore, #tpu.memory_space<semaphore_mem>> -> memref<!tpu.dma_semaphore, #tpu.memory_space<semaphore_mem>>
      tpu.enqueue_dma source(%795 : memref<1x128xf32, #tpu.memory_space<any>>) target(%797 : memref<1x128xf32, #tpu.memory_space<vmem>>) target_semaphore(%799 : memref<!tpu.dma_semaphore, #tpu.memory_space<semaphore_mem>>)
      %c57_i32_434 = arith.constant 57 : i32
      %800 = arith.addi %343, %c57_i32_434 : i32
      %801 = arith.index_cast %800 : i32 to index
      %802 = memref.load %arg2[%801] : memref<256xi32, #tpu.memory_space<smem>>
      %c0_i32_435 = arith.constant 0 : i32
      %803 = tpu.memref_slice %arg3[%802, %c0_i32_435] : memref<128x128xf32, #tpu.memory_space<any>> -> memref<1x128xf32, #tpu.memory_space<any>>
      %c57_i32_436 = arith.constant 57 : i32
      %c0_i32_437 = arith.constant 0 : i32
      %804 = tpu.memref_slice %arg6[%340, %c57_i32_436, %c0_i32_437] : memref<2x64x128xf32, #tpu.memory_space<vmem>> -> memref<1x1x128xf32, #tpu.memory_space<vmem>>
      %805 = tpu.memref_squeeze %804 : memref<1x1x128xf32, #tpu.memory_space<vmem>> -> memref<1x128xf32, #tpu.memory_space<vmem>>
      %806 = tpu.memref_slice %arg7[%340] : memref<2x!tpu.dma_semaphore, #tpu.memory_space<semaphore_mem>> -> memref<1x!tpu.dma_semaphore, #tpu.memory_space<semaphore_mem>>
      %807 = tpu.memref_squeeze %806 : memref<1x!tpu.dma_semaphore, #tpu.memory_space<semaphore_mem>> -> memref<!tpu.dma_semaphore, #tpu.memory_space<semaphore_mem>>
      tpu.enqueue_dma source(%803 : memref<1x128xf32, #tpu.memory_space<any>>) target(%805 : memref<1x128xf32, #tpu.memory_space<vmem>>) target_semaphore(%807 : memref<!tpu.dma_semaphore, #tpu.memory_space<semaphore_mem>>)
      %c58_i32_438 = arith.constant 58 : i32
      %808 = arith.addi %343, %c58_i32_438 : i32
      %809 = arith.index_cast %808 : i32 to index
      %810 = memref.load %arg2[%809] : memref<256xi32, #tpu.memory_space<smem>>
      %c0_i32_439 = arith.constant 0 : i32
      %811 = tpu.memref_slice %arg3[%810, %c0_i32_439] : memref<128x128xf32, #tpu.memory_space<any>> -> memref<1x128xf32, #tpu.memory_space<any>>
      %c58_i32_440 = arith.constant 58 : i32
      %c0_i32_441 = arith.constant 0 : i32
      %812 = tpu.memref_slice %arg6[%340, %c58_i32_440, %c0_i32_441] : memref<2x64x128xf32, #tpu.memory_space<vmem>> -> memref<1x1x128xf32, #tpu.memory_space<vmem>>
      %813 = tpu.memref_squeeze %812 : memref<1x1x128xf32, #tpu.memory_space<vmem>> -> memref<1x128xf32, #tpu.memory_space<vmem>>
      %814 = tpu.memref_slice %arg7[%340] : memref<2x!tpu.dma_semaphore, #tpu.memory_space<semaphore_mem>> -> memref<1x!tpu.dma_semaphore, #tpu.memory_space<semaphore_mem>>
      %815 = tpu.memref_squeeze %814 : memref<1x!tpu.dma_semaphore, #tpu.memory_space<semaphore_mem>> -> memref<!tpu.dma_semaphore, #tpu.memory_space<semaphore_mem>>
      tpu.enqueue_dma source(%811 : memref<1x128xf32, #tpu.memory_space<any>>) target(%813 : memref<1x128xf32, #tpu.memory_space<vmem>>) target_semaphore(%815 : memref<!tpu.dma_semaphore, #tpu.memory_space<semaphore_mem>>)
      %c59_i32_442 = arith.constant 59 : i32
      %816 = arith.addi %343, %c59_i32_442 : i32
      %817 = arith.index_cast %816 : i32 to index
      %818 = memref.load %arg2[%817] : memref<256xi32, #tpu.memory_space<smem>>
      %c0_i32_443 = arith.constant 0 : i32
      %819 = tpu.memref_slice %arg3[%818, %c0_i32_443] : memref<128x128xf32, #tpu.memory_space<any>> -> memref<1x128xf32, #tpu.memory_space<any>>
      %c59_i32_444 = arith.constant 59 : i32
      %c0_i32_445 = arith.constant 0 : i32
      %820 = tpu.memref_slice %arg6[%340, %c59_i32_444, %c0_i32_445] : memref<2x64x128xf32, #tpu.memory_space<vmem>> -> memref<1x1x128xf32, #tpu.memory_space<vmem>>
      %821 = tpu.memref_squeeze %820 : memref<1x1x128xf32, #tpu.memory_space<vmem>> -> memref<1x128xf32, #tpu.memory_space<vmem>>
      %822 = tpu.memref_slice %arg7[%340] : memref<2x!tpu.dma_semaphore, #tpu.memory_space<semaphore_mem>> -> memref<1x!tpu.dma_semaphore, #tpu.memory_space<semaphore_mem>>
      %823 = tpu.memref_squeeze %822 : memref<1x!tpu.dma_semaphore, #tpu.memory_space<semaphore_mem>> -> memref<!tpu.dma_semaphore, #tpu.memory_space<semaphore_mem>>
      tpu.enqueue_dma source(%819 : memref<1x128xf32, #tpu.memory_space<any>>) target(%821 : memref<1x128xf32, #tpu.memory_space<vmem>>) target_semaphore(%823 : memref<!tpu.dma_semaphore, #tpu.memory_space<semaphore_mem>>)
      %c60_i32_446 = arith.constant 60 : i32
      %824 = arith.addi %343, %c60_i32_446 : i32
      %825 = arith.index_cast %824 : i32 to index
      %826 = memref.load %arg2[%825] : memref<256xi32, #tpu.memory_space<smem>>
      %c0_i32_447 = arith.constant 0 : i32
      %827 = tpu.memref_slice %arg3[%826, %c0_i32_447] : memref<128x128xf32, #tpu.memory_space<any>> -> memref<1x128xf32, #tpu.memory_space<any>>
      %c60_i32_448 = arith.constant 60 : i32
      %c0_i32_449 = arith.constant 0 : i32
      %828 = tpu.memref_slice %arg6[%340, %c60_i32_448, %c0_i32_449] : memref<2x64x128xf32, #tpu.memory_space<vmem>> -> memref<1x1x128xf32, #tpu.memory_space<vmem>>
      %829 = tpu.memref_squeeze %828 : memref<1x1x128xf32, #tpu.memory_space<vmem>> -> memref<1x128xf32, #tpu.memory_space<vmem>>
      %830 = tpu.memref_slice %arg7[%340] : memref<2x!tpu.dma_semaphore, #tpu.memory_space<semaphore_mem>> -> memref<1x!tpu.dma_semaphore, #tpu.memory_space<semaphore_mem>>
      %831 = tpu.memref_squeeze %830 : memref<1x!tpu.dma_semaphore, #tpu.memory_space<semaphore_mem>> -> memref<!tpu.dma_semaphore, #tpu.memory_space<semaphore_mem>>
      tpu.enqueue_dma source(%827 : memref<1x128xf32, #tpu.memory_space<any>>) target(%829 : memref<1x128xf32, #tpu.memory_space<vmem>>) target_semaphore(%831 : memref<!tpu.dma_semaphore, #tpu.memory_space<semaphore_mem>>)
      %c61_i32_450 = arith.constant 61 : i32
      %832 = arith.addi %343, %c61_i32_450 : i32
      %833 = arith.index_cast %832 : i32 to index
      %834 = memref.load %arg2[%833] : memref<256xi32, #tpu.memory_space<smem>>
      %c0_i32_451 = arith.constant 0 : i32
      %835 = tpu.memref_slice %arg3[%834, %c0_i32_451] : memref<128x128xf32, #tpu.memory_space<any>> -> memref<1x128xf32, #tpu.memory_space<any>>
      %c61_i32_452 = arith.constant 61 : i32
      %c0_i32_453 = arith.constant 0 : i32
      %836 = tpu.memref_slice %arg6[%340, %c61_i32_452, %c0_i32_453] : memref<2x64x128xf32, #tpu.memory_space<vmem>> -> memref<1x1x128xf32, #tpu.memory_space<vmem>>
      %837 = tpu.memref_squeeze %836 : memref<1x1x128xf32, #tpu.memory_space<vmem>> -> memref<1x128xf32, #tpu.memory_space<vmem>>
      %838 = tpu.memref_slice %arg7[%340] : memref<2x!tpu.dma_semaphore, #tpu.memory_space<semaphore_mem>> -> memref<1x!tpu.dma_semaphore, #tpu.memory_space<semaphore_mem>>
      %839 = tpu.memref_squeeze %838 : memref<1x!tpu.dma_semaphore, #tpu.memory_space<semaphore_mem>> -> memref<!tpu.dma_semaphore, #tpu.memory_space<semaphore_mem>>
      tpu.enqueue_dma source(%835 : memref<1x128xf32, #tpu.memory_space<any>>) target(%837 : memref<1x128xf32, #tpu.memory_space<vmem>>) target_semaphore(%839 : memref<!tpu.dma_semaphore, #tpu.memory_space<semaphore_mem>>)
      %c62_i32_454 = arith.constant 62 : i32
      %840 = arith.addi %343, %c62_i32_454 : i32
      %841 = arith.index_cast %840 : i32 to index
      %842 = memref.load %arg2[%841] : memref<256xi32, #tpu.memory_space<smem>>
      %c0_i32_455 = arith.constant 0 : i32
      %843 = tpu.memref_slice %arg3[%842, %c0_i32_455] : memref<128x128xf32, #tpu.memory_space<any>> -> memref<1x128xf32, #tpu.memory_space<any>>
      %c62_i32_456 = arith.constant 62 : i32
      %c0_i32_457 = arith.constant 0 : i32
      %844 = tpu.memref_slice %arg6[%340, %c62_i32_456, %c0_i32_457] : memref<2x64x128xf32, #tpu.memory_space<vmem>> -> memref<1x1x128xf32, #tpu.memory_space<vmem>>
      %845 = tpu.memref_squeeze %844 : memref<1x1x128xf32, #tpu.memory_space<vmem>> -> memref<1x128xf32, #tpu.memory_space<vmem>>
      %846 = tpu.memref_slice %arg7[%340] : memref<2x!tpu.dma_semaphore, #tpu.memory_space<semaphore_mem>> -> memref<1x!tpu.dma_semaphore, #tpu.memory_space<semaphore_mem>>
      %847 = tpu.memref_squeeze %846 : memref<1x!tpu.dma_semaphore, #tpu.memory_space<semaphore_mem>> -> memref<!tpu.dma_semaphore, #tpu.memory_space<semaphore_mem>>
      tpu.enqueue_dma source(%843 : memref<1x128xf32, #tpu.memory_space<any>>) target(%845 : memref<1x128xf32, #tpu.memory_space<vmem>>) target_semaphore(%847 : memref<!tpu.dma_semaphore, #tpu.memory_space<semaphore_mem>>)
      %c63_i32_458 = arith.constant 63 : i32
      %848 = arith.addi %343, %c63_i32_458 : i32
      %849 = arith.index_cast %848 : i32 to index
      %850 = memref.load %arg2[%849] : memref<256xi32, #tpu.memory_space<smem>>
      %c0_i32_459 = arith.constant 0 : i32
      %851 = tpu.memref_slice %arg3[%850, %c0_i32_459] : memref<128x128xf32, #tpu.memory_space<any>> -> memref<1x128xf32, #tpu.memory_space<any>>
      %c63_i32_460 = arith.constant 63 : i32
      %c0_i32_461 = arith.constant 0 : i32
      %852 = tpu.memref_slice %arg6[%340, %c63_i32_460, %c0_i32_461] : memref<2x64x128xf32, #tpu.memory_space<vmem>> -> memref<1x1x128xf32, #tpu.memory_space<vmem>>
      %853 = tpu.memref_squeeze %852 : memref<1x1x128xf32, #tpu.memory_space<vmem>> -> memref<1x128xf32, #tpu.memory_space<vmem>>
      %854 = tpu.memref_slice %arg7[%340] : memref<2x!tpu.dma_semaphore, #tpu.memory_space<semaphore_mem>> -> memref<1x!tpu.dma_semaphore, #tpu.memory_space<semaphore_mem>>
      %855 = tpu.memref_squeeze %854 : memref<1x!tpu.dma_semaphore, #tpu.memory_space<semaphore_mem>> -> memref<!tpu.dma_semaphore, #tpu.memory_space<semaphore_mem>>
      tpu.enqueue_dma source(%851 : memref<1x128xf32, #tpu.memory_space<any>>) target(%853 : memref<1x128xf32, #tpu.memory_space<vmem>>) target_semaphore(%855 : memref<!tpu.dma_semaphore, #tpu.memory_space<semaphore_mem>>)
    } else {
    }
    %c0_i32_3 = arith.constant 0 : i32
    %c0_i32_4 = arith.constant 0 : i32
    %8 = tpu.memref_slice %arg3[%c0_i32_3, %c0_i32_4] : memref<128x128xf32, #tpu.memory_space<any>> -> memref<1x128xf32, #tpu.memory_space<any>>
    %c0_i32_5 = arith.constant 0 : i32
    %c0_i32_6 = arith.constant 0 : i32
    %9 = tpu.memref_slice %arg6[%0, %c0_i32_5, %c0_i32_6] : memref<2x64x128xf32, #tpu.memory_space<vmem>> -> memref<1x1x128xf32, #tpu.memory_space<vmem>>
    %10 = tpu.memref_squeeze %9 : memref<1x1x128xf32, #tpu.memory_space<vmem>> -> memref<1x128xf32, #tpu.memory_space<vmem>>
    %11 = tpu.memref_slice %arg7[%0] : memref<2x!tpu.dma_semaphore, #tpu.memory_space<semaphore_mem>> -> memref<1x!tpu.dma_semaphore, #tpu.memory_space<semaphore_mem>>
    %12 = tpu.memref_squeeze %11 : memref<1x!tpu.dma_semaphore, #tpu.memory_space<semaphore_mem>> -> memref<!tpu.dma_semaphore, #tpu.memory_space<semaphore_mem>>
    tpu.wait_dma2 semaphore(%12 : memref<!tpu.dma_semaphore, #tpu.memory_space<semaphore_mem>>) src(%8 : memref<1x128xf32, #tpu.memory_space<any>>) dst(%10 : memref<1x128xf32, #tpu.memory_space<vmem>>)
    %c0_i32_7 = arith.constant 0 : i32
    %c0_i32_8 = arith.constant 0 : i32
    %13 = tpu.memref_slice %arg3[%c0_i32_7, %c0_i32_8] : memref<128x128xf32, #tpu.memory_space<any>> -> memref<1x128xf32, #tpu.memory_space<any>>
    %c1_i32_9 = arith.constant 1 : i32
    %c0_i32_10 = arith.constant 0 : i32
    %14 = tpu.memref_slice %arg6[%0, %c1_i32_9, %c0_i32_10] : memref<2x64x128xf32, #tpu.memory_space<vmem>> -> memref<1x1x128xf32, #tpu.memory_space<vmem>>
    %15 = tpu.memref_squeeze %14 : memref<1x1x128xf32, #tpu.memory_space<vmem>> -> memref<1x128xf32, #tpu.memory_space<vmem>>
    %16 = tpu.memref_slice %arg7[%0] : memref<2x!tpu.dma_semaphore, #tpu.memory_space<semaphore_mem>> -> memref<1x!tpu.dma_semaphore, #tpu.memory_space<semaphore_mem>>
    %17 = tpu.memref_squeeze %16 : memref<1x!tpu.dma_semaphore, #tpu.memory_space<semaphore_mem>> -> memref<!tpu.dma_semaphore, #tpu.memory_space<semaphore_mem>>
    tpu.wait_dma2 semaphore(%17 : memref<!tpu.dma_semaphore, #tpu.memory_space<semaphore_mem>>) src(%13 : memref<1x128xf32, #tpu.memory_space<any>>) dst(%15 : memref<1x128xf32, #tpu.memory_space<vmem>>)
    %c0_i32_11 = arith.constant 0 : i32
    %c0_i32_12 = arith.constant 0 : i32
    %18 = tpu.memref_slice %arg3[%c0_i32_11, %c0_i32_12] : memref<128x128xf32, #tpu.memory_space<any>> -> memref<1x128xf32, #tpu.memory_space<any>>
    %c2_i32_13 = arith.constant 2 : i32
    %c0_i32_14 = arith.constant 0 : i32
    %19 = tpu.memref_slice %arg6[%0, %c2_i32_13, %c0_i32_14] : memref<2x64x128xf32, #tpu.memory_space<vmem>> -> memref<1x1x128xf32, #tpu.memory_space<vmem>>
    %20 = tpu.memref_squeeze %19 : memref<1x1x128xf32, #tpu.memory_space<vmem>> -> memref<1x128xf32, #tpu.memory_space<vmem>>
    %21 = tpu.memref_slice %arg7[%0] : memref<2x!tpu.dma_semaphore, #tpu.memory_space<semaphore_mem>> -> memref<1x!tpu.dma_semaphore, #tpu.memory_space<semaphore_mem>>
    %22 = tpu.memref_squeeze %21 : memref<1x!tpu.dma_semaphore, #tpu.memory_space<semaphore_mem>> -> memref<!tpu.dma_semaphore, #tpu.memory_space<semaphore_mem>>
    tpu.wait_dma2 semaphore(%22 : memref<!tpu.dma_semaphore, #tpu.memory_space<semaphore_mem>>) src(%18 : memref<1x128xf32, #tpu.memory_space<any>>) dst(%20 : memref<1x128xf32, #tpu.memory_space<vmem>>)
    %c0_i32_15 = arith.constant 0 : i32
    %c0_i32_16 = arith.constant 0 : i32
    %23 = tpu.memref_slice %arg3[%c0_i32_15, %c0_i32_16] : memref<128x128xf32, #tpu.memory_space<any>> -> memref<1x128xf32, #tpu.memory_space<any>>
    %c3_i32 = arith.constant 3 : i32
    %c0_i32_17 = arith.constant 0 : i32
    %24 = tpu.memref_slice %arg6[%0, %c3_i32, %c0_i32_17] : memref<2x64x128xf32, #tpu.memory_space<vmem>> -> memref<1x1x128xf32, #tpu.memory_space<vmem>>
    %25 = tpu.memref_squeeze %24 : memref<1x1x128xf32, #tpu.memory_space<vmem>> -> memref<1x128xf32, #tpu.memory_space<vmem>>
    %26 = tpu.memref_slice %arg7[%0] : memref<2x!tpu.dma_semaphore, #tpu.memory_space<semaphore_mem>> -> memref<1x!tpu.dma_semaphore, #tpu.memory_space<semaphore_mem>>
    %27 = tpu.memref_squeeze %26 : memref<1x!tpu.dma_semaphore, #tpu.memory_space<semaphore_mem>> -> memref<!tpu.dma_semaphore, #tpu.memory_space<semaphore_mem>>
    tpu.wait_dma2 semaphore(%27 : memref<!tpu.dma_semaphore, #tpu.memory_space<semaphore_mem>>) src(%23 : memref<1x128xf32, #tpu.memory_space<any>>) dst(%25 : memref<1x128xf32, #tpu.memory_space<vmem>>)
    %c0_i32_18 = arith.constant 0 : i32
    %c0_i32_19 = arith.constant 0 : i32
    %28 = tpu.memref_slice %arg3[%c0_i32_18, %c0_i32_19] : memref<128x128xf32, #tpu.memory_space<any>> -> memref<1x128xf32, #tpu.memory_space<any>>
    %c4_i32 = arith.constant 4 : i32
    %c0_i32_20 = arith.constant 0 : i32
    %29 = tpu.memref_slice %arg6[%0, %c4_i32, %c0_i32_20] : memref<2x64x128xf32, #tpu.memory_space<vmem>> -> memref<1x1x128xf32, #tpu.memory_space<vmem>>
    %30 = tpu.memref_squeeze %29 : memref<1x1x128xf32, #tpu.memory_space<vmem>> -> memref<1x128xf32, #tpu.memory_space<vmem>>
    %31 = tpu.memref_slice %arg7[%0] : memref<2x!tpu.dma_semaphore, #tpu.memory_space<semaphore_mem>> -> memref<1x!tpu.dma_semaphore, #tpu.memory_space<semaphore_mem>>
    %32 = tpu.memref_squeeze %31 : memref<1x!tpu.dma_semaphore, #tpu.memory_space<semaphore_mem>> -> memref<!tpu.dma_semaphore, #tpu.memory_space<semaphore_mem>>
    tpu.wait_dma2 semaphore(%32 : memref<!tpu.dma_semaphore, #tpu.memory_space<semaphore_mem>>) src(%28 : memref<1x128xf32, #tpu.memory_space<any>>) dst(%30 : memref<1x128xf32, #tpu.memory_space<vmem>>)
    %c0_i32_21 = arith.constant 0 : i32
    %c0_i32_22 = arith.constant 0 : i32
    %33 = tpu.memref_slice %arg3[%c0_i32_21, %c0_i32_22] : memref<128x128xf32, #tpu.memory_space<any>> -> memref<1x128xf32, #tpu.memory_space<any>>
    %c5_i32 = arith.constant 5 : i32
    %c0_i32_23 = arith.constant 0 : i32
    %34 = tpu.memref_slice %arg6[%0, %c5_i32, %c0_i32_23] : memref<2x64x128xf32, #tpu.memory_space<vmem>> -> memref<1x1x128xf32, #tpu.memory_space<vmem>>
    %35 = tpu.memref_squeeze %34 : memref<1x1x128xf32, #tpu.memory_space<vmem>> -> memref<1x128xf32, #tpu.memory_space<vmem>>
    %36 = tpu.memref_slice %arg7[%0] : memref<2x!tpu.dma_semaphore, #tpu.memory_space<semaphore_mem>> -> memref<1x!tpu.dma_semaphore, #tpu.memory_space<semaphore_mem>>
    %37 = tpu.memref_squeeze %36 : memref<1x!tpu.dma_semaphore, #tpu.memory_space<semaphore_mem>> -> memref<!tpu.dma_semaphore, #tpu.memory_space<semaphore_mem>>
    tpu.wait_dma2 semaphore(%37 : memref<!tpu.dma_semaphore, #tpu.memory_space<semaphore_mem>>) src(%33 : memref<1x128xf32, #tpu.memory_space<any>>) dst(%35 : memref<1x128xf32, #tpu.memory_space<vmem>>)
    %c0_i32_24 = arith.constant 0 : i32
    %c0_i32_25 = arith.constant 0 : i32
    %38 = tpu.memref_slice %arg3[%c0_i32_24, %c0_i32_25] : memref<128x128xf32, #tpu.memory_space<any>> -> memref<1x128xf32, #tpu.memory_space<any>>
    %c6_i32 = arith.constant 6 : i32
    %c0_i32_26 = arith.constant 0 : i32
    %39 = tpu.memref_slice %arg6[%0, %c6_i32, %c0_i32_26] : memref<2x64x128xf32, #tpu.memory_space<vmem>> -> memref<1x1x128xf32, #tpu.memory_space<vmem>>
    %40 = tpu.memref_squeeze %39 : memref<1x1x128xf32, #tpu.memory_space<vmem>> -> memref<1x128xf32, #tpu.memory_space<vmem>>
    %41 = tpu.memref_slice %arg7[%0] : memref<2x!tpu.dma_semaphore, #tpu.memory_space<semaphore_mem>> -> memref<1x!tpu.dma_semaphore, #tpu.memory_space<semaphore_mem>>
    %42 = tpu.memref_squeeze %41 : memref<1x!tpu.dma_semaphore, #tpu.memory_space<semaphore_mem>> -> memref<!tpu.dma_semaphore, #tpu.memory_space<semaphore_mem>>
    tpu.wait_dma2 semaphore(%42 : memref<!tpu.dma_semaphore, #tpu.memory_space<semaphore_mem>>) src(%38 : memref<1x128xf32, #tpu.memory_space<any>>) dst(%40 : memref<1x128xf32, #tpu.memory_space<vmem>>)
    %c0_i32_27 = arith.constant 0 : i32
    %c0_i32_28 = arith.constant 0 : i32
    %43 = tpu.memref_slice %arg3[%c0_i32_27, %c0_i32_28] : memref<128x128xf32, #tpu.memory_space<any>> -> memref<1x128xf32, #tpu.memory_space<any>>
    %c7_i32 = arith.constant 7 : i32
    %c0_i32_29 = arith.constant 0 : i32
    %44 = tpu.memref_slice %arg6[%0, %c7_i32, %c0_i32_29] : memref<2x64x128xf32, #tpu.memory_space<vmem>> -> memref<1x1x128xf32, #tpu.memory_space<vmem>>
    %45 = tpu.memref_squeeze %44 : memref<1x1x128xf32, #tpu.memory_space<vmem>> -> memref<1x128xf32, #tpu.memory_space<vmem>>
    %46 = tpu.memref_slice %arg7[%0] : memref<2x!tpu.dma_semaphore, #tpu.memory_space<semaphore_mem>> -> memref<1x!tpu.dma_semaphore, #tpu.memory_space<semaphore_mem>>
    %47 = tpu.memref_squeeze %46 : memref<1x!tpu.dma_semaphore, #tpu.memory_space<semaphore_mem>> -> memref<!tpu.dma_semaphore, #tpu.memory_space<semaphore_mem>>
    tpu.wait_dma2 semaphore(%47 : memref<!tpu.dma_semaphore, #tpu.memory_space<semaphore_mem>>) src(%43 : memref<1x128xf32, #tpu.memory_space<any>>) dst(%45 : memref<1x128xf32, #tpu.memory_space<vmem>>)
    %c0_i32_30 = arith.constant 0 : i32
    %c0_i32_31 = arith.constant 0 : i32
    %48 = tpu.memref_slice %arg3[%c0_i32_30, %c0_i32_31] : memref<128x128xf32, #tpu.memory_space<any>> -> memref<1x128xf32, #tpu.memory_space<any>>
    %c8_i32 = arith.constant 8 : i32
    %c0_i32_32 = arith.constant 0 : i32
    %49 = tpu.memref_slice %arg6[%0, %c8_i32, %c0_i32_32] : memref<2x64x128xf32, #tpu.memory_space<vmem>> -> memref<1x1x128xf32, #tpu.memory_space<vmem>>
    %50 = tpu.memref_squeeze %49 : memref<1x1x128xf32, #tpu.memory_space<vmem>> -> memref<1x128xf32, #tpu.memory_space<vmem>>
    %51 = tpu.memref_slice %arg7[%0] : memref<2x!tpu.dma_semaphore, #tpu.memory_space<semaphore_mem>> -> memref<1x!tpu.dma_semaphore, #tpu.memory_space<semaphore_mem>>
    %52 = tpu.memref_squeeze %51 : memref<1x!tpu.dma_semaphore, #tpu.memory_space<semaphore_mem>> -> memref<!tpu.dma_semaphore, #tpu.memory_space<semaphore_mem>>
    tpu.wait_dma2 semaphore(%52 : memref<!tpu.dma_semaphore, #tpu.memory_space<semaphore_mem>>) src(%48 : memref<1x128xf32, #tpu.memory_space<any>>) dst(%50 : memref<1x128xf32, #tpu.memory_space<vmem>>)
    %c0_i32_33 = arith.constant 0 : i32
    %c0_i32_34 = arith.constant 0 : i32
    %53 = tpu.memref_slice %arg3[%c0_i32_33, %c0_i32_34] : memref<128x128xf32, #tpu.memory_space<any>> -> memref<1x128xf32, #tpu.memory_space<any>>
    %c9_i32 = arith.constant 9 : i32
    %c0_i32_35 = arith.constant 0 : i32
    %54 = tpu.memref_slice %arg6[%0, %c9_i32, %c0_i32_35] : memref<2x64x128xf32, #tpu.memory_space<vmem>> -> memref<1x1x128xf32, #tpu.memory_space<vmem>>
    %55 = tpu.memref_squeeze %54 : memref<1x1x128xf32, #tpu.memory_space<vmem>> -> memref<1x128xf32, #tpu.memory_space<vmem>>
    %56 = tpu.memref_slice %arg7[%0] : memref<2x!tpu.dma_semaphore, #tpu.memory_space<semaphore_mem>> -> memref<1x!tpu.dma_semaphore, #tpu.memory_space<semaphore_mem>>
    %57 = tpu.memref_squeeze %56 : memref<1x!tpu.dma_semaphore, #tpu.memory_space<semaphore_mem>> -> memref<!tpu.dma_semaphore, #tpu.memory_space<semaphore_mem>>
    tpu.wait_dma2 semaphore(%57 : memref<!tpu.dma_semaphore, #tpu.memory_space<semaphore_mem>>) src(%53 : memref<1x128xf32, #tpu.memory_space<any>>) dst(%55 : memref<1x128xf32, #tpu.memory_space<vmem>>)
    %c0_i32_36 = arith.constant 0 : i32
    %c0_i32_37 = arith.constant 0 : i32
    %58 = tpu.memref_slice %arg3[%c0_i32_36, %c0_i32_37] : memref<128x128xf32, #tpu.memory_space<any>> -> memref<1x128xf32, #tpu.memory_space<any>>
    %c10_i32 = arith.constant 10 : i32
    %c0_i32_38 = arith.constant 0 : i32
    %59 = tpu.memref_slice %arg6[%0, %c10_i32, %c0_i32_38] : memref<2x64x128xf32, #tpu.memory_space<vmem>> -> memref<1x1x128xf32, #tpu.memory_space<vmem>>
    %60 = tpu.memref_squeeze %59 : memref<1x1x128xf32, #tpu.memory_space<vmem>> -> memref<1x128xf32, #tpu.memory_space<vmem>>
    %61 = tpu.memref_slice %arg7[%0] : memref<2x!tpu.dma_semaphore, #tpu.memory_space<semaphore_mem>> -> memref<1x!tpu.dma_semaphore, #tpu.memory_space<semaphore_mem>>
    %62 = tpu.memref_squeeze %61 : memref<1x!tpu.dma_semaphore, #tpu.memory_space<semaphore_mem>> -> memref<!tpu.dma_semaphore, #tpu.memory_space<semaphore_mem>>
    tpu.wait_dma2 semaphore(%62 : memref<!tpu.dma_semaphore, #tpu.memory_space<semaphore_mem>>) src(%58 : memref<1x128xf32, #tpu.memory_space<any>>) dst(%60 : memref<1x128xf32, #tpu.memory_space<vmem>>)
    %c0_i32_39 = arith.constant 0 : i32
    %c0_i32_40 = arith.constant 0 : i32
    %63 = tpu.memref_slice %arg3[%c0_i32_39, %c0_i32_40] : memref<128x128xf32, #tpu.memory_space<any>> -> memref<1x128xf32, #tpu.memory_space<any>>
    %c11_i32 = arith.constant 11 : i32
    %c0_i32_41 = arith.constant 0 : i32
    %64 = tpu.memref_slice %arg6[%0, %c11_i32, %c0_i32_41] : memref<2x64x128xf32, #tpu.memory_space<vmem>> -> memref<1x1x128xf32, #tpu.memory_space<vmem>>
    %65 = tpu.memref_squeeze %64 : memref<1x1x128xf32, #tpu.memory_space<vmem>> -> memref<1x128xf32, #tpu.memory_space<vmem>>
    %66 = tpu.memref_slice %arg7[%0] : memref<2x!tpu.dma_semaphore, #tpu.memory_space<semaphore_mem>> -> memref<1x!tpu.dma_semaphore, #tpu.memory_space<semaphore_mem>>
    %67 = tpu.memref_squeeze %66 : memref<1x!tpu.dma_semaphore, #tpu.memory_space<semaphore_mem>> -> memref<!tpu.dma_semaphore, #tpu.memory_space<semaphore_mem>>
    tpu.wait_dma2 semaphore(%67 : memref<!tpu.dma_semaphore, #tpu.memory_space<semaphore_mem>>) src(%63 : memref<1x128xf32, #tpu.memory_space<any>>) dst(%65 : memref<1x128xf32, #tpu.memory_space<vmem>>)
    %c0_i32_42 = arith.constant 0 : i32
    %c0_i32_43 = arith.constant 0 : i32
    %68 = tpu.memref_slice %arg3[%c0_i32_42, %c0_i32_43] : memref<128x128xf32, #tpu.memory_space<any>> -> memref<1x128xf32, #tpu.memory_space<any>>
    %c12_i32 = arith.constant 12 : i32
    %c0_i32_44 = arith.constant 0 : i32
    %69 = tpu.memref_slice %arg6[%0, %c12_i32, %c0_i32_44] : memref<2x64x128xf32, #tpu.memory_space<vmem>> -> memref<1x1x128xf32, #tpu.memory_space<vmem>>
    %70 = tpu.memref_squeeze %69 : memref<1x1x128xf32, #tpu.memory_space<vmem>> -> memref<1x128xf32, #tpu.memory_space<vmem>>
    %71 = tpu.memref_slice %arg7[%0] : memref<2x!tpu.dma_semaphore, #tpu.memory_space<semaphore_mem>> -> memref<1x!tpu.dma_semaphore, #tpu.memory_space<semaphore_mem>>
    %72 = tpu.memref_squeeze %71 : memref<1x!tpu.dma_semaphore, #tpu.memory_space<semaphore_mem>> -> memref<!tpu.dma_semaphore, #tpu.memory_space<semaphore_mem>>
    tpu.wait_dma2 semaphore(%72 : memref<!tpu.dma_semaphore, #tpu.memory_space<semaphore_mem>>) src(%68 : memref<1x128xf32, #tpu.memory_space<any>>) dst(%70 : memref<1x128xf32, #tpu.memory_space<vmem>>)
    %c0_i32_45 = arith.constant 0 : i32
    %c0_i32_46 = arith.constant 0 : i32
    %73 = tpu.memref_slice %arg3[%c0_i32_45, %c0_i32_46] : memref<128x128xf32, #tpu.memory_space<any>> -> memref<1x128xf32, #tpu.memory_space<any>>
    %c13_i32 = arith.constant 13 : i32
    %c0_i32_47 = arith.constant 0 : i32
    %74 = tpu.memref_slice %arg6[%0, %c13_i32, %c0_i32_47] : memref<2x64x128xf32, #tpu.memory_space<vmem>> -> memref<1x1x128xf32, #tpu.memory_space<vmem>>
    %75 = tpu.memref_squeeze %74 : memref<1x1x128xf32, #tpu.memory_space<vmem>> -> memref<1x128xf32, #tpu.memory_space<vmem>>
    %76 = tpu.memref_slice %arg7[%0] : memref<2x!tpu.dma_semaphore, #tpu.memory_space<semaphore_mem>> -> memref<1x!tpu.dma_semaphore, #tpu.memory_space<semaphore_mem>>
    %77 = tpu.memref_squeeze %76 : memref<1x!tpu.dma_semaphore, #tpu.memory_space<semaphore_mem>> -> memref<!tpu.dma_semaphore, #tpu.memory_space<semaphore_mem>>
    tpu.wait_dma2 semaphore(%77 : memref<!tpu.dma_semaphore, #tpu.memory_space<semaphore_mem>>) src(%73 : memref<1x128xf32, #tpu.memory_space<any>>) dst(%75 : memref<1x128xf32, #tpu.memory_space<vmem>>)
    %c0_i32_48 = arith.constant 0 : i32
    %c0_i32_49 = arith.constant 0 : i32
    %78 = tpu.memref_slice %arg3[%c0_i32_48, %c0_i32_49] : memref<128x128xf32, #tpu.memory_space<any>> -> memref<1x128xf32, #tpu.memory_space<any>>
    %c14_i32 = arith.constant 14 : i32
    %c0_i32_50 = arith.constant 0 : i32
    %79 = tpu.memref_slice %arg6[%0, %c14_i32, %c0_i32_50] : memref<2x64x128xf32, #tpu.memory_space<vmem>> -> memref<1x1x128xf32, #tpu.memory_space<vmem>>
    %80 = tpu.memref_squeeze %79 : memref<1x1x128xf32, #tpu.memory_space<vmem>> -> memref<1x128xf32, #tpu.memory_space<vmem>>
    %81 = tpu.memref_slice %arg7[%0] : memref<2x!tpu.dma_semaphore, #tpu.memory_space<semaphore_mem>> -> memref<1x!tpu.dma_semaphore, #tpu.memory_space<semaphore_mem>>
    %82 = tpu.memref_squeeze %81 : memref<1x!tpu.dma_semaphore, #tpu.memory_space<semaphore_mem>> -> memref<!tpu.dma_semaphore, #tpu.memory_space<semaphore_mem>>
    tpu.wait_dma2 semaphore(%82 : memref<!tpu.dma_semaphore, #tpu.memory_space<semaphore_mem>>) src(%78 : memref<1x128xf32, #tpu.memory_space<any>>) dst(%80 : memref<1x128xf32, #tpu.memory_space<vmem>>)
    %c0_i32_51 = arith.constant 0 : i32
    %c0_i32_52 = arith.constant 0 : i32
    %83 = tpu.memref_slice %arg3[%c0_i32_51, %c0_i32_52] : memref<128x128xf32, #tpu.memory_space<any>> -> memref<1x128xf32, #tpu.memory_space<any>>
    %c15_i32 = arith.constant 15 : i32
    %c0_i32_53 = arith.constant 0 : i32
    %84 = tpu.memref_slice %arg6[%0, %c15_i32, %c0_i32_53] : memref<2x64x128xf32, #tpu.memory_space<vmem>> -> memref<1x1x128xf32, #tpu.memory_space<vmem>>
    %85 = tpu.memref_squeeze %84 : memref<1x1x128xf32, #tpu.memory_space<vmem>> -> memref<1x128xf32, #tpu.memory_space<vmem>>
    %86 = tpu.memref_slice %arg7[%0] : memref<2x!tpu.dma_semaphore, #tpu.memory_space<semaphore_mem>> -> memref<1x!tpu.dma_semaphore, #tpu.memory_space<semaphore_mem>>
    %87 = tpu.memref_squeeze %86 : memref<1x!tpu.dma_semaphore, #tpu.memory_space<semaphore_mem>> -> memref<!tpu.dma_semaphore, #tpu.memory_space<semaphore_mem>>
    tpu.wait_dma2 semaphore(%87 : memref<!tpu.dma_semaphore, #tpu.memory_space<semaphore_mem>>) src(%83 : memref<1x128xf32, #tpu.memory_space<any>>) dst(%85 : memref<1x128xf32, #tpu.memory_space<vmem>>)
    %c0_i32_54 = arith.constant 0 : i32
    %c0_i32_55 = arith.constant 0 : i32
    %88 = tpu.memref_slice %arg3[%c0_i32_54, %c0_i32_55] : memref<128x128xf32, #tpu.memory_space<any>> -> memref<1x128xf32, #tpu.memory_space<any>>
    %c16_i32 = arith.constant 16 : i32
    %c0_i32_56 = arith.constant 0 : i32
    %89 = tpu.memref_slice %arg6[%0, %c16_i32, %c0_i32_56] : memref<2x64x128xf32, #tpu.memory_space<vmem>> -> memref<1x1x128xf32, #tpu.memory_space<vmem>>
    %90 = tpu.memref_squeeze %89 : memref<1x1x128xf32, #tpu.memory_space<vmem>> -> memref<1x128xf32, #tpu.memory_space<vmem>>
    %91 = tpu.memref_slice %arg7[%0] : memref<2x!tpu.dma_semaphore, #tpu.memory_space<semaphore_mem>> -> memref<1x!tpu.dma_semaphore, #tpu.memory_space<semaphore_mem>>
    %92 = tpu.memref_squeeze %91 : memref<1x!tpu.dma_semaphore, #tpu.memory_space<semaphore_mem>> -> memref<!tpu.dma_semaphore, #tpu.memory_space<semaphore_mem>>
    tpu.wait_dma2 semaphore(%92 : memref<!tpu.dma_semaphore, #tpu.memory_space<semaphore_mem>>) src(%88 : memref<1x128xf32, #tpu.memory_space<any>>) dst(%90 : memref<1x128xf32, #tpu.memory_space<vmem>>)
    %c0_i32_57 = arith.constant 0 : i32
    %c0_i32_58 = arith.constant 0 : i32
    %93 = tpu.memref_slice %arg3[%c0_i32_57, %c0_i32_58] : memref<128x128xf32, #tpu.memory_space<any>> -> memref<1x128xf32, #tpu.memory_space<any>>
    %c17_i32 = arith.constant 17 : i32
    %c0_i32_59 = arith.constant 0 : i32
    %94 = tpu.memref_slice %arg6[%0, %c17_i32, %c0_i32_59] : memref<2x64x128xf32, #tpu.memory_space<vmem>> -> memref<1x1x128xf32, #tpu.memory_space<vmem>>
    %95 = tpu.memref_squeeze %94 : memref<1x1x128xf32, #tpu.memory_space<vmem>> -> memref<1x128xf32, #tpu.memory_space<vmem>>
    %96 = tpu.memref_slice %arg7[%0] : memref<2x!tpu.dma_semaphore, #tpu.memory_space<semaphore_mem>> -> memref<1x!tpu.dma_semaphore, #tpu.memory_space<semaphore_mem>>
    %97 = tpu.memref_squeeze %96 : memref<1x!tpu.dma_semaphore, #tpu.memory_space<semaphore_mem>> -> memref<!tpu.dma_semaphore, #tpu.memory_space<semaphore_mem>>
    tpu.wait_dma2 semaphore(%97 : memref<!tpu.dma_semaphore, #tpu.memory_space<semaphore_mem>>) src(%93 : memref<1x128xf32, #tpu.memory_space<any>>) dst(%95 : memref<1x128xf32, #tpu.memory_space<vmem>>)
    %c0_i32_60 = arith.constant 0 : i32
    %c0_i32_61 = arith.constant 0 : i32
    %98 = tpu.memref_slice %arg3[%c0_i32_60, %c0_i32_61] : memref<128x128xf32, #tpu.memory_space<any>> -> memref<1x128xf32, #tpu.memory_space<any>>
    %c18_i32 = arith.constant 18 : i32
    %c0_i32_62 = arith.constant 0 : i32
    %99 = tpu.memref_slice %arg6[%0, %c18_i32, %c0_i32_62] : memref<2x64x128xf32, #tpu.memory_space<vmem>> -> memref<1x1x128xf32, #tpu.memory_space<vmem>>
    %100 = tpu.memref_squeeze %99 : memref<1x1x128xf32, #tpu.memory_space<vmem>> -> memref<1x128xf32, #tpu.memory_space<vmem>>
    %101 = tpu.memref_slice %arg7[%0] : memref<2x!tpu.dma_semaphore, #tpu.memory_space<semaphore_mem>> -> memref<1x!tpu.dma_semaphore, #tpu.memory_space<semaphore_mem>>
    %102 = tpu.memref_squeeze %101 : memref<1x!tpu.dma_semaphore, #tpu.memory_space<semaphore_mem>> -> memref<!tpu.dma_semaphore, #tpu.memory_space<semaphore_mem>>
    tpu.wait_dma2 semaphore(%102 : memref<!tpu.dma_semaphore, #tpu.memory_space<semaphore_mem>>) src(%98 : memref<1x128xf32, #tpu.memory_space<any>>) dst(%100 : memref<1x128xf32, #tpu.memory_space<vmem>>)
    %c0_i32_63 = arith.constant 0 : i32
    %c0_i32_64 = arith.constant 0 : i32
    %103 = tpu.memref_slice %arg3[%c0_i32_63, %c0_i32_64] : memref<128x128xf32, #tpu.memory_space<any>> -> memref<1x128xf32, #tpu.memory_space<any>>
    %c19_i32 = arith.constant 19 : i32
    %c0_i32_65 = arith.constant 0 : i32
    %104 = tpu.memref_slice %arg6[%0, %c19_i32, %c0_i32_65] : memref<2x64x128xf32, #tpu.memory_space<vmem>> -> memref<1x1x128xf32, #tpu.memory_space<vmem>>
    %105 = tpu.memref_squeeze %104 : memref<1x1x128xf32, #tpu.memory_space<vmem>> -> memref<1x128xf32, #tpu.memory_space<vmem>>
    %106 = tpu.memref_slice %arg7[%0] : memref<2x!tpu.dma_semaphore, #tpu.memory_space<semaphore_mem>> -> memref<1x!tpu.dma_semaphore, #tpu.memory_space<semaphore_mem>>
    %107 = tpu.memref_squeeze %106 : memref<1x!tpu.dma_semaphore, #tpu.memory_space<semaphore_mem>> -> memref<!tpu.dma_semaphore, #tpu.memory_space<semaphore_mem>>
    tpu.wait_dma2 semaphore(%107 : memref<!tpu.dma_semaphore, #tpu.memory_space<semaphore_mem>>) src(%103 : memref<1x128xf32, #tpu.memory_space<any>>) dst(%105 : memref<1x128xf32, #tpu.memory_space<vmem>>)
    %c0_i32_66 = arith.constant 0 : i32
    %c0_i32_67 = arith.constant 0 : i32
    %108 = tpu.memref_slice %arg3[%c0_i32_66, %c0_i32_67] : memref<128x128xf32, #tpu.memory_space<any>> -> memref<1x128xf32, #tpu.memory_space<any>>
    %c20_i32 = arith.constant 20 : i32
    %c0_i32_68 = arith.constant 0 : i32
    %109 = tpu.memref_slice %arg6[%0, %c20_i32, %c0_i32_68] : memref<2x64x128xf32, #tpu.memory_space<vmem>> -> memref<1x1x128xf32, #tpu.memory_space<vmem>>
    %110 = tpu.memref_squeeze %109 : memref<1x1x128xf32, #tpu.memory_space<vmem>> -> memref<1x128xf32, #tpu.memory_space<vmem>>
    %111 = tpu.memref_slice %arg7[%0] : memref<2x!tpu.dma_semaphore, #tpu.memory_space<semaphore_mem>> -> memref<1x!tpu.dma_semaphore, #tpu.memory_space<semaphore_mem>>
    %112 = tpu.memref_squeeze %111 : memref<1x!tpu.dma_semaphore, #tpu.memory_space<semaphore_mem>> -> memref<!tpu.dma_semaphore, #tpu.memory_space<semaphore_mem>>
    tpu.wait_dma2 semaphore(%112 : memref<!tpu.dma_semaphore, #tpu.memory_space<semaphore_mem>>) src(%108 : memref<1x128xf32, #tpu.memory_space<any>>) dst(%110 : memref<1x128xf32, #tpu.memory_space<vmem>>)
    %c0_i32_69 = arith.constant 0 : i32
    %c0_i32_70 = arith.constant 0 : i32
    %113 = tpu.memref_slice %arg3[%c0_i32_69, %c0_i32_70] : memref<128x128xf32, #tpu.memory_space<any>> -> memref<1x128xf32, #tpu.memory_space<any>>
    %c21_i32 = arith.constant 21 : i32
    %c0_i32_71 = arith.constant 0 : i32
    %114 = tpu.memref_slice %arg6[%0, %c21_i32, %c0_i32_71] : memref<2x64x128xf32, #tpu.memory_space<vmem>> -> memref<1x1x128xf32, #tpu.memory_space<vmem>>
    %115 = tpu.memref_squeeze %114 : memref<1x1x128xf32, #tpu.memory_space<vmem>> -> memref<1x128xf32, #tpu.memory_space<vmem>>
    %116 = tpu.memref_slice %arg7[%0] : memref<2x!tpu.dma_semaphore, #tpu.memory_space<semaphore_mem>> -> memref<1x!tpu.dma_semaphore, #tpu.memory_space<semaphore_mem>>
    %117 = tpu.memref_squeeze %116 : memref<1x!tpu.dma_semaphore, #tpu.memory_space<semaphore_mem>> -> memref<!tpu.dma_semaphore, #tpu.memory_space<semaphore_mem>>
    tpu.wait_dma2 semaphore(%117 : memref<!tpu.dma_semaphore, #tpu.memory_space<semaphore_mem>>) src(%113 : memref<1x128xf32, #tpu.memory_space<any>>) dst(%115 : memref<1x128xf32, #tpu.memory_space<vmem>>)
    %c0_i32_72 = arith.constant 0 : i32
    %c0_i32_73 = arith.constant 0 : i32
    %118 = tpu.memref_slice %arg3[%c0_i32_72, %c0_i32_73] : memref<128x128xf32, #tpu.memory_space<any>> -> memref<1x128xf32, #tpu.memory_space<any>>
    %c22_i32 = arith.constant 22 : i32
    %c0_i32_74 = arith.constant 0 : i32
    %119 = tpu.memref_slice %arg6[%0, %c22_i32, %c0_i32_74] : memref<2x64x128xf32, #tpu.memory_space<vmem>> -> memref<1x1x128xf32, #tpu.memory_space<vmem>>
    %120 = tpu.memref_squeeze %119 : memref<1x1x128xf32, #tpu.memory_space<vmem>> -> memref<1x128xf32, #tpu.memory_space<vmem>>
    %121 = tpu.memref_slice %arg7[%0] : memref<2x!tpu.dma_semaphore, #tpu.memory_space<semaphore_mem>> -> memref<1x!tpu.dma_semaphore, #tpu.memory_space<semaphore_mem>>
    %122 = tpu.memref_squeeze %121 : memref<1x!tpu.dma_semaphore, #tpu.memory_space<semaphore_mem>> -> memref<!tpu.dma_semaphore, #tpu.memory_space<semaphore_mem>>
    tpu.wait_dma2 semaphore(%122 : memref<!tpu.dma_semaphore, #tpu.memory_space<semaphore_mem>>) src(%118 : memref<1x128xf32, #tpu.memory_space<any>>) dst(%120 : memref<1x128xf32, #tpu.memory_space<vmem>>)
    %c0_i32_75 = arith.constant 0 : i32
    %c0_i32_76 = arith.constant 0 : i32
    %123 = tpu.memref_slice %arg3[%c0_i32_75, %c0_i32_76] : memref<128x128xf32, #tpu.memory_space<any>> -> memref<1x128xf32, #tpu.memory_space<any>>
    %c23_i32 = arith.constant 23 : i32
    %c0_i32_77 = arith.constant 0 : i32
    %124 = tpu.memref_slice %arg6[%0, %c23_i32, %c0_i32_77] : memref<2x64x128xf32, #tpu.memory_space<vmem>> -> memref<1x1x128xf32, #tpu.memory_space<vmem>>
    %125 = tpu.memref_squeeze %124 : memref<1x1x128xf32, #tpu.memory_space<vmem>> -> memref<1x128xf32, #tpu.memory_space<vmem>>
    %126 = tpu.memref_slice %arg7[%0] : memref<2x!tpu.dma_semaphore, #tpu.memory_space<semaphore_mem>> -> memref<1x!tpu.dma_semaphore, #tpu.memory_space<semaphore_mem>>
    %127 = tpu.memref_squeeze %126 : memref<1x!tpu.dma_semaphore, #tpu.memory_space<semaphore_mem>> -> memref<!tpu.dma_semaphore, #tpu.memory_space<semaphore_mem>>
    tpu.wait_dma2 semaphore(%127 : memref<!tpu.dma_semaphore, #tpu.memory_space<semaphore_mem>>) src(%123 : memref<1x128xf32, #tpu.memory_space<any>>) dst(%125 : memref<1x128xf32, #tpu.memory_space<vmem>>)
    %c0_i32_78 = arith.constant 0 : i32
    %c0_i32_79 = arith.constant 0 : i32
    %128 = tpu.memref_slice %arg3[%c0_i32_78, %c0_i32_79] : memref<128x128xf32, #tpu.memory_space<any>> -> memref<1x128xf32, #tpu.memory_space<any>>
    %c24_i32 = arith.constant 24 : i32
    %c0_i32_80 = arith.constant 0 : i32
    %129 = tpu.memref_slice %arg6[%0, %c24_i32, %c0_i32_80] : memref<2x64x128xf32, #tpu.memory_space<vmem>> -> memref<1x1x128xf32, #tpu.memory_space<vmem>>
    %130 = tpu.memref_squeeze %129 : memref<1x1x128xf32, #tpu.memory_space<vmem>> -> memref<1x128xf32, #tpu.memory_space<vmem>>
    %131 = tpu.memref_slice %arg7[%0] : memref<2x!tpu.dma_semaphore, #tpu.memory_space<semaphore_mem>> -> memref<1x!tpu.dma_semaphore, #tpu.memory_space<semaphore_mem>>
    %132 = tpu.memref_squeeze %131 : memref<1x!tpu.dma_semaphore, #tpu.memory_space<semaphore_mem>> -> memref<!tpu.dma_semaphore, #tpu.memory_space<semaphore_mem>>
    tpu.wait_dma2 semaphore(%132 : memref<!tpu.dma_semaphore, #tpu.memory_space<semaphore_mem>>) src(%128 : memref<1x128xf32, #tpu.memory_space<any>>) dst(%130 : memref<1x128xf32, #tpu.memory_space<vmem>>)
    %c0_i32_81 = arith.constant 0 : i32
    %c0_i32_82 = arith.constant 0 : i32
    %133 = tpu.memref_slice %arg3[%c0_i32_81, %c0_i32_82] : memref<128x128xf32, #tpu.memory_space<any>> -> memref<1x128xf32, #tpu.memory_space<any>>
    %c25_i32 = arith.constant 25 : i32
    %c0_i32_83 = arith.constant 0 : i32
    %134 = tpu.memref_slice %arg6[%0, %c25_i32, %c0_i32_83] : memref<2x64x128xf32, #tpu.memory_space<vmem>> -> memref<1x1x128xf32, #tpu.memory_space<vmem>>
    %135 = tpu.memref_squeeze %134 : memref<1x1x128xf32, #tpu.memory_space<vmem>> -> memref<1x128xf32, #tpu.memory_space<vmem>>
    %136 = tpu.memref_slice %arg7[%0] : memref<2x!tpu.dma_semaphore, #tpu.memory_space<semaphore_mem>> -> memref<1x!tpu.dma_semaphore, #tpu.memory_space<semaphore_mem>>
    %137 = tpu.memref_squeeze %136 : memref<1x!tpu.dma_semaphore, #tpu.memory_space<semaphore_mem>> -> memref<!tpu.dma_semaphore, #tpu.memory_space<semaphore_mem>>
    tpu.wait_dma2 semaphore(%137 : memref<!tpu.dma_semaphore, #tpu.memory_space<semaphore_mem>>) src(%133 : memref<1x128xf32, #tpu.memory_space<any>>) dst(%135 : memref<1x128xf32, #tpu.memory_space<vmem>>)
    %c0_i32_84 = arith.constant 0 : i32
    %c0_i32_85 = arith.constant 0 : i32
    %138 = tpu.memref_slice %arg3[%c0_i32_84, %c0_i32_85] : memref<128x128xf32, #tpu.memory_space<any>> -> memref<1x128xf32, #tpu.memory_space<any>>
    %c26_i32 = arith.constant 26 : i32
    %c0_i32_86 = arith.constant 0 : i32
    %139 = tpu.memref_slice %arg6[%0, %c26_i32, %c0_i32_86] : memref<2x64x128xf32, #tpu.memory_space<vmem>> -> memref<1x1x128xf32, #tpu.memory_space<vmem>>
    %140 = tpu.memref_squeeze %139 : memref<1x1x128xf32, #tpu.memory_space<vmem>> -> memref<1x128xf32, #tpu.memory_space<vmem>>
    %141 = tpu.memref_slice %arg7[%0] : memref<2x!tpu.dma_semaphore, #tpu.memory_space<semaphore_mem>> -> memref<1x!tpu.dma_semaphore, #tpu.memory_space<semaphore_mem>>
    %142 = tpu.memref_squeeze %141 : memref<1x!tpu.dma_semaphore, #tpu.memory_space<semaphore_mem>> -> memref<!tpu.dma_semaphore, #tpu.memory_space<semaphore_mem>>
    tpu.wait_dma2 semaphore(%142 : memref<!tpu.dma_semaphore, #tpu.memory_space<semaphore_mem>>) src(%138 : memref<1x128xf32, #tpu.memory_space<any>>) dst(%140 : memref<1x128xf32, #tpu.memory_space<vmem>>)
    %c0_i32_87 = arith.constant 0 : i32
    %c0_i32_88 = arith.constant 0 : i32
    %143 = tpu.memref_slice %arg3[%c0_i32_87, %c0_i32_88] : memref<128x128xf32, #tpu.memory_space<any>> -> memref<1x128xf32, #tpu.memory_space<any>>
    %c27_i32 = arith.constant 27 : i32
    %c0_i32_89 = arith.constant 0 : i32
    %144 = tpu.memref_slice %arg6[%0, %c27_i32, %c0_i32_89] : memref<2x64x128xf32, #tpu.memory_space<vmem>> -> memref<1x1x128xf32, #tpu.memory_space<vmem>>
    %145 = tpu.memref_squeeze %144 : memref<1x1x128xf32, #tpu.memory_space<vmem>> -> memref<1x128xf32, #tpu.memory_space<vmem>>
    %146 = tpu.memref_slice %arg7[%0] : memref<2x!tpu.dma_semaphore, #tpu.memory_space<semaphore_mem>> -> memref<1x!tpu.dma_semaphore, #tpu.memory_space<semaphore_mem>>
    %147 = tpu.memref_squeeze %146 : memref<1x!tpu.dma_semaphore, #tpu.memory_space<semaphore_mem>> -> memref<!tpu.dma_semaphore, #tpu.memory_space<semaphore_mem>>
    tpu.wait_dma2 semaphore(%147 : memref<!tpu.dma_semaphore, #tpu.memory_space<semaphore_mem>>) src(%143 : memref<1x128xf32, #tpu.memory_space<any>>) dst(%145 : memref<1x128xf32, #tpu.memory_space<vmem>>)
    %c0_i32_90 = arith.constant 0 : i32
    %c0_i32_91 = arith.constant 0 : i32
    %148 = tpu.memref_slice %arg3[%c0_i32_90, %c0_i32_91] : memref<128x128xf32, #tpu.memory_space<any>> -> memref<1x128xf32, #tpu.memory_space<any>>
    %c28_i32 = arith.constant 28 : i32
    %c0_i32_92 = arith.constant 0 : i32
    %149 = tpu.memref_slice %arg6[%0, %c28_i32, %c0_i32_92] : memref<2x64x128xf32, #tpu.memory_space<vmem>> -> memref<1x1x128xf32, #tpu.memory_space<vmem>>
    %150 = tpu.memref_squeeze %149 : memref<1x1x128xf32, #tpu.memory_space<vmem>> -> memref<1x128xf32, #tpu.memory_space<vmem>>
    %151 = tpu.memref_slice %arg7[%0] : memref<2x!tpu.dma_semaphore, #tpu.memory_space<semaphore_mem>> -> memref<1x!tpu.dma_semaphore, #tpu.memory_space<semaphore_mem>>
    %152 = tpu.memref_squeeze %151 : memref<1x!tpu.dma_semaphore, #tpu.memory_space<semaphore_mem>> -> memref<!tpu.dma_semaphore, #tpu.memory_space<semaphore_mem>>
    tpu.wait_dma2 semaphore(%152 : memref<!tpu.dma_semaphore, #tpu.memory_space<semaphore_mem>>) src(%148 : memref<1x128xf32, #tpu.memory_space<any>>) dst(%150 : memref<1x128xf32, #tpu.memory_space<vmem>>)
    %c0_i32_93 = arith.constant 0 : i32
    %c0_i32_94 = arith.constant 0 : i32
    %153 = tpu.memref_slice %arg3[%c0_i32_93, %c0_i32_94] : memref<128x128xf32, #tpu.memory_space<any>> -> memref<1x128xf32, #tpu.memory_space<any>>
    %c29_i32 = arith.constant 29 : i32
    %c0_i32_95 = arith.constant 0 : i32
    %154 = tpu.memref_slice %arg6[%0, %c29_i32, %c0_i32_95] : memref<2x64x128xf32, #tpu.memory_space<vmem>> -> memref<1x1x128xf32, #tpu.memory_space<vmem>>
    %155 = tpu.memref_squeeze %154 : memref<1x1x128xf32, #tpu.memory_space<vmem>> -> memref<1x128xf32, #tpu.memory_space<vmem>>
    %156 = tpu.memref_slice %arg7[%0] : memref<2x!tpu.dma_semaphore, #tpu.memory_space<semaphore_mem>> -> memref<1x!tpu.dma_semaphore, #tpu.memory_space<semaphore_mem>>
    %157 = tpu.memref_squeeze %156 : memref<1x!tpu.dma_semaphore, #tpu.memory_space<semaphore_mem>> -> memref<!tpu.dma_semaphore, #tpu.memory_space<semaphore_mem>>
    tpu.wait_dma2 semaphore(%157 : memref<!tpu.dma_semaphore, #tpu.memory_space<semaphore_mem>>) src(%153 : memref<1x128xf32, #tpu.memory_space<any>>) dst(%155 : memref<1x128xf32, #tpu.memory_space<vmem>>)
    %c0_i32_96 = arith.constant 0 : i32
    %c0_i32_97 = arith.constant 0 : i32
    %158 = tpu.memref_slice %arg3[%c0_i32_96, %c0_i32_97] : memref<128x128xf32, #tpu.memory_space<any>> -> memref<1x128xf32, #tpu.memory_space<any>>
    %c30_i32 = arith.constant 30 : i32
    %c0_i32_98 = arith.constant 0 : i32
    %159 = tpu.memref_slice %arg6[%0, %c30_i32, %c0_i32_98] : memref<2x64x128xf32, #tpu.memory_space<vmem>> -> memref<1x1x128xf32, #tpu.memory_space<vmem>>
    %160 = tpu.memref_squeeze %159 : memref<1x1x128xf32, #tpu.memory_space<vmem>> -> memref<1x128xf32, #tpu.memory_space<vmem>>
    %161 = tpu.memref_slice %arg7[%0] : memref<2x!tpu.dma_semaphore, #tpu.memory_space<semaphore_mem>> -> memref<1x!tpu.dma_semaphore, #tpu.memory_space<semaphore_mem>>
    %162 = tpu.memref_squeeze %161 : memref<1x!tpu.dma_semaphore, #tpu.memory_space<semaphore_mem>> -> memref<!tpu.dma_semaphore, #tpu.memory_space<semaphore_mem>>
    tpu.wait_dma2 semaphore(%162 : memref<!tpu.dma_semaphore, #tpu.memory_space<semaphore_mem>>) src(%158 : memref<1x128xf32, #tpu.memory_space<any>>) dst(%160 : memref<1x128xf32, #tpu.memory_space<vmem>>)
    %c0_i32_99 = arith.constant 0 : i32
    %c0_i32_100 = arith.constant 0 : i32
    %163 = tpu.memref_slice %arg3[%c0_i32_99, %c0_i32_100] : memref<128x128xf32, #tpu.memory_space<any>> -> memref<1x128xf32, #tpu.memory_space<any>>
    %c31_i32 = arith.constant 31 : i32
    %c0_i32_101 = arith.constant 0 : i32
    %164 = tpu.memref_slice %arg6[%0, %c31_i32, %c0_i32_101] : memref<2x64x128xf32, #tpu.memory_space<vmem>> -> memref<1x1x128xf32, #tpu.memory_space<vmem>>
    %165 = tpu.memref_squeeze %164 : memref<1x1x128xf32, #tpu.memory_space<vmem>> -> memref<1x128xf32, #tpu.memory_space<vmem>>
    %166 = tpu.memref_slice %arg7[%0] : memref<2x!tpu.dma_semaphore, #tpu.memory_space<semaphore_mem>> -> memref<1x!tpu.dma_semaphore, #tpu.memory_space<semaphore_mem>>
    %167 = tpu.memref_squeeze %166 : memref<1x!tpu.dma_semaphore, #tpu.memory_space<semaphore_mem>> -> memref<!tpu.dma_semaphore, #tpu.memory_space<semaphore_mem>>
    tpu.wait_dma2 semaphore(%167 : memref<!tpu.dma_semaphore, #tpu.memory_space<semaphore_mem>>) src(%163 : memref<1x128xf32, #tpu.memory_space<any>>) dst(%165 : memref<1x128xf32, #tpu.memory_space<vmem>>)
    %c0_i32_102 = arith.constant 0 : i32
    %c0_i32_103 = arith.constant 0 : i32
    %168 = tpu.memref_slice %arg3[%c0_i32_102, %c0_i32_103] : memref<128x128xf32, #tpu.memory_space<any>> -> memref<1x128xf32, #tpu.memory_space<any>>
    %c32_i32 = arith.constant 32 : i32
    %c0_i32_104 = arith.constant 0 : i32
    %169 = tpu.memref_slice %arg6[%0, %c32_i32, %c0_i32_104] : memref<2x64x128xf32, #tpu.memory_space<vmem>> -> memref<1x1x128xf32, #tpu.memory_space<vmem>>
    %170 = tpu.memref_squeeze %169 : memref<1x1x128xf32, #tpu.memory_space<vmem>> -> memref<1x128xf32, #tpu.memory_space<vmem>>
    %171 = tpu.memref_slice %arg7[%0] : memref<2x!tpu.dma_semaphore, #tpu.memory_space<semaphore_mem>> -> memref<1x!tpu.dma_semaphore, #tpu.memory_space<semaphore_mem>>
    %172 = tpu.memref_squeeze %171 : memref<1x!tpu.dma_semaphore, #tpu.memory_space<semaphore_mem>> -> memref<!tpu.dma_semaphore, #tpu.memory_space<semaphore_mem>>
    tpu.wait_dma2 semaphore(%172 : memref<!tpu.dma_semaphore, #tpu.memory_space<semaphore_mem>>) src(%168 : memref<1x128xf32, #tpu.memory_space<any>>) dst(%170 : memref<1x128xf32, #tpu.memory_space<vmem>>)
    %c0_i32_105 = arith.constant 0 : i32
    %c0_i32_106 = arith.constant 0 : i32
    %173 = tpu.memref_slice %arg3[%c0_i32_105, %c0_i32_106] : memref<128x128xf32, #tpu.memory_space<any>> -> memref<1x128xf32, #tpu.memory_space<any>>
    %c33_i32 = arith.constant 33 : i32
    %c0_i32_107 = arith.constant 0 : i32
    %174 = tpu.memref_slice %arg6[%0, %c33_i32, %c0_i32_107] : memref<2x64x128xf32, #tpu.memory_space<vmem>> -> memref<1x1x128xf32, #tpu.memory_space<vmem>>
    %175 = tpu.memref_squeeze %174 : memref<1x1x128xf32, #tpu.memory_space<vmem>> -> memref<1x128xf32, #tpu.memory_space<vmem>>
    %176 = tpu.memref_slice %arg7[%0] : memref<2x!tpu.dma_semaphore, #tpu.memory_space<semaphore_mem>> -> memref<1x!tpu.dma_semaphore, #tpu.memory_space<semaphore_mem>>
    %177 = tpu.memref_squeeze %176 : memref<1x!tpu.dma_semaphore, #tpu.memory_space<semaphore_mem>> -> memref<!tpu.dma_semaphore, #tpu.memory_space<semaphore_mem>>
    tpu.wait_dma2 semaphore(%177 : memref<!tpu.dma_semaphore, #tpu.memory_space<semaphore_mem>>) src(%173 : memref<1x128xf32, #tpu.memory_space<any>>) dst(%175 : memref<1x128xf32, #tpu.memory_space<vmem>>)
    %c0_i32_108 = arith.constant 0 : i32
    %c0_i32_109 = arith.constant 0 : i32
    %178 = tpu.memref_slice %arg3[%c0_i32_108, %c0_i32_109] : memref<128x128xf32, #tpu.memory_space<any>> -> memref<1x128xf32, #tpu.memory_space<any>>
    %c34_i32 = arith.constant 34 : i32
    %c0_i32_110 = arith.constant 0 : i32
    %179 = tpu.memref_slice %arg6[%0, %c34_i32, %c0_i32_110] : memref<2x64x128xf32, #tpu.memory_space<vmem>> -> memref<1x1x128xf32, #tpu.memory_space<vmem>>
    %180 = tpu.memref_squeeze %179 : memref<1x1x128xf32, #tpu.memory_space<vmem>> -> memref<1x128xf32, #tpu.memory_space<vmem>>
    %181 = tpu.memref_slice %arg7[%0] : memref<2x!tpu.dma_semaphore, #tpu.memory_space<semaphore_mem>> -> memref<1x!tpu.dma_semaphore, #tpu.memory_space<semaphore_mem>>
    %182 = tpu.memref_squeeze %181 : memref<1x!tpu.dma_semaphore, #tpu.memory_space<semaphore_mem>> -> memref<!tpu.dma_semaphore, #tpu.memory_space<semaphore_mem>>
    tpu.wait_dma2 semaphore(%182 : memref<!tpu.dma_semaphore, #tpu.memory_space<semaphore_mem>>) src(%178 : memref<1x128xf32, #tpu.memory_space<any>>) dst(%180 : memref<1x128xf32, #tpu.memory_space<vmem>>)
    %c0_i32_111 = arith.constant 0 : i32
    %c0_i32_112 = arith.constant 0 : i32
    %183 = tpu.memref_slice %arg3[%c0_i32_111, %c0_i32_112] : memref<128x128xf32, #tpu.memory_space<any>> -> memref<1x128xf32, #tpu.memory_space<any>>
    %c35_i32 = arith.constant 35 : i32
    %c0_i32_113 = arith.constant 0 : i32
    %184 = tpu.memref_slice %arg6[%0, %c35_i32, %c0_i32_113] : memref<2x64x128xf32, #tpu.memory_space<vmem>> -> memref<1x1x128xf32, #tpu.memory_space<vmem>>
    %185 = tpu.memref_squeeze %184 : memref<1x1x128xf32, #tpu.memory_space<vmem>> -> memref<1x128xf32, #tpu.memory_space<vmem>>
    %186 = tpu.memref_slice %arg7[%0] : memref<2x!tpu.dma_semaphore, #tpu.memory_space<semaphore_mem>> -> memref<1x!tpu.dma_semaphore, #tpu.memory_space<semaphore_mem>>
    %187 = tpu.memref_squeeze %186 : memref<1x!tpu.dma_semaphore, #tpu.memory_space<semaphore_mem>> -> memref<!tpu.dma_semaphore, #tpu.memory_space<semaphore_mem>>
    tpu.wait_dma2 semaphore(%187 : memref<!tpu.dma_semaphore, #tpu.memory_space<semaphore_mem>>) src(%183 : memref<1x128xf32, #tpu.memory_space<any>>) dst(%185 : memref<1x128xf32, #tpu.memory_space<vmem>>)
    %c0_i32_114 = arith.constant 0 : i32
    %c0_i32_115 = arith.constant 0 : i32
    %188 = tpu.memref_slice %arg3[%c0_i32_114, %c0_i32_115] : memref<128x128xf32, #tpu.memory_space<any>> -> memref<1x128xf32, #tpu.memory_space<any>>
    %c36_i32 = arith.constant 36 : i32
    %c0_i32_116 = arith.constant 0 : i32
    %189 = tpu.memref_slice %arg6[%0, %c36_i32, %c0_i32_116] : memref<2x64x128xf32, #tpu.memory_space<vmem>> -> memref<1x1x128xf32, #tpu.memory_space<vmem>>
    %190 = tpu.memref_squeeze %189 : memref<1x1x128xf32, #tpu.memory_space<vmem>> -> memref<1x128xf32, #tpu.memory_space<vmem>>
    %191 = tpu.memref_slice %arg7[%0] : memref<2x!tpu.dma_semaphore, #tpu.memory_space<semaphore_mem>> -> memref<1x!tpu.dma_semaphore, #tpu.memory_space<semaphore_mem>>
    %192 = tpu.memref_squeeze %191 : memref<1x!tpu.dma_semaphore, #tpu.memory_space<semaphore_mem>> -> memref<!tpu.dma_semaphore, #tpu.memory_space<semaphore_mem>>
    tpu.wait_dma2 semaphore(%192 : memref<!tpu.dma_semaphore, #tpu.memory_space<semaphore_mem>>) src(%188 : memref<1x128xf32, #tpu.memory_space<any>>) dst(%190 : memref<1x128xf32, #tpu.memory_space<vmem>>)
    %c0_i32_117 = arith.constant 0 : i32
    %c0_i32_118 = arith.constant 0 : i32
    %193 = tpu.memref_slice %arg3[%c0_i32_117, %c0_i32_118] : memref<128x128xf32, #tpu.memory_space<any>> -> memref<1x128xf32, #tpu.memory_space<any>>
    %c37_i32 = arith.constant 37 : i32
    %c0_i32_119 = arith.constant 0 : i32
    %194 = tpu.memref_slice %arg6[%0, %c37_i32, %c0_i32_119] : memref<2x64x128xf32, #tpu.memory_space<vmem>> -> memref<1x1x128xf32, #tpu.memory_space<vmem>>
    %195 = tpu.memref_squeeze %194 : memref<1x1x128xf32, #tpu.memory_space<vmem>> -> memref<1x128xf32, #tpu.memory_space<vmem>>
    %196 = tpu.memref_slice %arg7[%0] : memref<2x!tpu.dma_semaphore, #tpu.memory_space<semaphore_mem>> -> memref<1x!tpu.dma_semaphore, #tpu.memory_space<semaphore_mem>>
    %197 = tpu.memref_squeeze %196 : memref<1x!tpu.dma_semaphore, #tpu.memory_space<semaphore_mem>> -> memref<!tpu.dma_semaphore, #tpu.memory_space<semaphore_mem>>
    tpu.wait_dma2 semaphore(%197 : memref<!tpu.dma_semaphore, #tpu.memory_space<semaphore_mem>>) src(%193 : memref<1x128xf32, #tpu.memory_space<any>>) dst(%195 : memref<1x128xf32, #tpu.memory_space<vmem>>)
    %c0_i32_120 = arith.constant 0 : i32
    %c0_i32_121 = arith.constant 0 : i32
    %198 = tpu.memref_slice %arg3[%c0_i32_120, %c0_i32_121] : memref<128x128xf32, #tpu.memory_space<any>> -> memref<1x128xf32, #tpu.memory_space<any>>
    %c38_i32 = arith.constant 38 : i32
    %c0_i32_122 = arith.constant 0 : i32
    %199 = tpu.memref_slice %arg6[%0, %c38_i32, %c0_i32_122] : memref<2x64x128xf32, #tpu.memory_space<vmem>> -> memref<1x1x128xf32, #tpu.memory_space<vmem>>
    %200 = tpu.memref_squeeze %199 : memref<1x1x128xf32, #tpu.memory_space<vmem>> -> memref<1x128xf32, #tpu.memory_space<vmem>>
    %201 = tpu.memref_slice %arg7[%0] : memref<2x!tpu.dma_semaphore, #tpu.memory_space<semaphore_mem>> -> memref<1x!tpu.dma_semaphore, #tpu.memory_space<semaphore_mem>>
    %202 = tpu.memref_squeeze %201 : memref<1x!tpu.dma_semaphore, #tpu.memory_space<semaphore_mem>> -> memref<!tpu.dma_semaphore, #tpu.memory_space<semaphore_mem>>
    tpu.wait_dma2 semaphore(%202 : memref<!tpu.dma_semaphore, #tpu.memory_space<semaphore_mem>>) src(%198 : memref<1x128xf32, #tpu.memory_space<any>>) dst(%200 : memref<1x128xf32, #tpu.memory_space<vmem>>)
    %c0_i32_123 = arith.constant 0 : i32
    %c0_i32_124 = arith.constant 0 : i32
    %203 = tpu.memref_slice %arg3[%c0_i32_123, %c0_i32_124] : memref<128x128xf32, #tpu.memory_space<any>> -> memref<1x128xf32, #tpu.memory_space<any>>
    %c39_i32 = arith.constant 39 : i32
    %c0_i32_125 = arith.constant 0 : i32
    %204 = tpu.memref_slice %arg6[%0, %c39_i32, %c0_i32_125] : memref<2x64x128xf32, #tpu.memory_space<vmem>> -> memref<1x1x128xf32, #tpu.memory_space<vmem>>
    %205 = tpu.memref_squeeze %204 : memref<1x1x128xf32, #tpu.memory_space<vmem>> -> memref<1x128xf32, #tpu.memory_space<vmem>>
    %206 = tpu.memref_slice %arg7[%0] : memref<2x!tpu.dma_semaphore, #tpu.memory_space<semaphore_mem>> -> memref<1x!tpu.dma_semaphore, #tpu.memory_space<semaphore_mem>>
    %207 = tpu.memref_squeeze %206 : memref<1x!tpu.dma_semaphore, #tpu.memory_space<semaphore_mem>> -> memref<!tpu.dma_semaphore, #tpu.memory_space<semaphore_mem>>
    tpu.wait_dma2 semaphore(%207 : memref<!tpu.dma_semaphore, #tpu.memory_space<semaphore_mem>>) src(%203 : memref<1x128xf32, #tpu.memory_space<any>>) dst(%205 : memref<1x128xf32, #tpu.memory_space<vmem>>)
    %c0_i32_126 = arith.constant 0 : i32
    %c0_i32_127 = arith.constant 0 : i32
    %208 = tpu.memref_slice %arg3[%c0_i32_126, %c0_i32_127] : memref<128x128xf32, #tpu.memory_space<any>> -> memref<1x128xf32, #tpu.memory_space<any>>
    %c40_i32 = arith.constant 40 : i32
    %c0_i32_128 = arith.constant 0 : i32
    %209 = tpu.memref_slice %arg6[%0, %c40_i32, %c0_i32_128] : memref<2x64x128xf32, #tpu.memory_space<vmem>> -> memref<1x1x128xf32, #tpu.memory_space<vmem>>
    %210 = tpu.memref_squeeze %209 : memref<1x1x128xf32, #tpu.memory_space<vmem>> -> memref<1x128xf32, #tpu.memory_space<vmem>>
    %211 = tpu.memref_slice %arg7[%0] : memref<2x!tpu.dma_semaphore, #tpu.memory_space<semaphore_mem>> -> memref<1x!tpu.dma_semaphore, #tpu.memory_space<semaphore_mem>>
    %212 = tpu.memref_squeeze %211 : memref<1x!tpu.dma_semaphore, #tpu.memory_space<semaphore_mem>> -> memref<!tpu.dma_semaphore, #tpu.memory_space<semaphore_mem>>
    tpu.wait_dma2 semaphore(%212 : memref<!tpu.dma_semaphore, #tpu.memory_space<semaphore_mem>>) src(%208 : memref<1x128xf32, #tpu.memory_space<any>>) dst(%210 : memref<1x128xf32, #tpu.memory_space<vmem>>)
    %c0_i32_129 = arith.constant 0 : i32
    %c0_i32_130 = arith.constant 0 : i32
    %213 = tpu.memref_slice %arg3[%c0_i32_129, %c0_i32_130] : memref<128x128xf32, #tpu.memory_space<any>> -> memref<1x128xf32, #tpu.memory_space<any>>
    %c41_i32 = arith.constant 41 : i32
    %c0_i32_131 = arith.constant 0 : i32
    %214 = tpu.memref_slice %arg6[%0, %c41_i32, %c0_i32_131] : memref<2x64x128xf32, #tpu.memory_space<vmem>> -> memref<1x1x128xf32, #tpu.memory_space<vmem>>
    %215 = tpu.memref_squeeze %214 : memref<1x1x128xf32, #tpu.memory_space<vmem>> -> memref<1x128xf32, #tpu.memory_space<vmem>>
    %216 = tpu.memref_slice %arg7[%0] : memref<2x!tpu.dma_semaphore, #tpu.memory_space<semaphore_mem>> -> memref<1x!tpu.dma_semaphore, #tpu.memory_space<semaphore_mem>>
    %217 = tpu.memref_squeeze %216 : memref<1x!tpu.dma_semaphore, #tpu.memory_space<semaphore_mem>> -> memref<!tpu.dma_semaphore, #tpu.memory_space<semaphore_mem>>
    tpu.wait_dma2 semaphore(%217 : memref<!tpu.dma_semaphore, #tpu.memory_space<semaphore_mem>>) src(%213 : memref<1x128xf32, #tpu.memory_space<any>>) dst(%215 : memref<1x128xf32, #tpu.memory_space<vmem>>)
    %c0_i32_132 = arith.constant 0 : i32
    %c0_i32_133 = arith.constant 0 : i32
    %218 = tpu.memref_slice %arg3[%c0_i32_132, %c0_i32_133] : memref<128x128xf32, #tpu.memory_space<any>> -> memref<1x128xf32, #tpu.memory_space<any>>
    %c42_i32 = arith.constant 42 : i32
    %c0_i32_134 = arith.constant 0 : i32
    %219 = tpu.memref_slice %arg6[%0, %c42_i32, %c0_i32_134] : memref<2x64x128xf32, #tpu.memory_space<vmem>> -> memref<1x1x128xf32, #tpu.memory_space<vmem>>
    %220 = tpu.memref_squeeze %219 : memref<1x1x128xf32, #tpu.memory_space<vmem>> -> memref<1x128xf32, #tpu.memory_space<vmem>>
    %221 = tpu.memref_slice %arg7[%0] : memref<2x!tpu.dma_semaphore, #tpu.memory_space<semaphore_mem>> -> memref<1x!tpu.dma_semaphore, #tpu.memory_space<semaphore_mem>>
    %222 = tpu.memref_squeeze %221 : memref<1x!tpu.dma_semaphore, #tpu.memory_space<semaphore_mem>> -> memref<!tpu.dma_semaphore, #tpu.memory_space<semaphore_mem>>
    tpu.wait_dma2 semaphore(%222 : memref<!tpu.dma_semaphore, #tpu.memory_space<semaphore_mem>>) src(%218 : memref<1x128xf32, #tpu.memory_space<any>>) dst(%220 : memref<1x128xf32, #tpu.memory_space<vmem>>)
    %c0_i32_135 = arith.constant 0 : i32
    %c0_i32_136 = arith.constant 0 : i32
    %223 = tpu.memref_slice %arg3[%c0_i32_135, %c0_i32_136] : memref<128x128xf32, #tpu.memory_space<any>> -> memref<1x128xf32, #tpu.memory_space<any>>
    %c43_i32 = arith.constant 43 : i32
    %c0_i32_137 = arith.constant 0 : i32
    %224 = tpu.memref_slice %arg6[%0, %c43_i32, %c0_i32_137] : memref<2x64x128xf32, #tpu.memory_space<vmem>> -> memref<1x1x128xf32, #tpu.memory_space<vmem>>
    %225 = tpu.memref_squeeze %224 : memref<1x1x128xf32, #tpu.memory_space<vmem>> -> memref<1x128xf32, #tpu.memory_space<vmem>>
    %226 = tpu.memref_slice %arg7[%0] : memref<2x!tpu.dma_semaphore, #tpu.memory_space<semaphore_mem>> -> memref<1x!tpu.dma_semaphore, #tpu.memory_space<semaphore_mem>>
    %227 = tpu.memref_squeeze %226 : memref<1x!tpu.dma_semaphore, #tpu.memory_space<semaphore_mem>> -> memref<!tpu.dma_semaphore, #tpu.memory_space<semaphore_mem>>
    tpu.wait_dma2 semaphore(%227 : memref<!tpu.dma_semaphore, #tpu.memory_space<semaphore_mem>>) src(%223 : memref<1x128xf32, #tpu.memory_space<any>>) dst(%225 : memref<1x128xf32, #tpu.memory_space<vmem>>)
    %c0_i32_138 = arith.constant 0 : i32
    %c0_i32_139 = arith.constant 0 : i32
    %228 = tpu.memref_slice %arg3[%c0_i32_138, %c0_i32_139] : memref<128x128xf32, #tpu.memory_space<any>> -> memref<1x128xf32, #tpu.memory_space<any>>
    %c44_i32 = arith.constant 44 : i32
    %c0_i32_140 = arith.constant 0 : i32
    %229 = tpu.memref_slice %arg6[%0, %c44_i32, %c0_i32_140] : memref<2x64x128xf32, #tpu.memory_space<vmem>> -> memref<1x1x128xf32, #tpu.memory_space<vmem>>
    %230 = tpu.memref_squeeze %229 : memref<1x1x128xf32, #tpu.memory_space<vmem>> -> memref<1x128xf32, #tpu.memory_space<vmem>>
    %231 = tpu.memref_slice %arg7[%0] : memref<2x!tpu.dma_semaphore, #tpu.memory_space<semaphore_mem>> -> memref<1x!tpu.dma_semaphore, #tpu.memory_space<semaphore_mem>>
    %232 = tpu.memref_squeeze %231 : memref<1x!tpu.dma_semaphore, #tpu.memory_space<semaphore_mem>> -> memref<!tpu.dma_semaphore, #tpu.memory_space<semaphore_mem>>
    tpu.wait_dma2 semaphore(%232 : memref<!tpu.dma_semaphore, #tpu.memory_space<semaphore_mem>>) src(%228 : memref<1x128xf32, #tpu.memory_space<any>>) dst(%230 : memref<1x128xf32, #tpu.memory_space<vmem>>)
    %c0_i32_141 = arith.constant 0 : i32
    %c0_i32_142 = arith.constant 0 : i32
    %233 = tpu.memref_slice %arg3[%c0_i32_141, %c0_i32_142] : memref<128x128xf32, #tpu.memory_space<any>> -> memref<1x128xf32, #tpu.memory_space<any>>
    %c45_i32 = arith.constant 45 : i32
    %c0_i32_143 = arith.constant 0 : i32
    %234 = tpu.memref_slice %arg6[%0, %c45_i32, %c0_i32_143] : memref<2x64x128xf32, #tpu.memory_space<vmem>> -> memref<1x1x128xf32, #tpu.memory_space<vmem>>
    %235 = tpu.memref_squeeze %234 : memref<1x1x128xf32, #tpu.memory_space<vmem>> -> memref<1x128xf32, #tpu.memory_space<vmem>>
    %236 = tpu.memref_slice %arg7[%0] : memref<2x!tpu.dma_semaphore, #tpu.memory_space<semaphore_mem>> -> memref<1x!tpu.dma_semaphore, #tpu.memory_space<semaphore_mem>>
    %237 = tpu.memref_squeeze %236 : memref<1x!tpu.dma_semaphore, #tpu.memory_space<semaphore_mem>> -> memref<!tpu.dma_semaphore, #tpu.memory_space<semaphore_mem>>
    tpu.wait_dma2 semaphore(%237 : memref<!tpu.dma_semaphore, #tpu.memory_space<semaphore_mem>>) src(%233 : memref<1x128xf32, #tpu.memory_space<any>>) dst(%235 : memref<1x128xf32, #tpu.memory_space<vmem>>)
    %c0_i32_144 = arith.constant 0 : i32
    %c0_i32_145 = arith.constant 0 : i32
    %238 = tpu.memref_slice %arg3[%c0_i32_144, %c0_i32_145] : memref<128x128xf32, #tpu.memory_space<any>> -> memref<1x128xf32, #tpu.memory_space<any>>
    %c46_i32 = arith.constant 46 : i32
    %c0_i32_146 = arith.constant 0 : i32
    %239 = tpu.memref_slice %arg6[%0, %c46_i32, %c0_i32_146] : memref<2x64x128xf32, #tpu.memory_space<vmem>> -> memref<1x1x128xf32, #tpu.memory_space<vmem>>
    %240 = tpu.memref_squeeze %239 : memref<1x1x128xf32, #tpu.memory_space<vmem>> -> memref<1x128xf32, #tpu.memory_space<vmem>>
    %241 = tpu.memref_slice %arg7[%0] : memref<2x!tpu.dma_semaphore, #tpu.memory_space<semaphore_mem>> -> memref<1x!tpu.dma_semaphore, #tpu.memory_space<semaphore_mem>>
    %242 = tpu.memref_squeeze %241 : memref<1x!tpu.dma_semaphore, #tpu.memory_space<semaphore_mem>> -> memref<!tpu.dma_semaphore, #tpu.memory_space<semaphore_mem>>
    tpu.wait_dma2 semaphore(%242 : memref<!tpu.dma_semaphore, #tpu.memory_space<semaphore_mem>>) src(%238 : memref<1x128xf32, #tpu.memory_space<any>>) dst(%240 : memref<1x128xf32, #tpu.memory_space<vmem>>)
    %c0_i32_147 = arith.constant 0 : i32
    %c0_i32_148 = arith.constant 0 : i32
    %243 = tpu.memref_slice %arg3[%c0_i32_147, %c0_i32_148] : memref<128x128xf32, #tpu.memory_space<any>> -> memref<1x128xf32, #tpu.memory_space<any>>
    %c47_i32 = arith.constant 47 : i32
    %c0_i32_149 = arith.constant 0 : i32
    %244 = tpu.memref_slice %arg6[%0, %c47_i32, %c0_i32_149] : memref<2x64x128xf32, #tpu.memory_space<vmem>> -> memref<1x1x128xf32, #tpu.memory_space<vmem>>
    %245 = tpu.memref_squeeze %244 : memref<1x1x128xf32, #tpu.memory_space<vmem>> -> memref<1x128xf32, #tpu.memory_space<vmem>>
    %246 = tpu.memref_slice %arg7[%0] : memref<2x!tpu.dma_semaphore, #tpu.memory_space<semaphore_mem>> -> memref<1x!tpu.dma_semaphore, #tpu.memory_space<semaphore_mem>>
    %247 = tpu.memref_squeeze %246 : memref<1x!tpu.dma_semaphore, #tpu.memory_space<semaphore_mem>> -> memref<!tpu.dma_semaphore, #tpu.memory_space<semaphore_mem>>
    tpu.wait_dma2 semaphore(%247 : memref<!tpu.dma_semaphore, #tpu.memory_space<semaphore_mem>>) src(%243 : memref<1x128xf32, #tpu.memory_space<any>>) dst(%245 : memref<1x128xf32, #tpu.memory_space<vmem>>)
    %c0_i32_150 = arith.constant 0 : i32
    %c0_i32_151 = arith.constant 0 : i32
    %248 = tpu.memref_slice %arg3[%c0_i32_150, %c0_i32_151] : memref<128x128xf32, #tpu.memory_space<any>> -> memref<1x128xf32, #tpu.memory_space<any>>
    %c48_i32 = arith.constant 48 : i32
    %c0_i32_152 = arith.constant 0 : i32
    %249 = tpu.memref_slice %arg6[%0, %c48_i32, %c0_i32_152] : memref<2x64x128xf32, #tpu.memory_space<vmem>> -> memref<1x1x128xf32, #tpu.memory_space<vmem>>
    %250 = tpu.memref_squeeze %249 : memref<1x1x128xf32, #tpu.memory_space<vmem>> -> memref<1x128xf32, #tpu.memory_space<vmem>>
    %251 = tpu.memref_slice %arg7[%0] : memref<2x!tpu.dma_semaphore, #tpu.memory_space<semaphore_mem>> -> memref<1x!tpu.dma_semaphore, #tpu.memory_space<semaphore_mem>>
    %252 = tpu.memref_squeeze %251 : memref<1x!tpu.dma_semaphore, #tpu.memory_space<semaphore_mem>> -> memref<!tpu.dma_semaphore, #tpu.memory_space<semaphore_mem>>
    tpu.wait_dma2 semaphore(%252 : memref<!tpu.dma_semaphore, #tpu.memory_space<semaphore_mem>>) src(%248 : memref<1x128xf32, #tpu.memory_space<any>>) dst(%250 : memref<1x128xf32, #tpu.memory_space<vmem>>)
    %c0_i32_153 = arith.constant 0 : i32
    %c0_i32_154 = arith.constant 0 : i32
    %253 = tpu.memref_slice %arg3[%c0_i32_153, %c0_i32_154] : memref<128x128xf32, #tpu.memory_space<any>> -> memref<1x128xf32, #tpu.memory_space<any>>
    %c49_i32 = arith.constant 49 : i32
    %c0_i32_155 = arith.constant 0 : i32
    %254 = tpu.memref_slice %arg6[%0, %c49_i32, %c0_i32_155] : memref<2x64x128xf32, #tpu.memory_space<vmem>> -> memref<1x1x128xf32, #tpu.memory_space<vmem>>
    %255 = tpu.memref_squeeze %254 : memref<1x1x128xf32, #tpu.memory_space<vmem>> -> memref<1x128xf32, #tpu.memory_space<vmem>>
    %256 = tpu.memref_slice %arg7[%0] : memref<2x!tpu.dma_semaphore, #tpu.memory_space<semaphore_mem>> -> memref<1x!tpu.dma_semaphore, #tpu.memory_space<semaphore_mem>>
    %257 = tpu.memref_squeeze %256 : memref<1x!tpu.dma_semaphore, #tpu.memory_space<semaphore_mem>> -> memref<!tpu.dma_semaphore, #tpu.memory_space<semaphore_mem>>
    tpu.wait_dma2 semaphore(%257 : memref<!tpu.dma_semaphore, #tpu.memory_space<semaphore_mem>>) src(%253 : memref<1x128xf32, #tpu.memory_space<any>>) dst(%255 : memref<1x128xf32, #tpu.memory_space<vmem>>)
    %c0_i32_156 = arith.constant 0 : i32
    %c0_i32_157 = arith.constant 0 : i32
    %258 = tpu.memref_slice %arg3[%c0_i32_156, %c0_i32_157] : memref<128x128xf32, #tpu.memory_space<any>> -> memref<1x128xf32, #tpu.memory_space<any>>
    %c50_i32 = arith.constant 50 : i32
    %c0_i32_158 = arith.constant 0 : i32
    %259 = tpu.memref_slice %arg6[%0, %c50_i32, %c0_i32_158] : memref<2x64x128xf32, #tpu.memory_space<vmem>> -> memref<1x1x128xf32, #tpu.memory_space<vmem>>
    %260 = tpu.memref_squeeze %259 : memref<1x1x128xf32, #tpu.memory_space<vmem>> -> memref<1x128xf32, #tpu.memory_space<vmem>>
    %261 = tpu.memref_slice %arg7[%0] : memref<2x!tpu.dma_semaphore, #tpu.memory_space<semaphore_mem>> -> memref<1x!tpu.dma_semaphore, #tpu.memory_space<semaphore_mem>>
    %262 = tpu.memref_squeeze %261 : memref<1x!tpu.dma_semaphore, #tpu.memory_space<semaphore_mem>> -> memref<!tpu.dma_semaphore, #tpu.memory_space<semaphore_mem>>
    tpu.wait_dma2 semaphore(%262 : memref<!tpu.dma_semaphore, #tpu.memory_space<semaphore_mem>>) src(%258 : memref<1x128xf32, #tpu.memory_space<any>>) dst(%260 : memref<1x128xf32, #tpu.memory_space<vmem>>)
    %c0_i32_159 = arith.constant 0 : i32
    %c0_i32_160 = arith.constant 0 : i32
    %263 = tpu.memref_slice %arg3[%c0_i32_159, %c0_i32_160] : memref<128x128xf32, #tpu.memory_space<any>> -> memref<1x128xf32, #tpu.memory_space<any>>
    %c51_i32 = arith.constant 51 : i32
    %c0_i32_161 = arith.constant 0 : i32
    %264 = tpu.memref_slice %arg6[%0, %c51_i32, %c0_i32_161] : memref<2x64x128xf32, #tpu.memory_space<vmem>> -> memref<1x1x128xf32, #tpu.memory_space<vmem>>
    %265 = tpu.memref_squeeze %264 : memref<1x1x128xf32, #tpu.memory_space<vmem>> -> memref<1x128xf32, #tpu.memory_space<vmem>>
    %266 = tpu.memref_slice %arg7[%0] : memref<2x!tpu.dma_semaphore, #tpu.memory_space<semaphore_mem>> -> memref<1x!tpu.dma_semaphore, #tpu.memory_space<semaphore_mem>>
    %267 = tpu.memref_squeeze %266 : memref<1x!tpu.dma_semaphore, #tpu.memory_space<semaphore_mem>> -> memref<!tpu.dma_semaphore, #tpu.memory_space<semaphore_mem>>
    tpu.wait_dma2 semaphore(%267 : memref<!tpu.dma_semaphore, #tpu.memory_space<semaphore_mem>>) src(%263 : memref<1x128xf32, #tpu.memory_space<any>>) dst(%265 : memref<1x128xf32, #tpu.memory_space<vmem>>)
    %c0_i32_162 = arith.constant 0 : i32
    %c0_i32_163 = arith.constant 0 : i32
    %268 = tpu.memref_slice %arg3[%c0_i32_162, %c0_i32_163] : memref<128x128xf32, #tpu.memory_space<any>> -> memref<1x128xf32, #tpu.memory_space<any>>
    %c52_i32 = arith.constant 52 : i32
    %c0_i32_164 = arith.constant 0 : i32
    %269 = tpu.memref_slice %arg6[%0, %c52_i32, %c0_i32_164] : memref<2x64x128xf32, #tpu.memory_space<vmem>> -> memref<1x1x128xf32, #tpu.memory_space<vmem>>
    %270 = tpu.memref_squeeze %269 : memref<1x1x128xf32, #tpu.memory_space<vmem>> -> memref<1x128xf32, #tpu.memory_space<vmem>>
    %271 = tpu.memref_slice %arg7[%0] : memref<2x!tpu.dma_semaphore, #tpu.memory_space<semaphore_mem>> -> memref<1x!tpu.dma_semaphore, #tpu.memory_space<semaphore_mem>>
    %272 = tpu.memref_squeeze %271 : memref<1x!tpu.dma_semaphore, #tpu.memory_space<semaphore_mem>> -> memref<!tpu.dma_semaphore, #tpu.memory_space<semaphore_mem>>
    tpu.wait_dma2 semaphore(%272 : memref<!tpu.dma_semaphore, #tpu.memory_space<semaphore_mem>>) src(%268 : memref<1x128xf32, #tpu.memory_space<any>>) dst(%270 : memref<1x128xf32, #tpu.memory_space<vmem>>)
    %c0_i32_165 = arith.constant 0 : i32
    %c0_i32_166 = arith.constant 0 : i32
    %273 = tpu.memref_slice %arg3[%c0_i32_165, %c0_i32_166] : memref<128x128xf32, #tpu.memory_space<any>> -> memref<1x128xf32, #tpu.memory_space<any>>
    %c53_i32 = arith.constant 53 : i32
    %c0_i32_167 = arith.constant 0 : i32
    %274 = tpu.memref_slice %arg6[%0, %c53_i32, %c0_i32_167] : memref<2x64x128xf32, #tpu.memory_space<vmem>> -> memref<1x1x128xf32, #tpu.memory_space<vmem>>
    %275 = tpu.memref_squeeze %274 : memref<1x1x128xf32, #tpu.memory_space<vmem>> -> memref<1x128xf32, #tpu.memory_space<vmem>>
    %276 = tpu.memref_slice %arg7[%0] : memref<2x!tpu.dma_semaphore, #tpu.memory_space<semaphore_mem>> -> memref<1x!tpu.dma_semaphore, #tpu.memory_space<semaphore_mem>>
    %277 = tpu.memref_squeeze %276 : memref<1x!tpu.dma_semaphore, #tpu.memory_space<semaphore_mem>> -> memref<!tpu.dma_semaphore, #tpu.memory_space<semaphore_mem>>
    tpu.wait_dma2 semaphore(%277 : memref<!tpu.dma_semaphore, #tpu.memory_space<semaphore_mem>>) src(%273 : memref<1x128xf32, #tpu.memory_space<any>>) dst(%275 : memref<1x128xf32, #tpu.memory_space<vmem>>)
    %c0_i32_168 = arith.constant 0 : i32
    %c0_i32_169 = arith.constant 0 : i32
    %278 = tpu.memref_slice %arg3[%c0_i32_168, %c0_i32_169] : memref<128x128xf32, #tpu.memory_space<any>> -> memref<1x128xf32, #tpu.memory_space<any>>
    %c54_i32 = arith.constant 54 : i32
    %c0_i32_170 = arith.constant 0 : i32
    %279 = tpu.memref_slice %arg6[%0, %c54_i32, %c0_i32_170] : memref<2x64x128xf32, #tpu.memory_space<vmem>> -> memref<1x1x128xf32, #tpu.memory_space<vmem>>
    %280 = tpu.memref_squeeze %279 : memref<1x1x128xf32, #tpu.memory_space<vmem>> -> memref<1x128xf32, #tpu.memory_space<vmem>>
    %281 = tpu.memref_slice %arg7[%0] : memref<2x!tpu.dma_semaphore, #tpu.memory_space<semaphore_mem>> -> memref<1x!tpu.dma_semaphore, #tpu.memory_space<semaphore_mem>>
    %282 = tpu.memref_squeeze %281 : memref<1x!tpu.dma_semaphore, #tpu.memory_space<semaphore_mem>> -> memref<!tpu.dma_semaphore, #tpu.memory_space<semaphore_mem>>
    tpu.wait_dma2 semaphore(%282 : memref<!tpu.dma_semaphore, #tpu.memory_space<semaphore_mem>>) src(%278 : memref<1x128xf32, #tpu.memory_space<any>>) dst(%280 : memref<1x128xf32, #tpu.memory_space<vmem>>)
    %c0_i32_171 = arith.constant 0 : i32
    %c0_i32_172 = arith.constant 0 : i32
    %283 = tpu.memref_slice %arg3[%c0_i32_171, %c0_i32_172] : memref<128x128xf32, #tpu.memory_space<any>> -> memref<1x128xf32, #tpu.memory_space<any>>
    %c55_i32 = arith.constant 55 : i32
    %c0_i32_173 = arith.constant 0 : i32
    %284 = tpu.memref_slice %arg6[%0, %c55_i32, %c0_i32_173] : memref<2x64x128xf32, #tpu.memory_space<vmem>> -> memref<1x1x128xf32, #tpu.memory_space<vmem>>
    %285 = tpu.memref_squeeze %284 : memref<1x1x128xf32, #tpu.memory_space<vmem>> -> memref<1x128xf32, #tpu.memory_space<vmem>>
    %286 = tpu.memref_slice %arg7[%0] : memref<2x!tpu.dma_semaphore, #tpu.memory_space<semaphore_mem>> -> memref<1x!tpu.dma_semaphore, #tpu.memory_space<semaphore_mem>>
    %287 = tpu.memref_squeeze %286 : memref<1x!tpu.dma_semaphore, #tpu.memory_space<semaphore_mem>> -> memref<!tpu.dma_semaphore, #tpu.memory_space<semaphore_mem>>
    tpu.wait_dma2 semaphore(%287 : memref<!tpu.dma_semaphore, #tpu.memory_space<semaphore_mem>>) src(%283 : memref<1x128xf32, #tpu.memory_space<any>>) dst(%285 : memref<1x128xf32, #tpu.memory_space<vmem>>)
    %c0_i32_174 = arith.constant 0 : i32
    %c0_i32_175 = arith.constant 0 : i32
    %288 = tpu.memref_slice %arg3[%c0_i32_174, %c0_i32_175] : memref<128x128xf32, #tpu.memory_space<any>> -> memref<1x128xf32, #tpu.memory_space<any>>
    %c56_i32 = arith.constant 56 : i32
    %c0_i32_176 = arith.constant 0 : i32
    %289 = tpu.memref_slice %arg6[%0, %c56_i32, %c0_i32_176] : memref<2x64x128xf32, #tpu.memory_space<vmem>> -> memref<1x1x128xf32, #tpu.memory_space<vmem>>
    %290 = tpu.memref_squeeze %289 : memref<1x1x128xf32, #tpu.memory_space<vmem>> -> memref<1x128xf32, #tpu.memory_space<vmem>>
    %291 = tpu.memref_slice %arg7[%0] : memref<2x!tpu.dma_semaphore, #tpu.memory_space<semaphore_mem>> -> memref<1x!tpu.dma_semaphore, #tpu.memory_space<semaphore_mem>>
    %292 = tpu.memref_squeeze %291 : memref<1x!tpu.dma_semaphore, #tpu.memory_space<semaphore_mem>> -> memref<!tpu.dma_semaphore, #tpu.memory_space<semaphore_mem>>
    tpu.wait_dma2 semaphore(%292 : memref<!tpu.dma_semaphore, #tpu.memory_space<semaphore_mem>>) src(%288 : memref<1x128xf32, #tpu.memory_space<any>>) dst(%290 : memref<1x128xf32, #tpu.memory_space<vmem>>)
    %c0_i32_177 = arith.constant 0 : i32
    %c0_i32_178 = arith.constant 0 : i32
    %293 = tpu.memref_slice %arg3[%c0_i32_177, %c0_i32_178] : memref<128x128xf32, #tpu.memory_space<any>> -> memref<1x128xf32, #tpu.memory_space<any>>
    %c57_i32 = arith.constant 57 : i32
    %c0_i32_179 = arith.constant 0 : i32
    %294 = tpu.memref_slice %arg6[%0, %c57_i32, %c0_i32_179] : memref<2x64x128xf32, #tpu.memory_space<vmem>> -> memref<1x1x128xf32, #tpu.memory_space<vmem>>
    %295 = tpu.memref_squeeze %294 : memref<1x1x128xf32, #tpu.memory_space<vmem>> -> memref<1x128xf32, #tpu.memory_space<vmem>>
    %296 = tpu.memref_slice %arg7[%0] : memref<2x!tpu.dma_semaphore, #tpu.memory_space<semaphore_mem>> -> memref<1x!tpu.dma_semaphore, #tpu.memory_space<semaphore_mem>>
    %297 = tpu.memref_squeeze %296 : memref<1x!tpu.dma_semaphore, #tpu.memory_space<semaphore_mem>> -> memref<!tpu.dma_semaphore, #tpu.memory_space<semaphore_mem>>
    tpu.wait_dma2 semaphore(%297 : memref<!tpu.dma_semaphore, #tpu.memory_space<semaphore_mem>>) src(%293 : memref<1x128xf32, #tpu.memory_space<any>>) dst(%295 : memref<1x128xf32, #tpu.memory_space<vmem>>)
    %c0_i32_180 = arith.constant 0 : i32
    %c0_i32_181 = arith.constant 0 : i32
    %298 = tpu.memref_slice %arg3[%c0_i32_180, %c0_i32_181] : memref<128x128xf32, #tpu.memory_space<any>> -> memref<1x128xf32, #tpu.memory_space<any>>
    %c58_i32 = arith.constant 58 : i32
    %c0_i32_182 = arith.constant 0 : i32
    %299 = tpu.memref_slice %arg6[%0, %c58_i32, %c0_i32_182] : memref<2x64x128xf32, #tpu.memory_space<vmem>> -> memref<1x1x128xf32, #tpu.memory_space<vmem>>
    %300 = tpu.memref_squeeze %299 : memref<1x1x128xf32, #tpu.memory_space<vmem>> -> memref<1x128xf32, #tpu.memory_space<vmem>>
    %301 = tpu.memref_slice %arg7[%0] : memref<2x!tpu.dma_semaphore, #tpu.memory_space<semaphore_mem>> -> memref<1x!tpu.dma_semaphore, #tpu.memory_space<semaphore_mem>>
    %302 = tpu.memref_squeeze %301 : memref<1x!tpu.dma_semaphore, #tpu.memory_space<semaphore_mem>> -> memref<!tpu.dma_semaphore, #tpu.memory_space<semaphore_mem>>
    tpu.wait_dma2 semaphore(%302 : memref<!tpu.dma_semaphore, #tpu.memory_space<semaphore_mem>>) src(%298 : memref<1x128xf32, #tpu.memory_space<any>>) dst(%300 : memref<1x128xf32, #tpu.memory_space<vmem>>)
    %c0_i32_183 = arith.constant 0 : i32
    %c0_i32_184 = arith.constant 0 : i32
    %303 = tpu.memref_slice %arg3[%c0_i32_183, %c0_i32_184] : memref<128x128xf32, #tpu.memory_space<any>> -> memref<1x128xf32, #tpu.memory_space<any>>
    %c59_i32 = arith.constant 59 : i32
    %c0_i32_185 = arith.constant 0 : i32
    %304 = tpu.memref_slice %arg6[%0, %c59_i32, %c0_i32_185] : memref<2x64x128xf32, #tpu.memory_space<vmem>> -> memref<1x1x128xf32, #tpu.memory_space<vmem>>
    %305 = tpu.memref_squeeze %304 : memref<1x1x128xf32, #tpu.memory_space<vmem>> -> memref<1x128xf32, #tpu.memory_space<vmem>>
    %306 = tpu.memref_slice %arg7[%0] : memref<2x!tpu.dma_semaphore, #tpu.memory_space<semaphore_mem>> -> memref<1x!tpu.dma_semaphore, #tpu.memory_space<semaphore_mem>>
    %307 = tpu.memref_squeeze %306 : memref<1x!tpu.dma_semaphore, #tpu.memory_space<semaphore_mem>> -> memref<!tpu.dma_semaphore, #tpu.memory_space<semaphore_mem>>
    tpu.wait_dma2 semaphore(%307 : memref<!tpu.dma_semaphore, #tpu.memory_space<semaphore_mem>>) src(%303 : memref<1x128xf32, #tpu.memory_space<any>>) dst(%305 : memref<1x128xf32, #tpu.memory_space<vmem>>)
    %c0_i32_186 = arith.constant 0 : i32
    %c0_i32_187 = arith.constant 0 : i32
    %308 = tpu.memref_slice %arg3[%c0_i32_186, %c0_i32_187] : memref<128x128xf32, #tpu.memory_space<any>> -> memref<1x128xf32, #tpu.memory_space<any>>
    %c60_i32 = arith.constant 60 : i32
    %c0_i32_188 = arith.constant 0 : i32
    %309 = tpu.memref_slice %arg6[%0, %c60_i32, %c0_i32_188] : memref<2x64x128xf32, #tpu.memory_space<vmem>> -> memref<1x1x128xf32, #tpu.memory_space<vmem>>
    %310 = tpu.memref_squeeze %309 : memref<1x1x128xf32, #tpu.memory_space<vmem>> -> memref<1x128xf32, #tpu.memory_space<vmem>>
    %311 = tpu.memref_slice %arg7[%0] : memref<2x!tpu.dma_semaphore, #tpu.memory_space<semaphore_mem>> -> memref<1x!tpu.dma_semaphore, #tpu.memory_space<semaphore_mem>>
    %312 = tpu.memref_squeeze %311 : memref<1x!tpu.dma_semaphore, #tpu.memory_space<semaphore_mem>> -> memref<!tpu.dma_semaphore, #tpu.memory_space<semaphore_mem>>
    tpu.wait_dma2 semaphore(%312 : memref<!tpu.dma_semaphore, #tpu.memory_space<semaphore_mem>>) src(%308 : memref<1x128xf32, #tpu.memory_space<any>>) dst(%310 : memref<1x128xf32, #tpu.memory_space<vmem>>)
    %c0_i32_189 = arith.constant 0 : i32
    %c0_i32_190 = arith.constant 0 : i32
    %313 = tpu.memref_slice %arg3[%c0_i32_189, %c0_i32_190] : memref<128x128xf32, #tpu.memory_space<any>> -> memref<1x128xf32, #tpu.memory_space<any>>
    %c61_i32 = arith.constant 61 : i32
    %c0_i32_191 = arith.constant 0 : i32
    %314 = tpu.memref_slice %arg6[%0, %c61_i32, %c0_i32_191] : memref<2x64x128xf32, #tpu.memory_space<vmem>> -> memref<1x1x128xf32, #tpu.memory_space<vmem>>
    %315 = tpu.memref_squeeze %314 : memref<1x1x128xf32, #tpu.memory_space<vmem>> -> memref<1x128xf32, #tpu.memory_space<vmem>>
    %316 = tpu.memref_slice %arg7[%0] : memref<2x!tpu.dma_semaphore, #tpu.memory_space<semaphore_mem>> -> memref<1x!tpu.dma_semaphore, #tpu.memory_space<semaphore_mem>>
    %317 = tpu.memref_squeeze %316 : memref<1x!tpu.dma_semaphore, #tpu.memory_space<semaphore_mem>> -> memref<!tpu.dma_semaphore, #tpu.memory_space<semaphore_mem>>
    tpu.wait_dma2 semaphore(%317 : memref<!tpu.dma_semaphore, #tpu.memory_space<semaphore_mem>>) src(%313 : memref<1x128xf32, #tpu.memory_space<any>>) dst(%315 : memref<1x128xf32, #tpu.memory_space<vmem>>)
    %c0_i32_192 = arith.constant 0 : i32
    %c0_i32_193 = arith.constant 0 : i32
    %318 = tpu.memref_slice %arg3[%c0_i32_192, %c0_i32_193] : memref<128x128xf32, #tpu.memory_space<any>> -> memref<1x128xf32, #tpu.memory_space<any>>
    %c62_i32 = arith.constant 62 : i32
    %c0_i32_194 = arith.constant 0 : i32
    %319 = tpu.memref_slice %arg6[%0, %c62_i32, %c0_i32_194] : memref<2x64x128xf32, #tpu.memory_space<vmem>> -> memref<1x1x128xf32, #tpu.memory_space<vmem>>
    %320 = tpu.memref_squeeze %319 : memref<1x1x128xf32, #tpu.memory_space<vmem>> -> memref<1x128xf32, #tpu.memory_space<vmem>>
    %321 = tpu.memref_slice %arg7[%0] : memref<2x!tpu.dma_semaphore, #tpu.memory_space<semaphore_mem>> -> memref<1x!tpu.dma_semaphore, #tpu.memory_space<semaphore_mem>>
    %322 = tpu.memref_squeeze %321 : memref<1x!tpu.dma_semaphore, #tpu.memory_space<semaphore_mem>> -> memref<!tpu.dma_semaphore, #tpu.memory_space<semaphore_mem>>
    tpu.wait_dma2 semaphore(%322 : memref<!tpu.dma_semaphore, #tpu.memory_space<semaphore_mem>>) src(%318 : memref<1x128xf32, #tpu.memory_space<any>>) dst(%320 : memref<1x128xf32, #tpu.memory_space<vmem>>)
    %c0_i32_195 = arith.constant 0 : i32
    %c0_i32_196 = arith.constant 0 : i32
    %323 = tpu.memref_slice %arg3[%c0_i32_195, %c0_i32_196] : memref<128x128xf32, #tpu.memory_space<any>> -> memref<1x128xf32, #tpu.memory_space<any>>
    %c63_i32 = arith.constant 63 : i32
    %c0_i32_197 = arith.constant 0 : i32
    %324 = tpu.memref_slice %arg6[%0, %c63_i32, %c0_i32_197] : memref<2x64x128xf32, #tpu.memory_space<vmem>> -> memref<1x1x128xf32, #tpu.memory_space<vmem>>
    %325 = tpu.memref_squeeze %324 : memref<1x1x128xf32, #tpu.memory_space<vmem>> -> memref<1x128xf32, #tpu.memory_space<vmem>>
    %326 = tpu.memref_slice %arg7[%0] : memref<2x!tpu.dma_semaphore, #tpu.memory_space<semaphore_mem>> -> memref<1x!tpu.dma_semaphore, #tpu.memory_space<semaphore_mem>>
    %327 = tpu.memref_squeeze %326 : memref<1x!tpu.dma_semaphore, #tpu.memory_space<semaphore_mem>> -> memref<!tpu.dma_semaphore, #tpu.memory_space<semaphore_mem>>
    tpu.wait_dma2 semaphore(%327 : memref<!tpu.dma_semaphore, #tpu.memory_space<semaphore_mem>>) src(%323 : memref<1x128xf32, #tpu.memory_space<any>>) dst(%325 : memref<1x128xf32, #tpu.memory_space<vmem>>)
    %c64_i32 = arith.constant 64 : i32
    %328 = arith.muli %arg1, %c64_i32 : i32
    %329 = tpu.assume_multiple %328, 64 : i32
    %330 = arith.index_cast %0 : i32 to index
    %c0 = arith.constant 0 : index
    %c0_198 = arith.constant 0 : index
    %331 = vector.load %arg6[%330, %c0, %c0_198] : memref<2x64x128xf32, #tpu.memory_space<vmem>>, vector<1x64x128xf32>
    %332 = vector.shape_cast %331 : vector<1x64x128xf32> to vector<64x128xf32>
    %333 = arith.index_cast %329 : i32 to index
    %c0_199 = arith.constant 0 : index
    %334 = vector.load %arg4[%333, %c0_199] : memref<128x128xf32, #tpu.memory_space<vmem>>, vector<64x128xf32>
    %335 = arith.addf %332, %334 : vector<64x128xf32>
    %c0_200 = arith.constant 0 : index
    %c0_201 = arith.constant 0 : index
    %c0_202 = arith.constant 0 : index
    %336 = vector.load %arg5[%c0_200, %c0_201, %c0_202] : memref<1x64x128xf32, #tpu.memory_space<vmem>>, vector<1x64x128xf32>
    %337 = vector.shape_cast %336 : vector<1x64x128xf32> to vector<64x128xf32>
    %338 = vector.shape_cast %335 : vector<64x128xf32> to vector<1x64x128xf32>
    tpu.vector_store %arg5[%c0_200, %c0_201, %c0_202], %338 {strides = array<i32>} : memref<1x64x128xf32, #tpu.memory_space<vmem>>, vector<1x64x128xf32>,
    return
  }
  func.func @transform_1(%arg0: i32, %arg1: i32, %arg2: memref<256xi32, #tpu.memory_space<smem>>) -> (i32, i32) {
    %c0_i32 = arith.constant 0 : i32
    %c0_i32_0 = arith.constant 0 : i32
    %c0_i32_1 = arith.constant 0 : i32
    return %c0_i32, %c0_i32_0 : i32, i32
  }
  func.func @transform_2(%arg0: i32, %arg1: i32, %arg2: memref<256xi32, #tpu.memory_space<smem>>) -> (i32, i32, i32) {
    %c0_i32 = arith.constant 0 : i32
    %c0_i32_0 = arith.constant 0 : i32
    return %arg0, %arg1, %c0_i32 : i32, i32, i32
  }
}

</mosaic_0001>

<llo_original>
// kernel: tpu_custom_call.1
$region0: #{tpu_custom_call.1}
  #allocation0 [shape = 'u32[]', space=smem, size = 0x4, offset = 0x4, fixed_abs, tag = 'smem constant byte address 0x4 - core index']
  #allocation1 [shape = 'u32[72,128]{1,0:T(1,128)}', space=vmem, size = 0x9000, scoped, tag = 'internal scratch']
  #allocation2 [shape = 'f32[2,64,128]{2,1,0:T(8,128)}', space=vmem, size = 0x10000, scoped, tag = 'scratch operand']
  #allocation3 [shape = 's32[2]{0}', space=sflag, size = 0x8, scoped, tag = 'scratch operand']
  #allocation4 [shape = 's32[1]{0}', space=sflag, size = 0x4, scoped, tag = 'scoped memory for tpu_custom_call.1']
  #allocation5 [shape = 'u8[1024]{0}', space=smem, size = 0x400, scoped, tag = 'prefetched SMEM operand 0']
  #allocation10 [shape = 's32[]', space=sflag, size = 0x4, offset = 0, fixed_abs, tag = 'sflag constant byte address 0x0 - dummy sync flag']
  #allocation11 [shape = 's32[]', space=sflag, size = 0x4, offset = 0, fixed_abs, tag = 'sflag constant byte address 0x0 - dummy sync flag']
  #allocation12 [shape = 'u32[]', space=smem, size = 0x4, offset = 0x44, fixed_abs, tag = 'smem constant byte address 0x44 - assertion arg 0']
  #allocation13 [shape = 'u32[]', space=smem, size = 0x4, offset = 0x48, fixed_abs, tag = 'smem constant byte address 0x48 - assertion arg 1']
  #allocation14 [shape = 's32[]', space=sflag, size = 0x4, offset = 0, fixed_abs, tag = 'sflag constant byte address 0x0 - dummy sync flag']
  #allocation15 [shape = 's32[]', space=sflag, size = 0x4, offset = 0, fixed_abs, tag = 'sflag constant byte address 0x0 - dummy sync flag']
  #allocation16 [shape = 's32[]', space=sflag, size = 0x4, offset = 0, fixed_abs, tag = 'sflag constant byte address 0x0 - dummy sync flag']
  #allocation17 [shape = 's32[]', space=sflag, size = 0x4, offset = 0, fixed_abs, tag = 'sflag constant byte address 0x0 - dummy sync flag']
  #allocation18 [shape = 's32[]', space=sflag, size = 0x4, offset = 0, fixed_abs, tag = 'sflag constant byte address 0x0 - dummy sync flag']
  #allocation19 [shape = 's32[]', space=sflag, size = 0x4, offset = 0, fixed_abs, tag = 'sflag constant byte address 0x0 - dummy sync flag']
  #allocation20 [shape = 's32[]', space=sflag, size = 0x4, offset = 0, fixed_abs, tag = 'sflag constant byte address 0x0 - dummy sync flag']
  #allocation21 [shape = 's32[]', space=sflag, size = 0x4, offset = 0, fixed_abs, tag = 'sflag constant byte address 0x0 - dummy sync flag']
  #allocation22 [shape = 's32[]', space=sflag, size = 0x4, offset = 0, fixed_abs, tag = 'sflag constant byte address 0x0 - dummy sync flag']
  #allocation23 [shape = 's32[]', space=sflag, size = 0x4, offset = 0, fixed_abs, tag = 'sflag constant byte address 0x0 - dummy sync flag']
  #allocation24 [shape = 's32[]', space=sflag, size = 0x4, offset = 0, fixed_abs, tag = 'sflag constant byte address 0x0 - dummy sync flag']
  #allocation25 [shape = 's32[]', space=sflag, size = 0x4, offset = 0, fixed_abs, tag = 'sflag constant byte address 0x0 - dummy sync flag']
  #allocation26 [shape = 's32[]', space=sflag, size = 0x4, offset = 0, fixed_abs, tag = 'sflag constant byte address 0x0 - dummy sync flag']
  #allocation27 [shape = 's32[]', space=sflag, size = 0x4, offset = 0, fixed_abs, tag = 'sflag constant byte address 0x0 - dummy sync flag']
  #allocation28 [shape = 's32[]', space=sflag, size = 0x4, offset = 0, fixed_abs, tag = 'sflag constant byte address 0x0 - dummy sync flag']
  #allocation29 [shape = 's32[]', space=sflag, size = 0x4, offset = 0, fixed_abs, tag = 'sflag constant byte address 0x0 - dummy sync flag']
  #allocation30 [shape = 's32[]', space=sflag, size = 0x4, offset = 0, fixed_abs, tag = 'sflag constant byte address 0x0 - dummy sync flag']
  #allocation31 [shape = 's32[]', space=sflag, size = 0x4, offset = 0, fixed_abs, tag = 'sflag constant byte address 0x0 - dummy sync flag']
  #allocation32 [shape = 's32[]', space=sflag, size = 0x4, offset = 0, fixed_abs, tag = 'sflag constant byte address 0x0 - dummy sync flag']
  #allocation33 [shape = 's32[]', space=sflag, size = 0x4, offset = 0, fixed_abs, tag = 'sflag constant byte address 0x0 - dummy sync flag']
  #allocation34 [shape = 's32[]', space=sflag, size = 0x4, offset = 0, fixed_abs, tag = 'sflag constant byte address 0x0 - dummy sync flag']
  #allocation35 [shape = 's32[]', space=sflag, size = 0x4, offset = 0, fixed_abs, tag = 'sflag constant byte address 0x0 - dummy sync flag']
  #allocation36 [shape = 's32[]', space=sflag, size = 0x4, offset = 0, fixed_abs, tag = 'sflag constant byte address 0x0 - dummy sync flag']
  #allocation37 [shape = 's32[]', space=sflag, size = 0x4, offset = 0, fixed_abs, tag = 'sflag constant byte address 0x0 - dummy sync flag']
  #allocation38 [shape = 's32[]', space=sflag, size = 0x4, offset = 0, fixed_abs, tag = 'sflag constant byte address 0x0 - dummy sync flag']
  #allocation39 [shape = 's32[]', space=sflag, size = 0x4, offset = 0, fixed_abs, tag = 'sflag constant byte address 0x0 - dummy sync flag']
  #allocation40 [shape = 's32[]', space=sflag, size = 0x4, offset = 0, fixed_abs, tag = 'sflag constant byte address 0x0 - dummy sync flag']
  #allocation41 [shape = 's32[]', space=sflag, size = 0x4, offset = 0, fixed_abs, tag = 'sflag constant byte address 0x0 - dummy sync flag']
  #allocation42 [shape = 's32[]', space=sflag, size = 0x4, offset = 0, fixed_abs, tag = 'sflag constant byte address 0x0 - dummy sync flag']
  #allocation43 [shape = 's32[]', space=sflag, size = 0x4, offset = 0, fixed_abs, tag = 'sflag constant byte address 0x0 - dummy sync flag']
  #allocation44 [shape = 's32[]', space=sflag, size = 0x4, offset = 0, fixed_abs, tag = 'sflag constant byte address 0x0 - dummy sync flag']
  #allocation45 [shape = 's32[]', space=sflag, size = 0x4, offset = 0, fixed_abs, tag = 'sflag constant byte address 0x0 - dummy sync flag']
  #allocation46 [shape = 's32[]', space=sflag, size = 0x4, offset = 0, fixed_abs, tag = 'sflag constant byte address 0x0 - dummy sync flag']
  #allocation47 [shape = 's32[]', space=sflag, size = 0x4, offset = 0, fixed_abs, tag = 'sflag constant byte address 0x0 - dummy sync flag']
  #allocation48 [shape = 's32[]', space=sflag, size = 0x4, offset = 0, fixed_abs, tag = 'sflag constant byte address 0x0 - dummy sync flag']
  #allocation49 [shape = 's32[]', space=sflag, size = 0x4, offset = 0, fixed_abs, tag = 'sflag constant byte address 0x0 - dummy sync flag']
  #allocation50 [shape = 's32[]', space=sflag, size = 0x4, offset = 0, fixed_abs, tag = 'sflag constant byte address 0x0 - dummy sync flag']
  #allocation51 [shape = 's32[]', space=sflag, size = 0x4, offset = 0, fixed_abs, tag = 'sflag constant byte address 0x0 - dummy sync flag']
  #allocation52 [shape = 's32[]', space=sflag, size = 0x4, offset = 0, fixed_abs, tag = 'sflag constant byte address 0x0 - dummy sync flag']
  #allocation53 [shape = 's32[]', space=sflag, size = 0x4, offset = 0, fixed_abs, tag = 'sflag constant byte address 0x0 - dummy sync flag']
  #allocation54 [shape = 's32[]', space=sflag, size = 0x4, offset = 0, fixed_abs, tag = 'sflag constant byte address 0x0 - dummy sync flag']
  #allocation55 [shape = 's32[]', space=sflag, size = 0x4, offset = 0, fixed_abs, tag = 'sflag constant byte address 0x0 - dummy sync flag']
  #allocation56 [shape = 's32[]', space=sflag, size = 0x4, offset = 0, fixed_abs, tag = 'sflag constant byte address 0x0 - dummy sync flag']
  #allocation57 [shape = 's32[]', space=sflag, size = 0x4, offset = 0, fixed_abs, tag = 'sflag constant byte address 0x0 - dummy sync flag']
  #allocation58 [shape = 's32[]', space=sflag, size = 0x4, offset = 0, fixed_abs, tag = 'sflag constant byte address 0x0 - dummy sync flag']
  #allocation59 [shape = 's32[]', space=sflag, size = 0x4, offset = 0, fixed_abs, tag = 'sflag constant byte address 0x0 - dummy sync flag']
  #allocation60 [shape = 's32[]', space=sflag, size = 0x4, offset = 0, fixed_abs, tag = 'sflag constant byte address 0x0 - dummy sync flag']
  #allocation61 [shape = 's32[]', space=sflag, size = 0x4, offset = 0, fixed_abs, tag = 'sflag constant byte address 0x0 - dummy sync flag']
  #allocation62 [shape = 's32[]', space=sflag, size = 0x4, offset = 0, fixed_abs, tag = 'sflag constant byte address 0x0 - dummy sync flag']
  #allocation63 [shape = 's32[]', space=sflag, size = 0x4, offset = 0, fixed_abs, tag = 'sflag constant byte address 0x0 - dummy sync flag']
  #allocation64 [shape = 's32[]', space=sflag, size = 0x4, offset = 0, fixed_abs, tag = 'sflag constant byte address 0x0 - dummy sync flag']
  #allocation65 [shape = 's32[]', space=sflag, size = 0x4, offset = 0, fixed_abs, tag = 'sflag constant byte address 0x0 - dummy sync flag']
  #allocation66 [shape = 's32[]', space=sflag, size = 0x4, offset = 0, fixed_abs, tag = 'sflag constant byte address 0x0 - dummy sync flag']
  #allocation67 [shape = 's32[]', space=sflag, size = 0x4, offset = 0, fixed_abs, tag = 'sflag constant byte address 0x0 - dummy sync flag']
  #allocation68 [shape = 's32[]', space=sflag, size = 0x4, offset = 0, fixed_abs, tag = 'sflag constant byte address 0x0 - dummy sync flag']
  #allocation69 [shape = 's32[]', space=sflag, size = 0x4, offset = 0, fixed_abs, tag = 'sflag constant byte address 0x0 - dummy sync flag']
  #allocation70 [shape = 's32[]', space=sflag, size = 0x4, offset = 0, fixed_abs, tag = 'sflag constant byte address 0x0 - dummy sync flag']
  #allocation71 [shape = 's32[]', space=sflag, size = 0x4, offset = 0, fixed_abs, tag = 'sflag constant byte address 0x0 - dummy sync flag']
  #allocation72 [shape = 's32[]', space=sflag, size = 0x4, offset = 0, fixed_abs, tag = 'sflag constant byte address 0x0 - dummy sync flag']
  #allocation73 [shape = 's32[]', space=sflag, size = 0x4, offset = 0, fixed_abs, tag = 'sflag constant byte address 0x0 - dummy sync flag']
  #allocation74 [shape = 's32[]', space=sflag, size = 0x4, offset = 0, fixed_abs, tag = 'sflag constant byte address 0x0 - dummy sync flag']
  #allocation75 [shape = 's32[]', space=sflag, size = 0x4, offset = 0, fixed_abs, tag = 'sflag constant byte address 0x0 - dummy sync flag']
  #allocation76 [shape = 's32[]', space=sflag, size = 0x4, offset = 0, fixed_abs, tag = 'sflag constant byte address 0x0 - dummy sync flag']
  #allocation77 [shape = 's32[]', space=sflag, size = 0x4, offset = 0, fixed_abs, tag = 'sflag constant byte address 0x0 - dummy sync flag']
  #allocation78 [shape = 's32[]', space=sflag, size = 0x4, offset = 0, fixed_abs, tag = 'sflag constant byte address 0x0 - dummy sync flag']
  #allocation79 [shape = 's32[]', space=sflag, size = 0x4, offset = 0, fixed_abs, tag = 'sflag constant byte address 0x0 - dummy sync flag']
  #allocation80 [shape = 's32[]', space=sflag, size = 0x4, offset = 0, fixed_abs, tag = 'sflag constant byte address 0x0 - dummy sync flag']
  #allocation81 [shape = 's32[]', space=sflag, size = 0x4, offset = 0, fixed_abs, tag = 'sflag constant byte address 0x0 - dummy sync flag']
  #allocation82 [shape = 's32[]', space=sflag, size = 0x4, offset = 0, fixed_abs, tag = 'sflag constant byte address 0x0 - dummy sync flag']
  #allocation83 [shape = 's32[]', space=sflag, size = 0x4, offset = 0, fixed_abs, tag = 'sflag constant byte address 0x0 - dummy sync flag']
  #allocation84 [shape = 's32[]', space=sflag, size = 0x4, offset = 0, fixed_abs, tag = 'sflag constant byte address 0x0 - dummy sync flag']
  #allocation85 [shape = 's32[]', space=sflag, size = 0x4, offset = 0, fixed_abs, tag = 'sflag constant byte address 0x0 - dummy sync flag']
  #allocation86 [shape = 's32[]', space=sflag, size = 0x4, offset = 0, fixed_abs, tag = 'sflag constant byte address 0x0 - dummy sync flag']
  #allocation87 [shape = 's32[]', space=sflag, size = 0x4, offset = 0, fixed_abs, tag = 'sflag constant byte address 0x0 - dummy sync flag']
  #allocation88 [shape = 's32[]', space=sflag, size = 0x4, offset = 0, fixed_abs, tag = 'sflag constant byte address 0x0 - dummy sync flag']
  #allocation89 [shape = 's32[]', space=sflag, size = 0x4, offset = 0, fixed_abs, tag = 'sflag constant byte address 0x0 - dummy sync flag']
  #allocation90 [shape = 's32[]', space=sflag, size = 0x4, offset = 0, fixed_abs, tag = 'sflag constant byte address 0x0 - dummy sync flag']
  #allocation91 [shape = 's32[]', space=sflag, size = 0x4, offset = 0, fixed_abs, tag = 'sflag constant byte address 0x0 - dummy sync flag']
  #allocation92 [shape = 's32[]', space=sflag, size = 0x4, offset = 0, fixed_abs, tag = 'sflag constant byte address 0x0 - dummy sync flag']
  #allocation93 [shape = 's32[]', space=sflag, size = 0x4, offset = 0, fixed_abs, tag = 'sflag constant byte address 0x0 - dummy sync flag']
  #allocation94 [shape = 's32[]', space=sflag, size = 0x4, offset = 0, fixed_abs, tag = 'sflag constant byte address 0x0 - dummy sync flag']
  #allocation95 [shape = 's32[]', space=sflag, size = 0x4, offset = 0, fixed_abs, tag = 'sflag constant byte address 0x0 - dummy sync flag']
  #allocation96 [shape = 's32[]', space=sflag, size = 0x4, offset = 0, fixed_abs, tag = 'sflag constant byte address 0x0 - dummy sync flag']
  #allocation97 [shape = 's32[]', space=sflag, size = 0x4, offset = 0, fixed_abs, tag = 'sflag constant byte address 0x0 - dummy sync flag']
  #allocation98 [shape = 's32[]', space=sflag, size = 0x4, offset = 0, fixed_abs, tag = 'sflag constant byte address 0x0 - dummy sync flag']
  #allocation99 [shape = 's32[]', space=sflag, size = 0x4, offset = 0, fixed_abs, tag = 'sflag constant byte address 0x0 - dummy sync flag']
  #allocation100 [shape = 's32[]', space=sflag, size = 0x4, offset = 0, fixed_abs, tag = 'sflag constant byte address 0x0 - dummy sync flag']
  #allocation101 [shape = 's32[]', space=sflag, size = 0x4, offset = 0, fixed_abs, tag = 'sflag constant byte address 0x0 - dummy sync flag']
  #allocation102 [shape = 's32[]', space=sflag, size = 0x4, offset = 0, fixed_abs, tag = 'sflag constant byte address 0x0 - dummy sync flag']
  #allocation103 [shape = 's32[]', space=sflag, size = 0x4, offset = 0, fixed_abs, tag = 'sflag constant byte address 0x0 - dummy sync flag']
  #allocation104 [shape = 's32[]', space=sflag, size = 0x4, offset = 0, fixed_abs, tag = 'sflag constant byte address 0x0 - dummy sync flag']
  #allocation105 [shape = 's32[]', space=sflag, size = 0x4, offset = 0, fixed_abs, tag = 'sflag constant byte address 0x0 - dummy sync flag']
  #allocation106 [shape = 's32[]', space=sflag, size = 0x4, offset = 0, fixed_abs, tag = 'sflag constant byte address 0x0 - dummy sync flag']
  #allocation107 [shape = 's32[]', space=sflag, size = 0x4, offset = 0, fixed_abs, tag = 'sflag constant byte address 0x0 - dummy sync flag']
  #allocation108 [shape = 's32[]', space=sflag, size = 0x4, offset = 0, fixed_abs, tag = 'sflag constant byte address 0x0 - dummy sync flag']
  #allocation109 [shape = 's32[]', space=sflag, size = 0x4, offset = 0, fixed_abs, tag = 'sflag constant byte address 0x0 - dummy sync flag']
  #allocation110 [shape = 's32[]', space=sflag, size = 0x4, offset = 0, fixed_abs, tag = 'sflag constant byte address 0x0 - dummy sync flag']
  #allocation111 [shape = 's32[]', space=sflag, size = 0x4, offset = 0, fixed_abs, tag = 'sflag constant byte address 0x0 - dummy sync flag']
  #allocation112 [shape = 's32[]', space=sflag, size = 0x4, offset = 0, fixed_abs, tag = 'sflag constant byte address 0x0 - dummy sync flag']
  #allocation113 [shape = 's32[]', space=sflag, size = 0x4, offset = 0, fixed_abs, tag = 'sflag constant byte address 0x0 - dummy sync flag']
  #allocation114 [shape = 's32[]', space=sflag, size = 0x4, offset = 0, fixed_abs, tag = 'sflag constant byte address 0x0 - dummy sync flag']
  #allocation115 [shape = 's32[]', space=sflag, size = 0x4, offset = 0, fixed_abs, tag = 'sflag constant byte address 0x0 - dummy sync flag']
  #allocation116 [shape = 's32[]', space=sflag, size = 0x4, offset = 0, fixed_abs, tag = 'sflag constant byte address 0x0 - dummy sync flag']
  #allocation117 [shape = 's32[]', space=sflag, size = 0x4, offset = 0, fixed_abs, tag = 'sflag constant byte address 0x0 - dummy sync flag']
  #allocation118 [shape = 's32[]', space=sflag, size = 0x4, offset = 0, fixed_abs, tag = 'sflag constant byte address 0x0 - dummy sync flag']
  #allocation119 [shape = 's32[]', space=sflag, size = 0x4, offset = 0, fixed_abs, tag = 'sflag constant byte address 0x0 - dummy sync flag']
  #allocation120 [shape = 's32[]', space=sflag, size = 0x4, offset = 0, fixed_abs, tag = 'sflag constant byte address 0x0 - dummy sync flag']
  #allocation121 [shape = 's32[]', space=sflag, size = 0x4, offset = 0, fixed_abs, tag = 'sflag constant byte address 0x0 - dummy sync flag']
  #allocation122 [shape = 's32[]', space=sflag, size = 0x4, offset = 0, fixed_abs, tag = 'sflag constant byte address 0x0 - dummy sync flag']
  #allocation123 [shape = 's32[]', space=sflag, size = 0x4, offset = 0, fixed_abs, tag = 'sflag constant byte address 0x0 - dummy sync flag']
  #allocation124 [shape = 's32[]', space=sflag, size = 0x4, offset = 0, fixed_abs, tag = 'sflag constant byte address 0x0 - dummy sync flag']
  #allocation125 [shape = 's32[]', space=sflag, size = 0x4, offset = 0, fixed_abs, tag = 'sflag constant byte address 0x0 - dummy sync flag']
  #allocation126 [shape = 's32[]', space=sflag, size = 0x4, offset = 0, fixed_abs, tag = 'sflag constant byte address 0x0 - dummy sync flag']
  #allocation127 [shape = 's32[]', space=sflag, size = 0x4, offset = 0, fixed_abs, tag = 'sflag constant byte address 0x0 - dummy sync flag']
  #allocation128 [shape = 's32[]', space=sflag, size = 0x4, offset = 0, fixed_abs, tag = 'sflag constant byte address 0x0 - dummy sync flag']
  #allocation129 [shape = 's32[]', space=sflag, size = 0x4, offset = 0, fixed_abs, tag = 'sflag constant byte address 0x0 - dummy sync flag']
  #allocation130 [shape = 's32[]', space=sflag, size = 0x4, offset = 0, fixed_abs, tag = 'sflag constant byte address 0x0 - dummy sync flag']
  #allocation131 [shape = 's32[]', space=sflag, size = 0x4, offset = 0, fixed_abs, tag = 'sflag constant byte address 0x0 - dummy sync flag']
  #allocation132 [shape = 's32[]', space=sflag, size = 0x4, offset = 0, fixed_abs, tag = 'sflag constant byte address 0x0 - dummy sync flag']
  #allocation133 [shape = 's32[]', space=sflag, size = 0x4, offset = 0, fixed_abs, tag = 'sflag constant byte address 0x0 - dummy sync flag']
  #allocation134 [shape = 's32[]', space=sflag, size = 0x4, offset = 0, fixed_abs, tag = 'sflag constant byte address 0x0 - dummy sync flag']
  #allocation135 [shape = 's32[]', space=sflag, size = 0x4, offset = 0, fixed_abs, tag = 'sflag constant byte address 0x0 - dummy sync flag']
  #allocation136 [shape = 's32[]', space=sflag, size = 0x4, offset = 0, fixed_abs, tag = 'sflag constant byte address 0x0 - dummy sync flag']
  #allocation137 [shape = 's32[]', space=sflag, size = 0x4, offset = 0, fixed_abs, tag = 'sflag constant byte address 0x0 - dummy sync flag']
  #allocation138 [shape = 's32[]', space=sflag, size = 0x4, offset = 0, fixed_abs, tag = 'sflag constant byte address 0x0 - dummy sync flag']
  #allocation139 [shape = 's32[]', space=sflag, size = 0x4, offset = 0, fixed_abs, tag = 'sflag constant byte address 0x0 - dummy sync flag']
  #allocation140 [shape = 's32[]', space=sflag, size = 0x4, offset = 0, fixed_abs, tag = 'sflag constant byte address 0x0 - dummy sync flag']
  #allocation141 [shape = 's32[]', space=sflag, size = 0x4, offset = 0, fixed_abs, tag = 'sflag constant byte address 0x0 - dummy sync flag']
  #allocation142 [shape = 's32[]', space=sflag, size = 0x4, offset = 0, fixed_abs, tag = 'sflag constant byte address 0x0 - dummy sync flag']
  #allocation143 [shape = 's32[]', space=sflag, size = 0x4, offset = 0, fixed_abs, tag = 'sflag constant byte address 0x0 - dummy sync flag']
  #allocation144 [shape = 's32[]', space=sflag, size = 0x4, offset = 0, fixed_abs, tag = 'sflag constant byte address 0x0 - dummy sync flag']
  #allocation145 [shape = 's32[]', space=sflag, size = 0x4, offset = 0, fixed_abs, tag = 'sflag constant byte address 0x0 - dummy sync flag']
  #allocation146 [shape = 's32[]', space=sflag, size = 0x4, offset = 0, fixed_abs, tag = 'sflag constant byte address 0x0 - dummy sync flag']
  #allocation147 [shape = 's32[]', space=sflag, size = 0x4, offset = 0, fixed_abs, tag = 'sflag constant byte address 0x0 - dummy sync flag']
  #allocation148 [shape = 's32[]', space=sflag, size = 0x4, offset = 0, fixed_abs, tag = 'sflag constant byte address 0x0 - dummy sync flag']
  #allocation149 [shape = 's32[]', space=sflag, size = 0x4, offset = 0, fixed_abs, tag = 'sflag constant byte address 0x0 - dummy sync flag']
  #allocation150 [shape = 's32[]', space=sflag, size = 0x4, offset = 0, fixed_abs, tag = 'sflag constant byte address 0x0 - dummy sync flag']
  #allocation151 [shape = 's32[]', space=sflag, size = 0x4, offset = 0, fixed_abs, tag = 'sflag constant byte address 0x0 - dummy sync flag']
  #allocation152 [shape = 's32[]', space=sflag, size = 0x4, offset = 0, fixed_abs, tag = 'sflag constant byte address 0x0 - dummy sync flag']
  #allocation153 [shape = 's32[]', space=sflag, size = 0x4, offset = 0, fixed_abs, tag = 'sflag constant byte address 0x0 - dummy sync flag']
  #allocation154 [shape = 's32[]', space=sflag, size = 0x4, offset = 0, fixed_abs, tag = 'sflag constant byte address 0x0 - dummy sync flag']
  #allocation155 [shape = 's32[]', space=sflag, size = 0x4, offset = 0, fixed_abs, tag = 'sflag constant byte address 0x0 - dummy sync flag']
  #allocation156 [shape = 's32[]', space=sflag, size = 0x4, offset = 0, fixed_abs, tag = 'sflag constant byte address 0x0 - dummy sync flag']
  #allocation157 [shape = 's32[]', space=sflag, size = 0x4, offset = 0, fixed_abs, tag = 'sflag constant byte address 0x0 - dummy sync flag']
  #allocation158 [shape = 's32[]', space=sflag, size = 0x4, offset = 0, fixed_abs, tag = 'sflag constant byte address 0x0 - dummy sync flag']
  #allocation159 [shape = 's32[]', space=sflag, size = 0x4, offset = 0, fixed_abs, tag = 'sflag constant byte address 0x0 - dummy sync flag']
  #allocation160 [shape = 's32[]', space=sflag, size = 0x4, offset = 0, fixed_abs, tag = 'sflag constant byte address 0x0 - dummy sync flag']
  #allocation161 [shape = 's32[]', space=sflag, size = 0x4, offset = 0, fixed_abs, tag = 'sflag constant byte address 0x0 - dummy sync flag']
  #allocation162 [shape = 's32[]', space=sflag, size = 0x4, offset = 0, fixed_abs, tag = 'sflag constant byte address 0x0 - dummy sync flag']
  #allocation163 [shape = 's32[]', space=sflag, size = 0x4, offset = 0, fixed_abs, tag = 'sflag constant byte address 0x0 - dummy sync flag']
  #allocation164 [shape = 's32[]', space=sflag, size = 0x4, offset = 0, fixed_abs, tag = 'sflag constant byte address 0x0 - dummy sync flag']
  #allocation165 [shape = 's32[]', space=sflag, size = 0x4, offset = 0, fixed_abs, tag = 'sflag constant byte address 0x0 - dummy sync flag']
  #allocation166 [shape = 's32[]', space=sflag, size = 0x4, offset = 0, fixed_abs, tag = 'sflag constant byte address 0x0 - dummy sync flag']
  #allocation167 [shape = 's32[]', space=sflag, size = 0x4, offset = 0, fixed_abs, tag = 'sflag constant byte address 0x0 - dummy sync flag']
  #allocation168 [shape = 's32[]', space=sflag, size = 0x4, offset = 0, fixed_abs, tag = 'sflag constant byte address 0x0 - dummy sync flag']
  #allocation169 [shape = 's32[]', space=sflag, size = 0x4, offset = 0, fixed_abs, tag = 'sflag constant byte address 0x0 - dummy sync flag']
  #allocation170 [shape = 's32[]', space=sflag, size = 0x4, offset = 0, fixed_abs, tag = 'sflag constant byte address 0x0 - dummy sync flag']
  #allocation171 [shape = 's32[]', space=sflag, size = 0x4, offset = 0, fixed_abs, tag = 'sflag constant byte address 0x0 - dummy sync flag']
  #allocation172 [shape = 's32[]', space=sflag, size = 0x4, offset = 0, fixed_abs, tag = 'sflag constant byte address 0x0 - dummy sync flag']
  #allocation173 [shape = 's32[]', space=sflag, size = 0x4, offset = 0, fixed_abs, tag = 'sflag constant byte address 0x0 - dummy sync flag']
  #allocation174 [shape = 's32[]', space=sflag, size = 0x4, offset = 0, fixed_abs, tag = 'sflag constant byte address 0x0 - dummy sync flag']
  #allocation175 [shape = 's32[]', space=sflag, size = 0x4, offset = 0, fixed_abs, tag = 'sflag constant byte address 0x0 - dummy sync flag']
  #allocation176 [shape = 's32[]', space=sflag, size = 0x4, offset = 0, fixed_abs, tag = 'sflag constant byte address 0x0 - dummy sync flag']
  #allocation177 [shape = 's32[]', space=sflag, size = 0x4, offset = 0, fixed_abs, tag = 'sflag constant byte address 0x0 - dummy sync flag']
  #allocation178 [shape = 's32[]', space=sflag, size = 0x4, offset = 0, fixed_abs, tag = 'sflag constant byte address 0x0 - dummy sync flag']
  #allocation179 [shape = 's32[]', space=sflag, size = 0x4, offset = 0, fixed_abs, tag = 'sflag constant byte address 0x0 - dummy sync flag']
  #allocation180 [shape = 's32[]', space=sflag, size = 0x4, offset = 0, fixed_abs, tag = 'sflag constant byte address 0x0 - dummy sync flag']
  #allocation181 [shape = 's32[]', space=sflag, size = 0x4, offset = 0, fixed_abs, tag = 'sflag constant byte address 0x0 - dummy sync flag']
  #allocation182 [shape = 's32[]', space=sflag, size = 0x4, offset = 0, fixed_abs, tag = 'sflag constant byte address 0x0 - dummy sync flag']
  #allocation183 [shape = 's32[]', space=sflag, size = 0x4, offset = 0, fixed_abs, tag = 'sflag constant byte address 0x0 - dummy sync flag']
  #allocation184 [shape = 's32[]', space=sflag, size = 0x4, offset = 0, fixed_abs, tag = 'sflag constant byte address 0x0 - dummy sync flag']
  #allocation185 [shape = 's32[]', space=sflag, size = 0x4, offset = 0, fixed_abs, tag = 'sflag constant byte address 0x0 - dummy sync flag']
  #allocation186 [shape = 's32[]', space=sflag, size = 0x4, offset = 0, fixed_abs, tag = 'sflag constant byte address 0x0 - dummy sync flag']
  #allocation187 [shape = 's32[]', space=sflag, size = 0x4, offset = 0, fixed_abs, tag = 'sflag constant byte address 0x0 - dummy sync flag']
  #allocation188 [shape = 's32[]', space=sflag, size = 0x4, offset = 0, fixed_abs, tag = 'sflag constant byte address 0x0 - dummy sync flag']
  #allocation189 [shape = 's32[]', space=sflag, size = 0x4, offset = 0, fixed_abs, tag = 'sflag constant byte address 0x0 - dummy sync flag']
  #allocation190 [shape = 's32[]', space=sflag, size = 0x4, offset = 0, fixed_abs, tag = 'sflag constant byte address 0x0 - dummy sync flag']
  #allocation191 [shape = 's32[]', space=sflag, size = 0x4, offset = 0, fixed_abs, tag = 'sflag constant byte address 0x0 - dummy sync flag']
  #allocation192 [shape = 's32[]', space=sflag, size = 0x4, offset = 0, fixed_abs, tag = 'sflag constant byte address 0x0 - dummy sync flag']
  #allocation193 [shape = 's32[]', space=sflag, size = 0x4, offset = 0, fixed_abs, tag = 'sflag constant byte address 0x0 - dummy sync flag']
  #allocation194 [shape = 's32[]', space=sflag, size = 0x4, offset = 0, fixed_abs, tag = 'sflag constant byte address 0x0 - dummy sync flag']
  #allocation195 [shape = 's32[]', space=sflag, size = 0x4, offset = 0, fixed_abs, tag = 'sflag constant byte address 0x0 - dummy sync flag']
  #allocation196 [shape = 's32[]', space=sflag, size = 0x4, offset = 0, fixed_abs, tag = 'sflag constant byte address 0x0 - dummy sync flag']
  #allocation197 [shape = 's32[]', space=sflag, size = 0x4, offset = 0, fixed_abs, tag = 'sflag constant byte address 0x0 - dummy sync flag']
  #allocation198 [shape = 's32[]', space=sflag, size = 0x4, offset = 0, fixed_abs, tag = 'sflag constant byte address 0x0 - dummy sync flag']
  #allocation199 [shape = 's32[]', space=sflag, size = 0x4, offset = 0, fixed_abs, tag = 'sflag constant byte address 0x0 - dummy sync flag']
  #allocation200 [shape = 's32[]', space=sflag, size = 0x4, offset = 0, fixed_abs, tag = 'sflag constant byte address 0x0 - dummy sync flag']
  #allocation201 [shape = 's32[]', space=sflag, size = 0x4, offset = 0, fixed_abs, tag = 'sflag constant byte address 0x0 - dummy sync flag']
  #allocation202 [shape = 's32[]', space=sflag, size = 0x4, offset = 0, fixed_abs, tag = 'sflag constant byte address 0x0 - dummy sync flag']
  #allocation203 [shape = 's32[]', space=sflag, size = 0x4, offset = 0, fixed_abs, tag = 'sflag constant byte address 0x0 - dummy sync flag']
  #allocation204 [shape = 's32[]', space=sflag, size = 0x4, offset = 0, fixed_abs, tag = 'sflag constant byte address 0x0 - dummy sync flag']
  #allocation205 [shape = 's32[]', space=sflag, size = 0x4, offset = 0, fixed_abs, tag = 'sflag constant byte address 0x0 - dummy sync flag']
  #allocation206 [shape = 's32[]', space=sflag, size = 0x4, offset = 0, fixed_abs, tag = 'sflag constant byte address 0x0 - dummy sync flag']
  #allocation207 [shape = 's32[]', space=sflag, size = 0x4, offset = 0, fixed_abs, tag = 'sflag constant byte address 0x0 - dummy sync flag']
  #allocation208 [shape = 's32[]', space=sflag, size = 0x4, offset = 0, fixed_abs, tag = 'sflag constant byte address 0x0 - dummy sync flag']
  #allocation209 [shape = 's32[]', space=sflag, size = 0x4, offset = 0, fixed_abs, tag = 'sflag constant byte address 0x0 - dummy sync flag']
  #allocation210 [shape = 's32[]', space=sflag, size = 0x4, offset = 0, fixed_abs, tag = 'sflag constant byte address 0x0 - dummy sync flag']
  #allocation211 [shape = 's32[]', space=sflag, size = 0x4, offset = 0, fixed_abs, tag = 'sflag constant byte address 0x0 - dummy sync flag']
  #allocation212 [shape = 's32[]', space=sflag, size = 0x4, offset = 0, fixed_abs, tag = 'sflag constant byte address 0x0 - dummy sync flag']
  #allocation213 [shape = 's32[]', space=sflag, size = 0x4, offset = 0, fixed_abs, tag = 'sflag constant byte address 0x0 - dummy sync flag']
  #allocation214 [shape = 's32[]', space=sflag, size = 0x4, offset = 0, fixed_abs, tag = 'sflag constant byte address 0x0 - dummy sync flag']
  #allocation215 [shape = 's32[]', space=sflag, size = 0x4, offset = 0, fixed_abs, tag = 'sflag constant byte address 0x0 - dummy sync flag']
  #allocation216 [shape = 's32[]', space=sflag, size = 0x4, offset = 0, fixed_abs, tag = 'sflag constant byte address 0x0 - dummy sync flag']
  #allocation217 [shape = 's32[]', space=sflag, size = 0x4, offset = 0, fixed_abs, tag = 'sflag constant byte address 0x0 - dummy sync flag']
  #allocation218 [shape = 's32[]', space=sflag, size = 0x4, offset = 0, fixed_abs, tag = 'sflag constant byte address 0x0 - dummy sync flag']
  #allocation219 [shape = 's32[]', space=sflag, size = 0x4, offset = 0, fixed_abs, tag = 'sflag constant byte address 0x0 - dummy sync flag']
  #allocation220 [shape = 's32[]', space=sflag, size = 0x4, offset = 0, fixed_abs, tag = 'sflag constant byte address 0x0 - dummy sync flag']
  #allocation221 [shape = 's32[]', space=sflag, size = 0x4, offset = 0, fixed_abs, tag = 'sflag constant byte address 0x0 - dummy sync flag']
  #allocation222 [shape = 's32[]', space=sflag, size = 0x4, offset = 0, fixed_abs, tag = 'sflag constant byte address 0x0 - dummy sync flag']
  #allocation223 [shape = 's32[]', space=sflag, size = 0x4, offset = 0, fixed_abs, tag = 'sflag constant byte address 0x0 - dummy sync flag']
  #allocation224 [shape = 's32[]', space=sflag, size = 0x4, offset = 0, fixed_abs, tag = 'sflag constant byte address 0x0 - dummy sync flag']
  #allocation225 [shape = 's32[]', space=sflag, size = 0x4, offset = 0, fixed_abs, tag = 'sflag constant byte address 0x0 - dummy sync flag']
  #allocation226 [shape = 's32[]', space=sflag, size = 0x4, offset = 0, fixed_abs, tag = 'sflag constant byte address 0x0 - dummy sync flag']
  #allocation227 [shape = 's32[]', space=sflag, size = 0x4, offset = 0, fixed_abs, tag = 'sflag constant byte address 0x0 - dummy sync flag']
  #allocation228 [shape = 's32[]', space=sflag, size = 0x4, offset = 0, fixed_abs, tag = 'sflag constant byte address 0x0 - dummy sync flag']
  #allocation229 [shape = 's32[]', space=sflag, size = 0x4, offset = 0, fixed_abs, tag = 'sflag constant byte address 0x0 - dummy sync flag']
  #allocation230 [shape = 's32[]', space=sflag, size = 0x4, offset = 0, fixed_abs, tag = 'sflag constant byte address 0x0 - dummy sync flag']
  #allocation231 [shape = 's32[]', space=sflag, size = 0x4, offset = 0, fixed_abs, tag = 'sflag constant byte address 0x0 - dummy sync flag']
  #allocation232 [shape = 's32[]', space=sflag, size = 0x4, offset = 0, fixed_abs, tag = 'sflag constant byte address 0x0 - dummy sync flag']
  #allocation233 [shape = 's32[]', space=sflag, size = 0x4, offset = 0, fixed_abs, tag = 'sflag constant byte address 0x0 - dummy sync flag']
  #allocation234 [shape = 's32[]', space=sflag, size = 0x4, offset = 0, fixed_abs, tag = 'sflag constant byte address 0x0 - dummy sync flag']
  #allocation235 [shape = 's32[]', space=sflag, size = 0x4, offset = 0, fixed_abs, tag = 'sflag constant byte address 0x0 - dummy sync flag']
  #allocation236 [shape = 's32[]', space=sflag, size = 0x4, offset = 0, fixed_abs, tag = 'sflag constant byte address 0x0 - dummy sync flag']
  #allocation237 [shape = 's32[]', space=sflag, size = 0x4, offset = 0, fixed_abs, tag = 'sflag constant byte address 0x0 - dummy sync flag']
  #allocation238 [shape = 's32[]', space=sflag, size = 0x4, offset = 0, fixed_abs, tag = 'sflag constant byte address 0x0 - dummy sync flag']
  #allocation239 [shape = 's32[]', space=sflag, size = 0x4, offset = 0, fixed_abs, tag = 'sflag constant byte address 0x0 - dummy sync flag']
  #allocation240 [shape = 's32[]', space=sflag, size = 0x4, offset = 0, fixed_abs, tag = 'sflag constant byte address 0x0 - dummy sync flag']
  #allocation241 [shape = 's32[]', space=sflag, size = 0x4, offset = 0, fixed_abs, tag = 'sflag constant byte address 0x0 - dummy sync flag']
  #allocation242 [shape = 's32[]', space=sflag, size = 0x4, offset = 0, fixed_abs, tag = 'sflag constant byte address 0x0 - dummy sync flag']
  #allocation243 [shape = 's32[]', space=sflag, size = 0x4, offset = 0, fixed_abs, tag = 'sflag constant byte address 0x0 - dummy sync flag']
  #allocation244 [shape = 's32[]', space=sflag, size = 0x4, offset = 0, fixed_abs, tag = 'sflag constant byte address 0x0 - dummy sync flag']
  #allocation245 [shape = 's32[]', space=sflag, size = 0x4, offset = 0, fixed_abs, tag = 'sflag constant byte address 0x0 - dummy sync flag']
  #allocation246 [shape = 's32[]', space=sflag, size = 0x4, offset = 0, fixed_abs, tag = 'sflag constant byte address 0x0 - dummy sync flag']
  #allocation247 [shape = 's32[]', space=sflag, size = 0x4, offset = 0, fixed_abs, tag = 'sflag constant byte address 0x0 - dummy sync flag']
  #allocation248 [shape = 's32[]', space=sflag, size = 0x4, offset = 0, fixed_abs, tag = 'sflag constant byte address 0x0 - dummy sync flag']
  #allocation249 [shape = 's32[]', space=sflag, size = 0x4, offset = 0, fixed_abs, tag = 'sflag constant byte address 0x0 - dummy sync flag']
  #allocation250 [shape = 's32[]', space=sflag, size = 0x4, offset = 0, fixed_abs, tag = 'sflag constant byte address 0x0 - dummy sync flag']
  #allocation251 [shape = 's32[]', space=sflag, size = 0x4, offset = 0, fixed_abs, tag = 'sflag constant byte address 0x0 - dummy sync flag']
  #allocation252 [shape = 's32[]', space=sflag, size = 0x4, offset = 0, fixed_abs, tag = 'sflag constant byte address 0x0 - dummy sync flag']
  #allocation253 [shape = 's32[]', space=sflag, size = 0x4, offset = 0, fixed_abs, tag = 'sflag constant byte address 0x0 - dummy sync flag']
  #allocation254 [shape = 's32[]', space=sflag, size = 0x4, offset = 0, fixed_abs, tag = 'sflag constant byte address 0x0 - dummy sync flag']
  #allocation255 [shape = 's32[]', space=sflag, size = 0x4, offset = 0, fixed_abs, tag = 'sflag constant byte address 0x0 - dummy sync flag']
  #allocation256 [shape = 's32[]', space=sflag, size = 0x4, offset = 0, fixed_abs, tag = 'sflag constant byte address 0x0 - dummy sync flag']
  #allocation257 [shape = 's32[]', space=sflag, size = 0x4, offset = 0, fixed_abs, tag = 'sflag constant byte address 0x0 - dummy sync flag']
  #allocation258 [shape = 's32[]', space=sflag, size = 0x4, offset = 0, fixed_abs, tag = 'sflag constant byte address 0x0 - dummy sync flag']
  #allocation259 [shape = 's32[]', space=sflag, size = 0x4, offset = 0, fixed_abs, tag = 'sflag constant byte address 0x0 - dummy sync flag']
  #allocation260 [shape = 's32[]', space=sflag, size = 0x4, offset = 0, fixed_abs, tag = 'sflag constant byte address 0x0 - dummy sync flag']
  #allocation261 [shape = 's32[]', space=sflag, size = 0x4, offset = 0, fixed_abs, tag = 'sflag constant byte address 0x0 - dummy sync flag']
  #allocation262 [shape = 's32[]', space=sflag, size = 0x4, offset = 0, fixed_abs, tag = 'sflag constant byte address 0x0 - dummy sync flag']
  #allocation263 [shape = 's32[]', space=sflag, size = 0x4, offset = 0, fixed_abs, tag = 'sflag constant byte address 0x0 - dummy sync flag']
  #allocation264 [shape = 's32[]', space=sflag, size = 0x4, offset = 0, fixed_abs, tag = 'sflag constant byte address 0x0 - dummy sync flag']
  #allocation265 [shape = 's32[]', space=sflag, size = 0x4, offset = 0, fixed_abs, tag = 'sflag constant byte address 0x0 - dummy sync flag']
  #allocation266 [shape = 's32[]', space=sflag, size = 0x4, offset = 0, fixed_abs, tag = 'sflag constant byte address 0x0 - dummy sync flag']
  #allocation267 [shape = 's32[]', space=sflag, size = 0x4, offset = 0, fixed_abs, tag = 'sflag constant byte address 0x0 - dummy sync flag']
  %s0 = inlined_call_operand.hbm [shape: s32[256], index: 0, kind: input, shape index: {}]
  %s1 = inlined_call_operand.hbm [shape: f32[128,128], index: 1, kind: input, shape index: {}]
  %s2 = inlined_call_operand.hbm [shape: f32[128,128], index: 2, kind: input, shape index: {}]
  %s3 = inlined_call_operand.hbm [shape: f32[2,128,128], index: 3, kind: output, shape index: {}]
  %s4 = sld [smem:[#allocation0]]
  $region561: #{tpu_custom_call.1} parent=0
    _
  %s6 = ssub.s32 1, %s4
  %s7 = scalar_select 0, %s6, %s4
  %s9 = sshll.u32 %s0, 4
  %s10 = int_to_ptr.hbm [resolvable:$true] %s9
  %12 = dma.hbm_to_smem %s10, 32, [#allocation5], [#allocation4]
  %14 = dma.done [#allocation4], 32
  %15 = sfence
  $region1: #{tpu_custom_call.1} parent=0
    #allocation6 [shape = 'u8[65536]{0}', space=vmem, size = 0x10000, scoped, tag = 'input window, operand 2, single buffered']
    #allocation7 [shape = 's32[2]{0}', space=sflag, size = 0x8, scoped, tag = 'scoped memory for tpu_custom_call.1']
    #allocation8 [shape = 's32[2]{0}', space=sflag, size = 0x8, scoped, tag = 'scoped memory for tpu_custom_call.1']
    #allocation9 [shape = 'u8[65536]{0}', space=vmem, size = 0x10000, scoped, tag = 'output window, operand 0']
    %16 = vsyncpa [#allocation7], 0
    %17 = vsyncpa [#allocation8], 0
    %s18 = scalar_lea.sflag [#allocation8], 1
    %19 = vsyncpa %s18, 0
    loop: start=0, step=1, limit=6
    $region2: #{tpu_custom_call.1} parent=1 // loop_pre_header
      _
    $region3: #{tpu_custom_call.1} parent=1 // loop_header
      %s21 = sphi 0, %s25
      %p22 = scmp.ge.s32.totalorder %s21, 6
      %s28 = sphi 0, %s40
      %s29 = sphi 0, %s36
      %s30 = sphi 0, %s28
      %s31 = sphi 0, %s29
      %s32 = sphi 0, %s30
      %s33 = sphi 0, %s31
      %s41 = sphi 0, %s41
      %s43 = sphi 0, %s41
      %s44 = sphi 0, %s43
      %s58 = sphi 0, %s44
      %s66 = sphi 0, %s68
      %s69 = sphi 0, %s66
      %s70 = sphi 0, %s69
      %s86 = sphi 0, %s70
    $region4: #{tpu_custom_call.1} parent=1 // loop_header_branch
      %24 = sbr.rel (%p22) target = $region8
    $region5: #{tpu_custom_call.1} parent=1 // loop_body
      %s26 = ssub.s32 %s21, 1
      %s27 = ssub.s32 %s21, 2
      %s34 = sadd.s32 1, %s29
      %p35 = scmp.ge.s32.totalorder %s34, 2
      %s36 = scalar_select %p35, 0, %s34
      %s37 = sadd.s32 1, %s28
      %s38 = scalar_select %p35, %s37, %s28
      %p39 = scmp.ge.s32.totalorder %s38, 2
      %s40 = scalar_select %p39, 0, %s38
      %s42 = sadd.s32 %s41, 1
      %p45 = scmp.eq.s32.totalorder %s21, 3
      %p46 = scmp.ne.s32.totalorder %s41, %s43
      %p47 = scmp.eq.s32.totalorder %s21, 0
      %p48 = por %p46, %p47
      %p49 = scmp.ne.s32.totalorder %s41, %s43
      %p50 = scmp.eq.s32.totalorder %s26, 3
      %p51 = por %p49, %p50
      %p52 = scmp.ne.s32.totalorder %s43, %s44
      %p53 = scmp.eq.s32.totalorder %s26, 0
      %p54 = por %p52, %p53
      %p55 = scmp.ne.s32.totalorder %s43, %s44
      %p56 = scmp.eq.s32.totalorder %s27, 3
      %p57 = por %p55, %p56
      %p59 = scmp.ne.s32.totalorder %s44, %s58
      %p60 = scmp.eq.s32.totalorder %s27, 0
      %p61 = por %p59, %p60
      %s62 = ssub.s32 %s28, %s40
      %s63 = ssub.s32 %s29, %s36
      %s64 = sor.u32 %s62, %s63
      %p65 = scmp.eq.s32.totalorder %s64, 0
      %s67 = sadd.s32 %s66, 1
      %s68 = scalar_select %p65, %s66, %s67
      %p71 = pneg %p65
      %p72 = scmp.eq.s32.totalorder %s21, 3
      %p73 = por %p71, %p72
      %p74 = scmp.ne.s32.totalorder %s66, %s69
      %p75 = scmp.eq.s32.totalorder %s21, 0
      %p76 = por %p74, %p75
      %p77 = scmp.ne.s32.totalorder %s66, %s69
      %p78 = scmp.eq.s32.totalorder %s26, 3
      %p79 = por %p77, %p78
      %p80 = scmp.ne.s32.totalorder %s69, %s70
      %p81 = scmp.eq.s32.totalorder %s26, 0
      %p82 = por %p80, %p81
      %p83 = scmp.ne.s32.totalorder %s69, %s70
      %p84 = scmp.eq.s32.totalorder %s27, 3
      %p85 = por %p83, %p84
      %p87 = scmp.ne.s32.totalorder %s70, %s86
      %p88 = scmp.eq.s32.totalorder %s27, 0
      %p89 = por %p87, %p88
      %p90 = scmp.le.s32.totalorder 1, %s21
      %p91 = scmp.lt.s32.totalorder %s21, 5
      %p92 = pnand %p90, %p91
      %p93 = pneg %p92
      // Predicated region
      $region9: #{tpu_custom_call.1} parent=5 // pred_check
        _
      $region10: #{tpu_custom_call.1} parent=5 // pred_check_branch
        %95 = sbr.rel (%p92) target = $region12
      $region11: #{tpu_custom_call.1} parent=5 // pred_region
        %s96 = ssub.s32 %s21, 1
        // Predicated region
        $region13: #{tpu_custom_call.1} parent=11 // pred_check
          %p97 = pneg %p54
        $region14: #{tpu_custom_call.1} parent=11 // pred_check_branch
          %99 = sbr.rel (%p97) target = $region16
        $region15: #{tpu_custom_call.1} parent=11 // pred_region
          %101 = vsyncadd [#allocation7], 0
          %s102 = sshll.u32 %s2, 4
          %s103 = int_to_ptr.hbm [resolvable:$true] %s102
          %s104 = sshll.u32 [#allocation6], 4
          %s105 = int_to_ptr.vmem [resolvable:$true] %s104
          %110 = dma.hbm_to_vmem [thread:$0]  %s103, 2048, %s105, [#allocation7], 128, 128, 8
        $region16: #{tpu_custom_call.1} parent=11 // pred_fallthru
          _
      $region12: #{tpu_custom_call.1} parent=5 // pred_fallthru
        _
      %p111 = scmp.lt.s32.totalorder %s21, 4
      // Predicated region
      $region17: #{tpu_custom_call.1} parent=5 // pred_check
        %p112 = pneg %p111
      $region18: #{tpu_custom_call.1} parent=5 // pred_check_branch
        %114 = sbr.rel (%p112) target = $region20
      $region19: #{tpu_custom_call.1} parent=5 // pred_region
        _
      $region20: #{tpu_custom_call.1} parent=5 // pred_fallthru
        _
      %p115 = scmp.le.s32.totalorder 1, %s21
      %p116 = scmp.lt.s32.totalorder %s21, 5
      %p117 = pnand %p115, %p116
      %p118 = pneg %p117
      // Predicated region
      $region21: #{tpu_custom_call.1} parent=5 // pred_check
        _
      $region22: #{tpu_custom_call.1} parent=5 // pred_check_branch
        %120 = sbr.rel (%p117) target = $region24
      $region23: #{tpu_custom_call.1} parent=5 // pred_region
        %s121 = ssub.s32 %s21, 1
        // Predicated region
        $region25: #{tpu_custom_call.1} parent=23 // pred_check
          %p122 = pneg %p54
        $region26: #{tpu_custom_call.1} parent=23 // pred_check_branch
          %124 = sbr.rel (%p122) target = $region28
        $region27: #{tpu_custom_call.1} parent=23 // pred_region
          %126 = dma.done [#allocation7], 2048
        $region28: #{tpu_custom_call.1} parent=23 // pred_fallthru
          _
        %p127 = pneg %p54
        %p128 = pneg %p51
        %p129 = pneg %p82
        %p130 = pneg %p79
        %s131 = sand.u32 %s69, 1
        %s132 = scalar_lea.sflag [#allocation8], %s131
        %s133 = sand.u32 %s69, 1
        %s134 = smul.addr %s133, 64
        %s135 = scalar_lea.vmem [#allocation9], %s134
        %s136 = smul.u32 8, %s31
        %p137 = scmp.lt.s32.totalorder %s31, 0
        %s138 = ssub.s32 0, %s31
        %s139 = scalar_select %p137, %s138, %s31
        %s140 = sand.u32 %s139, 1
        %s141 = ssub.s32 0, %s140
        %s142 = scalar_select %p137, %s141, %s140
        %p143 = scmp.eq.s32.totalorder %s31, 0
        // Predicated region
        $region29: #{tpu_custom_call.1} parent=23 // pred_check
          %p144 = pneg %p143
        $region30: #{tpu_custom_call.1} parent=23 // pred_check_branch
          %146 = sbr.rel (%p144) target = $region32
        $region31: #{tpu_custom_call.1} parent=23 // pred_region
          %s147 = smul.u32 %s30, 128
          %s148 = sld [smem:[#allocation5 + %s147]]
          %s149 = scalar_lea.hbm %s1, %s148
          // Predicated region
          $region33: #{tpu_custom_call.1} parent=31 // pred_check
            _
          $region34: #{tpu_custom_call.1} parent=31 // pred_check_branch
            %151 = sbr.rel target = $region36
          $region35: #{tpu_custom_call.1} parent=31 // pred_region
            %152 = sst [smem:[#allocation12]] [#allocation11]
            %153 = sst [smem:[#allocation13]] [#allocation10]
          $region36: #{tpu_custom_call.1} parent=31 // pred_fallthru
            _
          %155 = shalt.err (0)
          %s157 = sshll.u32 %s149, 4
          %s158 = int_to_ptr.hbm [resolvable:$true] %s157
          %s159 = sshll.u32 [#allocation2], 4
          %s160 = int_to_ptr.vmem [resolvable:$true] %s159
          %162 = dma.hbm_to_vmem [thread:$0]  %s158, 16, %s160, [#allocation3]
          %s163 = sadd.s32 %s147, 1
          %s164 = sld [smem:[#allocation5 + %s163]]
          %s165 = scalar_lea.hbm %s1, %s164
          %s166 = scalar_lea.vmem [#allocation2], 1
          // Predicated region
          $region37: #{tpu_custom_call.1} parent=31 // pred_check
            _
          $region38: #{tpu_custom_call.1} parent=31 // pred_check_branch
            %168 = sbr.rel target = $region40
          $region39: #{tpu_custom_call.1} parent=31 // pred_region
            %169 = sst [smem:[#allocation12]] [#allocation15]
            %170 = sst [smem:[#allocation13]] [#allocation14]
          $region40: #{tpu_custom_call.1} parent=31 // pred_fallthru
            _
          %172 = shalt.err (0)
          %s174 = sshll.u32 %s165, 4
          %s175 = int_to_ptr.hbm [resolvable:$true] %s174
          %s176 = sshll.u32 %s166, 4
          %s177 = int_to_ptr.vmem [resolvable:$true] %s176
          %179 = dma.hbm_to_vmem [thread:$0]  %s175, 16, %s177, [#allocation3]
          %s180 = sadd.s32 %s147, 2
          %s181 = sld [smem:[#allocation5 + %s180]]
          %s182 = scalar_lea.hbm %s1, %s181
          %s183 = scalar_lea.vmem [#allocation2], 2
          // Predicated region
          $region41: #{tpu_custom_call.1} parent=31 // pred_check
            _
          $region42: #{tpu_custom_call.1} parent=31 // pred_check_branch
            %185 = sbr.rel target = $region44
          $region43: #{tpu_custom_call.1} parent=31 // pred_region
            %186 = sst [smem:[#allocation12]] [#allocation17]
            %187 = sst [smem:[#allocation13]] [#allocation16]
          $region44: #{tpu_custom_call.1} parent=31 // pred_fallthru
            _
          %189 = shalt.err (0)
          %s191 = sshll.u32 %s182, 4
          %s192 = int_to_ptr.hbm [resolvable:$true] %s191
          %s193 = sshll.u32 %s183, 4
          %s194 = int_to_ptr.vmem [resolvable:$true] %s193
          %196 = dma.hbm_to_vmem [thread:$0]  %s192, 16, %s194, [#allocation3]
          %s197 = sadd.s32 %s147, 3
          %s198 = sld [smem:[#allocation5 + %s197]]
          %s199 = scalar_lea.hbm %s1, %s198
          %s200 = scalar_lea.vmem [#allocation2], 3
          // Predicated region
          $region45: #{tpu_custom_call.1} parent=31 // pred_check
            _
          $region46: #{tpu_custom_call.1} parent=31 // pred_check_branch
            %202 = sbr.rel target = $region48
          $region47: #{tpu_custom_call.1} parent=31 // pred_region
            %203 = sst [smem:[#allocation12]] [#allocation19]
            %204 = sst [smem:[#allocation13]] [#allocation18]
          $region48: #{tpu_custom_call.1} parent=31 // pred_fallthru
            _
          %206 = shalt.err (0)
          %s208 = sshll.u32 %s199, 4
          %s209 = int_to_ptr.hbm [resolvable:$true] %s208
          %s210 = sshll.u32 %s200, 4
          %s211 = int_to_ptr.vmem [resolvable:$true] %s210
          %213 = dma.hbm_to_vmem [thread:$0]  %s209, 16, %s211, [#allocation3]
          %s214 = sadd.s32 %s147, 4
          %s215 = sld [smem:[#allocation5 + %s214]]
          %s216 = scalar_lea.hbm %s1, %s215
          %s217 = scalar_lea.vmem [#allocation2], 4
          // Predicated region
          $region49: #{tpu_custom_call.1} parent=31 // pred_check
            _
          $region50: #{tpu_custom_call.1} parent=31 // pred_check_branch
            %219 = sbr.rel target = $region52
          $region51: #{tpu_custom_call.1} parent=31 // pred_region
            %220 = sst [smem:[#allocation12]] [#allocation21]
            %221 = sst [smem:[#allocation13]] [#allocation20]
          $region52: #{tpu_custom_call.1} parent=31 // pred_fallthru
            _
          %223 = shalt.err (0)
          %s225 = sshll.u32 %s216, 4
          %s226 = int_to_ptr.hbm [resolvable:$true] %s225
          %s227 = sshll.u32 %s217, 4
          %s228 = int_to_ptr.vmem [resolvable:$true] %s227
          %230 = dma.hbm_to_vmem [thread:$0]  %s226, 16, %s228, [#allocation3]
          %s231 = sadd.s32 %s147, 5
          %s232 = sld [smem:[#allocation5 + %s231]]
          %s233 = scalar_lea.hbm %s1, %s232
          %s234 = scalar_lea.vmem [#allocation2], 5
          // Predicated region
          $region53: #{tpu_custom_call.1} parent=31 // pred_check
            _
          $region54: #{tpu_custom_call.1} parent=31 // pred_check_branch
            %236 = sbr.rel target = $region56
          $region55: #{tpu_custom_call.1} parent=31 // pred_region
            %237 = sst [smem:[#allocation12]] [#allocation23]
            %238 = sst [smem:[#allocation13]] [#allocation22]
          $region56: #{tpu_custom_call.1} parent=31 // pred_fallthru
            _
          %240 = shalt.err (0)
          %s242 = sshll.u32 %s233, 4
          %s243 = int_to_ptr.hbm [resolvable:$true] %s242
          %s244 = sshll.u32 %s234, 4
          %s245 = int_to_ptr.vmem [resolvable:$true] %s244
          %247 = dma.hbm_to_vmem [thread:$0]  %s243, 16, %s245, [#allocation3]
          %s248 = sadd.s32 %s147, 6
          %s249 = sld [smem:[#allocation5 + %s248]]
          %s250 = scalar_lea.hbm %s1, %s249
          %s251 = scalar_lea.vmem [#allocation2], 6
          // Predicated region
          $region57: #{tpu_custom_call.1} parent=31 // pred_check
            _
          $region58: #{tpu_custom_call.1} parent=31 // pred_check_branch
            %253 = sbr.rel target = $region60
          $region59: #{tpu_custom_call.1} parent=31 // pred_region
            %254 = sst [smem:[#allocation12]] [#allocation25]
            %255 = sst [smem:[#allocation13]] [#allocation24]
          $region60: #{tpu_custom_call.1} parent=31 // pred_fallthru
            _
          %257 = shalt.err (0)
          %s259 = sshll.u32 %s250, 4
          %s260 = int_to_ptr.hbm [resolvable:$true] %s259
          %s261 = sshll.u32 %s251, 4
          %s262 = int_to_ptr.vmem [resolvable:$true] %s261
          %264 = dma.hbm_to_vmem [thread:$0]  %s260, 16, %s262, [#allocation3]
          %s265 = sadd.s32 %s147, 7
          %s266 = sld [smem:[#allocation5 + %s265]]
          %s267 = scalar_lea.hbm %s1, %s266
          %s268 = scalar_lea.vmem [#allocation2], 7
          // Predicated region
          $region61: #{tpu_custom_call.1} parent=31 // pred_check
            _
          $region62: #{tpu_custom_call.1} parent=31 // pred_check_branch
            %270 = sbr.rel target = $region64
          $region63: #{tpu_custom_call.1} parent=31 // pred_region
            %271 = sst [smem:[#allocation12]] [#allocation27]
            %272 = sst [smem:[#allocation13]] [#allocation26]
          $region64: #{tpu_custom_call.1} parent=31 // pred_fallthru
            _
          %274 = shalt.err (0)
          %s276 = sshll.u32 %s267, 4
          %s277 = int_to_ptr.hbm [resolvable:$true] %s276
          %s278 = sshll.u32 %s268, 4
          %s279 = int_to_ptr.vmem [resolvable:$true] %s278
          %281 = dma.hbm_to_vmem [thread:$0]  %s277, 16, %s279, [#allocation3]
          %s282 = sadd.s32 %s147, 8
          %s283 = sld [smem:[#allocation5 + %s282]]
          %s284 = scalar_lea.hbm %s1, %s283
          %s285 = scalar_lea.vmem [#allocation2], 8
          // Predicated region
          $region65: #{tpu_custom_call.1} parent=31 // pred_check
            _
          $region66: #{tpu_custom_call.1} parent=31 // pred_check_branch
            %287 = sbr.rel target = $region68
          $region67: #{tpu_custom_call.1} parent=31 // pred_region
            %288 = sst [smem:[#allocation12]] [#allocation29]
            %289 = sst [smem:[#allocation13]] [#allocation28]
          $region68: #{tpu_custom_call.1} parent=31 // pred_fallthru
            _
          %291 = shalt.err (0)
          %s293 = sshll.u32 %s284, 4
          %s294 = int_to_ptr.hbm [resolvable:$true] %s293
          %s295 = sshll.u32 %s285, 4
          %s296 = int_to_ptr.vmem [resolvable:$true] %s295
          %298 = dma.hbm_to_vmem [thread:$0]  %s294, 16, %s296, [#allocation3]
          %s299 = sadd.s32 %s147, 9
          %s300 = sld [smem:[#allocation5 + %s299]]
          %s301 = scalar_lea.hbm %s1, %s300
          %s302 = scalar_lea.vmem [#allocation2], 9
          // Predicated region
          $region69: #{tpu_custom_call.1} parent=31 // pred_check
            _
          $region70: #{tpu_custom_call.1} parent=31 // pred_check_branch
            %304 = sbr.rel target = $region72
          $region71: #{tpu_custom_call.1} parent=31 // pred_region
            %305 = sst [smem:[#allocation12]] [#allocation31]
            %306 = sst [smem:[#allocation13]] [#allocation30]
          $region72: #{tpu_custom_call.1} parent=31 // pred_fallthru
            _
          %308 = shalt.err (0)
          %s310 = sshll.u32 %s301, 4
          %s311 = int_to_ptr.hbm [resolvable:$true] %s310
          %s312 = sshll.u32 %s302, 4
          %s313 = int_to_ptr.vmem [resolvable:$true] %s312
          %315 = dma.hbm_to_vmem [thread:$0]  %s311, 16, %s313, [#allocation3]
          %s316 = sadd.s32 %s147, 10
          %s317 = sld [smem:[#allocation5 + %s316]]
          %s318 = scalar_lea.hbm %s1, %s317
          %s319 = scalar_lea.vmem [#allocation2], 10
          // Predicated region
          $region73: #{tpu_custom_call.1} parent=31 // pred_check
            _
          $region74: #{tpu_custom_call.1} parent=31 // pred_check_branch
            %321 = sbr.rel target = $region76
          $region75: #{tpu_custom_call.1} parent=31 // pred_region
            %322 = sst [smem:[#allocation12]] [#allocation33]
            %323 = sst [smem:[#allocation13]] [#allocation32]
          $region76: #{tpu_custom_call.1} parent=31 // pred_fallthru
            _
          %325 = shalt.err (0)
          %s327 = sshll.u32 %s318, 4
          %s328 = int_to_ptr.hbm [resolvable:$true] %s327
          %s329 = sshll.u32 %s319, 4
          %s330 = int_to_ptr.vmem [resolvable:$true] %s329
          %332 = dma.hbm_to_vmem [thread:$0]  %s328, 16, %s330, [#allocation3]
          %s333 = sadd.s32 %s147, 11
          %s334 = sld [smem:[#allocation5 + %s333]]
          %s335 = scalar_lea.hbm %s1, %s334
          %s336 = scalar_lea.vmem [#allocation2], 11
          // Predicated region
          $region77: #{tpu_custom_call.1} parent=31 // pred_check
            _
          $region78: #{tpu_custom_call.1} parent=31 // pred_check_branch
            %338 = sbr.rel target = $region80
          $region79: #{tpu_custom_call.1} parent=31 // pred_region
            %339 = sst [smem:[#allocation12]] [#allocation35]
            %340 = sst [smem:[#allocation13]] [#allocation34]
          $region80: #{tpu_custom_call.1} parent=31 // pred_fallthru
            _
          %342 = shalt.err (0)
          %s344 = sshll.u32 %s335, 4
          %s345 = int_to_ptr.hbm [resolvable:$true] %s344
          %s346 = sshll.u32 %s336, 4
          %s347 = int_to_ptr.vmem [resolvable:$true] %s346
          %349 = dma.hbm_to_vmem [thread:$0]  %s345, 16, %s347, [#allocation3]
          %s350 = sadd.s32 %s147, 12
          %s351 = sld [smem:[#allocation5 + %s350]]
          %s352 = scalar_lea.hbm %s1, %s351
          %s353 = scalar_lea.vmem [#allocation2], 12
          // Predicated region
          $region81: #{tpu_custom_call.1} parent=31 // pred_check
            _
          $region82: #{tpu_custom_call.1} parent=31 // pred_check_branch
            %355 = sbr.rel target = $region84
          $region83: #{tpu_custom_call.1} parent=31 // pred_region
            %356 = sst [smem:[#allocation12]] [#allocation37]
            %357 = sst [smem:[#allocation13]] [#allocation36]
          $region84: #{tpu_custom_call.1} parent=31 // pred_fallthru
            _
          %359 = shalt.err (0)
          %s361 = sshll.u32 %s352, 4
          %s362 = int_to_ptr.hbm [resolvable:$true] %s361
          %s363 = sshll.u32 %s353, 4
          %s364 = int_to_ptr.vmem [resolvable:$true] %s363
          %366 = dma.hbm_to_vmem [thread:$0]  %s362, 16, %s364, [#allocation3]
          %s367 = sadd.s32 %s147, 13
          %s368 = sld [smem:[#allocation5 + %s367]]
          %s369 = scalar_lea.hbm %s1, %s368
          %s370 = scalar_lea.vmem [#allocation2], 13
          // Predicated region
          $region85: #{tpu_custom_call.1} parent=31 // pred_check
            _
          $region86: #{tpu_custom_call.1} parent=31 // pred_check_branch
            %372 = sbr.rel target = $region88
          $region87: #{tpu_custom_call.1} parent=31 // pred_region
            %373 = sst [smem:[#allocation12]] [#allocation39]
            %374 = sst [smem:[#allocation13]] [#allocation38]
          $region88: #{tpu_custom_call.1} parent=31 // pred_fallthru
            _
          %376 = shalt.err (0)
          %s378 = sshll.u32 %s369, 4
          %s379 = int_to_ptr.hbm [resolvable:$true] %s378
          %s380 = sshll.u32 %s370, 4
          %s381 = int_to_ptr.vmem [resolvable:$true] %s380
          %383 = dma.hbm_to_vmem [thread:$0]  %s379, 16, %s381, [#allocation3]
          %s384 = sadd.s32 %s147, 14
          %s385 = sld [smem:[#allocation5 + %s384]]
          %s386 = scalar_lea.hbm %s1, %s385
          %s387 = scalar_lea.vmem [#allocation2], 14
          // Predicated region
          $region89: #{tpu_custom_call.1} parent=31 // pred_check
            _
          $region90: #{tpu_custom_call.1} parent=31 // pred_check_branch
            %389 = sbr.rel target = $region92
          $region91: #{tpu_custom_call.1} parent=31 // pred_region
            %390 = sst [smem:[#allocation12]] [#allocation41]
            %391 = sst [smem:[#allocation13]] [#allocation40]
          $region92: #{tpu_custom_call.1} parent=31 // pred_fallthru
            _
          %393 = shalt.err (0)
          %s395 = sshll.u32 %s386, 4
          %s396 = int_to_ptr.hbm [resolvable:$true] %s395
          %s397 = sshll.u32 %s387, 4
          %s398 = int_to_ptr.vmem [resolvable:$true] %s397
          %400 = dma.hbm_to_vmem [thread:$0]  %s396, 16, %s398, [#allocation3]
          %s401 = sadd.s32 %s147, 15
          %s402 = sld [smem:[#allocation5 + %s401]]
          %s403 = scalar_lea.hbm %s1, %s402
          %s404 = scalar_lea.vmem [#allocation2], 15
          // Predicated region
          $region93: #{tpu_custom_call.1} parent=31 // pred_check
            _
          $region94: #{tpu_custom_call.1} parent=31 // pred_check_branch
            %406 = sbr.rel target = $region96
          $region95: #{tpu_custom_call.1} parent=31 // pred_region
            %407 = sst [smem:[#allocation12]] [#allocation43]
            %408 = sst [smem:[#allocation13]] [#allocation42]
          $region96: #{tpu_custom_call.1} parent=31 // pred_fallthru
            _
          %410 = shalt.err (0)
          %s412 = sshll.u32 %s403, 4
          %s413 = int_to_ptr.hbm [resolvable:$true] %s412
          %s414 = sshll.u32 %s404, 4
          %s415 = int_to_ptr.vmem [resolvable:$true] %s414
          %417 = dma.hbm_to_vmem [thread:$0]  %s413, 16, %s415, [#allocation3]
          %s418 = sadd.s32 %s147, 16
          %s419 = sld [smem:[#allocation5 + %s418]]
          %s420 = scalar_lea.hbm %s1, %s419
          %s421 = scalar_lea.vmem [#allocation2], 16
          // Predicated region
          $region97: #{tpu_custom_call.1} parent=31 // pred_check
            _
          $region98: #{tpu_custom_call.1} parent=31 // pred_check_branch
            %423 = sbr.rel target = $region100
          $region99: #{tpu_custom_call.1} parent=31 // pred_region
            %424 = sst [smem:[#allocation12]] [#allocation45]
            %425 = sst [smem:[#allocation13]] [#allocation44]
          $region100: #{tpu_custom_call.1} parent=31 // pred_fallthru
            _
          %427 = shalt.err (0)
          %s429 = sshll.u32 %s420, 4
          %s430 = int_to_ptr.hbm [resolvable:$true] %s429
          %s431 = sshll.u32 %s421, 4
          %s432 = int_to_ptr.vmem [resolvable:$true] %s431
          %434 = dma.hbm_to_vmem [thread:$0]  %s430, 16, %s432, [#allocation3]
          %s435 = sadd.s32 %s147, 17
          %s436 = sld [smem:[#allocation5 + %s435]]
          %s437 = scalar_lea.hbm %s1, %s436
          %s438 = scalar_lea.vmem [#allocation2], 17
          // Predicated region
          $region101: #{tpu_custom_call.1} parent=31 // pred_check
            _
          $region102: #{tpu_custom_call.1} parent=31 // pred_check_branch
            %440 = sbr.rel target = $region104
          $region103: #{tpu_custom_call.1} parent=31 // pred_region
            %441 = sst [smem:[#allocation12]] [#allocation47]
            %442 = sst [smem:[#allocation13]] [#allocation46]
          $region104: #{tpu_custom_call.1} parent=31 // pred_fallthru
            _
          %444 = shalt.err (0)
          %s446 = sshll.u32 %s437, 4
          %s447 = int_to_ptr.hbm [resolvable:$true] %s446
          %s448 = sshll.u32 %s438, 4
          %s449 = int_to_ptr.vmem [resolvable:$true] %s448
          %451 = dma.hbm_to_vmem [thread:$0]  %s447, 16, %s449, [#allocation3]
          %s452 = sadd.s32 %s147, 18
          %s453 = sld [smem:[#allocation5 + %s452]]
          %s454 = scalar_lea.hbm %s1, %s453
          %s455 = scalar_lea.vmem [#allocation2], 18
          // Predicated region
          $region105: #{tpu_custom_call.1} parent=31 // pred_check
            _
          $region106: #{tpu_custom_call.1} parent=31 // pred_check_branch
            %457 = sbr.rel target = $region108
          $region107: #{tpu_custom_call.1} parent=31 // pred_region
            %458 = sst [smem:[#allocation12]] [#allocation49]
            %459 = sst [smem:[#allocation13]] [#allocation48]
          $region108: #{tpu_custom_call.1} parent=31 // pred_fallthru
            _
          %461 = shalt.err (0)
          %s463 = sshll.u32 %s454, 4
          %s464 = int_to_ptr.hbm [resolvable:$true] %s463
          %s465 = sshll.u32 %s455, 4
          %s466 = int_to_ptr.vmem [resolvable:$true] %s465
          %468 = dma.hbm_to_vmem [thread:$0]  %s464, 16, %s466, [#allocation3]
          %s469 = sadd.s32 %s147, 19
          %s470 = sld [smem:[#allocation5 + %s469]]
          %s471 = scalar_lea.hbm %s1, %s470
          %s472 = scalar_lea.vmem [#allocation2], 19
          // Predicated region
          $region109: #{tpu_custom_call.1} parent=31 // pred_check
            _
          $region110: #{tpu_custom_call.1} parent=31 // pred_check_branch
            %474 = sbr.rel target = $region112
          $region111: #{tpu_custom_call.1} parent=31 // pred_region
            %475 = sst [smem:[#allocation12]] [#allocation51]
            %476 = sst [smem:[#allocation13]] [#allocation50]
          $region112: #{tpu_custom_call.1} parent=31 // pred_fallthru
            _
          %478 = shalt.err (0)
          %s480 = sshll.u32 %s471, 4
          %s481 = int_to_ptr.hbm [resolvable:$true] %s480
          %s482 = sshll.u32 %s472, 4
          %s483 = int_to_ptr.vmem [resolvable:$true] %s482
          %485 = dma.hbm_to_vmem [thread:$0]  %s481, 16, %s483, [#allocation3]
          %s486 = sadd.s32 %s147, 20
          %s487 = sld [smem:[#allocation5 + %s486]]
          %s488 = scalar_lea.hbm %s1, %s487
          %s489 = scalar_lea.vmem [#allocation2], 20
          // Predicated region
          $region113: #{tpu_custom_call.1} parent=31 // pred_check
            _
          $region114: #{tpu_custom_call.1} parent=31 // pred_check_branch
            %491 = sbr.rel target = $region116
          $region115: #{tpu_custom_call.1} parent=31 // pred_region
            %492 = sst [smem:[#allocation12]] [#allocation53]
            %493 = sst [smem:[#allocation13]] [#allocation52]
          $region116: #{tpu_custom_call.1} parent=31 // pred_fallthru
            _
          %495 = shalt.err (0)
          %s497 = sshll.u32 %s488, 4
          %s498 = int_to_ptr.hbm [resolvable:$true] %s497
          %s499 = sshll.u32 %s489, 4
          %s500 = int_to_ptr.vmem [resolvable:$true] %s499
          %502 = dma.hbm_to_vmem [thread:$0]  %s498, 16, %s500, [#allocation3]
          %s503 = sadd.s32 %s147, 21
          %s504 = sld [smem:[#allocation5 + %s503]]
          %s505 = scalar_lea.hbm %s1, %s504
          %s506 = scalar_lea.vmem [#allocation2], 21
          // Predicated region
          $region117: #{tpu_custom_call.1} parent=31 // pred_check
            _
          $region118: #{tpu_custom_call.1} parent=31 // pred_check_branch
            %508 = sbr.rel target = $region120
          $region119: #{tpu_custom_call.1} parent=31 // pred_region
            %509 = sst [smem:[#allocation12]] [#allocation55]
            %510 = sst [smem:[#allocation13]] [#allocation54]
          $region120: #{tpu_custom_call.1} parent=31 // pred_fallthru
            _
          %512 = shalt.err (0)
          %s514 = sshll.u32 %s505, 4
          %s515 = int_to_ptr.hbm [resolvable:$true] %s514
          %s516 = sshll.u32 %s506, 4
          %s517 = int_to_ptr.vmem [resolvable:$true] %s516
          %519 = dma.hbm_to_vmem [thread:$0]  %s515, 16, %s517, [#allocation3]
          %s520 = sadd.s32 %s147, 22
          %s521 = sld [smem:[#allocation5 + %s520]]
          %s522 = scalar_lea.hbm %s1, %s521
          %s523 = scalar_lea.vmem [#allocation2], 22
          // Predicated region
          $region121: #{tpu_custom_call.1} parent=31 // pred_check
            _
          $region122: #{tpu_custom_call.1} parent=31 // pred_check_branch
            %525 = sbr.rel target = $region124
          $region123: #{tpu_custom_call.1} parent=31 // pred_region
            %526 = sst [smem:[#allocation12]] [#allocation57]
            %527 = sst [smem:[#allocation13]] [#allocation56]
          $region124: #{tpu_custom_call.1} parent=31 // pred_fallthru
            _
          %529 = shalt.err (0)
          %s531 = sshll.u32 %s522, 4
          %s532 = int_to_ptr.hbm [resolvable:$true] %s531
          %s533 = sshll.u32 %s523, 4
          %s534 = int_to_ptr.vmem [resolvable:$true] %s533
          %536 = dma.hbm_to_vmem [thread:$0]  %s532, 16, %s534, [#allocation3]
          %s537 = sadd.s32 %s147, 23
          %s538 = sld [smem:[#allocation5 + %s537]]
          %s539 = scalar_lea.hbm %s1, %s538
          %s540 = scalar_lea.vmem [#allocation2], 23
          // Predicated region
          $region125: #{tpu_custom_call.1} parent=31 // pred_check
            _
          $region126: #{tpu_custom_call.1} parent=31 // pred_check_branch
            %542 = sbr.rel target = $region128
          $region127: #{tpu_custom_call.1} parent=31 // pred_region
            %543 = sst [smem:[#allocation12]] [#allocation59]
            %544 = sst [smem:[#allocation13]] [#allocation58]
          $region128: #{tpu_custom_call.1} parent=31 // pred_fallthru
            _
          %546 = shalt.err (0)
          %s548 = sshll.u32 %s539, 4
          %s549 = int_to_ptr.hbm [resolvable:$true] %s548
          %s550 = sshll.u32 %s540, 4
          %s551 = int_to_ptr.vmem [resolvable:$true] %s550
          %553 = dma.hbm_to_vmem [thread:$0]  %s549, 16, %s551, [#allocation3]
          %s554 = sadd.s32 %s147, 24
          %s555 = sld [smem:[#allocation5 + %s554]]
          %s556 = scalar_lea.hbm %s1, %s555
          %s557 = scalar_lea.vmem [#allocation2], 24
          // Predicated region
          $region129: #{tpu_custom_call.1} parent=31 // pred_check
            _
          $region130: #{tpu_custom_call.1} parent=31 // pred_check_branch
            %559 = sbr.rel target = $region132
          $region131: #{tpu_custom_call.1} parent=31 // pred_region
            %560 = sst [smem:[#allocation12]] [#allocation61]
            %561 = sst [smem:[#allocation13]] [#allocation60]
          $region132: #{tpu_custom_call.1} parent=31 // pred_fallthru
            _
          %563 = shalt.err (0)
          %s565 = sshll.u32 %s556, 4
          %s566 = int_to_ptr.hbm [resolvable:$true] %s565
          %s567 = sshll.u32 %s557, 4
          %s568 = int_to_ptr.vmem [resolvable:$true] %s567
          %570 = dma.hbm_to_vmem [thread:$0]  %s566, 16, %s568, [#allocation3]
          %s571 = sadd.s32 %s147, 25
          %s572 = sld [smem:[#allocation5 + %s571]]
          %s573 = scalar_lea.hbm %s1, %s572
          %s574 = scalar_lea.vmem [#allocation2], 25
          // Predicated region
          $region133: #{tpu_custom_call.1} parent=31 // pred_check
            _
          $region134: #{tpu_custom_call.1} parent=31 // pred_check_branch
            %576 = sbr.rel target = $region136
          $region135: #{tpu_custom_call.1} parent=31 // pred_region
            %577 = sst [smem:[#allocation12]] [#allocation63]
            %578 = sst [smem:[#allocation13]] [#allocation62]
          $region136: #{tpu_custom_call.1} parent=31 // pred_fallthru
            _
          %580 = shalt.err (0)
          %s582 = sshll.u32 %s573, 4
          %s583 = int_to_ptr.hbm [resolvable:$true] %s582
          %s584 = sshll.u32 %s574, 4
          %s585 = int_to_ptr.vmem [resolvable:$true] %s584
          %587 = dma.hbm_to_vmem [thread:$0]  %s583, 16, %s585, [#allocation3]
          %s588 = sadd.s32 %s147, 26
          %s589 = sld [smem:[#allocation5 + %s588]]
          %s590 = scalar_lea.hbm %s1, %s589
          %s591 = scalar_lea.vmem [#allocation2], 26
          // Predicated region
          $region137: #{tpu_custom_call.1} parent=31 // pred_check
            _
          $region138: #{tpu_custom_call.1} parent=31 // pred_check_branch
            %593 = sbr.rel target = $region140
          $region139: #{tpu_custom_call.1} parent=31 // pred_region
            %594 = sst [smem:[#allocation12]] [#allocation65]
            %595 = sst [smem:[#allocation13]] [#allocation64]
          $region140: #{tpu_custom_call.1} parent=31 // pred_fallthru
            _
          %597 = shalt.err (0)
          %s599 = sshll.u32 %s590, 4
          %s600 = int_to_ptr.hbm [resolvable:$true] %s599
          %s601 = sshll.u32 %s591, 4
          %s602 = int_to_ptr.vmem [resolvable:$true] %s601
          %604 = dma.hbm_to_vmem [thread:$0]  %s600, 16, %s602, [#allocation3]
          %s605 = sadd.s32 %s147, 27
          %s606 = sld [smem:[#allocation5 + %s605]]
          %s607 = scalar_lea.hbm %s1, %s606
          %s608 = scalar_lea.vmem [#allocation2], 27
          // Predicated region
          $region141: #{tpu_custom_call.1} parent=31 // pred_check
            _
          $region142: #{tpu_custom_call.1} parent=31 // pred_check_branch
            %610 = sbr.rel target = $region144
          $region143: #{tpu_custom_call.1} parent=31 // pred_region
            %611 = sst [smem:[#allocation12]] [#allocation67]
            %612 = sst [smem:[#allocation13]] [#allocation66]
          $region144: #{tpu_custom_call.1} parent=31 // pred_fallthru
            _
          %614 = shalt.err (0)
          %s616 = sshll.u32 %s607, 4
          %s617 = int_to_ptr.hbm [resolvable:$true] %s616
          %s618 = sshll.u32 %s608, 4
          %s619 = int_to_ptr.vmem [resolvable:$true] %s618
          %621 = dma.hbm_to_vmem [thread:$0]  %s617, 16, %s619, [#allocation3]
          %s622 = sadd.s32 %s147, 28
          %s623 = sld [smem:[#allocation5 + %s622]]
          %s624 = scalar_lea.hbm %s1, %s623
          %s625 = scalar_lea.vmem [#allocation2], 28
          // Predicated region
          $region145: #{tpu_custom_call.1} parent=31 // pred_check
            _
          $region146: #{tpu_custom_call.1} parent=31 // pred_check_branch
            %627 = sbr.rel target = $region148
          $region147: #{tpu_custom_call.1} parent=31 // pred_region
            %628 = sst [smem:[#allocation12]] [#allocation69]
            %629 = sst [smem:[#allocation13]] [#allocation68]
          $region148: #{tpu_custom_call.1} parent=31 // pred_fallthru
            _
          %631 = shalt.err (0)
          %s633 = sshll.u32 %s624, 4
          %s634 = int_to_ptr.hbm [resolvable:$true] %s633
          %s635 = sshll.u32 %s625, 4
          %s636 = int_to_ptr.vmem [resolvable:$true] %s635
          %638 = dma.hbm_to_vmem [thread:$0]  %s634, 16, %s636, [#allocation3]
          %s639 = sadd.s32 %s147, 29
          %s640 = sld [smem:[#allocation5 + %s639]]
          %s641 = scalar_lea.hbm %s1, %s640
          %s642 = scalar_lea.vmem [#allocation2], 29
          // Predicated region
          $region149: #{tpu_custom_call.1} parent=31 // pred_check
            _
          $region150: #{tpu_custom_call.1} parent=31 // pred_check_branch
            %644 = sbr.rel target = $region152
          $region151: #{tpu_custom_call.1} parent=31 // pred_region
            %645 = sst [smem:[#allocation12]] [#allocation71]
            %646 = sst [smem:[#allocation13]] [#allocation70]
          $region152: #{tpu_custom_call.1} parent=31 // pred_fallthru
            _
          %648 = shalt.err (0)
          %s650 = sshll.u32 %s641, 4
          %s651 = int_to_ptr.hbm [resolvable:$true] %s650
          %s652 = sshll.u32 %s642, 4
          %s653 = int_to_ptr.vmem [resolvable:$true] %s652
          %655 = dma.hbm_to_vmem [thread:$0]  %s651, 16, %s653, [#allocation3]
          %s656 = sadd.s32 %s147, 30
          %s657 = sld [smem:[#allocation5 + %s656]]
          %s658 = scalar_lea.hbm %s1, %s657
          %s659 = scalar_lea.vmem [#allocation2], 30
          // Predicated region
          $region153: #{tpu_custom_call.1} parent=31 // pred_check
            _
          $region154: #{tpu_custom_call.1} parent=31 // pred_check_branch
            %661 = sbr.rel target = $region156
          $region155: #{tpu_custom_call.1} parent=31 // pred_region
            %662 = sst [smem:[#allocation12]] [#allocation73]
            %663 = sst [smem:[#allocation13]] [#allocation72]
          $region156: #{tpu_custom_call.1} parent=31 // pred_fallthru
            _
          %665 = shalt.err (0)
          %s667 = sshll.u32 %s658, 4
          %s668 = int_to_ptr.hbm [resolvable:$true] %s667
          %s669 = sshll.u32 %s659, 4
          %s670 = int_to_ptr.vmem [resolvable:$true] %s669
          %672 = dma.hbm_to_vmem [thread:$0]  %s668, 16, %s670, [#allocation3]
          %s673 = sadd.s32 %s147, 31
          %s674 = sld [smem:[#allocation5 + %s673]]
          %s675 = scalar_lea.hbm %s1, %s674
          %s676 = scalar_lea.vmem [#allocation2], 31
          // Predicated region
          $region157: #{tpu_custom_call.1} parent=31 // pred_check
            _
          $region158: #{tpu_custom_call.1} parent=31 // pred_check_branch
            %678 = sbr.rel target = $region160
          $region159: #{tpu_custom_call.1} parent=31 // pred_region
            %679 = sst [smem:[#allocation12]] [#allocation75]
            %680 = sst [smem:[#allocation13]] [#allocation74]
          $region160: #{tpu_custom_call.1} parent=31 // pred_fallthru
            _
          %682 = shalt.err (0)
          %s684 = sshll.u32 %s675, 4
          %s685 = int_to_ptr.hbm [resolvable:$true] %s684
          %s686 = sshll.u32 %s676, 4
          %s687 = int_to_ptr.vmem [resolvable:$true] %s686
          %689 = dma.hbm_to_vmem [thread:$0]  %s685, 16, %s687, [#allocation3]
          %s690 = sadd.s32 %s147, 32
          %s691 = sld [smem:[#allocation5 + %s690]]
          %s692 = scalar_lea.hbm %s1, %s691
          %s693 = scalar_lea.vmem [#allocation2], 32
          // Predicated region
          $region161: #{tpu_custom_call.1} parent=31 // pred_check
            _
          $region162: #{tpu_custom_call.1} parent=31 // pred_check_branch
            %695 = sbr.rel target = $region164
          $region163: #{tpu_custom_call.1} parent=31 // pred_region
            %696 = sst [smem:[#allocation12]] [#allocation77]
            %697 = sst [smem:[#allocation13]] [#allocation76]
          $region164: #{tpu_custom_call.1} parent=31 // pred_fallthru
            _
          %699 = shalt.err (0)
          %s701 = sshll.u32 %s692, 4
          %s702 = int_to_ptr.hbm [resolvable:$true] %s701
          %s703 = sshll.u32 %s693, 4
          %s704 = int_to_ptr.vmem [resolvable:$true] %s703
          %706 = dma.hbm_to_vmem [thread:$0]  %s702, 16, %s704, [#allocation3]
          %s707 = sadd.s32 %s147, 33
          %s708 = sld [smem:[#allocation5 + %s707]]
          %s709 = scalar_lea.hbm %s1, %s708
          %s710 = scalar_lea.vmem [#allocation2], 33
          // Predicated region
          $region165: #{tpu_custom_call.1} parent=31 // pred_check
            _
          $region166: #{tpu_custom_call.1} parent=31 // pred_check_branch
            %712 = sbr.rel target = $region168
          $region167: #{tpu_custom_call.1} parent=31 // pred_region
            %713 = sst [smem:[#allocation12]] [#allocation79]
            %714 = sst [smem:[#allocation13]] [#allocation78]
          $region168: #{tpu_custom_call.1} parent=31 // pred_fallthru
            _
          %716 = shalt.err (0)
          %s718 = sshll.u32 %s709, 4
          %s719 = int_to_ptr.hbm [resolvable:$true] %s718
          %s720 = sshll.u32 %s710, 4
          %s721 = int_to_ptr.vmem [resolvable:$true] %s720
          %723 = dma.hbm_to_vmem [thread:$0]  %s719, 16, %s721, [#allocation3]
          %s724 = sadd.s32 %s147, 34
          %s725 = sld [smem:[#allocation5 + %s724]]
          %s726 = scalar_lea.hbm %s1, %s725
          %s727 = scalar_lea.vmem [#allocation2], 34
          // Predicated region
          $region169: #{tpu_custom_call.1} parent=31 // pred_check
            _
          $region170: #{tpu_custom_call.1} parent=31 // pred_check_branch
            %729 = sbr.rel target = $region172
          $region171: #{tpu_custom_call.1} parent=31 // pred_region
            %730 = sst [smem:[#allocation12]] [#allocation81]
            %731 = sst [smem:[#allocation13]] [#allocation80]
          $region172: #{tpu_custom_call.1} parent=31 // pred_fallthru
            _
          %733 = shalt.err (0)
          %s735 = sshll.u32 %s726, 4
          %s736 = int_to_ptr.hbm [resolvable:$true] %s735
          %s737 = sshll.u32 %s727, 4
          %s738 = int_to_ptr.vmem [resolvable:$true] %s737
          %740 = dma.hbm_to_vmem [thread:$0]  %s736, 16, %s738, [#allocation3]
          %s741 = sadd.s32 %s147, 35
          %s742 = sld [smem:[#allocation5 + %s741]]
          %s743 = scalar_lea.hbm %s1, %s742
          %s744 = scalar_lea.vmem [#allocation2], 35
          // Predicated region
          $region173: #{tpu_custom_call.1} parent=31 // pred_check
            _
          $region174: #{tpu_custom_call.1} parent=31 // pred_check_branch
            %746 = sbr.rel target = $region176
          $region175: #{tpu_custom_call.1} parent=31 // pred_region
            %747 = sst [smem:[#allocation12]] [#allocation83]
            %748 = sst [smem:[#allocation13]] [#allocation82]
          $region176: #{tpu_custom_call.1} parent=31 // pred_fallthru
            _
          %750 = shalt.err (0)
          %s752 = sshll.u32 %s743, 4
          %s753 = int_to_ptr.hbm [resolvable:$true] %s752
          %s754 = sshll.u32 %s744, 4
          %s755 = int_to_ptr.vmem [resolvable:$true] %s754
          %757 = dma.hbm_to_vmem [thread:$0]  %s753, 16, %s755, [#allocation3]
          %s758 = sadd.s32 %s147, 36
          %s759 = sld [smem:[#allocation5 + %s758]]
          %s760 = scalar_lea.hbm %s1, %s759
          %s761 = scalar_lea.vmem [#allocation2], 36
          // Predicated region
          $region177: #{tpu_custom_call.1} parent=31 // pred_check
            _
          $region178: #{tpu_custom_call.1} parent=31 // pred_check_branch
            %763 = sbr.rel target = $region180
          $region179: #{tpu_custom_call.1} parent=31 // pred_region
            %764 = sst [smem:[#allocation12]] [#allocation85]
            %765 = sst [smem:[#allocation13]] [#allocation84]
          $region180: #{tpu_custom_call.1} parent=31 // pred_fallthru
            _
          %767 = shalt.err (0)
          %s769 = sshll.u32 %s760, 4
          %s770 = int_to_ptr.hbm [resolvable:$true] %s769
          %s771 = sshll.u32 %s761, 4
          %s772 = int_to_ptr.vmem [resolvable:$true] %s771
          %774 = dma.hbm_to_vmem [thread:$0]  %s770, 16, %s772, [#allocation3]
          %s775 = sadd.s32 %s147, 37
          %s776 = sld [smem:[#allocation5 + %s775]]
          %s777 = scalar_lea.hbm %s1, %s776
          %s778 = scalar_lea.vmem [#allocation2], 37
          // Predicated region
          $region181: #{tpu_custom_call.1} parent=31 // pred_check
            _
          $region182: #{tpu_custom_call.1} parent=31 // pred_check_branch
            %780 = sbr.rel target = $region184
          $region183: #{tpu_custom_call.1} parent=31 // pred_region
            %781 = sst [smem:[#allocation12]] [#allocation87]
            %782 = sst [smem:[#allocation13]] [#allocation86]
          $region184: #{tpu_custom_call.1} parent=31 // pred_fallthru
            _
          %784 = shalt.err (0)
          %s786 = sshll.u32 %s777, 4
          %s787 = int_to_ptr.hbm [resolvable:$true] %s786
          %s788 = sshll.u32 %s778, 4
          %s789 = int_to_ptr.vmem [resolvable:$true] %s788
          %791 = dma.hbm_to_vmem [thread:$0]  %s787, 16, %s789, [#allocation3]
          %s792 = sadd.s32 %s147, 38
          %s793 = sld [smem:[#allocation5 + %s792]]
          %s794 = scalar_lea.hbm %s1, %s793
          %s795 = scalar_lea.vmem [#allocation2], 38
          // Predicated region
          $region185: #{tpu_custom_call.1} parent=31 // pred_check
            _
          $region186: #{tpu_custom_call.1} parent=31 // pred_check_branch
            %797 = sbr.rel target = $region188
          $region187: #{tpu_custom_call.1} parent=31 // pred_region
            %798 = sst [smem:[#allocation12]] [#allocation89]
            %799 = sst [smem:[#allocation13]] [#allocation88]
          $region188: #{tpu_custom_call.1} parent=31 // pred_fallthru
            _
          %801 = shalt.err (0)
          %s803 = sshll.u32 %s794, 4
          %s804 = int_to_ptr.hbm [resolvable:$true] %s803
          %s805 = sshll.u32 %s795, 4
          %s806 = int_to_ptr.vmem [resolvable:$true] %s805
          %808 = dma.hbm_to_vmem [thread:$0]  %s804, 16, %s806, [#allocation3]
          %s809 = sadd.s32 %s147, 39
          %s810 = sld [smem:[#allocation5 + %s809]]
          %s811 = scalar_lea.hbm %s1, %s810
          %s812 = scalar_lea.vmem [#allocation2], 39
          // Predicated region
          $region189: #{tpu_custom_call.1} parent=31 // pred_check
            _
          $region190: #{tpu_custom_call.1} parent=31 // pred_check_branch
            %814 = sbr.rel target = $region192
          $region191: #{tpu_custom_call.1} parent=31 // pred_region
            %815 = sst [smem:[#allocation12]] [#allocation91]
            %816 = sst [smem:[#allocation13]] [#allocation90]
          $region192: #{tpu_custom_call.1} parent=31 // pred_fallthru
            _
          %818 = shalt.err (0)
          %s820 = sshll.u32 %s811, 4
          %s821 = int_to_ptr.hbm [resolvable:$true] %s820
          %s822 = sshll.u32 %s812, 4
          %s823 = int_to_ptr.vmem [resolvable:$true] %s822
          %825 = dma.hbm_to_vmem [thread:$0]  %s821, 16, %s823, [#allocation3]
          %s826 = sadd.s32 %s147, 40
          %s827 = sld [smem:[#allocation5 + %s826]]
          %s828 = scalar_lea.hbm %s1, %s827
          %s829 = scalar_lea.vmem [#allocation2], 40
          // Predicated region
          $region193: #{tpu_custom_call.1} parent=31 // pred_check
            _
          $region194: #{tpu_custom_call.1} parent=31 // pred_check_branch
            %831 = sbr.rel target = $region196
          $region195: #{tpu_custom_call.1} parent=31 // pred_region
            %832 = sst [smem:[#allocation12]] [#allocation93]
            %833 = sst [smem:[#allocation13]] [#allocation92]
          $region196: #{tpu_custom_call.1} parent=31 // pred_fallthru
            _
          %835 = shalt.err (0)
          %s837 = sshll.u32 %s828, 4
          %s838 = int_to_ptr.hbm [resolvable:$true] %s837
          %s839 = sshll.u32 %s829, 4
          %s840 = int_to_ptr.vmem [resolvable:$true] %s839
          %842 = dma.hbm_to_vmem [thread:$0]  %s838, 16, %s840, [#allocation3]
          %s843 = sadd.s32 %s147, 41
          %s844 = sld [smem:[#allocation5 + %s843]]
          %s845 = scalar_lea.hbm %s1, %s844
          %s846 = scalar_lea.vmem [#allocation2], 41
          // Predicated region
          $region197: #{tpu_custom_call.1} parent=31 // pred_check
            _
          $region198: #{tpu_custom_call.1} parent=31 // pred_check_branch
            %848 = sbr.rel target = $region200
          $region199: #{tpu_custom_call.1} parent=31 // pred_region
            %849 = sst [smem:[#allocation12]] [#allocation95]
            %850 = sst [smem:[#allocation13]] [#allocation94]
          $region200: #{tpu_custom_call.1} parent=31 // pred_fallthru
            _
          %852 = shalt.err (0)
          %s854 = sshll.u32 %s845, 4
          %s855 = int_to_ptr.hbm [resolvable:$true] %s854
          %s856 = sshll.u32 %s846, 4
          %s857 = int_to_ptr.vmem [resolvable:$true] %s856
          %859 = dma.hbm_to_vmem [thread:$0]  %s855, 16, %s857, [#allocation3]
          %s860 = sadd.s32 %s147, 42
          %s861 = sld [smem:[#allocation5 + %s860]]
          %s862 = scalar_lea.hbm %s1, %s861
          %s863 = scalar_lea.vmem [#allocation2], 42
          // Predicated region
          $region201: #{tpu_custom_call.1} parent=31 // pred_check
            _
          $region202: #{tpu_custom_call.1} parent=31 // pred_check_branch
            %865 = sbr.rel target = $region204
          $region203: #{tpu_custom_call.1} parent=31 // pred_region
            %866 = sst [smem:[#allocation12]] [#allocation97]
            %867 = sst [smem:[#allocation13]] [#allocation96]
          $region204: #{tpu_custom_call.1} parent=31 // pred_fallthru
            _
          %869 = shalt.err (0)
          %s871 = sshll.u32 %s862, 4
          %s872 = int_to_ptr.hbm [resolvable:$true] %s871
          %s873 = sshll.u32 %s863, 4
          %s874 = int_to_ptr.vmem [resolvable:$true] %s873
          %876 = dma.hbm_to_vmem [thread:$0]  %s872, 16, %s874, [#allocation3]
          %s877 = sadd.s32 %s147, 43
          %s878 = sld [smem:[#allocation5 + %s877]]
          %s879 = scalar_lea.hbm %s1, %s878
          %s880 = scalar_lea.vmem [#allocation2], 43
          // Predicated region
          $region205: #{tpu_custom_call.1} parent=31 // pred_check
            _
          $region206: #{tpu_custom_call.1} parent=31 // pred_check_branch
            %882 = sbr.rel target = $region208
          $region207: #{tpu_custom_call.1} parent=31 // pred_region
            %883 = sst [smem:[#allocation12]] [#allocation99]
            %884 = sst [smem:[#allocation13]] [#allocation98]
          $region208: #{tpu_custom_call.1} parent=31 // pred_fallthru
            _
          %886 = shalt.err (0)
          %s888 = sshll.u32 %s879, 4
          %s889 = int_to_ptr.hbm [resolvable:$true] %s888
          %s890 = sshll.u32 %s880, 4
          %s891 = int_to_ptr.vmem [resolvable:$true] %s890
          %893 = dma.hbm_to_vmem [thread:$0]  %s889, 16, %s891, [#allocation3]
          %s894 = sadd.s32 %s147, 44
          %s895 = sld [smem:[#allocation5 + %s894]]
          %s896 = scalar_lea.hbm %s1, %s895
          %s897 = scalar_lea.vmem [#allocation2], 44
          // Predicated region
          $region209: #{tpu_custom_call.1} parent=31 // pred_check
            _
          $region210: #{tpu_custom_call.1} parent=31 // pred_check_branch
            %899 = sbr.rel target = $region212
          $region211: #{tpu_custom_call.1} parent=31 // pred_region
            %900 = sst [smem:[#allocation12]] [#allocation101]
            %901 = sst [smem:[#allocation13]] [#allocation100]
          $region212: #{tpu_custom_call.1} parent=31 // pred_fallthru
            _
          %903 = shalt.err (0)
          %s905 = sshll.u32 %s896, 4
          %s906 = int_to_ptr.hbm [resolvable:$true] %s905
          %s907 = sshll.u32 %s897, 4
          %s908 = int_to_ptr.vmem [resolvable:$true] %s907
          %910 = dma.hbm_to_vmem [thread:$0]  %s906, 16, %s908, [#allocation3]
          %s911 = sadd.s32 %s147, 45
          %s912 = sld [smem:[#allocation5 + %s911]]
          %s913 = scalar_lea.hbm %s1, %s912
          %s914 = scalar_lea.vmem [#allocation2], 45
          // Predicated region
          $region213: #{tpu_custom_call.1} parent=31 // pred_check
            _
          $region214: #{tpu_custom_call.1} parent=31 // pred_check_branch
            %916 = sbr.rel target = $region216
          $region215: #{tpu_custom_call.1} parent=31 // pred_region
            %917 = sst [smem:[#allocation12]] [#allocation103]
            %918 = sst [smem:[#allocation13]] [#allocation102]
          $region216: #{tpu_custom_call.1} parent=31 // pred_fallthru
            _
          %920 = shalt.err (0)
          %s922 = sshll.u32 %s913, 4
          %s923 = int_to_ptr.hbm [resolvable:$true] %s922
          %s924 = sshll.u32 %s914, 4
          %s925 = int_to_ptr.vmem [resolvable:$true] %s924
          %927 = dma.hbm_to_vmem [thread:$0]  %s923, 16, %s925, [#allocation3]
          %s928 = sadd.s32 %s147, 46
          %s929 = sld [smem:[#allocation5 + %s928]]
          %s930 = scalar_lea.hbm %s1, %s929
          %s931 = scalar_lea.vmem [#allocation2], 46
          // Predicated region
          $region217: #{tpu_custom_call.1} parent=31 // pred_check
            _
          $region218: #{tpu_custom_call.1} parent=31 // pred_check_branch
            %933 = sbr.rel target = $region220
          $region219: #{tpu_custom_call.1} parent=31 // pred_region
            %934 = sst [smem:[#allocation12]] [#allocation105]
            %935 = sst [smem:[#allocation13]] [#allocation104]
          $region220: #{tpu_custom_call.1} parent=31 // pred_fallthru
            _
          %937 = shalt.err (0)
          %s939 = sshll.u32 %s930, 4
          %s940 = int_to_ptr.hbm [resolvable:$true] %s939
          %s941 = sshll.u32 %s931, 4
          %s942 = int_to_ptr.vmem [resolvable:$true] %s941
          %944 = dma.hbm_to_vmem [thread:$0]  %s940, 16, %s942, [#allocation3]
          %s945 = sadd.s32 %s147, 47
          %s946 = sld [smem:[#allocation5 + %s945]]
          %s947 = scalar_lea.hbm %s1, %s946
          %s948 = scalar_lea.vmem [#allocation2], 47
          // Predicated region
          $region221: #{tpu_custom_call.1} parent=31 // pred_check
            _
          $region222: #{tpu_custom_call.1} parent=31 // pred_check_branch
            %950 = sbr.rel target = $region224
          $region223: #{tpu_custom_call.1} parent=31 // pred_region
            %951 = sst [smem:[#allocation12]] [#allocation107]
            %952 = sst [smem:[#allocation13]] [#allocation106]
          $region224: #{tpu_custom_call.1} parent=31 // pred_fallthru
            _
          %954 = shalt.err (0)
          %s956 = sshll.u32 %s947, 4
          %s957 = int_to_ptr.hbm [resolvable:$true] %s956
          %s958 = sshll.u32 %s948, 4
          %s959 = int_to_ptr.vmem [resolvable:$true] %s958
          %961 = dma.hbm_to_vmem [thread:$0]  %s957, 16, %s959, [#allocation3]
          %s962 = sadd.s32 %s147, 48
          %s963 = sld [smem:[#allocation5 + %s962]]
          %s964 = scalar_lea.hbm %s1, %s963
          %s965 = scalar_lea.vmem [#allocation2], 48
          // Predicated region
          $region225: #{tpu_custom_call.1} parent=31 // pred_check
            _
          $region226: #{tpu_custom_call.1} parent=31 // pred_check_branch
            %967 = sbr.rel target = $region228
          $region227: #{tpu_custom_call.1} parent=31 // pred_region
            %968 = sst [smem:[#allocation12]] [#allocation109]
            %969 = sst [smem:[#allocation13]] [#allocation108]
          $region228: #{tpu_custom_call.1} parent=31 // pred_fallthru
            _
          %971 = shalt.err (0)
          %s973 = sshll.u32 %s964, 4
          %s974 = int_to_ptr.hbm [resolvable:$true] %s973
          %s975 = sshll.u32 %s965, 4
          %s976 = int_to_ptr.vmem [resolvable:$true] %s975
          %978 = dma.hbm_to_vmem [thread:$0]  %s974, 16, %s976, [#allocation3]
          %s979 = sadd.s32 %s147, 49
          %s980 = sld [smem:[#allocation5 + %s979]]
          %s981 = scalar_lea.hbm %s1, %s980
          %s982 = scalar_lea.vmem [#allocation2], 49
          // Predicated region
          $region229: #{tpu_custom_call.1} parent=31 // pred_check
            _
          $region230: #{tpu_custom_call.1} parent=31 // pred_check_branch
            %984 = sbr.rel target = $region232
          $region231: #{tpu_custom_call.1} parent=31 // pred_region
            %985 = sst [smem:[#allocation12]] [#allocation111]
            %986 = sst [smem:[#allocation13]] [#allocation110]
          $region232: #{tpu_custom_call.1} parent=31 // pred_fallthru
            _
          %988 = shalt.err (0)
          %s990 = sshll.u32 %s981, 4
          %s991 = int_to_ptr.hbm [resolvable:$true] %s990
          %s992 = sshll.u32 %s982, 4
          %s993 = int_to_ptr.vmem [resolvable:$true] %s992
          %995 = dma.hbm_to_vmem [thread:$0]  %s991, 16, %s993, [#allocation3]
          %s996 = sadd.s32 %s147, 50
          %s997 = sld [smem:[#allocation5 + %s996]]
          %s998 = scalar_lea.hbm %s1, %s997
          %s999 = scalar_lea.vmem [#allocation2], 50
          // Predicated region
          $region233: #{tpu_custom_call.1} parent=31 // pred_check
            _
          $region234: #{tpu_custom_call.1} parent=31 // pred_check_branch
            %1001 = sbr.rel target = $region236
          $region235: #{tpu_custom_call.1} parent=31 // pred_region
            %1002 = sst [smem:[#allocation12]] [#allocation113]
            %1003 = sst [smem:[#allocation13]] [#allocation112]
          $region236: #{tpu_custom_call.1} parent=31 // pred_fallthru
            _
          %1005 = shalt.err (0)
          %s1007 = sshll.u32 %s998, 4
          %s1008 = int_to_ptr.hbm [resolvable:$true] %s1007
          %s1009 = sshll.u32 %s999, 4
          %s1010 = int_to_ptr.vmem [resolvable:$true] %s1009
          %1012 = dma.hbm_to_vmem [thread:$0]  %s1008, 16, %s1010, [#allocation3]
          %s1013 = sadd.s32 %s147, 51
          %s1014 = sld [smem:[#allocation5 + %s1013]]
          %s1015 = scalar_lea.hbm %s1, %s1014
          %s1016 = scalar_lea.vmem [#allocation2], 51
          // Predicated region
          $region237: #{tpu_custom_call.1} parent=31 // pred_check
            _
          $region238: #{tpu_custom_call.1} parent=31 // pred_check_branch
            %1018 = sbr.rel target = $region240
          $region239: #{tpu_custom_call.1} parent=31 // pred_region
            %1019 = sst [smem:[#allocation12]] [#allocation115]
            %1020 = sst [smem:[#allocation13]] [#allocation114]
          $region240: #{tpu_custom_call.1} parent=31 // pred_fallthru
            _
          %1022 = shalt.err (0)
          %s1024 = sshll.u32 %s1015, 4
          %s1025 = int_to_ptr.hbm [resolvable:$true] %s1024
          %s1026 = sshll.u32 %s1016, 4
          %s1027 = int_to_ptr.vmem [resolvable:$true] %s1026
          %1029 = dma.hbm_to_vmem [thread:$0]  %s1025, 16, %s1027, [#allocation3]
          %s1030 = sadd.s32 %s147, 52
          %s1031 = sld [smem:[#allocation5 + %s1030]]
          %s1032 = scalar_lea.hbm %s1, %s1031
          %s1033 = scalar_lea.vmem [#allocation2], 52
          // Predicated region
          $region241: #{tpu_custom_call.1} parent=31 // pred_check
            _
          $region242: #{tpu_custom_call.1} parent=31 // pred_check_branch
            %1035 = sbr.rel target = $region244
          $region243: #{tpu_custom_call.1} parent=31 // pred_region
            %1036 = sst [smem:[#allocation12]] [#allocation117]
            %1037 = sst [smem:[#allocation13]] [#allocation116]
          $region244: #{tpu_custom_call.1} parent=31 // pred_fallthru
            _
          %1039 = shalt.err (0)
          %s1041 = sshll.u32 %s1032, 4
          %s1042 = int_to_ptr.hbm [resolvable:$true] %s1041
          %s1043 = sshll.u32 %s1033, 4
          %s1044 = int_to_ptr.vmem [resolvable:$true] %s1043
          %1046 = dma.hbm_to_vmem [thread:$0]  %s1042, 16, %s1044, [#allocation3]
          %s1047 = sadd.s32 %s147, 53
          %s1048 = sld [smem:[#allocation5 + %s1047]]
          %s1049 = scalar_lea.hbm %s1, %s1048
          %s1050 = scalar_lea.vmem [#allocation2], 53
          // Predicated region
          $region245: #{tpu_custom_call.1} parent=31 // pred_check
            _
          $region246: #{tpu_custom_call.1} parent=31 // pred_check_branch
            %1052 = sbr.rel target = $region248
          $region247: #{tpu_custom_call.1} parent=31 // pred_region
            %1053 = sst [smem:[#allocation12]] [#allocation119]
            %1054 = sst [smem:[#allocation13]] [#allocation118]
          $region248: #{tpu_custom_call.1} parent=31 // pred_fallthru
            _
          %1056 = shalt.err (0)
          %s1058 = sshll.u32 %s1049, 4
          %s1059 = int_to_ptr.hbm [resolvable:$true] %s1058
          %s1060 = sshll.u32 %s1050, 4
          %s1061 = int_to_ptr.vmem [resolvable:$true] %s1060
          %1063 = dma.hbm_to_vmem [thread:$0]  %s1059, 16, %s1061, [#allocation3]
          %s1064 = sadd.s32 %s147, 54
          %s1065 = sld [smem:[#allocation5 + %s1064]]
          %s1066 = scalar_lea.hbm %s1, %s1065
          %s1067 = scalar_lea.vmem [#allocation2], 54
          // Predicated region
          $region249: #{tpu_custom_call.1} parent=31 // pred_check
            _
          $region250: #{tpu_custom_call.1} parent=31 // pred_check_branch
            %1069 = sbr.rel target = $region252
          $region251: #{tpu_custom_call.1} parent=31 // pred_region
            %1070 = sst [smem:[#allocation12]] [#allocation121]
            %1071 = sst [smem:[#allocation13]] [#allocation120]
          $region252: #{tpu_custom_call.1} parent=31 // pred_fallthru
            _
          %1073 = shalt.err (0)
          %s1075 = sshll.u32 %s1066, 4
          %s1076 = int_to_ptr.hbm [resolvable:$true] %s1075
          %s1077 = sshll.u32 %s1067, 4
          %s1078 = int_to_ptr.vmem [resolvable:$true] %s1077
          %1080 = dma.hbm_to_vmem [thread:$0]  %s1076, 16, %s1078, [#allocation3]
          %s1081 = sadd.s32 %s147, 55
          %s1082 = sld [smem:[#allocation5 + %s1081]]
          %s1083 = scalar_lea.hbm %s1, %s1082
          %s1084 = scalar_lea.vmem [#allocation2], 55
          // Predicated region
          $region253: #{tpu_custom_call.1} parent=31 // pred_check
            _
          $region254: #{tpu_custom_call.1} parent=31 // pred_check_branch
            %1086 = sbr.rel target = $region256
          $region255: #{tpu_custom_call.1} parent=31 // pred_region
            %1087 = sst [smem:[#allocation12]] [#allocation123]
            %1088 = sst [smem:[#allocation13]] [#allocation122]
          $region256: #{tpu_custom_call.1} parent=31 // pred_fallthru
            _
          %1090 = shalt.err (0)
          %s1092 = sshll.u32 %s1083, 4
          %s1093 = int_to_ptr.hbm [resolvable:$true] %s1092
          %s1094 = sshll.u32 %s1084, 4
          %s1095 = int_to_ptr.vmem [resolvable:$true] %s1094
          %1097 = dma.hbm_to_vmem [thread:$0]  %s1093, 16, %s1095, [#allocation3]
          %s1098 = sadd.s32 %s147, 56
          %s1099 = sld [smem:[#allocation5 + %s1098]]
          %s1100 = scalar_lea.hbm %s1, %s1099
          %s1101 = scalar_lea.vmem [#allocation2], 56
          // Predicated region
          $region257: #{tpu_custom_call.1} parent=31 // pred_check
            _
          $region258: #{tpu_custom_call.1} parent=31 // pred_check_branch
            %1103 = sbr.rel target = $region260
          $region259: #{tpu_custom_call.1} parent=31 // pred_region
            %1104 = sst [smem:[#allocation12]] [#allocation125]
            %1105 = sst [smem:[#allocation13]] [#allocation124]
          $region260: #{tpu_custom_call.1} parent=31 // pred_fallthru
            _
          %1107 = shalt.err (0)
          %s1109 = sshll.u32 %s1100, 4
          %s1110 = int_to_ptr.hbm [resolvable:$true] %s1109
          %s1111 = sshll.u32 %s1101, 4
          %s1112 = int_to_ptr.vmem [resolvable:$true] %s1111
          %1114 = dma.hbm_to_vmem [thread:$0]  %s1110, 16, %s1112, [#allocation3]
          %s1115 = sadd.s32 %s147, 57
          %s1116 = sld [smem:[#allocation5 + %s1115]]
          %s1117 = scalar_lea.hbm %s1, %s1116
          %s1118 = scalar_lea.vmem [#allocation2], 57
          // Predicated region
          $region261: #{tpu_custom_call.1} parent=31 // pred_check
            _
          $region262: #{tpu_custom_call.1} parent=31 // pred_check_branch
            %1120 = sbr.rel target = $region264
          $region263: #{tpu_custom_call.1} parent=31 // pred_region
            %1121 = sst [smem:[#allocation12]] [#allocation127]
            %1122 = sst [smem:[#allocation13]] [#allocation126]
          $region264: #{tpu_custom_call.1} parent=31 // pred_fallthru
            _
          %1124 = shalt.err (0)
          %s1126 = sshll.u32 %s1117, 4
          %s1127 = int_to_ptr.hbm [resolvable:$true] %s1126
          %s1128 = sshll.u32 %s1118, 4
          %s1129 = int_to_ptr.vmem [resolvable:$true] %s1128
          %1131 = dma.hbm_to_vmem [thread:$0]  %s1127, 16, %s1129, [#allocation3]
          %s1132 = sadd.s32 %s147, 58
          %s1133 = sld [smem:[#allocation5 + %s1132]]
          %s1134 = scalar_lea.hbm %s1, %s1133
          %s1135 = scalar_lea.vmem [#allocation2], 58
          // Predicated region
          $region265: #{tpu_custom_call.1} parent=31 // pred_check
            _
          $region266: #{tpu_custom_call.1} parent=31 // pred_check_branch
            %1137 = sbr.rel target = $region268
          $region267: #{tpu_custom_call.1} parent=31 // pred_region
            %1138 = sst [smem:[#allocation12]] [#allocation129]
            %1139 = sst [smem:[#allocation13]] [#allocation128]
          $region268: #{tpu_custom_call.1} parent=31 // pred_fallthru
            _
          %1141 = shalt.err (0)
          %s1143 = sshll.u32 %s1134, 4
          %s1144 = int_to_ptr.hbm [resolvable:$true] %s1143
          %s1145 = sshll.u32 %s1135, 4
          %s1146 = int_to_ptr.vmem [resolvable:$true] %s1145
          %1148 = dma.hbm_to_vmem [thread:$0]  %s1144, 16, %s1146, [#allocation3]
          %s1149 = sadd.s32 %s147, 59
          %s1150 = sld [smem:[#allocation5 + %s1149]]
          %s1151 = scalar_lea.hbm %s1, %s1150
          %s1152 = scalar_lea.vmem [#allocation2], 59
          // Predicated region
          $region269: #{tpu_custom_call.1} parent=31 // pred_check
            _
          $region270: #{tpu_custom_call.1} parent=31 // pred_check_branch
            %1154 = sbr.rel target = $region272
          $region271: #{tpu_custom_call.1} parent=31 // pred_region
            %1155 = sst [smem:[#allocation12]] [#allocation131]
            %1156 = sst [smem:[#allocation13]] [#allocation130]
          $region272: #{tpu_custom_call.1} parent=31 // pred_fallthru
            _
          %1158 = shalt.err (0)
          %s1160 = sshll.u32 %s1151, 4
          %s1161 = int_to_ptr.hbm [resolvable:$true] %s1160
          %s1162 = sshll.u32 %s1152, 4
          %s1163 = int_to_ptr.vmem [resolvable:$true] %s1162
          %1165 = dma.hbm_to_vmem [thread:$0]  %s1161, 16, %s1163, [#allocation3]
          %s1166 = sadd.s32 %s147, 60
          %s1167 = sld [smem:[#allocation5 + %s1166]]
          %s1168 = scalar_lea.hbm %s1, %s1167
          %s1169 = scalar_lea.vmem [#allocation2], 60
          // Predicated region
          $region273: #{tpu_custom_call.1} parent=31 // pred_check
            _
          $region274: #{tpu_custom_call.1} parent=31 // pred_check_branch
            %1171 = sbr.rel target = $region276
          $region275: #{tpu_custom_call.1} parent=31 // pred_region
            %1172 = sst [smem:[#allocation12]] [#allocation133]
            %1173 = sst [smem:[#allocation13]] [#allocation132]
          $region276: #{tpu_custom_call.1} parent=31 // pred_fallthru
            _
          %1175 = shalt.err (0)
          %s1177 = sshll.u32 %s1168, 4
          %s1178 = int_to_ptr.hbm [resolvable:$true] %s1177
          %s1179 = sshll.u32 %s1169, 4
          %s1180 = int_to_ptr.vmem [resolvable:$true] %s1179
          %1182 = dma.hbm_to_vmem [thread:$0]  %s1178, 16, %s1180, [#allocation3]
          %s1183 = sadd.s32 %s147, 61
          %s1184 = sld [smem:[#allocation5 + %s1183]]
          %s1185 = scalar_lea.hbm %s1, %s1184
          %s1186 = scalar_lea.vmem [#allocation2], 61
          // Predicated region
          $region277: #{tpu_custom_call.1} parent=31 // pred_check
            _
          $region278: #{tpu_custom_call.1} parent=31 // pred_check_branch
            %1188 = sbr.rel target = $region280
          $region279: #{tpu_custom_call.1} parent=31 // pred_region
            %1189 = sst [smem:[#allocation12]] [#allocation135]
            %1190 = sst [smem:[#allocation13]] [#allocation134]
          $region280: #{tpu_custom_call.1} parent=31 // pred_fallthru
            _
          %1192 = shalt.err (0)
          %s1194 = sshll.u32 %s1185, 4
          %s1195 = int_to_ptr.hbm [resolvable:$true] %s1194
          %s1196 = sshll.u32 %s1186, 4
          %s1197 = int_to_ptr.vmem [resolvable:$true] %s1196
          %1199 = dma.hbm_to_vmem [thread:$0]  %s1195, 16, %s1197, [#allocation3]
          %s1200 = sadd.s32 %s147, 62
          %s1201 = sld [smem:[#allocation5 + %s1200]]
          %s1202 = scalar_lea.hbm %s1, %s1201
          %s1203 = scalar_lea.vmem [#allocation2], 62
          // Predicated region
          $region281: #{tpu_custom_call.1} parent=31 // pred_check
            _
          $region282: #{tpu_custom_call.1} parent=31 // pred_check_branch
            %1205 = sbr.rel target = $region284
          $region283: #{tpu_custom_call.1} parent=31 // pred_region
            %1206 = sst [smem:[#allocation12]] [#allocation137]
            %1207 = sst [smem:[#allocation13]] [#allocation136]
          $region284: #{tpu_custom_call.1} parent=31 // pred_fallthru
            _
          %1209 = shalt.err (0)
          %s1211 = sshll.u32 %s1202, 4
          %s1212 = int_to_ptr.hbm [resolvable:$true] %s1211
          %s1213 = sshll.u32 %s1203, 4
          %s1214 = int_to_ptr.vmem [resolvable:$true] %s1213
          %1216 = dma.hbm_to_vmem [thread:$0]  %s1212, 16, %s1214, [#allocation3]
          %s1217 = sadd.s32 %s147, 63
          %s1218 = sld [smem:[#allocation5 + %s1217]]
          %s1219 = scalar_lea.hbm %s1, %s1218
          %s1220 = scalar_lea.vmem [#allocation2], 63
          // Predicated region
          $region285: #{tpu_custom_call.1} parent=31 // pred_check
            _
          $region286: #{tpu_custom_call.1} parent=31 // pred_check_branch
            %1222 = sbr.rel target = $region288
          $region287: #{tpu_custom_call.1} parent=31 // pred_region
            %1223 = sst [smem:[#allocation12]] [#allocation139]
            %1224 = sst [smem:[#allocation13]] [#allocation138]
          $region288: #{tpu_custom_call.1} parent=31 // pred_fallthru
            _
          %1226 = shalt.err (0)
          %s1228 = sshll.u32 %s1219, 4
          %s1229 = int_to_ptr.hbm [resolvable:$true] %s1228
          %s1230 = sshll.u32 %s1220, 4
          %s1231 = int_to_ptr.vmem [resolvable:$true] %s1230
          %1233 = dma.hbm_to_vmem [thread:$0]  %s1229, 16, %s1231, [#allocation3]
        $region32: #{tpu_custom_call.1} parent=23 // pred_fallthru
          _
        %s1234 = sadd.s32 %s31, 1
        %p1235 = scmp.lt.s32.totalorder %s1234, 2
        // Predicated region
        $region289: #{tpu_custom_call.1} parent=23 // pred_check
          %p1236 = pneg %p1235
        $region290: #{tpu_custom_call.1} parent=23 // pred_check_branch
          %1238 = sbr.rel (%p1236) target = $region292
        $region291: #{tpu_custom_call.1} parent=23 // pred_region
          %s1239 = ssub.s32 1, %s142
          %s1240 = smul.u32 %s30, 128
          %s1241 = smul.u32 %s1234, 64
          %s1242 = sadd.s32 %s1240, %s1241
          %s1243 = sld [smem:[#allocation5 + %s1242]]
          %s1244 = scalar_lea.hbm %s1, %s1243
          %s1245 = smul.u32 %s1239, 64
          %s1246 = scalar_lea.vmem [#allocation2], %s1245
          %s1247 = scalar_lea.sflag [#allocation3], %s1239
          // Predicated region
          $region293: #{tpu_custom_call.1} parent=291 // pred_check
            _
          $region294: #{tpu_custom_call.1} parent=291 // pred_check_branch
            %1249 = sbr.rel target = $region296
          $region295: #{tpu_custom_call.1} parent=291 // pred_region
            %1250 = sst [smem:[#allocation12]] [#allocation141]
            %1251 = sst [smem:[#allocation13]] [#allocation140]
          $region296: #{tpu_custom_call.1} parent=291 // pred_fallthru
            _
          %1253 = shalt.err (0)
          %s1255 = sshll.u32 %s1244, 4
          %s1256 = int_to_ptr.hbm [resolvable:$true] %s1255
          %s1257 = sshll.u32 %s1246, 4
          %s1258 = int_to_ptr.vmem [resolvable:$true] %s1257
          %1260 = dma.hbm_to_vmem [thread:$0]  %s1256, 16, %s1258, %s1247
          %s1261 = sadd.s32 %s1242, 1
          %s1262 = sld [smem:[#allocation5 + %s1261]]
          %s1263 = scalar_lea.hbm %s1, %s1262
          %s1264 = sadd.s32 1, %s1245
          %s1265 = scalar_lea.vmem [#allocation2], %s1264
          // Predicated region
          $region297: #{tpu_custom_call.1} parent=291 // pred_check
            _
          $region298: #{tpu_custom_call.1} parent=291 // pred_check_branch
            %1267 = sbr.rel target = $region300
          $region299: #{tpu_custom_call.1} parent=291 // pred_region
            %1268 = sst [smem:[#allocation12]] [#allocation143]
            %1269 = sst [smem:[#allocation13]] [#allocation142]
          $region300: #{tpu_custom_call.1} parent=291 // pred_fallthru
            _
          %1271 = shalt.err (0)
          %s1273 = sshll.u32 %s1263, 4
          %s1274 = int_to_ptr.hbm [resolvable:$true] %s1273
          %s1275 = sshll.u32 %s1265, 4
          %s1276 = int_to_ptr.vmem [resolvable:$true] %s1275
          %1278 = dma.hbm_to_vmem [thread:$0]  %s1274, 16, %s1276, %s1247
          %s1279 = sadd.s32 %s1242, 2
          %s1280 = sld [smem:[#allocation5 + %s1279]]
          %s1281 = scalar_lea.hbm %s1, %s1280
          %s1282 = sadd.s32 2, %s1245
          %s1283 = scalar_lea.vmem [#allocation2], %s1282
          // Predicated region
          $region301: #{tpu_custom_call.1} parent=291 // pred_check
            _
          $region302: #{tpu_custom_call.1} parent=291 // pred_check_branch
            %1285 = sbr.rel target = $region304
          $region303: #{tpu_custom_call.1} parent=291 // pred_region
            %1286 = sst [smem:[#allocation12]] [#allocation145]
            %1287 = sst [smem:[#allocation13]] [#allocation144]
          $region304: #{tpu_custom_call.1} parent=291 // pred_fallthru
            _
          %1289 = shalt.err (0)
          %s1291 = sshll.u32 %s1281, 4
          %s1292 = int_to_ptr.hbm [resolvable:$true] %s1291
          %s1293 = sshll.u32 %s1283, 4
          %s1294 = int_to_ptr.vmem [resolvable:$true] %s1293
          %1296 = dma.hbm_to_vmem [thread:$0]  %s1292, 16, %s1294, %s1247
          %s1297 = sadd.s32 %s1242, 3
          %s1298 = sld [smem:[#allocation5 + %s1297]]
          %s1299 = scalar_lea.hbm %s1, %s1298
          %s1300 = sadd.s32 3, %s1245
          %s1301 = scalar_lea.vmem [#allocation2], %s1300
          // Predicated region
          $region305: #{tpu_custom_call.1} parent=291 // pred_check
            _
          $region306: #{tpu_custom_call.1} parent=291 // pred_check_branch
            %1303 = sbr.rel target = $region308
          $region307: #{tpu_custom_call.1} parent=291 // pred_region
            %1304 = sst [smem:[#allocation12]] [#allocation147]
            %1305 = sst [smem:[#allocation13]] [#allocation146]
          $region308: #{tpu_custom_call.1} parent=291 // pred_fallthru
            _
          %1307 = shalt.err (0)
          %s1309 = sshll.u32 %s1299, 4
          %s1310 = int_to_ptr.hbm [resolvable:$true] %s1309
          %s1311 = sshll.u32 %s1301, 4
          %s1312 = int_to_ptr.vmem [resolvable:$true] %s1311
          %1314 = dma.hbm_to_vmem [thread:$0]  %s1310, 16, %s1312, %s1247
          %s1315 = sadd.s32 %s1242, 4
          %s1316 = sld [smem:[#allocation5 + %s1315]]
          %s1317 = scalar_lea.hbm %s1, %s1316
          %s1318 = sadd.s32 4, %s1245
          %s1319 = scalar_lea.vmem [#allocation2], %s1318
          // Predicated region
          $region309: #{tpu_custom_call.1} parent=291 // pred_check
            _
          $region310: #{tpu_custom_call.1} parent=291 // pred_check_branch
            %1321 = sbr.rel target = $region312
          $region311: #{tpu_custom_call.1} parent=291 // pred_region
            %1322 = sst [smem:[#allocation12]] [#allocation149]
            %1323 = sst [smem:[#allocation13]] [#allocation148]
          $region312: #{tpu_custom_call.1} parent=291 // pred_fallthru
            _
          %1325 = shalt.err (0)
          %s1327 = sshll.u32 %s1317, 4
          %s1328 = int_to_ptr.hbm [resolvable:$true] %s1327
          %s1329 = sshll.u32 %s1319, 4
          %s1330 = int_to_ptr.vmem [resolvable:$true] %s1329
          %1332 = dma.hbm_to_vmem [thread:$0]  %s1328, 16, %s1330, %s1247
          %s1333 = sadd.s32 %s1242, 5
          %s1334 = sld [smem:[#allocation5 + %s1333]]
          %s1335 = scalar_lea.hbm %s1, %s1334
          %s1336 = sadd.s32 5, %s1245
          %s1337 = scalar_lea.vmem [#allocation2], %s1336
          // Predicated region
          $region313: #{tpu_custom_call.1} parent=291 // pred_check
            _
          $region314: #{tpu_custom_call.1} parent=291 // pred_check_branch
            %1339 = sbr.rel target = $region316
          $region315: #{tpu_custom_call.1} parent=291 // pred_region
            %1340 = sst [smem:[#allocation12]] [#allocation151]
            %1341 = sst [smem:[#allocation13]] [#allocation150]
          $region316: #{tpu_custom_call.1} parent=291 // pred_fallthru
            _
          %1343 = shalt.err (0)
          %s1345 = sshll.u32 %s1335, 4
          %s1346 = int_to_ptr.hbm [resolvable:$true] %s1345
          %s1347 = sshll.u32 %s1337, 4
          %s1348 = int_to_ptr.vmem [resolvable:$true] %s1347
          %1350 = dma.hbm_to_vmem [thread:$0]  %s1346, 16, %s1348, %s1247
          %s1351 = sadd.s32 %s1242, 6
          %s1352 = sld [smem:[#allocation5 + %s1351]]
          %s1353 = scalar_lea.hbm %s1, %s1352
          %s1354 = sadd.s32 6, %s1245
          %s1355 = scalar_lea.vmem [#allocation2], %s1354
          // Predicated region
          $region317: #{tpu_custom_call.1} parent=291 // pred_check
            _
          $region318: #{tpu_custom_call.1} parent=291 // pred_check_branch
            %1357 = sbr.rel target = $region320
          $region319: #{tpu_custom_call.1} parent=291 // pred_region
            %1358 = sst [smem:[#allocation12]] [#allocation153]
            %1359 = sst [smem:[#allocation13]] [#allocation152]
          $region320: #{tpu_custom_call.1} parent=291 // pred_fallthru
            _
          %1361 = shalt.err (0)
          %s1363 = sshll.u32 %s1353, 4
          %s1364 = int_to_ptr.hbm [resolvable:$true] %s1363
          %s1365 = sshll.u32 %s1355, 4
          %s1366 = int_to_ptr.vmem [resolvable:$true] %s1365
          %1368 = dma.hbm_to_vmem [thread:$0]  %s1364, 16, %s1366, %s1247
          %s1369 = sadd.s32 %s1242, 7
          %s1370 = sld [smem:[#allocation5 + %s1369]]
          %s1371 = scalar_lea.hbm %s1, %s1370
          %s1372 = sadd.s32 7, %s1245
          %s1373 = scalar_lea.vmem [#allocation2], %s1372
          // Predicated region
          $region321: #{tpu_custom_call.1} parent=291 // pred_check
            _
          $region322: #{tpu_custom_call.1} parent=291 // pred_check_branch
            %1375 = sbr.rel target = $region324
          $region323: #{tpu_custom_call.1} parent=291 // pred_region
            %1376 = sst [smem:[#allocation12]] [#allocation155]
            %1377 = sst [smem:[#allocation13]] [#allocation154]
          $region324: #{tpu_custom_call.1} parent=291 // pred_fallthru
            _
          %1379 = shalt.err (0)
          %s1381 = sshll.u32 %s1371, 4
          %s1382 = int_to_ptr.hbm [resolvable:$true] %s1381
          %s1383 = sshll.u32 %s1373, 4
          %s1384 = int_to_ptr.vmem [resolvable:$true] %s1383
          %1386 = dma.hbm_to_vmem [thread:$0]  %s1382, 16, %s1384, %s1247
          %s1387 = sadd.s32 %s1242, 8
          %s1388 = sld [smem:[#allocation5 + %s1387]]
          %s1389 = scalar_lea.hbm %s1, %s1388
          %s1390 = sadd.s32 8, %s1245
          %s1391 = scalar_lea.vmem [#allocation2], %s1390
          // Predicated region
          $region325: #{tpu_custom_call.1} parent=291 // pred_check
            _
          $region326: #{tpu_custom_call.1} parent=291 // pred_check_branch
            %1393 = sbr.rel target = $region328
          $region327: #{tpu_custom_call.1} parent=291 // pred_region
            %1394 = sst [smem:[#allocation12]] [#allocation157]
            %1395 = sst [smem:[#allocation13]] [#allocation156]
          $region328: #{tpu_custom_call.1} parent=291 // pred_fallthru
            _
          %1397 = shalt.err (0)
          %s1399 = sshll.u32 %s1389, 4
          %s1400 = int_to_ptr.hbm [resolvable:$true] %s1399
          %s1401 = sshll.u32 %s1391, 4
          %s1402 = int_to_ptr.vmem [resolvable:$true] %s1401
          %1404 = dma.hbm_to_vmem [thread:$0]  %s1400, 16, %s1402, %s1247
          %s1405 = sadd.s32 %s1242, 9
          %s1406 = sld [smem:[#allocation5 + %s1405]]
          %s1407 = scalar_lea.hbm %s1, %s1406
          %s1408 = sadd.s32 9, %s1245
          %s1409 = scalar_lea.vmem [#allocation2], %s1408
          // Predicated region
          $region329: #{tpu_custom_call.1} parent=291 // pred_check
            _
          $region330: #{tpu_custom_call.1} parent=291 // pred_check_branch
            %1411 = sbr.rel target = $region332
          $region331: #{tpu_custom_call.1} parent=291 // pred_region
            %1412 = sst [smem:[#allocation12]] [#allocation159]
            %1413 = sst [smem:[#allocation13]] [#allocation158]
          $region332: #{tpu_custom_call.1} parent=291 // pred_fallthru
            _
          %1415 = shalt.err (0)
          %s1417 = sshll.u32 %s1407, 4
          %s1418 = int_to_ptr.hbm [resolvable:$true] %s1417
          %s1419 = sshll.u32 %s1409, 4
          %s1420 = int_to_ptr.vmem [resolvable:$true] %s1419
          %1422 = dma.hbm_to_vmem [thread:$0]  %s1418, 16, %s1420, %s1247
          %s1423 = sadd.s32 %s1242, 10
          %s1424 = sld [smem:[#allocation5 + %s1423]]
          %s1425 = scalar_lea.hbm %s1, %s1424
          %s1426 = sadd.s32 10, %s1245
          %s1427 = scalar_lea.vmem [#allocation2], %s1426
          // Predicated region
          $region333: #{tpu_custom_call.1} parent=291 // pred_check
            _
          $region334: #{tpu_custom_call.1} parent=291 // pred_check_branch
            %1429 = sbr.rel target = $region336
          $region335: #{tpu_custom_call.1} parent=291 // pred_region
            %1430 = sst [smem:[#allocation12]] [#allocation161]
            %1431 = sst [smem:[#allocation13]] [#allocation160]
          $region336: #{tpu_custom_call.1} parent=291 // pred_fallthru
            _
          %1433 = shalt.err (0)
          %s1435 = sshll.u32 %s1425, 4
          %s1436 = int_to_ptr.hbm [resolvable:$true] %s1435
          %s1437 = sshll.u32 %s1427, 4
          %s1438 = int_to_ptr.vmem [resolvable:$true] %s1437
          %1440 = dma.hbm_to_vmem [thread:$0]  %s1436, 16, %s1438, %s1247
          %s1441 = sadd.s32 %s1242, 11
          %s1442 = sld [smem:[#allocation5 + %s1441]]
          %s1443 = scalar_lea.hbm %s1, %s1442
          %s1444 = sadd.s32 11, %s1245
          %s1445 = scalar_lea.vmem [#allocation2], %s1444
          // Predicated region
          $region337: #{tpu_custom_call.1} parent=291 // pred_check
            _
          $region338: #{tpu_custom_call.1} parent=291 // pred_check_branch
            %1447 = sbr.rel target = $region340
          $region339: #{tpu_custom_call.1} parent=291 // pred_region
            %1448 = sst [smem:[#allocation12]] [#allocation163]
            %1449 = sst [smem:[#allocation13]] [#allocation162]
          $region340: #{tpu_custom_call.1} parent=291 // pred_fallthru
            _
          %1451 = shalt.err (0)
          %s1453 = sshll.u32 %s1443, 4
          %s1454 = int_to_ptr.hbm [resolvable:$true] %s1453
          %s1455 = sshll.u32 %s1445, 4
          %s1456 = int_to_ptr.vmem [resolvable:$true] %s1455
          %1458 = dma.hbm_to_vmem [thread:$0]  %s1454, 16, %s1456, %s1247
          %s1459 = sadd.s32 %s1242, 12
          %s1460 = sld [smem:[#allocation5 + %s1459]]
          %s1461 = scalar_lea.hbm %s1, %s1460
          %s1462 = sadd.s32 12, %s1245
          %s1463 = scalar_lea.vmem [#allocation2], %s1462
          // Predicated region
          $region341: #{tpu_custom_call.1} parent=291 // pred_check
            _
          $region342: #{tpu_custom_call.1} parent=291 // pred_check_branch
            %1465 = sbr.rel target = $region344
          $region343: #{tpu_custom_call.1} parent=291 // pred_region
            %1466 = sst [smem:[#allocation12]] [#allocation165]
            %1467 = sst [smem:[#allocation13]] [#allocation164]
          $region344: #{tpu_custom_call.1} parent=291 // pred_fallthru
            _
          %1469 = shalt.err (0)
          %s1471 = sshll.u32 %s1461, 4
          %s1472 = int_to_ptr.hbm [resolvable:$true] %s1471
          %s1473 = sshll.u32 %s1463, 4
          %s1474 = int_to_ptr.vmem [resolvable:$true] %s1473
          %1476 = dma.hbm_to_vmem [thread:$0]  %s1472, 16, %s1474, %s1247
          %s1477 = sadd.s32 %s1242, 13
          %s1478 = sld [smem:[#allocation5 + %s1477]]
          %s1479 = scalar_lea.hbm %s1, %s1478
          %s1480 = sadd.s32 13, %s1245
          %s1481 = scalar_lea.vmem [#allocation2], %s1480
          // Predicated region
          $region345: #{tpu_custom_call.1} parent=291 // pred_check
            _
          $region346: #{tpu_custom_call.1} parent=291 // pred_check_branch
            %1483 = sbr.rel target = $region348
          $region347: #{tpu_custom_call.1} parent=291 // pred_region
            %1484 = sst [smem:[#allocation12]] [#allocation167]
            %1485 = sst [smem:[#allocation13]] [#allocation166]
          $region348: #{tpu_custom_call.1} parent=291 // pred_fallthru
            _
          %1487 = shalt.err (0)
          %s1489 = sshll.u32 %s1479, 4
          %s1490 = int_to_ptr.hbm [resolvable:$true] %s1489
          %s1491 = sshll.u32 %s1481, 4
          %s1492 = int_to_ptr.vmem [resolvable:$true] %s1491
          %1494 = dma.hbm_to_vmem [thread:$0]  %s1490, 16, %s1492, %s1247
          %s1495 = sadd.s32 %s1242, 14
          %s1496 = sld [smem:[#allocation5 + %s1495]]
          %s1497 = scalar_lea.hbm %s1, %s1496
          %s1498 = sadd.s32 14, %s1245
          %s1499 = scalar_lea.vmem [#allocation2], %s1498
          // Predicated region
          $region349: #{tpu_custom_call.1} parent=291 // pred_check
            _
          $region350: #{tpu_custom_call.1} parent=291 // pred_check_branch
            %1501 = sbr.rel target = $region352
          $region351: #{tpu_custom_call.1} parent=291 // pred_region
            %1502 = sst [smem:[#allocation12]] [#allocation169]
            %1503 = sst [smem:[#allocation13]] [#allocation168]
          $region352: #{tpu_custom_call.1} parent=291 // pred_fallthru
            _
          %1505 = shalt.err (0)
          %s1507 = sshll.u32 %s1497, 4
          %s1508 = int_to_ptr.hbm [resolvable:$true] %s1507
          %s1509 = sshll.u32 %s1499, 4
          %s1510 = int_to_ptr.vmem [resolvable:$true] %s1509
          %1512 = dma.hbm_to_vmem [thread:$0]  %s1508, 16, %s1510, %s1247
          %s1513 = sadd.s32 %s1242, 15
          %s1514 = sld [smem:[#allocation5 + %s1513]]
          %s1515 = scalar_lea.hbm %s1, %s1514
          %s1516 = sadd.s32 15, %s1245
          %s1517 = scalar_lea.vmem [#allocation2], %s1516
          // Predicated region
          $region353: #{tpu_custom_call.1} parent=291 // pred_check
            _
          $region354: #{tpu_custom_call.1} parent=291 // pred_check_branch
            %1519 = sbr.rel target = $region356
          $region355: #{tpu_custom_call.1} parent=291 // pred_region
            %1520 = sst [smem:[#allocation12]] [#allocation171]
            %1521 = sst [smem:[#allocation13]] [#allocation170]
          $region356: #{tpu_custom_call.1} parent=291 // pred_fallthru
            _
          %1523 = shalt.err (0)
          %s1525 = sshll.u32 %s1515, 4
          %s1526 = int_to_ptr.hbm [resolvable:$true] %s1525
          %s1527 = sshll.u32 %s1517, 4
          %s1528 = int_to_ptr.vmem [resolvable:$true] %s1527
          %1530 = dma.hbm_to_vmem [thread:$0]  %s1526, 16, %s1528, %s1247
          %s1531 = sadd.s32 %s1242, 16
          %s1532 = sld [smem:[#allocation5 + %s1531]]
          %s1533 = scalar_lea.hbm %s1, %s1532
          %s1534 = sadd.s32 16, %s1245
          %s1535 = scalar_lea.vmem [#allocation2], %s1534
          // Predicated region
          $region357: #{tpu_custom_call.1} parent=291 // pred_check
            _
          $region358: #{tpu_custom_call.1} parent=291 // pred_check_branch
            %1537 = sbr.rel target = $region360
          $region359: #{tpu_custom_call.1} parent=291 // pred_region
            %1538 = sst [smem:[#allocation12]] [#allocation173]
            %1539 = sst [smem:[#allocation13]] [#allocation172]
          $region360: #{tpu_custom_call.1} parent=291 // pred_fallthru
            _
          %1541 = shalt.err (0)
          %s1543 = sshll.u32 %s1533, 4
          %s1544 = int_to_ptr.hbm [resolvable:$true] %s1543
          %s1545 = sshll.u32 %s1535, 4
          %s1546 = int_to_ptr.vmem [resolvable:$true] %s1545
          %1548 = dma.hbm_to_vmem [thread:$0]  %s1544, 16, %s1546, %s1247
          %s1549 = sadd.s32 %s1242, 17
          %s1550 = sld [smem:[#allocation5 + %s1549]]
          %s1551 = scalar_lea.hbm %s1, %s1550
          %s1552 = sadd.s32 17, %s1245
          %s1553 = scalar_lea.vmem [#allocation2], %s1552
          // Predicated region
          $region361: #{tpu_custom_call.1} parent=291 // pred_check
            _
          $region362: #{tpu_custom_call.1} parent=291 // pred_check_branch
            %1555 = sbr.rel target = $region364
          $region363: #{tpu_custom_call.1} parent=291 // pred_region
            %1556 = sst [smem:[#allocation12]] [#allocation175]
            %1557 = sst [smem:[#allocation13]] [#allocation174]
          $region364: #{tpu_custom_call.1} parent=291 // pred_fallthru
            _
          %1559 = shalt.err (0)
          %s1561 = sshll.u32 %s1551, 4
          %s1562 = int_to_ptr.hbm [resolvable:$true] %s1561
          %s1563 = sshll.u32 %s1553, 4
          %s1564 = int_to_ptr.vmem [resolvable:$true] %s1563
          %1566 = dma.hbm_to_vmem [thread:$0]  %s1562, 16, %s1564, %s1247
          %s1567 = sadd.s32 %s1242, 18
          %s1568 = sld [smem:[#allocation5 + %s1567]]
          %s1569 = scalar_lea.hbm %s1, %s1568
          %s1570 = sadd.s32 18, %s1245
          %s1571 = scalar_lea.vmem [#allocation2], %s1570
          // Predicated region
          $region365: #{tpu_custom_call.1} parent=291 // pred_check
            _
          $region366: #{tpu_custom_call.1} parent=291 // pred_check_branch
            %1573 = sbr.rel target = $region368
          $region367: #{tpu_custom_call.1} parent=291 // pred_region
            %1574 = sst [smem:[#allocation12]] [#allocation177]
            %1575 = sst [smem:[#allocation13]] [#allocation176]
          $region368: #{tpu_custom_call.1} parent=291 // pred_fallthru
            _
          %1577 = shalt.err (0)
          %s1579 = sshll.u32 %s1569, 4
          %s1580 = int_to_ptr.hbm [resolvable:$true] %s1579
          %s1581 = sshll.u32 %s1571, 4
          %s1582 = int_to_ptr.vmem [resolvable:$true] %s1581
          %1584 = dma.hbm_to_vmem [thread:$0]  %s1580, 16, %s1582, %s1247
          %s1585 = sadd.s32 %s1242, 19
          %s1586 = sld [smem:[#allocation5 + %s1585]]
          %s1587 = scalar_lea.hbm %s1, %s1586
          %s1588 = sadd.s32 19, %s1245
          %s1589 = scalar_lea.vmem [#allocation2], %s1588
          // Predicated region
          $region369: #{tpu_custom_call.1} parent=291 // pred_check
            _
          $region370: #{tpu_custom_call.1} parent=291 // pred_check_branch
            %1591 = sbr.rel target = $region372
          $region371: #{tpu_custom_call.1} parent=291 // pred_region
            %1592 = sst [smem:[#allocation12]] [#allocation179]
            %1593 = sst [smem:[#allocation13]] [#allocation178]
          $region372: #{tpu_custom_call.1} parent=291 // pred_fallthru
            _
          %1595 = shalt.err (0)
          %s1597 = sshll.u32 %s1587, 4
          %s1598 = int_to_ptr.hbm [resolvable:$true] %s1597
          %s1599 = sshll.u32 %s1589, 4
          %s1600 = int_to_ptr.vmem [resolvable:$true] %s1599
          %1602 = dma.hbm_to_vmem [thread:$0]  %s1598, 16, %s1600, %s1247
          %s1603 = sadd.s32 %s1242, 20
          %s1604 = sld [smem:[#allocation5 + %s1603]]
          %s1605 = scalar_lea.hbm %s1, %s1604
          %s1606 = sadd.s32 20, %s1245
          %s1607 = scalar_lea.vmem [#allocation2], %s1606
          // Predicated region
          $region373: #{tpu_custom_call.1} parent=291 // pred_check
            _
          $region374: #{tpu_custom_call.1} parent=291 // pred_check_branch
            %1609 = sbr.rel target = $region376
          $region375: #{tpu_custom_call.1} parent=291 // pred_region
            %1610 = sst [smem:[#allocation12]] [#allocation181]
            %1611 = sst [smem:[#allocation13]] [#allocation180]
          $region376: #{tpu_custom_call.1} parent=291 // pred_fallthru
            _
          %1613 = shalt.err (0)
          %s1615 = sshll.u32 %s1605, 4
          %s1616 = int_to_ptr.hbm [resolvable:$true] %s1615
          %s1617 = sshll.u32 %s1607, 4
          %s1618 = int_to_ptr.vmem [resolvable:$true] %s1617
          %1620 = dma.hbm_to_vmem [thread:$0]  %s1616, 16, %s1618, %s1247
          %s1621 = sadd.s32 %s1242, 21
          %s1622 = sld [smem:[#allocation5 + %s1621]]
          %s1623 = scalar_lea.hbm %s1, %s1622
          %s1624 = sadd.s32 21, %s1245
          %s1625 = scalar_lea.vmem [#allocation2], %s1624
          // Predicated region
          $region377: #{tpu_custom_call.1} parent=291 // pred_check
            _
          $region378: #{tpu_custom_call.1} parent=291 // pred_check_branch
            %1627 = sbr.rel target = $region380
          $region379: #{tpu_custom_call.1} parent=291 // pred_region
            %1628 = sst [smem:[#allocation12]] [#allocation183]
            %1629 = sst [smem:[#allocation13]] [#allocation182]
          $region380: #{tpu_custom_call.1} parent=291 // pred_fallthru
            _
          %1631 = shalt.err (0)
          %s1633 = sshll.u32 %s1623, 4
          %s1634 = int_to_ptr.hbm [resolvable:$true] %s1633
          %s1635 = sshll.u32 %s1625, 4
          %s1636 = int_to_ptr.vmem [resolvable:$true] %s1635
          %1638 = dma.hbm_to_vmem [thread:$0]  %s1634, 16, %s1636, %s1247
          %s1639 = sadd.s32 %s1242, 22
          %s1640 = sld [smem:[#allocation5 + %s1639]]
          %s1641 = scalar_lea.hbm %s1, %s1640
          %s1642 = sadd.s32 22, %s1245
          %s1643 = scalar_lea.vmem [#allocation2], %s1642
          // Predicated region
          $region381: #{tpu_custom_call.1} parent=291 // pred_check
            _
          $region382: #{tpu_custom_call.1} parent=291 // pred_check_branch
            %1645 = sbr.rel target = $region384
          $region383: #{tpu_custom_call.1} parent=291 // pred_region
            %1646 = sst [smem:[#allocation12]] [#allocation185]
            %1647 = sst [smem:[#allocation13]] [#allocation184]
          $region384: #{tpu_custom_call.1} parent=291 // pred_fallthru
            _
          %1649 = shalt.err (0)
          %s1651 = sshll.u32 %s1641, 4
          %s1652 = int_to_ptr.hbm [resolvable:$true] %s1651
          %s1653 = sshll.u32 %s1643, 4
          %s1654 = int_to_ptr.vmem [resolvable:$true] %s1653
          %1656 = dma.hbm_to_vmem [thread:$0]  %s1652, 16, %s1654, %s1247
          %s1657 = sadd.s32 %s1242, 23
          %s1658 = sld [smem:[#allocation5 + %s1657]]
          %s1659 = scalar_lea.hbm %s1, %s1658
          %s1660 = sadd.s32 23, %s1245
          %s1661 = scalar_lea.vmem [#allocation2], %s1660
          // Predicated region
          $region385: #{tpu_custom_call.1} parent=291 // pred_check
            _
          $region386: #{tpu_custom_call.1} parent=291 // pred_check_branch
            %1663 = sbr.rel target = $region388
          $region387: #{tpu_custom_call.1} parent=291 // pred_region
            %1664 = sst [smem:[#allocation12]] [#allocation187]
            %1665 = sst [smem:[#allocation13]] [#allocation186]
          $region388: #{tpu_custom_call.1} parent=291 // pred_fallthru
            _
          %1667 = shalt.err (0)
          %s1669 = sshll.u32 %s1659, 4
          %s1670 = int_to_ptr.hbm [resolvable:$true] %s1669
          %s1671 = sshll.u32 %s1661, 4
          %s1672 = int_to_ptr.vmem [resolvable:$true] %s1671
          %1674 = dma.hbm_to_vmem [thread:$0]  %s1670, 16, %s1672, %s1247
          %s1675 = sadd.s32 %s1242, 24
          %s1676 = sld [smem:[#allocation5 + %s1675]]
          %s1677 = scalar_lea.hbm %s1, %s1676
          %s1678 = sadd.s32 24, %s1245
          %s1679 = scalar_lea.vmem [#allocation2], %s1678
          // Predicated region
          $region389: #{tpu_custom_call.1} parent=291 // pred_check
            _
          $region390: #{tpu_custom_call.1} parent=291 // pred_check_branch
            %1681 = sbr.rel target = $region392
          $region391: #{tpu_custom_call.1} parent=291 // pred_region
            %1682 = sst [smem:[#allocation12]] [#allocation189]
            %1683 = sst [smem:[#allocation13]] [#allocation188]
          $region392: #{tpu_custom_call.1} parent=291 // pred_fallthru
            _
          %1685 = shalt.err (0)
          %s1687 = sshll.u32 %s1677, 4
          %s1688 = int_to_ptr.hbm [resolvable:$true] %s1687
          %s1689 = sshll.u32 %s1679, 4
          %s1690 = int_to_ptr.vmem [resolvable:$true] %s1689
          %1692 = dma.hbm_to_vmem [thread:$0]  %s1688, 16, %s1690, %s1247
          %s1693 = sadd.s32 %s1242, 25
          %s1694 = sld [smem:[#allocation5 + %s1693]]
          %s1695 = scalar_lea.hbm %s1, %s1694
          %s1696 = sadd.s32 25, %s1245
          %s1697 = scalar_lea.vmem [#allocation2], %s1696
          // Predicated region
          $region393: #{tpu_custom_call.1} parent=291 // pred_check
            _
          $region394: #{tpu_custom_call.1} parent=291 // pred_check_branch
            %1699 = sbr.rel target = $region396
          $region395: #{tpu_custom_call.1} parent=291 // pred_region
            %1700 = sst [smem:[#allocation12]] [#allocation191]
            %1701 = sst [smem:[#allocation13]] [#allocation190]
          $region396: #{tpu_custom_call.1} parent=291 // pred_fallthru
            _
          %1703 = shalt.err (0)
          %s1705 = sshll.u32 %s1695, 4
          %s1706 = int_to_ptr.hbm [resolvable:$true] %s1705
          %s1707 = sshll.u32 %s1697, 4
          %s1708 = int_to_ptr.vmem [resolvable:$true] %s1707
          %1710 = dma.hbm_to_vmem [thread:$0]  %s1706, 16, %s1708, %s1247
          %s1711 = sadd.s32 %s1242, 26
          %s1712 = sld [smem:[#allocation5 + %s1711]]
          %s1713 = scalar_lea.hbm %s1, %s1712
          %s1714 = sadd.s32 26, %s1245
          %s1715 = scalar_lea.vmem [#allocation2], %s1714
          // Predicated region
          $region397: #{tpu_custom_call.1} parent=291 // pred_check
            _
          $region398: #{tpu_custom_call.1} parent=291 // pred_check_branch
            %1717 = sbr.rel target = $region400
          $region399: #{tpu_custom_call.1} parent=291 // pred_region
            %1718 = sst [smem:[#allocation12]] [#allocation193]
            %1719 = sst [smem:[#allocation13]] [#allocation192]
          $region400: #{tpu_custom_call.1} parent=291 // pred_fallthru
            _
          %1721 = shalt.err (0)
          %s1723 = sshll.u32 %s1713, 4
          %s1724 = int_to_ptr.hbm [resolvable:$true] %s1723
          %s1725 = sshll.u32 %s1715, 4
          %s1726 = int_to_ptr.vmem [resolvable:$true] %s1725
          %1728 = dma.hbm_to_vmem [thread:$0]  %s1724, 16, %s1726, %s1247
          %s1729 = sadd.s32 %s1242, 27
          %s1730 = sld [smem:[#allocation5 + %s1729]]
          %s1731 = scalar_lea.hbm %s1, %s1730
          %s1732 = sadd.s32 27, %s1245
          %s1733 = scalar_lea.vmem [#allocation2], %s1732
          // Predicated region
          $region401: #{tpu_custom_call.1} parent=291 // pred_check
            _
          $region402: #{tpu_custom_call.1} parent=291 // pred_check_branch
            %1735 = sbr.rel target = $region404
          $region403: #{tpu_custom_call.1} parent=291 // pred_region
            %1736 = sst [smem:[#allocation12]] [#allocation195]
            %1737 = sst [smem:[#allocation13]] [#allocation194]
          $region404: #{tpu_custom_call.1} parent=291 // pred_fallthru
            _
          %1739 = shalt.err (0)
          %s1741 = sshll.u32 %s1731, 4
          %s1742 = int_to_ptr.hbm [resolvable:$true] %s1741
          %s1743 = sshll.u32 %s1733, 4
          %s1744 = int_to_ptr.vmem [resolvable:$true] %s1743
          %1746 = dma.hbm_to_vmem [thread:$0]  %s1742, 16, %s1744, %s1247
          %s1747 = sadd.s32 %s1242, 28
          %s1748 = sld [smem:[#allocation5 + %s1747]]
          %s1749 = scalar_lea.hbm %s1, %s1748
          %s1750 = sadd.s32 28, %s1245
          %s1751 = scalar_lea.vmem [#allocation2], %s1750
          // Predicated region
          $region405: #{tpu_custom_call.1} parent=291 // pred_check
            _
          $region406: #{tpu_custom_call.1} parent=291 // pred_check_branch
            %1753 = sbr.rel target = $region408
          $region407: #{tpu_custom_call.1} parent=291 // pred_region
            %1754 = sst [smem:[#allocation12]] [#allocation197]
            %1755 = sst [smem:[#allocation13]] [#allocation196]
          $region408: #{tpu_custom_call.1} parent=291 // pred_fallthru
            _
          %1757 = shalt.err (0)
          %s1759 = sshll.u32 %s1749, 4
          %s1760 = int_to_ptr.hbm [resolvable:$true] %s1759
          %s1761 = sshll.u32 %s1751, 4
          %s1762 = int_to_ptr.vmem [resolvable:$true] %s1761
          %1764 = dma.hbm_to_vmem [thread:$0]  %s1760, 16, %s1762, %s1247
          %s1765 = sadd.s32 %s1242, 29
          %s1766 = sld [smem:[#allocation5 + %s1765]]
          %s1767 = scalar_lea.hbm %s1, %s1766
          %s1768 = sadd.s32 29, %s1245
          %s1769 = scalar_lea.vmem [#allocation2], %s1768
          // Predicated region
          $region409: #{tpu_custom_call.1} parent=291 // pred_check
            _
          $region410: #{tpu_custom_call.1} parent=291 // pred_check_branch
            %1771 = sbr.rel target = $region412
          $region411: #{tpu_custom_call.1} parent=291 // pred_region
            %1772 = sst [smem:[#allocation12]] [#allocation199]
            %1773 = sst [smem:[#allocation13]] [#allocation198]
          $region412: #{tpu_custom_call.1} parent=291 // pred_fallthru
            _
          %1775 = shalt.err (0)
          %s1777 = sshll.u32 %s1767, 4
          %s1778 = int_to_ptr.hbm [resolvable:$true] %s1777
          %s1779 = sshll.u32 %s1769, 4
          %s1780 = int_to_ptr.vmem [resolvable:$true] %s1779
          %1782 = dma.hbm_to_vmem [thread:$0]  %s1778, 16, %s1780, %s1247
          %s1783 = sadd.s32 %s1242, 30
          %s1784 = sld [smem:[#allocation5 + %s1783]]
          %s1785 = scalar_lea.hbm %s1, %s1784
          %s1786 = sadd.s32 30, %s1245
          %s1787 = scalar_lea.vmem [#allocation2], %s1786
          // Predicated region
          $region413: #{tpu_custom_call.1} parent=291 // pred_check
            _
          $region414: #{tpu_custom_call.1} parent=291 // pred_check_branch
            %1789 = sbr.rel target = $region416
          $region415: #{tpu_custom_call.1} parent=291 // pred_region
            %1790 = sst [smem:[#allocation12]] [#allocation201]
            %1791 = sst [smem:[#allocation13]] [#allocation200]
          $region416: #{tpu_custom_call.1} parent=291 // pred_fallthru
            _
          %1793 = shalt.err (0)
          %s1795 = sshll.u32 %s1785, 4
          %s1796 = int_to_ptr.hbm [resolvable:$true] %s1795
          %s1797 = sshll.u32 %s1787, 4
          %s1798 = int_to_ptr.vmem [resolvable:$true] %s1797
          %1800 = dma.hbm_to_vmem [thread:$0]  %s1796, 16, %s1798, %s1247
          %s1801 = sadd.s32 %s1242, 31
          %s1802 = sld [smem:[#allocation5 + %s1801]]
          %s1803 = scalar_lea.hbm %s1, %s1802
          %s1804 = sadd.s32 31, %s1245
          %s1805 = scalar_lea.vmem [#allocation2], %s1804
          // Predicated region
          $region417: #{tpu_custom_call.1} parent=291 // pred_check
            _
          $region418: #{tpu_custom_call.1} parent=291 // pred_check_branch
            %1807 = sbr.rel target = $region420
          $region419: #{tpu_custom_call.1} parent=291 // pred_region
            %1808 = sst [smem:[#allocation12]] [#allocation203]
            %1809 = sst [smem:[#allocation13]] [#allocation202]
          $region420: #{tpu_custom_call.1} parent=291 // pred_fallthru
            _
          %1811 = shalt.err (0)
          %s1813 = sshll.u32 %s1803, 4
          %s1814 = int_to_ptr.hbm [resolvable:$true] %s1813
          %s1815 = sshll.u32 %s1805, 4
          %s1816 = int_to_ptr.vmem [resolvable:$true] %s1815
          %1818 = dma.hbm_to_vmem [thread:$0]  %s1814, 16, %s1816, %s1247
          %s1819 = sadd.s32 %s1242, 32
          %s1820 = sld [smem:[#allocation5 + %s1819]]
          %s1821 = scalar_lea.hbm %s1, %s1820
          %s1822 = sadd.s32 32, %s1245
          %s1823 = scalar_lea.vmem [#allocation2], %s1822
          // Predicated region
          $region421: #{tpu_custom_call.1} parent=291 // pred_check
            _
          $region422: #{tpu_custom_call.1} parent=291 // pred_check_branch
            %1825 = sbr.rel target = $region424
          $region423: #{tpu_custom_call.1} parent=291 // pred_region
            %1826 = sst [smem:[#allocation12]] [#allocation205]
            %1827 = sst [smem:[#allocation13]] [#allocation204]
          $region424: #{tpu_custom_call.1} parent=291 // pred_fallthru
            _
          %1829 = shalt.err (0)
          %s1831 = sshll.u32 %s1821, 4
          %s1832 = int_to_ptr.hbm [resolvable:$true] %s1831
          %s1833 = sshll.u32 %s1823, 4
          %s1834 = int_to_ptr.vmem [resolvable:$true] %s1833
          %1836 = dma.hbm_to_vmem [thread:$0]  %s1832, 16, %s1834, %s1247
          %s1837 = sadd.s32 %s1242, 33
          %s1838 = sld [smem:[#allocation5 + %s1837]]
          %s1839 = scalar_lea.hbm %s1, %s1838
          %s1840 = sadd.s32 33, %s1245
          %s1841 = scalar_lea.vmem [#allocation2], %s1840
          // Predicated region
          $region425: #{tpu_custom_call.1} parent=291 // pred_check
            _
          $region426: #{tpu_custom_call.1} parent=291 // pred_check_branch
            %1843 = sbr.rel target = $region428
          $region427: #{tpu_custom_call.1} parent=291 // pred_region
            %1844 = sst [smem:[#allocation12]] [#allocation207]
            %1845 = sst [smem:[#allocation13]] [#allocation206]
          $region428: #{tpu_custom_call.1} parent=291 // pred_fallthru
            _
          %1847 = shalt.err (0)
          %s1849 = sshll.u32 %s1839, 4
          %s1850 = int_to_ptr.hbm [resolvable:$true] %s1849
          %s1851 = sshll.u32 %s1841, 4
          %s1852 = int_to_ptr.vmem [resolvable:$true] %s1851
          %1854 = dma.hbm_to_vmem [thread:$0]  %s1850, 16, %s1852, %s1247
          %s1855 = sadd.s32 %s1242, 34
          %s1856 = sld [smem:[#allocation5 + %s1855]]
          %s1857 = scalar_lea.hbm %s1, %s1856
          %s1858 = sadd.s32 34, %s1245
          %s1859 = scalar_lea.vmem [#allocation2], %s1858
          // Predicated region
          $region429: #{tpu_custom_call.1} parent=291 // pred_check
            _
          $region430: #{tpu_custom_call.1} parent=291 // pred_check_branch
            %1861 = sbr.rel target = $region432
          $region431: #{tpu_custom_call.1} parent=291 // pred_region
            %1862 = sst [smem:[#allocation12]] [#allocation209]
            %1863 = sst [smem:[#allocation13]] [#allocation208]
          $region432: #{tpu_custom_call.1} parent=291 // pred_fallthru
            _
          %1865 = shalt.err (0)
          %s1867 = sshll.u32 %s1857, 4
          %s1868 = int_to_ptr.hbm [resolvable:$true] %s1867
          %s1869 = sshll.u32 %s1859, 4
          %s1870 = int_to_ptr.vmem [resolvable:$true] %s1869
          %1872 = dma.hbm_to_vmem [thread:$0]  %s1868, 16, %s1870, %s1247
          %s1873 = sadd.s32 %s1242, 35
          %s1874 = sld [smem:[#allocation5 + %s1873]]
          %s1875 = scalar_lea.hbm %s1, %s1874
          %s1876 = sadd.s32 35, %s1245
          %s1877 = scalar_lea.vmem [#allocation2], %s1876
          // Predicated region
          $region433: #{tpu_custom_call.1} parent=291 // pred_check
            _
          $region434: #{tpu_custom_call.1} parent=291 // pred_check_branch
            %1879 = sbr.rel target = $region436
          $region435: #{tpu_custom_call.1} parent=291 // pred_region
            %1880 = sst [smem:[#allocation12]] [#allocation211]
            %1881 = sst [smem:[#allocation13]] [#allocation210]
          $region436: #{tpu_custom_call.1} parent=291 // pred_fallthru
            _
          %1883 = shalt.err (0)
          %s1885 = sshll.u32 %s1875, 4
          %s1886 = int_to_ptr.hbm [resolvable:$true] %s1885
          %s1887 = sshll.u32 %s1877, 4
          %s1888 = int_to_ptr.vmem [resolvable:$true] %s1887
          %1890 = dma.hbm_to_vmem [thread:$0]  %s1886, 16, %s1888, %s1247
          %s1891 = sadd.s32 %s1242, 36
          %s1892 = sld [smem:[#allocation5 + %s1891]]
          %s1893 = scalar_lea.hbm %s1, %s1892
          %s1894 = sadd.s32 36, %s1245
          %s1895 = scalar_lea.vmem [#allocation2], %s1894
          // Predicated region
          $region437: #{tpu_custom_call.1} parent=291 // pred_check
            _
          $region438: #{tpu_custom_call.1} parent=291 // pred_check_branch
            %1897 = sbr.rel target = $region440
          $region439: #{tpu_custom_call.1} parent=291 // pred_region
            %1898 = sst [smem:[#allocation12]] [#allocation213]
            %1899 = sst [smem:[#allocation13]] [#allocation212]
          $region440: #{tpu_custom_call.1} parent=291 // pred_fallthru
            _
          %1901 = shalt.err (0)
          %s1903 = sshll.u32 %s1893, 4
          %s1904 = int_to_ptr.hbm [resolvable:$true] %s1903
          %s1905 = sshll.u32 %s1895, 4
          %s1906 = int_to_ptr.vmem [resolvable:$true] %s1905
          %1908 = dma.hbm_to_vmem [thread:$0]  %s1904, 16, %s1906, %s1247
          %s1909 = sadd.s32 %s1242, 37
          %s1910 = sld [smem:[#allocation5 + %s1909]]
          %s1911 = scalar_lea.hbm %s1, %s1910
          %s1912 = sadd.s32 37, %s1245
          %s1913 = scalar_lea.vmem [#allocation2], %s1912
          // Predicated region
          $region441: #{tpu_custom_call.1} parent=291 // pred_check
            _
          $region442: #{tpu_custom_call.1} parent=291 // pred_check_branch
            %1915 = sbr.rel target = $region444
          $region443: #{tpu_custom_call.1} parent=291 // pred_region
            %1916 = sst [smem:[#allocation12]] [#allocation215]
            %1917 = sst [smem:[#allocation13]] [#allocation214]
          $region444: #{tpu_custom_call.1} parent=291 // pred_fallthru
            _
          %1919 = shalt.err (0)
          %s1921 = sshll.u32 %s1911, 4
          %s1922 = int_to_ptr.hbm [resolvable:$true] %s1921
          %s1923 = sshll.u32 %s1913, 4
          %s1924 = int_to_ptr.vmem [resolvable:$true] %s1923
          %1926 = dma.hbm_to_vmem [thread:$0]  %s1922, 16, %s1924, %s1247
          %s1927 = sadd.s32 %s1242, 38
          %s1928 = sld [smem:[#allocation5 + %s1927]]
          %s1929 = scalar_lea.hbm %s1, %s1928
          %s1930 = sadd.s32 38, %s1245
          %s1931 = scalar_lea.vmem [#allocation2], %s1930
          // Predicated region
          $region445: #{tpu_custom_call.1} parent=291 // pred_check
            _
          $region446: #{tpu_custom_call.1} parent=291 // pred_check_branch
            %1933 = sbr.rel target = $region448
          $region447: #{tpu_custom_call.1} parent=291 // pred_region
            %1934 = sst [smem:[#allocation12]] [#allocation217]
            %1935 = sst [smem:[#allocation13]] [#allocation216]
          $region448: #{tpu_custom_call.1} parent=291 // pred_fallthru
            _
          %1937 = shalt.err (0)
          %s1939 = sshll.u32 %s1929, 4
          %s1940 = int_to_ptr.hbm [resolvable:$true] %s1939
          %s1941 = sshll.u32 %s1931, 4
          %s1942 = int_to_ptr.vmem [resolvable:$true] %s1941
          %1944 = dma.hbm_to_vmem [thread:$0]  %s1940, 16, %s1942, %s1247
          %s1945 = sadd.s32 %s1242, 39
          %s1946 = sld [smem:[#allocation5 + %s1945]]
          %s1947 = scalar_lea.hbm %s1, %s1946
          %s1948 = sadd.s32 39, %s1245
          %s1949 = scalar_lea.vmem [#allocation2], %s1948
          // Predicated region
          $region449: #{tpu_custom_call.1} parent=291 // pred_check
            _
          $region450: #{tpu_custom_call.1} parent=291 // pred_check_branch
            %1951 = sbr.rel target = $region452
          $region451: #{tpu_custom_call.1} parent=291 // pred_region
            %1952 = sst [smem:[#allocation12]] [#allocation219]
            %1953 = sst [smem:[#allocation13]] [#allocation218]
          $region452: #{tpu_custom_call.1} parent=291 // pred_fallthru
            _
          %1955 = shalt.err (0)
          %s1957 = sshll.u32 %s1947, 4
          %s1958 = int_to_ptr.hbm [resolvable:$true] %s1957
          %s1959 = sshll.u32 %s1949, 4
          %s1960 = int_to_ptr.vmem [resolvable:$true] %s1959
          %1962 = dma.hbm_to_vmem [thread:$0]  %s1958, 16, %s1960, %s1247
          %s1963 = sadd.s32 %s1242, 40
          %s1964 = sld [smem:[#allocation5 + %s1963]]
          %s1965 = scalar_lea.hbm %s1, %s1964
          %s1966 = sadd.s32 40, %s1245
          %s1967 = scalar_lea.vmem [#allocation2], %s1966
          // Predicated region
          $region453: #{tpu_custom_call.1} parent=291 // pred_check
            _
          $region454: #{tpu_custom_call.1} parent=291 // pred_check_branch
            %1969 = sbr.rel target = $region456
          $region455: #{tpu_custom_call.1} parent=291 // pred_region
            %1970 = sst [smem:[#allocation12]] [#allocation221]
            %1971 = sst [smem:[#allocation13]] [#allocation220]
          $region456: #{tpu_custom_call.1} parent=291 // pred_fallthru
            _
          %1973 = shalt.err (0)
          %s1975 = sshll.u32 %s1965, 4
          %s1976 = int_to_ptr.hbm [resolvable:$true] %s1975
          %s1977 = sshll.u32 %s1967, 4
          %s1978 = int_to_ptr.vmem [resolvable:$true] %s1977
          %1980 = dma.hbm_to_vmem [thread:$0]  %s1976, 16, %s1978, %s1247
          %s1981 = sadd.s32 %s1242, 41
          %s1982 = sld [smem:[#allocation5 + %s1981]]
          %s1983 = scalar_lea.hbm %s1, %s1982
          %s1984 = sadd.s32 41, %s1245
          %s1985 = scalar_lea.vmem [#allocation2], %s1984
          // Predicated region
          $region457: #{tpu_custom_call.1} parent=291 // pred_check
            _
          $region458: #{tpu_custom_call.1} parent=291 // pred_check_branch
            %1987 = sbr.rel target = $region460
          $region459: #{tpu_custom_call.1} parent=291 // pred_region
            %1988 = sst [smem:[#allocation12]] [#allocation223]
            %1989 = sst [smem:[#allocation13]] [#allocation222]
          $region460: #{tpu_custom_call.1} parent=291 // pred_fallthru
            _
          %1991 = shalt.err (0)
          %s1993 = sshll.u32 %s1983, 4
          %s1994 = int_to_ptr.hbm [resolvable:$true] %s1993
          %s1995 = sshll.u32 %s1985, 4
          %s1996 = int_to_ptr.vmem [resolvable:$true] %s1995
          %1998 = dma.hbm_to_vmem [thread:$0]  %s1994, 16, %s1996, %s1247
          %s1999 = sadd.s32 %s1242, 42
          %s2000 = sld [smem:[#allocation5 + %s1999]]
          %s2001 = scalar_lea.hbm %s1, %s2000
          %s2002 = sadd.s32 42, %s1245
          %s2003 = scalar_lea.vmem [#allocation2], %s2002
          // Predicated region
          $region461: #{tpu_custom_call.1} parent=291 // pred_check
            _
          $region462: #{tpu_custom_call.1} parent=291 // pred_check_branch
            %2005 = sbr.rel target = $region464
          $region463: #{tpu_custom_call.1} parent=291 // pred_region
            %2006 = sst [smem:[#allocation12]] [#allocation225]
            %2007 = sst [smem:[#allocation13]] [#allocation224]
          $region464: #{tpu_custom_call.1} parent=291 // pred_fallthru
            _
          %2009 = shalt.err (0)
          %s2011 = sshll.u32 %s2001, 4
          %s2012 = int_to_ptr.hbm [resolvable:$true] %s2011
          %s2013 = sshll.u32 %s2003, 4
          %s2014 = int_to_ptr.vmem [resolvable:$true] %s2013
          %2016 = dma.hbm_to_vmem [thread:$0]  %s2012, 16, %s2014, %s1247
          %s2017 = sadd.s32 %s1242, 43
          %s2018 = sld [smem:[#allocation5 + %s2017]]
          %s2019 = scalar_lea.hbm %s1, %s2018
          %s2020 = sadd.s32 43, %s1245
          %s2021 = scalar_lea.vmem [#allocation2], %s2020
          // Predicated region
          $region465: #{tpu_custom_call.1} parent=291 // pred_check
            _
          $region466: #{tpu_custom_call.1} parent=291 // pred_check_branch
            %2023 = sbr.rel target = $region468
          $region467: #{tpu_custom_call.1} parent=291 // pred_region
            %2024 = sst [smem:[#allocation12]] [#allocation227]
            %2025 = sst [smem:[#allocation13]] [#allocation226]
          $region468: #{tpu_custom_call.1} parent=291 // pred_fallthru
            _
          %2027 = shalt.err (0)
          %s2029 = sshll.u32 %s2019, 4
          %s2030 = int_to_ptr.hbm [resolvable:$true] %s2029
          %s2031 = sshll.u32 %s2021, 4
          %s2032 = int_to_ptr.vmem [resolvable:$true] %s2031
          %2034 = dma.hbm_to_vmem [thread:$0]  %s2030, 16, %s2032, %s1247
          %s2035 = sadd.s32 %s1242, 44
          %s2036 = sld [smem:[#allocation5 + %s2035]]
          %s2037 = scalar_lea.hbm %s1, %s2036
          %s2038 = sadd.s32 44, %s1245
          %s2039 = scalar_lea.vmem [#allocation2], %s2038
          // Predicated region
          $region469: #{tpu_custom_call.1} parent=291 // pred_check
            _
          $region470: #{tpu_custom_call.1} parent=291 // pred_check_branch
            %2041 = sbr.rel target = $region472
          $region471: #{tpu_custom_call.1} parent=291 // pred_region
            %2042 = sst [smem:[#allocation12]] [#allocation229]
            %2043 = sst [smem:[#allocation13]] [#allocation228]
          $region472: #{tpu_custom_call.1} parent=291 // pred_fallthru
            _
          %2045 = shalt.err (0)
          %s2047 = sshll.u32 %s2037, 4
          %s2048 = int_to_ptr.hbm [resolvable:$true] %s2047
          %s2049 = sshll.u32 %s2039, 4
          %s2050 = int_to_ptr.vmem [resolvable:$true] %s2049
          %2052 = dma.hbm_to_vmem [thread:$0]  %s2048, 16, %s2050, %s1247
          %s2053 = sadd.s32 %s1242, 45
          %s2054 = sld [smem:[#allocation5 + %s2053]]
          %s2055 = scalar_lea.hbm %s1, %s2054
          %s2056 = sadd.s32 45, %s1245
          %s2057 = scalar_lea.vmem [#allocation2], %s2056
          // Predicated region
          $region473: #{tpu_custom_call.1} parent=291 // pred_check
            _
          $region474: #{tpu_custom_call.1} parent=291 // pred_check_branch
            %2059 = sbr.rel target = $region476
          $region475: #{tpu_custom_call.1} parent=291 // pred_region
            %2060 = sst [smem:[#allocation12]] [#allocation231]
            %2061 = sst [smem:[#allocation13]] [#allocation230]
          $region476: #{tpu_custom_call.1} parent=291 // pred_fallthru
            _
          %2063 = shalt.err (0)
          %s2065 = sshll.u32 %s2055, 4
          %s2066 = int_to_ptr.hbm [resolvable:$true] %s2065
          %s2067 = sshll.u32 %s2057, 4
          %s2068 = int_to_ptr.vmem [resolvable:$true] %s2067
          %2070 = dma.hbm_to_vmem [thread:$0]  %s2066, 16, %s2068, %s1247
          %s2071 = sadd.s32 %s1242, 46
          %s2072 = sld [smem:[#allocation5 + %s2071]]
          %s2073 = scalar_lea.hbm %s1, %s2072
          %s2074 = sadd.s32 46, %s1245
          %s2075 = scalar_lea.vmem [#allocation2], %s2074
          // Predicated region
          $region477: #{tpu_custom_call.1} parent=291 // pred_check
            _
          $region478: #{tpu_custom_call.1} parent=291 // pred_check_branch
            %2077 = sbr.rel target = $region480
          $region479: #{tpu_custom_call.1} parent=291 // pred_region
            %2078 = sst [smem:[#allocation12]] [#allocation233]
            %2079 = sst [smem:[#allocation13]] [#allocation232]
          $region480: #{tpu_custom_call.1} parent=291 // pred_fallthru
            _
          %2081 = shalt.err (0)
          %s2083 = sshll.u32 %s2073, 4
          %s2084 = int_to_ptr.hbm [resolvable:$true] %s2083
          %s2085 = sshll.u32 %s2075, 4
          %s2086 = int_to_ptr.vmem [resolvable:$true] %s2085
          %2088 = dma.hbm_to_vmem [thread:$0]  %s2084, 16, %s2086, %s1247
          %s2089 = sadd.s32 %s1242, 47
          %s2090 = sld [smem:[#allocation5 + %s2089]]
          %s2091 = scalar_lea.hbm %s1, %s2090
          %s2092 = sadd.s32 47, %s1245
          %s2093 = scalar_lea.vmem [#allocation2], %s2092
          // Predicated region
          $region481: #{tpu_custom_call.1} parent=291 // pred_check
            _
          $region482: #{tpu_custom_call.1} parent=291 // pred_check_branch
            %2095 = sbr.rel target = $region484
          $region483: #{tpu_custom_call.1} parent=291 // pred_region
            %2096 = sst [smem:[#allocation12]] [#allocation235]
            %2097 = sst [smem:[#allocation13]] [#allocation234]
          $region484: #{tpu_custom_call.1} parent=291 // pred_fallthru
            _
          %2099 = shalt.err (0)
          %s2101 = sshll.u32 %s2091, 4
          %s2102 = int_to_ptr.hbm [resolvable:$true] %s2101
          %s2103 = sshll.u32 %s2093, 4
          %s2104 = int_to_ptr.vmem [resolvable:$true] %s2103
          %2106 = dma.hbm_to_vmem [thread:$0]  %s2102, 16, %s2104, %s1247
          %s2107 = sadd.s32 %s1242, 48
          %s2108 = sld [smem:[#allocation5 + %s2107]]
          %s2109 = scalar_lea.hbm %s1, %s2108
          %s2110 = sadd.s32 48, %s1245
          %s2111 = scalar_lea.vmem [#allocation2], %s2110
          // Predicated region
          $region485: #{tpu_custom_call.1} parent=291 // pred_check
            _
          $region486: #{tpu_custom_call.1} parent=291 // pred_check_branch
            %2113 = sbr.rel target = $region488
          $region487: #{tpu_custom_call.1} parent=291 // pred_region
            %2114 = sst [smem:[#allocation12]] [#allocation237]
            %2115 = sst [smem:[#allocation13]] [#allocation236]
          $region488: #{tpu_custom_call.1} parent=291 // pred_fallthru
            _
          %2117 = shalt.err (0)
          %s2119 = sshll.u32 %s2109, 4
          %s2120 = int_to_ptr.hbm [resolvable:$true] %s2119
          %s2121 = sshll.u32 %s2111, 4
          %s2122 = int_to_ptr.vmem [resolvable:$true] %s2121
          %2124 = dma.hbm_to_vmem [thread:$0]  %s2120, 16, %s2122, %s1247
          %s2125 = sadd.s32 %s1242, 49
          %s2126 = sld [smem:[#allocation5 + %s2125]]
          %s2127 = scalar_lea.hbm %s1, %s2126
          %s2128 = sadd.s32 49, %s1245
          %s2129 = scalar_lea.vmem [#allocation2], %s2128
          // Predicated region
          $region489: #{tpu_custom_call.1} parent=291 // pred_check
            _
          $region490: #{tpu_custom_call.1} parent=291 // pred_check_branch
            %2131 = sbr.rel target = $region492
          $region491: #{tpu_custom_call.1} parent=291 // pred_region
            %2132 = sst [smem:[#allocation12]] [#allocation239]
            %2133 = sst [smem:[#allocation13]] [#allocation238]
          $region492: #{tpu_custom_call.1} parent=291 // pred_fallthru
            _
          %2135 = shalt.err (0)
          %s2137 = sshll.u32 %s2127, 4
          %s2138 = int_to_ptr.hbm [resolvable:$true] %s2137
          %s2139 = sshll.u32 %s2129, 4
          %s2140 = int_to_ptr.vmem [resolvable:$true] %s2139
          %2142 = dma.hbm_to_vmem [thread:$0]  %s2138, 16, %s2140, %s1247
          %s2143 = sadd.s32 %s1242, 50
          %s2144 = sld [smem:[#allocation5 + %s2143]]
          %s2145 = scalar_lea.hbm %s1, %s2144
          %s2146 = sadd.s32 50, %s1245
          %s2147 = scalar_lea.vmem [#allocation2], %s2146
          // Predicated region
          $region493: #{tpu_custom_call.1} parent=291 // pred_check
            _
          $region494: #{tpu_custom_call.1} parent=291 // pred_check_branch
            %2149 = sbr.rel target = $region496
          $region495: #{tpu_custom_call.1} parent=291 // pred_region
            %2150 = sst [smem:[#allocation12]] [#allocation241]
            %2151 = sst [smem:[#allocation13]] [#allocation240]
          $region496: #{tpu_custom_call.1} parent=291 // pred_fallthru
            _
          %2153 = shalt.err (0)
          %s2155 = sshll.u32 %s2145, 4
          %s2156 = int_to_ptr.hbm [resolvable:$true] %s2155
          %s2157 = sshll.u32 %s2147, 4
          %s2158 = int_to_ptr.vmem [resolvable:$true] %s2157
          %2160 = dma.hbm_to_vmem [thread:$0]  %s2156, 16, %s2158, %s1247
          %s2161 = sadd.s32 %s1242, 51
          %s2162 = sld [smem:[#allocation5 + %s2161]]
          %s2163 = scalar_lea.hbm %s1, %s2162
          %s2164 = sadd.s32 51, %s1245
          %s2165 = scalar_lea.vmem [#allocation2], %s2164
          // Predicated region
          $region497: #{tpu_custom_call.1} parent=291 // pred_check
            _
          $region498: #{tpu_custom_call.1} parent=291 // pred_check_branch
            %2167 = sbr.rel target = $region500
          $region499: #{tpu_custom_call.1} parent=291 // pred_region
            %2168 = sst [smem:[#allocation12]] [#allocation243]
            %2169 = sst [smem:[#allocation13]] [#allocation242]
          $region500: #{tpu_custom_call.1} parent=291 // pred_fallthru
            _
          %2171 = shalt.err (0)
          %s2173 = sshll.u32 %s2163, 4
          %s2174 = int_to_ptr.hbm [resolvable:$true] %s2173
          %s2175 = sshll.u32 %s2165, 4
          %s2176 = int_to_ptr.vmem [resolvable:$true] %s2175
          %2178 = dma.hbm_to_vmem [thread:$0]  %s2174, 16, %s2176, %s1247
          %s2179 = sadd.s32 %s1242, 52
          %s2180 = sld [smem:[#allocation5 + %s2179]]
          %s2181 = scalar_lea.hbm %s1, %s2180
          %s2182 = sadd.s32 52, %s1245
          %s2183 = scalar_lea.vmem [#allocation2], %s2182
          // Predicated region
          $region501: #{tpu_custom_call.1} parent=291 // pred_check
            _
          $region502: #{tpu_custom_call.1} parent=291 // pred_check_branch
            %2185 = sbr.rel target = $region504
          $region503: #{tpu_custom_call.1} parent=291 // pred_region
            %2186 = sst [smem:[#allocation12]] [#allocation245]
            %2187 = sst [smem:[#allocation13]] [#allocation244]
          $region504: #{tpu_custom_call.1} parent=291 // pred_fallthru
            _
          %2189 = shalt.err (0)
          %s2191 = sshll.u32 %s2181, 4
          %s2192 = int_to_ptr.hbm [resolvable:$true] %s2191
          %s2193 = sshll.u32 %s2183, 4
          %s2194 = int_to_ptr.vmem [resolvable:$true] %s2193
          %2196 = dma.hbm_to_vmem [thread:$0]  %s2192, 16, %s2194, %s1247
          %s2197 = sadd.s32 %s1242, 53
          %s2198 = sld [smem:[#allocation5 + %s2197]]
          %s2199 = scalar_lea.hbm %s1, %s2198
          %s2200 = sadd.s32 53, %s1245
          %s2201 = scalar_lea.vmem [#allocation2], %s2200
          // Predicated region
          $region505: #{tpu_custom_call.1} parent=291 // pred_check
            _
          $region506: #{tpu_custom_call.1} parent=291 // pred_check_branch
            %2203 = sbr.rel target = $region508
          $region507: #{tpu_custom_call.1} parent=291 // pred_region
            %2204 = sst [smem:[#allocation12]] [#allocation247]
            %2205 = sst [smem:[#allocation13]] [#allocation246]
          $region508: #{tpu_custom_call.1} parent=291 // pred_fallthru
            _
          %2207 = shalt.err (0)
          %s2209 = sshll.u32 %s2199, 4
          %s2210 = int_to_ptr.hbm [resolvable:$true] %s2209
          %s2211 = sshll.u32 %s2201, 4
          %s2212 = int_to_ptr.vmem [resolvable:$true] %s2211
          %2214 = dma.hbm_to_vmem [thread:$0]  %s2210, 16, %s2212, %s1247
          %s2215 = sadd.s32 %s1242, 54
          %s2216 = sld [smem:[#allocation5 + %s2215]]
          %s2217 = scalar_lea.hbm %s1, %s2216
          %s2218 = sadd.s32 54, %s1245
          %s2219 = scalar_lea.vmem [#allocation2], %s2218
          // Predicated region
          $region509: #{tpu_custom_call.1} parent=291 // pred_check
            _
          $region510: #{tpu_custom_call.1} parent=291 // pred_check_branch
            %2221 = sbr.rel target = $region512
          $region511: #{tpu_custom_call.1} parent=291 // pred_region
            %2222 = sst [smem:[#allocation12]] [#allocation249]
            %2223 = sst [smem:[#allocation13]] [#allocation248]
          $region512: #{tpu_custom_call.1} parent=291 // pred_fallthru
            _
          %2225 = shalt.err (0)
          %s2227 = sshll.u32 %s2217, 4
          %s2228 = int_to_ptr.hbm [resolvable:$true] %s2227
          %s2229 = sshll.u32 %s2219, 4
          %s2230 = int_to_ptr.vmem [resolvable:$true] %s2229
          %2232 = dma.hbm_to_vmem [thread:$0]  %s2228, 16, %s2230, %s1247
          %s2233 = sadd.s32 %s1242, 55
          %s2234 = sld [smem:[#allocation5 + %s2233]]
          %s2235 = scalar_lea.hbm %s1, %s2234
          %s2236 = sadd.s32 55, %s1245
          %s2237 = scalar_lea.vmem [#allocation2], %s2236
          // Predicated region
          $region513: #{tpu_custom_call.1} parent=291 // pred_check
            _
          $region514: #{tpu_custom_call.1} parent=291 // pred_check_branch
            %2239 = sbr.rel target = $region516
          $region515: #{tpu_custom_call.1} parent=291 // pred_region
            %2240 = sst [smem:[#allocation12]] [#allocation251]
            %2241 = sst [smem:[#allocation13]] [#allocation250]
          $region516: #{tpu_custom_call.1} parent=291 // pred_fallthru
            _
          %2243 = shalt.err (0)
          %s2245 = sshll.u32 %s2235, 4
          %s2246 = int_to_ptr.hbm [resolvable:$true] %s2245
          %s2247 = sshll.u32 %s2237, 4
          %s2248 = int_to_ptr.vmem [resolvable:$true] %s2247
          %2250 = dma.hbm_to_vmem [thread:$0]  %s2246, 16, %s2248, %s1247
          %s2251 = sadd.s32 %s1242, 56
          %s2252 = sld [smem:[#allocation5 + %s2251]]
          %s2253 = scalar_lea.hbm %s1, %s2252
          %s2254 = sadd.s32 56, %s1245
          %s2255 = scalar_lea.vmem [#allocation2], %s2254
          // Predicated region
          $region517: #{tpu_custom_call.1} parent=291 // pred_check
            _
          $region518: #{tpu_custom_call.1} parent=291 // pred_check_branch
            %2257 = sbr.rel target = $region520
          $region519: #{tpu_custom_call.1} parent=291 // pred_region
            %2258 = sst [smem:[#allocation12]] [#allocation253]
            %2259 = sst [smem:[#allocation13]] [#allocation252]
          $region520: #{tpu_custom_call.1} parent=291 // pred_fallthru
            _
          %2261 = shalt.err (0)
          %s2263 = sshll.u32 %s2253, 4
          %s2264 = int_to_ptr.hbm [resolvable:$true] %s2263
          %s2265 = sshll.u32 %s2255, 4
          %s2266 = int_to_ptr.vmem [resolvable:$true] %s2265
          %2268 = dma.hbm_to_vmem [thread:$0]  %s2264, 16, %s2266, %s1247
          %s2269 = sadd.s32 %s1242, 57
          %s2270 = sld [smem:[#allocation5 + %s2269]]
          %s2271 = scalar_lea.hbm %s1, %s2270
          %s2272 = sadd.s32 57, %s1245
          %s2273 = scalar_lea.vmem [#allocation2], %s2272
          // Predicated region
          $region521: #{tpu_custom_call.1} parent=291 // pred_check
            _
          $region522: #{tpu_custom_call.1} parent=291 // pred_check_branch
            %2275 = sbr.rel target = $region524
          $region523: #{tpu_custom_call.1} parent=291 // pred_region
            %2276 = sst [smem:[#allocation12]] [#allocation255]
            %2277 = sst [smem:[#allocation13]] [#allocation254]
          $region524: #{tpu_custom_call.1} parent=291 // pred_fallthru
            _
          %2279 = shalt.err (0)
          %s2281 = sshll.u32 %s2271, 4
          %s2282 = int_to_ptr.hbm [resolvable:$true] %s2281
          %s2283 = sshll.u32 %s2273, 4
          %s2284 = int_to_ptr.vmem [resolvable:$true] %s2283
          %2286 = dma.hbm_to_vmem [thread:$0]  %s2282, 16, %s2284, %s1247
          %s2287 = sadd.s32 %s1242, 58
          %s2288 = sld [smem:[#allocation5 + %s2287]]
          %s2289 = scalar_lea.hbm %s1, %s2288
          %s2290 = sadd.s32 58, %s1245
          %s2291 = scalar_lea.vmem [#allocation2], %s2290
          // Predicated region
          $region525: #{tpu_custom_call.1} parent=291 // pred_check
            _
          $region526: #{tpu_custom_call.1} parent=291 // pred_check_branch
            %2293 = sbr.rel target = $region528
          $region527: #{tpu_custom_call.1} parent=291 // pred_region
            %2294 = sst [smem:[#allocation12]] [#allocation257]
            %2295 = sst [smem:[#allocation13]] [#allocation256]
          $region528: #{tpu_custom_call.1} parent=291 // pred_fallthru
            _
          %2297 = shalt.err (0)
          %s2299 = sshll.u32 %s2289, 4
          %s2300 = int_to_ptr.hbm [resolvable:$true] %s2299
          %s2301 = sshll.u32 %s2291, 4
          %s2302 = int_to_ptr.vmem [resolvable:$true] %s2301
          %2304 = dma.hbm_to_vmem [thread:$0]  %s2300, 16, %s2302, %s1247
          %s2305 = sadd.s32 %s1242, 59
          %s2306 = sld [smem:[#allocation5 + %s2305]]
          %s2307 = scalar_lea.hbm %s1, %s2306
          %s2308 = sadd.s32 59, %s1245
          %s2309 = scalar_lea.vmem [#allocation2], %s2308
          // Predicated region
          $region529: #{tpu_custom_call.1} parent=291 // pred_check
            _
          $region530: #{tpu_custom_call.1} parent=291 // pred_check_branch
            %2311 = sbr.rel target = $region532
          $region531: #{tpu_custom_call.1} parent=291 // pred_region
            %2312 = sst [smem:[#allocation12]] [#allocation259]
            %2313 = sst [smem:[#allocation13]] [#allocation258]
          $region532: #{tpu_custom_call.1} parent=291 // pred_fallthru
            _
          %2315 = shalt.err (0)
          %s2317 = sshll.u32 %s2307, 4
          %s2318 = int_to_ptr.hbm [resolvable:$true] %s2317
          %s2319 = sshll.u32 %s2309, 4
          %s2320 = int_to_ptr.vmem [resolvable:$true] %s2319
          %2322 = dma.hbm_to_vmem [thread:$0]  %s2318, 16, %s2320, %s1247
          %s2323 = sadd.s32 %s1242, 60
          %s2324 = sld [smem:[#allocation5 + %s2323]]
          %s2325 = scalar_lea.hbm %s1, %s2324
          %s2326 = sadd.s32 60, %s1245
          %s2327 = scalar_lea.vmem [#allocation2], %s2326
          // Predicated region
          $region533: #{tpu_custom_call.1} parent=291 // pred_check
            _
          $region534: #{tpu_custom_call.1} parent=291 // pred_check_branch
            %2329 = sbr.rel target = $region536
          $region535: #{tpu_custom_call.1} parent=291 // pred_region
            %2330 = sst [smem:[#allocation12]] [#allocation261]
            %2331 = sst [smem:[#allocation13]] [#allocation260]
          $region536: #{tpu_custom_call.1} parent=291 // pred_fallthru
            _
          %2333 = shalt.err (0)
          %s2335 = sshll.u32 %s2325, 4
          %s2336 = int_to_ptr.hbm [resolvable:$true] %s2335
          %s2337 = sshll.u32 %s2327, 4
          %s2338 = int_to_ptr.vmem [resolvable:$true] %s2337
          %2340 = dma.hbm_to_vmem [thread:$0]  %s2336, 16, %s2338, %s1247
          %s2341 = sadd.s32 %s1242, 61
          %s2342 = sld [smem:[#allocation5 + %s2341]]
          %s2343 = scalar_lea.hbm %s1, %s2342
          %s2344 = sadd.s32 61, %s1245
          %s2345 = scalar_lea.vmem [#allocation2], %s2344
          // Predicated region
          $region537: #{tpu_custom_call.1} parent=291 // pred_check
            _
          $region538: #{tpu_custom_call.1} parent=291 // pred_check_branch
            %2347 = sbr.rel target = $region540
          $region539: #{tpu_custom_call.1} parent=291 // pred_region
            %2348 = sst [smem:[#allocation12]] [#allocation263]
            %2349 = sst [smem:[#allocation13]] [#allocation262]
          $region540: #{tpu_custom_call.1} parent=291 // pred_fallthru
            _
          %2351 = shalt.err (0)
          %s2353 = sshll.u32 %s2343, 4
          %s2354 = int_to_ptr.hbm [resolvable:$true] %s2353
          %s2355 = sshll.u32 %s2345, 4
          %s2356 = int_to_ptr.vmem [resolvable:$true] %s2355
          %2358 = dma.hbm_to_vmem [thread:$0]  %s2354, 16, %s2356, %s1247
          %s2359 = sadd.s32 %s1242, 62
          %s2360 = sld [smem:[#allocation5 + %s2359]]
          %s2361 = scalar_lea.hbm %s1, %s2360
          %s2362 = sadd.s32 62, %s1245
          %s2363 = scalar_lea.vmem [#allocation2], %s2362
          // Predicated region
          $region541: #{tpu_custom_call.1} parent=291 // pred_check
            _
          $region542: #{tpu_custom_call.1} parent=291 // pred_check_branch
            %2365 = sbr.rel target = $region544
          $region543: #{tpu_custom_call.1} parent=291 // pred_region
            %2366 = sst [smem:[#allocation12]] [#allocation265]
            %2367 = sst [smem:[#allocation13]] [#allocation264]
          $region544: #{tpu_custom_call.1} parent=291 // pred_fallthru
            _
          %2369 = shalt.err (0)
          %s2371 = sshll.u32 %s2361, 4
          %s2372 = int_to_ptr.hbm [resolvable:$true] %s2371
          %s2373 = sshll.u32 %s2363, 4
          %s2374 = int_to_ptr.vmem [resolvable:$true] %s2373
          %2376 = dma.hbm_to_vmem [thread:$0]  %s2372, 16, %s2374, %s1247
          %s2377 = sadd.s32 %s1242, 63
          %s2378 = sld [smem:[#allocation5 + %s2377]]
          %s2379 = scalar_lea.hbm %s1, %s2378
          %s2380 = sadd.s32 63, %s1245
          %s2381 = scalar_lea.vmem [#allocation2], %s2380
          // Predicated region
          $region545: #{tpu_custom_call.1} parent=291 // pred_check
            _
          $region546: #{tpu_custom_call.1} parent=291 // pred_check_branch
            %2383 = sbr.rel target = $region548
          $region547: #{tpu_custom_call.1} parent=291 // pred_region
            %2384 = sst [smem:[#allocation12]] [#allocation267]
            %2385 = sst [smem:[#allocation13]] [#allocation266]
          $region548: #{tpu_custom_call.1} parent=291 // pred_fallthru
            _
          %2387 = shalt.err (0)
          %s2389 = sshll.u32 %s2379, 4
          %s2390 = int_to_ptr.hbm [resolvable:$true] %s2389
          %s2391 = sshll.u32 %s2381, 4
          %s2392 = int_to_ptr.vmem [resolvable:$true] %s2391
          %2394 = dma.hbm_to_vmem [thread:$0]  %s2390, 16, %s2392, %s1247
        $region292: #{tpu_custom_call.1} parent=23 // pred_fallthru
          _
        %s2395 = scalar_lea.sflag [#allocation3], %s142
        %s2396 = smul.u32 1, 1
        %s2397 = sshll.u32 %s2396, 4
        %2398 = dma.done %s2395, %s2397
        %s2399 = sshll.u32 %s2396, 4
        %2400 = dma.done %s2395, %s2399
        %s2401 = sshll.u32 %s2396, 4
        %2402 = dma.done %s2395, %s2401
        %s2403 = sshll.u32 %s2396, 4
        %2404 = dma.done %s2395, %s2403
        %s2405 = sshll.u32 %s2396, 4
        %2406 = dma.done %s2395, %s2405
        %s2407 = sshll.u32 %s2396, 4
        %2408 = dma.done %s2395, %s2407
        %s2409 = sshll.u32 %s2396, 4
        %2410 = dma.done %s2395, %s2409
        %s2411 = sshll.u32 %s2396, 4
        %2412 = dma.done %s2395, %s2411
        %s2413 = sshll.u32 %s2396, 4
        %2414 = dma.done %s2395, %s2413
        %s2415 = sshll.u32 %s2396, 4
        %2416 = dma.done %s2395, %s2415
        %s2417 = sshll.u32 %s2396, 4
        %2418 = dma.done %s2395, %s2417
        %s2419 = sshll.u32 %s2396, 4
        %2420 = dma.done %s2395, %s2419
        %s2421 = sshll.u32 %s2396, 4
        %2422 = dma.done %s2395, %s2421
        %s2423 = sshll.u32 %s2396, 4
        %2424 = dma.done %s2395, %s2423
        %s2425 = sshll.u32 %s2396, 4
        %2426 = dma.done %s2395, %s2425
        %s2427 = sshll.u32 %s2396, 4
        %2428 = dma.done %s2395, %s2427
        %s2429 = sshll.u32 %s2396, 4
        %2430 = dma.done %s2395, %s2429
        %s2431 = sshll.u32 %s2396, 4
        %2432 = dma.done %s2395, %s2431
        %s2433 = sshll.u32 %s2396, 4
        %2434 = dma.done %s2395, %s2433
        %s2435 = sshll.u32 %s2396, 4
        %2436 = dma.done %s2395, %s2435
        %s2437 = sshll.u32 %s2396, 4
        %2438 = dma.done %s2395, %s2437
        %s2439 = sshll.u32 %s2396, 4
        %2440 = dma.done %s2395, %s2439
        %s2441 = sshll.u32 %s2396, 4
        %2442 = dma.done %s2395, %s2441
        %s2443 = sshll.u32 %s2396, 4
        %2444 = dma.done %s2395, %s2443
        %s2445 = sshll.u32 %s2396, 4
        %2446 = dma.done %s2395, %s2445
        %s2447 = sshll.u32 %s2396, 4
        %2448 = dma.done %s2395, %s2447
        %s2449 = sshll.u32 %s2396, 4
        %2450 = dma.done %s2395, %s2449
        %s2451 = sshll.u32 %s2396, 4
        %2452 = dma.done %s2395, %s2451
        %s2453 = sshll.u32 %s2396, 4
        %2454 = dma.done %s2395, %s2453
        %s2455 = sshll.u32 %s2396, 4
        %2456 = dma.done %s2395, %s2455
        %s2457 = sshll.u32 %s2396, 4
        %2458 = dma.done %s2395, %s2457
        %s2459 = sshll.u32 %s2396, 4
        %2460 = dma.done %s2395, %s2459
        %s2461 = sshll.u32 %s2396, 4
        %2462 = dma.done %s2395, %s2461
        %s2463 = sshll.u32 %s2396, 4
        %2464 = dma.done %s2395, %s2463
        %s2465 = sshll.u32 %s2396, 4
        %2466 = dma.done %s2395, %s2465
        %s2467 = sshll.u32 %s2396, 4
        %2468 = dma.done %s2395, %s2467
        %s2469 = sshll.u32 %s2396, 4
        %2470 = dma.done %s2395, %s2469
        %s2471 = sshll.u32 %s2396, 4
        %2472 = dma.done %s2395, %s2471
        %s2473 = sshll.u32 %s2396, 4
        %2474 = dma.done %s2395, %s2473
        %s2475 = sshll.u32 %s2396, 4
        %2476 = dma.done %s2395, %s2475
        %s2477 = sshll.u32 %s2396, 4
        %2478 = dma.done %s2395, %s2477
        %s2479 = sshll.u32 %s2396, 4
        %2480 = dma.done %s2395, %s2479
        %s2481 = sshll.u32 %s2396, 4
        %2482 = dma.done %s2395, %s2481
        %s2483 = sshll.u32 %s2396, 4
        %2484 = dma.done %s2395, %s2483
        %s2485 = sshll.u32 %s2396, 4
        %2486 = dma.done %s2395, %s2485
        %s2487 = sshll.u32 %s2396, 4
        %2488 = dma.done %s2395, %s2487
        %s2489 = sshll.u32 %s2396, 4
        %2490 = dma.done %s2395, %s2489
        %s2491 = sshll.u32 %s2396, 4
        %2492 = dma.done %s2395, %s2491
        %s2493 = sshll.u32 %s2396, 4
        %2494 = dma.done %s2395, %s2493
        %s2495 = sshll.u32 %s2396, 4
        %2496 = dma.done %s2395, %s2495
        %s2497 = sshll.u32 %s2396, 4
        %2498 = dma.done %s2395, %s2497
        %s2499 = sshll.u32 %s2396, 4
        %2500 = dma.done %s2395, %s2499
        %s2501 = sshll.u32 %s2396, 4
        %2502 = dma.done %s2395, %s2501
        %s2503 = sshll.u32 %s2396, 4
        %2504 = dma.done %s2395, %s2503
        %s2505 = sshll.u32 %s2396, 4
        %2506 = dma.done %s2395, %s2505
        %s2507 = sshll.u32 %s2396, 4
        %2508 = dma.done %s2395, %s2507
        %s2509 = sshll.u32 %s2396, 4
        %2510 = dma.done %s2395, %s2509
        %s2511 = sshll.u32 %s2396, 4
        %2512 = dma.done %s2395, %s2511
        %s2513 = sshll.u32 %s2396, 4
        %2514 = dma.done %s2395, %s2513
        %s2515 = sshll.u32 %s2396, 4
        %2516 = dma.done %s2395, %s2515
        %s2517 = sshll.u32 %s2396, 4
        %2518 = dma.done %s2395, %s2517
        %s2519 = sshll.u32 %s2396, 4
        %2520 = dma.done %s2395, %s2519
        %s2521 = sshll.u32 %s2396, 4
        %2522 = dma.done %s2395, %s2521
        %s2523 = sshll.u32 %s2396, 4
        %2524 = dma.done %s2395, %s2523
        %s2525 = smul.u32 %s31, 64
        %s2526 = smul.u32 %s142, 64
        %s2527 = scalar_lea.vmem [#allocation2], %s2526
        %v2528 = vld [vmem:[%s2527] sm:$0xff]
        %v2529 = vld [vmem:[%s2527 + $0x8] sm:$0xff]
        %v2530 = vld [vmem:[%s2527 + $0x10] sm:$0xff]
        %v2531 = vld [vmem:[%s2527 + $0x18] sm:$0xff]
        %v2532 = vld [vmem:[%s2527 + $0x20] sm:$0xff]
        %v2533 = vld [vmem:[%s2527 + $0x28] sm:$0xff]
        %v2534 = vld [vmem:[%s2527 + $0x30] sm:$0xff]
        %v2535 = vld [vmem:[%s2527 + $0x38] sm:$0xff]
        %s2536 = scalar_lea.vmem [#allocation6], %s2525
        %v2537 = vld [vmem:[%s2536] sm:$0xff]
        %v2538 = vld [vmem:[%s2536 + $0x8] sm:$0xff]
        %v2539 = vld [vmem:[%s2536 + $0x10] sm:$0xff]
        %v2540 = vld [vmem:[%s2536 + $0x18] sm:$0xff]
        %v2541 = vld [vmem:[%s2536 + $0x20] sm:$0xff]
        %v2542 = vld [vmem:[%s2536 + $0x28] sm:$0xff]
        %v2543 = vld [vmem:[%s2536 + $0x30] sm:$0xff]
        %v2544 = vld [vmem:[%s2536 + $0x38] sm:$0xff]
        %v2545 = vadd.f32 %v2528, %v2537
        %v2546 = vadd.f32 %v2529, %v2538
        %v2547 = vadd.f32 %v2530, %v2539
        %v2548 = vadd.f32 %v2531, %v2540
        %v2549 = vadd.f32 %v2532, %v2541
        %v2550 = vadd.f32 %v2533, %v2542
        %v2551 = vadd.f32 %v2534, %v2543
        %v2552 = vadd.f32 %v2535, %v2544
        %2553 = vst [vmem:[%s135] sm:$0xff] %v2545
        %2554 = vst [vmem:[%s135 + $0x8] sm:$0xff] %v2546
        %2555 = vst [vmem:[%s135 + $0x10] sm:$0xff] %v2547
        %2556 = vst [vmem:[%s135 + $0x18] sm:$0xff] %v2548
        %2557 = vst [vmem:[%s135 + $0x20] sm:$0xff] %v2549
        %2558 = vst [vmem:[%s135 + $0x28] sm:$0xff] %v2550
        %2559 = vst [vmem:[%s135 + $0x30] sm:$0xff] %v2551
        %2560 = vst [vmem:[%s135 + $0x38] sm:$0xff] %v2552
        %s2561 = sand.u32 %s69, 1
        %s2562 = scalar_lea.sflag [#allocation8], %s2561
        %s2563 = sand.u32 %s69, 1
        %s2564 = smul.addr %s2563, 64
        %s2565 = scalar_lea.vmem [#allocation9], %s2564
        // Predicated region
        $region549: #{tpu_custom_call.1} parent=23 // pred_check
          %p2566 = pneg %p79
        $region550: #{tpu_custom_call.1} parent=23 // pred_check_branch
          %2568 = sbr.rel (%p2566) target = $region552
        $region551: #{tpu_custom_call.1} parent=23 // pred_region
          %s2569 = smul.u32 8, %s31
          %2571 = vsyncadd %s2562, 0
          %s2572 = smul.addr %s30, 16
          %s2573 = sadd.s32 %s2569, %s2572
          %s2574 = smul.addr %s2573, 8
          %s2575 = scalar_lea.hbm %s3, %s2574
          %s2576 = sshll.u32 %s2565, 4
          %s2577 = int_to_ptr.vmem [resolvable:$true] %s2576
          %s2578 = sshll.u32 %s2575, 4
          %s2579 = int_to_ptr.hbm [resolvable:$true] %s2578
          %2584 = dma.vmem_to_hbm [thread:$0]  %s2577, 1024, %s2579, %s2562, 128, 128, 8
        $region552: #{tpu_custom_call.1} parent=23 // pred_fallthru
          _
      $region24: #{tpu_custom_call.1} parent=5 // pred_fallthru
        _
      %p2585 = scmp.le.s32.totalorder 2, %s21
      // Predicated region
      $region553: #{tpu_custom_call.1} parent=5 // pred_check
        %p2586 = pneg %p2585
      $region554: #{tpu_custom_call.1} parent=5 // pred_check_branch
        %2588 = sbr.rel (%p2586) target = $region556
      $region555: #{tpu_custom_call.1} parent=5 // pred_region
        %s2589 = ssub.s32 %s21, 2
        // Predicated region
        $region557: #{tpu_custom_call.1} parent=555 // pred_check
          %p2590 = pneg %p85
        $region558: #{tpu_custom_call.1} parent=555 // pred_check_branch
          %2592 = sbr.rel (%p2590) target = $region560
        $region559: #{tpu_custom_call.1} parent=555 // pred_region
          %s2593 = sand.u32 %s70, 1
          %s2594 = scalar_lea.sflag [#allocation8], %s2593
          %s2595 = sand.u32 %s70, 1
          %s2596 = smul.addr %s2595, 64
          %s2597 = scalar_lea.vmem [#allocation9], %s2596
          %2599 = dma.done %s2594, 1024
        $region560: #{tpu_custom_call.1} parent=555 // pred_fallthru
          _
      $region556: #{tpu_custom_call.1} parent=5 // pred_fallthru
        _
    $region6: #{tpu_custom_call.1} parent=1 // loop_footer
      %s25 = sadd.s32 1, %s21
    $region7: #{tpu_custom_call.1} parent=1 // loop_footer_branch
      %20 = sbr.rel target = $region3
    $region8: #{tpu_custom_call.1} parent=1 // loop_exit
      _
    %2600 = vsyncpa [#allocation7], 1
    %s2601 = scalar_lea.sflag [#allocation7], 1
    %2602 = vsyncpa %s2601, 1
    %2603 = vsyncpa [#allocation8], 1
    %s2604 = scalar_lea.sflag [#allocation8], 1
    %2605 = vsyncpa %s2604, 1
  %2606 = vsyncmov [#allocation3]
  %s2607 = vpop.sfrf %2606
  %p2608 = scmp.eq.s32.totalorder %s2607, 0
  %p2609 = pneg %p2608
  %2611 = shalt.err (%p2609)
  %s2612 = scalar_lea.sflag [#allocation3], 1
  %2613 = vsyncmov %s2612
  %s2614 = vpop.sfrf %2613
  %p2615 = scmp.eq.s32.totalorder %s2614, 0
  %p2616 = pneg %p2615
  %2618 = shalt.err (%p2616)

</llo_original>
